<compile_context>
chip_gen: v7x
topology: tpu7x:2x2x1
jax: 0.10.0
libtpu: 0.0.40
codegen_flags: <defaults>
</compile_context>

<pallas_src>
import functools
import math

import jax
import jax.numpy as jnp
from jax import lax
from jax.experimental import pallas as pl
from jax.experimental.pallas import tpu as pltpu


def _round_up(x, m):
    return (x + m - 1) // m * m


def _layernorm(x, g, b, eps):
    mu = jnp.mean(x, axis=-1, keepdims=True)
    var = jnp.mean((x - mu) ** 2, axis=-1, keepdims=True)
    return (x - mu) * lax.rsqrt(var + eps) * g + b


def _w_slab_layout(d, dh, nhid, nhead, align=16):
    """Row offsets of each matmul weight inside the packed bf16 per-layer slab.

    Every block starts at lane 0 and at a row offset aligned to 16 sublanes
    (the bf16 sublane-pack tile), so in-kernel Ref slices are tile-aligned.
    """
    ru = lambda v: _round_up(v, align)
    offs, r = {}, 0
    for hi in range(nhead):
        offs[("wq", hi)] = r; r += ru(d)
        offs[("wk", hi)] = r; r += ru(d)
        offs[("wv", hi)] = r; r += ru(d)
        offs[("wo", hi)] = r; r += ru(dh)
    offs["w1"] = r; r += ru(d)
    offs["w2"] = r; r += ru(nhid)
    return offs, r


# --------------------------- fused forward kernel ----------------------------

def _fused_tf_encoder_kernel(
        x_ref, misc_ref, ed_ref, w_ref, vec_ref, out_ref,
        *, nlayers, nhead, d, dh, nhid, c, hw, seq_pad, b_tile, eps):
    f32, bf16 = jnp.float32, jnp.bfloat16
    seq_valid = hw + 1                       # real tokens (pixels + point token)
    offs, _ = _w_slab_layout(d, dh, nhid, nhead)

    # ---- grid-invariant small tensors ----
    pe    = misc_ref[0:hw, :]                # (HW, D) f32
    enc_b = misc_ref[hw:hw + 1, :]           # (1, D)
    dec_b = misc_ref[hw + 1:hw + 2, :]       # (1, D)
    enc_w = ed_ref[0:c, :]                   # (C, D) bf16
    dec_w = ed_ref[c:c + d, :]               # (D, D) bf16

    # additive key-mask row: 0 for valid keys, -1e30 for padding columns
    col = lax.broadcasted_iota(jnp.int32, (1, seq_pad), 1)
    key_bias = jnp.where(col < seq_valid, 0.0, -1e30).astype(f32)   # (1, S_pad)

    # ---- encoder Linear(nchannel -> ninp) + 2-D PE; build folded token slab ----
    # Slab rows per batch element: [0, HW) pixel tokens, HW = zero point token,
    # (HW, seq_pad) = padding rows (excluded from keys & outputs; garbage there
    # is benign and never read back).
    pad_rows = jnp.zeros((seq_pad - hw, d), f32)
    parts = []
    for bi in range(b_tile):
        xb = x_ref[bi].astype(bf16)                                   # (HW, C)
        enc = jnp.dot(xb, enc_w, preferred_element_type=f32) + enc_b + pe
        parts.append(enc)
        parts.append(pad_rows)
    h2 = jnp.concatenate(parts, axis=0)      # (b_tile*S_pad, D) f32

    r_outb = 3 * nhead                       # row indices inside the vec slab
    r_b1, r_b2 = r_outb + 1, r_outb + 2
    r_g1, r_be1, r_g2, r_be2 = r_outb + 3, r_outb + 4, r_outb + 5, r_outb + 6

    # ---- TransformerEncoder layers (post-norm, ReLU, no dropout) ----
    for li in range(nlayers):
        # -------- multi-head self-attention --------
        h16 = h2.astype(bf16)
        q_h, k_h, v_h, wo_h = [], [], [], []
        for hi in range(nhead):
            wq = w_ref[li, offs[("wq", hi)]:offs[("wq", hi)] + d, 0:dh]   # pre-scaled
            wk = w_ref[li, offs[("wk", hi)]:offs[("wk", hi)] + d, 0:dh]
            wv = w_ref[li, offs[("wv", hi)]:offs[("wv", hi)] + d, 0:dh]
            wo_h.append(w_ref[li, offs[("wo", hi)]:offs[("wo", hi)] + dh, 0:d])
            bq = vec_ref[li, 3 * hi:3 * hi + 1, 0:dh]                     # pre-scaled
            bk = vec_ref[li, 3 * hi + 1:3 * hi + 2, 0:dh]
            bv = vec_ref[li, 3 * hi + 2:3 * hi + 3, 0:dh]
            q_h.append(jnp.dot(h16, wq, preferred_element_type=f32) + bq)
            k_h.append(jnp.dot(h16, wk, preferred_element_type=f32) + bk)
            v_h.append(jnp.dot(h16, wv, preferred_element_type=f32) + bv)

        out_b = vec_ref[li, r_outb:r_outb + 1, 0:d]                       # (1, D)
        attn_parts = []
        for bi in range(b_tile):
            r0 = bi * seq_pad                # vreg-aligned sublane slice per batch row
            acc = None
            for hi in range(nhead):
                qb = q_h[hi][r0:r0 + seq_pad].astype(bf16)       # (S, dh)
                kb = k_h[hi][r0:r0 + seq_pad].astype(bf16)
                vb = v_h[hi][r0:r0 + seq_pad].astype(bf16)
                s = lax.dot_general(qb, kb, (((1,), (1,)), ((), ())),
                                    preferred_element_type=f32)   # (S, S)
                s = s + key_bias
                m = jnp.max(s, axis=-1, keepdims=True)
                p = jnp.exp(s - m)
                p = p * pl.reciprocal(jnp.sum(p, axis=-1, keepdims=True), approx=True)
                ho = jnp.dot(p.astype(bf16), vb, preferred_element_type=f32)  # (S, dh)
                proj = jnp.dot(ho.astype(bf16), wo_h[hi],
                               preferred_element_type=f32)        # (S, D)
                acc = proj if acc is None else acc + proj
            attn_parts.append(acc)
        attn = jnp.concatenate(attn_parts, axis=0) + out_b        # (BT*S, D)

        g1 = vec_ref[li, r_g1:r_g1 + 1, 0:d]
        be1 = vec_ref[li, r_be1:r_be1 + 1, 0:d]
        h2 = _layernorm(h2 + attn, g1, be1, eps)                  # norm1(x + attn)

        # -------- feed-forward --------
        w1 = w_ref[li, offs["w1"]:offs["w1"] + d, 0:nhid]         # (D, nhid) bf16
        w2 = w_ref[li, offs["w2"]:offs["w2"] + nhid, 0:d]         # (nhid, D) bf16
        b1 = vec_ref[li, r_b1:r_b1 + 1, 0:nhid]
        b2 = vec_ref[li, r_b2:r_b2 + 1, 0:d]
        ff = jnp.dot(h2.astype(bf16), w1, preferred_element_type=f32) + b1
        ff = jnp.maximum(ff, 0.0)                                 # ReLU
        ff = jnp.dot(ff.astype(bf16), w2, preferred_element_type=f32) + b2

        g2 = vec_ref[li, r_g2:r_g2 + 1, 0:d]
        be2 = vec_ref[li, r_be2:r_be2 + 1, 0:d]
        h2 = _layernorm(h2 + ff, g2, be2, eps)                    # norm2(x + ff)

    # ---- decoder Linear(ninp -> ninp) + heads ----
    dec = jnp.dot(h2.astype(bf16), dec_w, preferred_element_type=f32) + dec_b

    for bi in range(b_tile):
        db = dec[bi * seq_pad:(bi + 1) * seq_pad]                 # (S_pad, D)
        # spatial softmax over the H*W pixel tokens, per channel (exact divide)
        xs = db[0:hw]
        m = jnp.max(xs, axis=0, keepdims=True)
        e = jnp.exp(xs - m)
        out_ref[bi, 0:hw, :] = e / jnp.sum(e, axis=0, keepdims=True)
        # point_state = sigmoid(point token)   (stable tanh formulation)
        pt = db[hw:hw + 1]
        out_ref[bi, hw:hw + 1, :] = 0.5 * (jnp.tanh(0.5 * pt) + 1.0)
        # rows [hw+1, seq_pad) of the output block stay as padding (sliced off).


# ------------------------------ parameter packing -----------------------------

def pack_params(params, *, nhead, h, w):
    """One-time packing of all parameters into 4 lane/sublane-aligned slabs."""
    enc_w_t = params["enc_w_t"]
    c, d = enc_w_t.shape
    nhid = params["w1_t"].shape[2]
    nlayers = params["in_w_t"].shape[0]
    dh = d // nhead
    scale = 1.0 / math.sqrt(dh)
    hw = h * w
    cw = max(d, nhid, dh)
    offs, rw = _w_slab_layout(d, dh, nhid, nhead)

    w_slab = jnp.zeros((nlayers, rw, cw), jnp.float32)
    vec_rows = 3 * nhead + 7
    vec_slab = jnp.zeros((nlayers, _round_up(vec_rows, 8), cw), jnp.float32)

    for li in range(nlayers):
        inw, outw = params["in_w_t"][li], params["out_w_t"][li]
        inb = params["in_b"][li][0]
        for hi in range(nhead):
            s0, s1 = hi * dh, (hi + 1) * dh
            # score scale folded into Wq / bq (pack-time, zero kernel cost)
            w_slab = w_slab.at[li, offs[("wq", hi)]:offs[("wq", hi)] + d, 0:dh].set(
                inw[:, s0:s1] * scale)
            w_slab = w_slab.at[li, offs[("wk", hi)]:offs[("wk", hi)] + d, 0:dh].set(
                inw[:, d + s0:d + s1])
            w_slab = w_slab.at[li, offs[("wv", hi)]:offs[("wv", hi)] + d, 0:dh].set(
                inw[:, 2 * d + s0:2 * d + s1])
            w_slab = w_slab.at[li, offs[("wo", hi)]:offs[("wo", hi)] + dh, 0:d].set(
                outw[s0:s1, :])
            vec_slab = vec_slab.at[li, 3 * hi, 0:dh].set(inb[s0:s1] * scale)
            vec_slab = vec_slab.at[li, 3 * hi + 1, 0:dh].set(inb[d + s0:d + s1])
            vec_slab = vec_slab.at[li, 3 * hi + 2, 0:dh].set(inb[2 * d + s0:2 * d + s1])
        w_slab = w_slab.at[li, offs["w1"]:offs["w1"] + d, 0:nhid].set(params["w1_t"][li])
        w_slab = w_slab.at[li, offs["w2"]:offs["w2"] + nhid, 0:d].set(params["w2_t"][li])
        r = 3 * nhead
        vec_slab = vec_slab.at[li, r, 0:d].set(params["out_b"][li][0])
        vec_slab = vec_slab.at[li, r + 1, 0:nhid].set(params["b1"][li][0])
        vec_slab = vec_slab.at[li, r + 2, 0:d].set(params["b2"][li][0])
        vec_slab = vec_slab.at[li, r + 3, 0:d].set(params["g1"][li][0])
        vec_slab = vec_slab.at[li, r + 4, 0:d].set(params["be1"][li][0])
        vec_slab = vec_slab.at[li, r + 5, 0:d].set(params["g2"][li][0])
        vec_slab = vec_slab.at[li, r + 6, 0:d].set(params["be2"][li][0])

    w_slab = w_slab.astype(jnp.bfloat16)                     # MXU operands in bf16

    # misc (f32): per-pixel PE rows + encoder/decoder biases, padded to 8 rows
    pe_tok = jnp.transpose(params["pe"][:, :h, :w].reshape(d, hw), (1, 0))  # (HW, D)
    misc = jnp.concatenate([pe_tok, params["enc_b"], params["dec_b"]], axis=0)
    pad = _round_up(misc.shape[0], 8) - misc.shape[0]
    if pad:
        misc = jnp.concatenate([misc, jnp.zeros((pad, d), jnp.float32)], axis=0)

    # encoder / decoder weights (bf16)
    ed = jnp.concatenate([enc_w_t, params["dec_w_t"]], axis=0)
    pad = _round_up(ed.shape[0], 8) - ed.shape[0]
    if pad:
        ed = jnp.concatenate([ed, jnp.zeros((pad, d), jnp.float32)], axis=0)
    ed = ed.astype(jnp.bfloat16)

    return misc, ed, w_slab, vec_slab


# ---------------------------------- forward ----------------------------------

def tf_encoder_forward(x, misc, ed, w_slab, vec_slab, *, nhead, nhid):
    """Fused Pallas forward. x: (B, C, H, W). Returns ((B, ninp, H, W), (B, ninp))."""
    b, c, h, w = x.shape
    d = ed.shape[1]
    hw = h * w
    seq_pad = _round_up(hw + 1, 8)
    nlayers = w_slab.shape[0]
    dh = d // nhead

    # layout plumbing: NCHW -> (B, H*W, C) tokens (matches reshape(B, C, H*W) order)
    x_tok = jnp.transpose(x, (0, 2, 3, 1)).reshape(b, hw, c)

    # batch folding: keep 2 grid steps so both v7x TensorCores are busy;
    # on single-TC chips (v5e/v6e) n_steps = 1 (b_tile = B) is marginally better.
    n_steps = 2 if (b >= 2 and b % 2 == 0) else 1
    b_tile = b // n_steps

    kernel = functools.partial(
        _fused_tf_encoder_kernel, nlayers=nlayers, nhead=nhead, d=d, dh=dh,
        nhid=nhid, c=c, hw=hw, seq_pad=seq_pad, b_tile=b_tile, eps=1e-5)

    def full_spec(a):
        nd = a.ndim
        return pl.BlockSpec(a.shape, lambda *_: (0,) * nd)

    out = pl.pallas_call(
        kernel,
        grid=(n_steps,),
        in_specs=[pl.BlockSpec((b_tile, hw, c), lambda i: (i, 0, 0)),
                  full_spec(misc), full_spec(ed),
                  full_spec(w_slab), full_spec(vec_slab)],
        out_specs=pl.BlockSpec((b_tile, seq_pad, d), lambda i: (i, 0, 0)),
        out_shape=jax.ShapeDtypeStruct((b, seq_pad, d), jnp.float32),
        compiler_params=pltpu.CompilerParams(
            dimension_semantics=("parallel",),
            vmem_limit_bytes=32 * 1024 * 1024),
    )(x_tok, misc, ed, w_slab, vec_slab)

    x_map = jnp.transpose(out[:, :hw, :], (0, 2, 1)).reshape(b, d, h, w)
    point_state = out[:, hw, :]
    return x_map, point_state


# ------------------------ parameters / buffers (glue) ------------------------

def make_pe_2d(d_model, max_h=32, max_w=32):
    """2-D sinusoidal positional encoding, identical to PositionalEncoding2d."""
    pe = jnp.zeros((d_model, max_h, max_w), jnp.float32)
    dm = d_model // 2
    pos_h = jnp.arange(max_h, dtype=jnp.float32)[:, None]
    pos_w = jnp.arange(max_w, dtype=jnp.float32)[:, None]
    div_term = jnp.exp(jnp.arange(0, dm, 2, dtype=jnp.float32)
                       * (-math.log(10000.0) / dm))
    sw = jnp.sin(pos_w * div_term).T
    cw = jnp.cos(pos_w * div_term).T
    sh = jnp.sin(pos_h * div_term).T
    ch = jnp.cos(pos_h * div_term).T
    pe = pe.at[0:dm:2, :, :].set(
        jnp.broadcast_to(sw[:, None, :], (sw.shape[0], max_h, max_w)))
    pe = pe.at[1:dm:2, :, :].set(
        jnp.broadcast_to(cw[:, None, :], (cw.shape[0], max_h, max_w)))
    pe = pe.at[dm::2, :, :].set(
        jnp.broadcast_to(sh[:, :, None], (sh.shape[0], max_h, max_w)))
    pe = pe.at[dm + 1::2, :, :].set(
        jnp.broadcast_to(ch[:, :, None], (ch.shape[0], max_h, max_w)))
    return pe


def init_params(key, nchannel, ninp, nhead, nhid, nlayers, max_h=32, max_w=32):
    def u(k, shape, a):
        return jax.random.uniform(k, shape, jnp.float32, minval=-a, maxval=a)

    keys = jax.random.split(key, 2 + nlayers)
    enc_w = u(keys[0], (ninp, nchannel), 0.1)        # init_weights: U(-0.1, 0.1)
    enc_b = jnp.zeros((ninp,), jnp.float32)
    dec_w = u(keys[1], (ninp, ninp), 0.1)
    dec_b = jnp.zeros((ninp,), jnp.float32)

    in_w, in_b, out_w, out_b = [], [], [], []
    w1, b1, w2, b2 = [], [], [], []
    for li in range(nlayers):
        lk = jax.random.split(keys[2 + li], 6)
        in_w.append(u(lk[0], (3 * ninp, ninp), 1.0 / math.sqrt(ninp)))
        in_b.append(u(lk[1], (3 * ninp,), 0.05))
        out_w.append(u(lk[2], (ninp, ninp), 1.0 / math.sqrt(ninp)))
        out_b.append(jnp.zeros((ninp,), jnp.float32))
        w1.append(u(lk[3], (nhid, ninp), 1.0 / math.sqrt(ninp)))
        b1.append(u(lk[4], (nhid,), 0.05))
        w2.append(u(lk[5], (ninp, nhid), 1.0 / math.sqrt(nhid)))
        b2.append(jnp.zeros((ninp,), jnp.float32))

    stk = lambda xs: jnp.stack(xs, axis=0)
    return dict(
        enc_w_t=enc_w.T, enc_b=enc_b.reshape(1, ninp),
        dec_w_t=dec_w.T, dec_b=dec_b.reshape(1, ninp),
        in_w_t=stk([m.T for m in in_w]),                  # (L, D, 3D)
        in_b=stk([v.reshape(1, -1) for v in in_b]),       # (L, 1, 3D)
        out_w_t=stk([m.T for m in out_w]),                # (L, D, D)
        out_b=stk([v.reshape(1, -1) for v in out_b]),
        w1_t=stk([m.T for m in w1]),                      # (L, D, nhid)
        b1=stk([v.reshape(1, -1) for v in b1]),
        w2_t=stk([m.T for m in w2]),                      # (L, nhid, D)
        b2=stk([v.reshape(1, -1) for v in b2]),
        g1=jnp.ones((nlayers, 1, ninp), jnp.float32),
        be1=jnp.zeros((nlayers, 1, ninp), jnp.float32),
        g2=jnp.ones((nlayers, 1, ninp), jnp.float32),
        be2=jnp.zeros((nlayers, 1, ninp), jnp.float32),
        pe=make_pe_2d(ninp, max_h, max_w),
    )


# ---------------------------- pure-JAX reference -----------------------------

def _ln_ref(x, g, beta, eps=1e-5):
    mu = jnp.mean(x, axis=-1, keepdims=True)
    var = jnp.mean((x - mu) ** 2, axis=-1, keepdims=True)
    return (x - mu) / jnp.sqrt(var + eps) * g + beta


def ref_forward(x, params, *, nhead):
    b, c, h, w = x.shape
    d = params["enc_w_t"].shape[1]
    dh = d // nhead
    nlayers = params["in_w_t"].shape[0]

    xt = jnp.transpose(x, (0, 2, 3, 1)) @ params["enc_w_t"] + params["enc_b"][0]
    xt = jnp.transpose(xt, (0, 3, 1, 2)) + params["pe"][:, :h, :w][None]
    seq = xt.reshape(b, c, -1)
    seq = jnp.concatenate([seq, jnp.zeros((b, c, 1), jnp.float32)], axis=2)
    hseq = jnp.transpose(seq, (2, 0, 1))                  # (S, B, D)
    s = hseq.shape[0]
    for li in range(nlayers):
        h2 = hseq.reshape(s * b, d)
        qkv = h2 @ params["in_w_t"][li] + params["in_b"][li][0]
        q, k, v = jnp.split(qkv, 3, axis=1)

        def heads(t):
            return t.reshape(s, b, nhead, dh).transpose(1, 2, 0, 3)

        qh, kh, vh = heads(q), heads(k), heads(v)
        sc = jnp.einsum("bhqd,bhkd->bhqk", qh, kh) / math.sqrt(dh)
        p = jax.nn.softmax(sc, axis=-1)
        o = jnp.einsum("bhqk,bhkd->bhqd", p, vh)
        o = o.transpose(2, 0, 1, 3).reshape(s * b, d)
        o = o @ params["out_w_t"][li] + params["out_b"][li][0]
        h2 = _ln_ref(h2 + o, params["g1"][li][0], params["be1"][li][0])
        ff = jnp.maximum(h2 @ params["w1_t"][li] + params["b1"][li][0], 0.0)
        ff = ff @ params["w2_t"][li] + params["b2"][li][0]
        h2 = _ln_ref(h2 + ff, params["g2"][li][0], params["be2"][li][0])
        hseq = h2.reshape(s, b, d)
    dec = (hseq.reshape(s * b, d) @ params["dec_w_t"]
           + params["dec_b"][0]).reshape(s, b, d)
    ps = jax.nn.sigmoid(dec[-1])
    xo = dec[:-1].transpose(1, 2, 0)
    xo = jax.nn.softmax(xo, axis=-1).reshape(b, d, h, w)
    return xo, ps


# ------------------------------------ main ------------------------------------

if __name__ == "__main__":
    # Small shapes; the module's forward requires nchannel == ninp.
    B, nchannel, H, W = 4, 16, 8, 8
    ninp, nhead, nhid, nlayers = 16, 2, 32, 2
    assert nchannel == ninp

    key = jax.random.PRNGKey(0)
    kx, kp = jax.random.split(key)
    x = jax.random.normal(kx, (B, nchannel, H, W), jnp.float32)
    params = init_params(kp, nchannel, ninp, nhead, nhid, nlayers)
    packed = pack_params(params, nhead=nhead, h=H, w=W)   # one-time packing

    fwd = jax.jit(functools.partial(tf_encoder_forward, nhead=nhead, nhid=nhid))
    out, point_state = fwd(x, *packed)
    jax.block_until_ready((out, point_state))

    ref_out, ref_ps = ref_forward(x, params, nhead=nhead)
    assert out.shape == (B, ninp, H, W)
    assert point_state.shape == (B, ninp)
    assert bool(jnp.allclose(out, ref_out, rtol=2e-2, atol=2e-3)), "spatial map mismatch"
    assert bool(jnp.allclose(point_state, ref_ps, rtol=2e-2, atol=2e-3)), "point state mismatch"
    # spatial softmax rows must sum to 1
    assert bool(jnp.allclose(out.reshape(B, ninp, -1).sum(-1), 1.0, atol=1e-4))

    print("KERNEL_OK")
</pallas_src>

<mosaic_0001>
module attributes {stable_mosaic.version = 11 : i64} {
  func.func @_fused_tf_encoder_kernel(%arg0: i32, %arg1: memref<2x64x16xf32, #tpu.memory_space<vmem>>, %arg2: memref<72x16xf32, #tpu.memory_space<vmem>>, %arg3: memref<32x16xbf16, #tpu.memory_space<vmem>>, %arg4: memref<2x176x32xbf16, #tpu.memory_space<vmem>>, %arg5: memref<2x16x32xf32, #tpu.memory_space<vmem>>, %arg6: memref<2x72x16xf32, #tpu.memory_space<vmem>>) attributes {dimension_semantics = [#tpu.dimension_semantics<parallel>], iteration_bounds = array<i64: 2>, scalar_prefetch = 0 : i64, scratch_operands = 0 : i64, tpu.core_type = #tpu.core_type<tc>, window_params = [{transform_indices = @transform_0, window_bounds = array<i64: 2, 64, 16>}, {pipeline_mode = #tpu.pipeline_mode<synchronous>, transform_indices = @transform_1, window_bounds = array<i64: 72, 16>}, {pipeline_mode = #tpu.pipeline_mode<synchronous>, transform_indices = @transform_2, window_bounds = array<i64: 32, 16>}, {pipeline_mode = #tpu.pipeline_mode<synchronous>, transform_indices = @transform_3, window_bounds = array<i64: 2, 176, 32>}, {pipeline_mode = #tpu.pipeline_mode<synchronous>, transform_indices = @transform_4, window_bounds = array<i64: 2, 16, 32>}, {transform_indices = @transform_5, window_bounds = array<i64: 2, 72, 16>}]} {
    %c0 = arith.constant 0 : index
    %c0_0 = arith.constant 0 : index
    %0 = vector.load %arg2[%c0, %c0_0] : memref<72x16xf32, #tpu.memory_space<vmem>>, vector<64x16xf32>
    %c64 = arith.constant 64 : index
    %c0_1 = arith.constant 0 : index
    %1 = vector.load %arg2[%c64, %c0_1] : memref<72x16xf32, #tpu.memory_space<vmem>>, vector<1x16xf32>
    %c65 = arith.constant 65 : index
    %c0_2 = arith.constant 0 : index
    %2 = vector.load %arg2[%c65, %c0_2] : memref<72x16xf32, #tpu.memory_space<vmem>>, vector<1x16xf32>
    %c0_3 = arith.constant 0 : index
    %c0_4 = arith.constant 0 : index
    %3 = vector.load %arg3[%c0_3, %c0_4] : memref<32x16xbf16, #tpu.memory_space<vmem>>, vector<16x16xbf16>
    %c16 = arith.constant 16 : index
    %c0_5 = arith.constant 0 : index
    %4 = vector.load %arg3[%c16, %c0_5] : memref<32x16xbf16, #tpu.memory_space<vmem>>, vector<16x16xbf16>
    %5 = tpu.iota {dimensions = array<i32: 1>} : vector<1x72xi32>
    %c65_i32 = arith.constant 65 : i32
    %6 = vector.broadcast %c65_i32 : i32 to vector<1x72xi32>
    %7 = arith.cmpi slt, %5, %6 : vector<1x72xi32>
    %cst = arith.constant 0.000000e+00 : f32
    %cst_6 = arith.constant -1.000000e+30 : f32
    %8 = vector.broadcast %cst : f32 to vector<1x72xf32>
    %9 = vector.broadcast %cst_6 : f32 to vector<1x72xf32>
    %10 = arith.select %7, %8, %9 : vector<1x72xi1>, vector<1x72xf32>
    %cst_7 = arith.constant 0.000000e+00 : f32
    %11 = vector.broadcast %cst_7 : f32 to vector<8x16xf32>
    %c0_8 = arith.constant 0 : index
    %c0_9 = arith.constant 0 : index
    %c0_10 = arith.constant 0 : index
    %12 = vector.load %arg1[%c0_8, %c0_9, %c0_10] : memref<2x64x16xf32, #tpu.memory_space<vmem>>, vector<1x64x16xf32>
    %13 = vector.shape_cast %12 : vector<1x64x16xf32> to vector<64x16xf32>
    %14 = arith.truncf %13 : vector<64x16xf32> to vector<64x16xbf16>
    %cst_11 = arith.constant dense<0.000000e+00> : vector<64x16xf32>
    %15 = tpu.matmul %14, %3, %cst_11 {dimension_numbers = #tpu.dot_dimension_numbers<[1], [0], [0], [1], [0, 0, 1, 1], [], []>} : vector<64x16xbf16>, vector<16x16xbf16>, vector<64x16xf32> -> vector<64x16xf32>
    %16 = vector.broadcast %1 : vector<1x16xf32> to vector<64x16xf32>
    %17 = arith.addf %15, %16 : vector<64x16xf32>
    %18 = arith.addf %17, %0 : vector<64x16xf32>
    %c1 = arith.constant 1 : index
    %c0_12 = arith.constant 0 : index
    %c0_13 = arith.constant 0 : index
    %19 = vector.load %arg1[%c1, %c0_12, %c0_13] : memref<2x64x16xf32, #tpu.memory_space<vmem>>, vector<1x64x16xf32>
    %20 = vector.shape_cast %19 : vector<1x64x16xf32> to vector<64x16xf32>
    %21 = arith.truncf %20 : vector<64x16xf32> to vector<64x16xbf16>
    %cst_14 = arith.constant dense<0.000000e+00> : vector<64x16xf32>
    %22 = tpu.matmul %21, %3, %cst_14 {dimension_numbers = #tpu.dot_dimension_numbers<[1], [0], [0], [1], [0, 0, 1, 1], [], []>} : vector<64x16xbf16>, vector<16x16xbf16>, vector<64x16xf32> -> vector<64x16xf32>
    %23 = vector.broadcast %1 : vector<1x16xf32> to vector<64x16xf32>
    %24 = arith.addf %22, %23 : vector<64x16xf32>
    %25 = arith.addf %24, %0 : vector<64x16xf32>
    %26 = tpu.concatenate %18, %11, %25, %11 in 0 : vector<64x16xf32>, vector<8x16xf32>, vector<64x16xf32>, vector<8x16xf32> -> vector<144x16xf32>
    %27 = arith.truncf %26 : vector<144x16xf32> to vector<144x16xbf16>
    %c0_15 = arith.constant 0 : index
    %c0_16 = arith.constant 0 : index
    %c0_17 = arith.constant 0 : index
    %28 = vector.load %arg4[%c0_15, %c0_16, %c0_17] : memref<2x176x32xbf16, #tpu.memory_space<vmem>>, vector<1x16x8xbf16>
    %29 = vector.shape_cast %28 : vector<1x16x8xbf16> to vector<16x8xbf16>
    %c0_18 = arith.constant 0 : index
    %c16_19 = arith.constant 16 : index
    %c0_20 = arith.constant 0 : index
    %30 = vector.load %arg4[%c0_18, %c16_19, %c0_20] : memref<2x176x32xbf16, #tpu.memory_space<vmem>>, vector<1x16x8xbf16>
    %31 = vector.shape_cast %30 : vector<1x16x8xbf16> to vector<16x8xbf16>
    %c0_21 = arith.constant 0 : index
    %c32 = arith.constant 32 : index
    %c0_22 = arith.constant 0 : index
    %32 = vector.load %arg4[%c0_21, %c32, %c0_22] : memref<2x176x32xbf16, #tpu.memory_space<vmem>>, vector<1x16x8xbf16>
    %33 = vector.shape_cast %32 : vector<1x16x8xbf16> to vector<16x8xbf16>
    %c0_23 = arith.constant 0 : index
    %c48 = arith.constant 48 : index
    %c0_24 = arith.constant 0 : index
    %34 = vector.load %arg4[%c0_23, %c48, %c0_24] : memref<2x176x32xbf16, #tpu.memory_space<vmem>>, vector<1x8x16xbf16>
    %35 = vector.shape_cast %34 : vector<1x8x16xbf16> to vector<8x16xbf16>
    %c0_25 = arith.constant 0 : index
    %c0_26 = arith.constant 0 : index
    %c0_27 = arith.constant 0 : index
    %36 = vector.load %arg5[%c0_25, %c0_26, %c0_27] : memref<2x16x32xf32, #tpu.memory_space<vmem>>, vector<1x1x8xf32>
    %37 = vector.shape_cast %36 : vector<1x1x8xf32> to vector<1x8xf32>
    %c0_28 = arith.constant 0 : index
    %c1_29 = arith.constant 1 : index
    %c0_30 = arith.constant 0 : index
    %38 = vector.load %arg5[%c0_28, %c1_29, %c0_30] : memref<2x16x32xf32, #tpu.memory_space<vmem>>, vector<1x1x8xf32>
    %39 = vector.shape_cast %38 : vector<1x1x8xf32> to vector<1x8xf32>
    %c0_31 = arith.constant 0 : index
    %c2 = arith.constant 2 : index
    %c0_32 = arith.constant 0 : index
    %40 = vector.load %arg5[%c0_31, %c2, %c0_32] : memref<2x16x32xf32, #tpu.memory_space<vmem>>, vector<1x1x8xf32>
    %41 = vector.shape_cast %40 : vector<1x1x8xf32> to vector<1x8xf32>
    %cst_33 = arith.constant dense<0.000000e+00> : vector<144x8xf32>
    %42 = tpu.matmul %27, %29, %cst_33 {dimension_numbers = #tpu.dot_dimension_numbers<[1], [0], [0], [1], [0, 0, 1, 1], [], []>} : vector<144x16xbf16>, vector<16x8xbf16>, vector<144x8xf32> -> vector<144x8xf32>
    %43 = vector.broadcast %37 : vector<1x8xf32> to vector<144x8xf32>
    %44 = arith.addf %42, %43 : vector<144x8xf32>
    %cst_34 = arith.constant dense<0.000000e+00> : vector<144x8xf32>
    %45 = tpu.matmul %27, %31, %cst_34 {dimension_numbers = #tpu.dot_dimension_numbers<[1], [0], [0], [1], [0, 0, 1, 1], [], []>} : vector<144x16xbf16>, vector<16x8xbf16>, vector<144x8xf32> -> vector<144x8xf32>
    %46 = vector.broadcast %39 : vector<1x8xf32> to vector<144x8xf32>
    %47 = arith.addf %45, %46 : vector<144x8xf32>
    %cst_35 = arith.constant dense<0.000000e+00> : vector<144x8xf32>
    %48 = tpu.matmul %27, %33, %cst_35 {dimension_numbers = #tpu.dot_dimension_numbers<[1], [0], [0], [1], [0, 0, 1, 1], [], []>} : vector<144x16xbf16>, vector<16x8xbf16>, vector<144x8xf32> -> vector<144x8xf32>
    %49 = vector.broadcast %41 : vector<1x8xf32> to vector<144x8xf32>
    %50 = arith.addf %48, %49 : vector<144x8xf32>
    %c0_36 = arith.constant 0 : index
    %c64_37 = arith.constant 64 : index
    %c0_38 = arith.constant 0 : index
    %51 = vector.load %arg4[%c0_36, %c64_37, %c0_38] : memref<2x176x32xbf16, #tpu.memory_space<vmem>>, vector<1x16x8xbf16>
    %52 = vector.shape_cast %51 : vector<1x16x8xbf16> to vector<16x8xbf16>
    %c0_39 = arith.constant 0 : index
    %c80 = arith.constant 80 : index
    %c0_40 = arith.constant 0 : index
    %53 = vector.load %arg4[%c0_39, %c80, %c0_40] : memref<2x176x32xbf16, #tpu.memory_space<vmem>>, vector<1x16x8xbf16>
    %54 = vector.shape_cast %53 : vector<1x16x8xbf16> to vector<16x8xbf16>
    %c0_41 = arith.constant 0 : index
    %c96 = arith.constant 96 : index
    %c0_42 = arith.constant 0 : index
    %55 = vector.load %arg4[%c0_41, %c96, %c0_42] : memref<2x176x32xbf16, #tpu.memory_space<vmem>>, vector<1x16x8xbf16>
    %56 = vector.shape_cast %55 : vector<1x16x8xbf16> to vector<16x8xbf16>
    %c0_43 = arith.constant 0 : index
    %c112 = arith.constant 112 : index
    %c0_44 = arith.constant 0 : index
    %57 = vector.load %arg4[%c0_43, %c112, %c0_44] : memref<2x176x32xbf16, #tpu.memory_space<vmem>>, vector<1x8x16xbf16>
    %58 = vector.shape_cast %57 : vector<1x8x16xbf16> to vector<8x16xbf16>
    %c0_45 = arith.constant 0 : index
    %c3 = arith.constant 3 : index
    %c0_46 = arith.constant 0 : index
    %59 = vector.load %arg5[%c0_45, %c3, %c0_46] : memref<2x16x32xf32, #tpu.memory_space<vmem>>, vector<1x1x8xf32>
    %60 = vector.shape_cast %59 : vector<1x1x8xf32> to vector<1x8xf32>
    %c0_47 = arith.constant 0 : index
    %c4 = arith.constant 4 : index
    %c0_48 = arith.constant 0 : index
    %61 = vector.load %arg5[%c0_47, %c4, %c0_48] : memref<2x16x32xf32, #tpu.memory_space<vmem>>, vector<1x1x8xf32>
    %62 = vector.shape_cast %61 : vector<1x1x8xf32> to vector<1x8xf32>
    %c0_49 = arith.constant 0 : index
    %c5 = arith.constant 5 : index
    %c0_50 = arith.constant 0 : index
    %63 = vector.load %arg5[%c0_49, %c5, %c0_50] : memref<2x16x32xf32, #tpu.memory_space<vmem>>, vector<1x1x8xf32>
    %64 = vector.shape_cast %63 : vector<1x1x8xf32> to vector<1x8xf32>
    %cst_51 = arith.constant dense<0.000000e+00> : vector<144x8xf32>
    %65 = tpu.matmul %27, %52, %cst_51 {dimension_numbers = #tpu.dot_dimension_numbers<[1], [0], [0], [1], [0, 0, 1, 1], [], []>} : vector<144x16xbf16>, vector<16x8xbf16>, vector<144x8xf32> -> vector<144x8xf32>
    %66 = vector.broadcast %60 : vector<1x8xf32> to vector<144x8xf32>
    %67 = arith.addf %65, %66 : vector<144x8xf32>
    %cst_52 = arith.constant dense<0.000000e+00> : vector<144x8xf32>
    %68 = tpu.matmul %27, %54, %cst_52 {dimension_numbers = #tpu.dot_dimension_numbers<[1], [0], [0], [1], [0, 0, 1, 1], [], []>} : vector<144x16xbf16>, vector<16x8xbf16>, vector<144x8xf32> -> vector<144x8xf32>
    %69 = vector.broadcast %62 : vector<1x8xf32> to vector<144x8xf32>
    %70 = arith.addf %68, %69 : vector<144x8xf32>
    %cst_53 = arith.constant dense<0.000000e+00> : vector<144x8xf32>
    %71 = tpu.matmul %27, %56, %cst_53 {dimension_numbers = #tpu.dot_dimension_numbers<[1], [0], [0], [1], [0, 0, 1, 1], [], []>} : vector<144x16xbf16>, vector<16x8xbf16>, vector<144x8xf32> -> vector<144x8xf32>
    %72 = vector.broadcast %64 : vector<1x8xf32> to vector<144x8xf32>
    %73 = arith.addf %71, %72 : vector<144x8xf32>
    %c0_54 = arith.constant 0 : index
    %c6 = arith.constant 6 : index
    %c0_55 = arith.constant 0 : index
    %74 = vector.load %arg5[%c0_54, %c6, %c0_55] : memref<2x16x32xf32, #tpu.memory_space<vmem>>, vector<1x1x16xf32>
    %75 = vector.shape_cast %74 : vector<1x1x16xf32> to vector<1x16xf32>
    %76 = vector.extract_strided_slice %44 {offsets = [0, 0], sizes = [72, 8], strides = [1, 1]} : vector<144x8xf32> to vector<72x8xf32>
    %77 = arith.truncf %76 : vector<72x8xf32> to vector<72x8xbf16>
    %78 = vector.extract_strided_slice %47 {offsets = [0, 0], sizes = [72, 8], strides = [1, 1]} : vector<144x8xf32> to vector<72x8xf32>
    %79 = arith.truncf %78 : vector<72x8xf32> to vector<72x8xbf16>
    %80 = vector.extract_strided_slice %50 {offsets = [0, 0], sizes = [72, 8], strides = [1, 1]} : vector<144x8xf32> to vector<72x8xf32>
    %81 = arith.truncf %80 : vector<72x8xf32> to vector<72x8xbf16>
    %cst_56 = arith.constant dense<0.000000e+00> : vector<72x72xf32>
    %82 = tpu.matmul %77, %79, %cst_56 {dimension_numbers = #tpu.dot_dimension_numbers<[1], [1], [0], [0], [0, 0, 1, 0], [], []>} : vector<72x8xbf16>, vector<72x8xbf16>, vector<72x72xf32> -> vector<72x72xf32>
    %83 = vector.broadcast %10 : vector<1x72xf32> to vector<72x72xf32>
    %84 = arith.addf %82, %83 : vector<72x72xf32>
    %cst_57 = arith.constant dense<0xFF800000> : vector<72xf32>
    %85 = vector.multi_reduction <maximumf>, %84, %cst_57 [1] : vector<72x72xf32> to vector<72xf32>
    %86 = vector.shape_cast %85 : vector<72xf32> to vector<72x1xf32>
    %87 = vector.broadcast %86 : vector<72x1xf32> to vector<72x72xf32>
    %88 = arith.subf %84, %87 : vector<72x72xf32>
    %89 = math.exp %88 : vector<72x72xf32>
    %cst_58 = arith.constant dense<0.000000e+00> : vector<72xf32>
    %90 = vector.multi_reduction <add>, %89, %cst_58 [1] : vector<72x72xf32> to vector<72xf32>
    %91 = vector.shape_cast %90 : vector<72xf32> to vector<72x1xf32>
    %92 = tpu.reciprocal %91 {approx = true} : vector<72x1xf32> -> vector<72x1xf32>
    %93 = vector.broadcast %92 : vector<72x1xf32> to vector<72x72xf32>
    %94 = arith.mulf %89, %93 : vector<72x72xf32>
    %95 = arith.truncf %94 : vector<72x72xf32> to vector<72x72xbf16>
    %cst_59 = arith.constant dense<0.000000e+00> : vector<72x8xf32>
    %96 = tpu.matmul %95, %81, %cst_59 {dimension_numbers = #tpu.dot_dimension_numbers<[1], [0], [0], [1], [0, 0, 1, 1], [], []>} : vector<72x72xbf16>, vector<72x8xbf16>, vector<72x8xf32> -> vector<72x8xf32>
    %97 = arith.truncf %96 : vector<72x8xf32> to vector<72x8xbf16>
    %cst_60 = arith.constant dense<0.000000e+00> : vector<72x16xf32>
    %98 = tpu.matmul %97, %35, %cst_60 {dimension_numbers = #tpu.dot_dimension_numbers<[1], [0], [0], [1], [0, 0, 1, 1], [], []>} : vector<72x8xbf16>, vector<8x16xbf16>, vector<72x16xf32> -> vector<72x16xf32>
    %99 = vector.extract_strided_slice %67 {offsets = [0, 0], sizes = [72, 8], strides = [1, 1]} : vector<144x8xf32> to vector<72x8xf32>
    %100 = arith.truncf %99 : vector<72x8xf32> to vector<72x8xbf16>
    %101 = vector.extract_strided_slice %70 {offsets = [0, 0], sizes = [72, 8], strides = [1, 1]} : vector<144x8xf32> to vector<72x8xf32>
    %102 = arith.truncf %101 : vector<72x8xf32> to vector<72x8xbf16>
    %103 = vector.extract_strided_slice %73 {offsets = [0, 0], sizes = [72, 8], strides = [1, 1]} : vector<144x8xf32> to vector<72x8xf32>
    %104 = arith.truncf %103 : vector<72x8xf32> to vector<72x8xbf16>
    %cst_61 = arith.constant dense<0.000000e+00> : vector<72x72xf32>
    %105 = tpu.matmul %100, %102, %cst_61 {dimension_numbers = #tpu.dot_dimension_numbers<[1], [1], [0], [0], [0, 0, 1, 0], [], []>} : vector<72x8xbf16>, vector<72x8xbf16>, vector<72x72xf32> -> vector<72x72xf32>
    %106 = vector.broadcast %10 : vector<1x72xf32> to vector<72x72xf32>
    %107 = arith.addf %105, %106 : vector<72x72xf32>
    %cst_62 = arith.constant dense<0xFF800000> : vector<72xf32>
    %108 = vector.multi_reduction <maximumf>, %107, %cst_62 [1] : vector<72x72xf32> to vector<72xf32>
    %109 = vector.shape_cast %108 : vector<72xf32> to vector<72x1xf32>
    %110 = vector.broadcast %109 : vector<72x1xf32> to vector<72x72xf32>
    %111 = arith.subf %107, %110 : vector<72x72xf32>
    %112 = math.exp %111 : vector<72x72xf32>
    %cst_63 = arith.constant dense<0.000000e+00> : vector<72xf32>
    %113 = vector.multi_reduction <add>, %112, %cst_63 [1] : vector<72x72xf32> to vector<72xf32>
    %114 = vector.shape_cast %113 : vector<72xf32> to vector<72x1xf32>
    %115 = tpu.reciprocal %114 {approx = true} : vector<72x1xf32> -> vector<72x1xf32>
    %116 = vector.broadcast %115 : vector<72x1xf32> to vector<72x72xf32>
    %117 = arith.mulf %112, %116 : vector<72x72xf32>
    %118 = arith.truncf %117 : vector<72x72xf32> to vector<72x72xbf16>
    %cst_64 = arith.constant dense<0.000000e+00> : vector<72x8xf32>
    %119 = tpu.matmul %118, %104, %cst_64 {dimension_numbers = #tpu.dot_dimension_numbers<[1], [0], [0], [1], [0, 0, 1, 1], [], []>} : vector<72x72xbf16>, vector<72x8xbf16>, vector<72x8xf32> -> vector<72x8xf32>
    %120 = arith.truncf %119 : vector<72x8xf32> to vector<72x8xbf16>
    %cst_65 = arith.constant dense<0.000000e+00> : vector<72x16xf32>
    %121 = tpu.matmul %120, %58, %cst_65 {dimension_numbers = #tpu.dot_dimension_numbers<[1], [0], [0], [1], [0, 0, 1, 1], [], []>} : vector<72x8xbf16>, vector<8x16xbf16>, vector<72x16xf32> -> vector<72x16xf32>
    %122 = arith.addf %98, %121 : vector<72x16xf32>
    %123 = vector.extract_strided_slice %44 {offsets = [72, 0], sizes = [72, 8], strides = [1, 1]} : vector<144x8xf32> to vector<72x8xf32>
    %124 = arith.truncf %123 : vector<72x8xf32> to vector<72x8xbf16>
    %125 = vector.extract_strided_slice %47 {offsets = [72, 0], sizes = [72, 8], strides = [1, 1]} : vector<144x8xf32> to vector<72x8xf32>
    %126 = arith.truncf %125 : vector<72x8xf32> to vector<72x8xbf16>
    %127 = vector.extract_strided_slice %50 {offsets = [72, 0], sizes = [72, 8], strides = [1, 1]} : vector<144x8xf32> to vector<72x8xf32>
    %128 = arith.truncf %127 : vector<72x8xf32> to vector<72x8xbf16>
    %cst_66 = arith.constant dense<0.000000e+00> : vector<72x72xf32>
    %129 = tpu.matmul %124, %126, %cst_66 {dimension_numbers = #tpu.dot_dimension_numbers<[1], [1], [0], [0], [0, 0, 1, 0], [], []>} : vector<72x8xbf16>, vector<72x8xbf16>, vector<72x72xf32> -> vector<72x72xf32>
    %130 = vector.broadcast %10 : vector<1x72xf32> to vector<72x72xf32>
    %131 = arith.addf %129, %130 : vector<72x72xf32>
    %cst_67 = arith.constant dense<0xFF800000> : vector<72xf32>
    %132 = vector.multi_reduction <maximumf>, %131, %cst_67 [1] : vector<72x72xf32> to vector<72xf32>
    %133 = vector.shape_cast %132 : vector<72xf32> to vector<72x1xf32>
    %134 = vector.broadcast %133 : vector<72x1xf32> to vector<72x72xf32>
    %135 = arith.subf %131, %134 : vector<72x72xf32>
    %136 = math.exp %135 : vector<72x72xf32>
    %cst_68 = arith.constant dense<0.000000e+00> : vector<72xf32>
    %137 = vector.multi_reduction <add>, %136, %cst_68 [1] : vector<72x72xf32> to vector<72xf32>
    %138 = vector.shape_cast %137 : vector<72xf32> to vector<72x1xf32>
    %139 = tpu.reciprocal %138 {approx = true} : vector<72x1xf32> -> vector<72x1xf32>
    %140 = vector.broadcast %139 : vector<72x1xf32> to vector<72x72xf32>
    %141 = arith.mulf %136, %140 : vector<72x72xf32>
    %142 = arith.truncf %141 : vector<72x72xf32> to vector<72x72xbf16>
    %cst_69 = arith.constant dense<0.000000e+00> : vector<72x8xf32>
    %143 = tpu.matmul %142, %128, %cst_69 {dimension_numbers = #tpu.dot_dimension_numbers<[1], [0], [0], [1], [0, 0, 1, 1], [], []>} : vector<72x72xbf16>, vector<72x8xbf16>, vector<72x8xf32> -> vector<72x8xf32>
    %144 = arith.truncf %143 : vector<72x8xf32> to vector<72x8xbf16>
    %cst_70 = arith.constant dense<0.000000e+00> : vector<72x16xf32>
    %145 = tpu.matmul %144, %35, %cst_70 {dimension_numbers = #tpu.dot_dimension_numbers<[1], [0], [0], [1], [0, 0, 1, 1], [], []>} : vector<72x8xbf16>, vector<8x16xbf16>, vector<72x16xf32> -> vector<72x16xf32>
    %146 = vector.extract_strided_slice %67 {offsets = [72, 0], sizes = [72, 8], strides = [1, 1]} : vector<144x8xf32> to vector<72x8xf32>
    %147 = arith.truncf %146 : vector<72x8xf32> to vector<72x8xbf16>
    %148 = vector.extract_strided_slice %70 {offsets = [72, 0], sizes = [72, 8], strides = [1, 1]} : vector<144x8xf32> to vector<72x8xf32>
    %149 = arith.truncf %148 : vector<72x8xf32> to vector<72x8xbf16>
    %150 = vector.extract_strided_slice %73 {offsets = [72, 0], sizes = [72, 8], strides = [1, 1]} : vector<144x8xf32> to vector<72x8xf32>
    %151 = arith.truncf %150 : vector<72x8xf32> to vector<72x8xbf16>
    %cst_71 = arith.constant dense<0.000000e+00> : vector<72x72xf32>
    %152 = tpu.matmul %147, %149, %cst_71 {dimension_numbers = #tpu.dot_dimension_numbers<[1], [1], [0], [0], [0, 0, 1, 0], [], []>} : vector<72x8xbf16>, vector<72x8xbf16>, vector<72x72xf32> -> vector<72x72xf32>
    %153 = vector.broadcast %10 : vector<1x72xf32> to vector<72x72xf32>
    %154 = arith.addf %152, %153 : vector<72x72xf32>
    %cst_72 = arith.constant dense<0xFF800000> : vector<72xf32>
    %155 = vector.multi_reduction <maximumf>, %154, %cst_72 [1] : vector<72x72xf32> to vector<72xf32>
    %156 = vector.shape_cast %155 : vector<72xf32> to vector<72x1xf32>
    %157 = vector.broadcast %156 : vector<72x1xf32> to vector<72x72xf32>
    %158 = arith.subf %154, %157 : vector<72x72xf32>
    %159 = math.exp %158 : vector<72x72xf32>
    %cst_73 = arith.constant dense<0.000000e+00> : vector<72xf32>
    %160 = vector.multi_reduction <add>, %159, %cst_73 [1] : vector<72x72xf32> to vector<72xf32>
    %161 = vector.shape_cast %160 : vector<72xf32> to vector<72x1xf32>
    %162 = tpu.reciprocal %161 {approx = true} : vector<72x1xf32> -> vector<72x1xf32>
    %163 = vector.broadcast %162 : vector<72x1xf32> to vector<72x72xf32>
    %164 = arith.mulf %159, %163 : vector<72x72xf32>
    %165 = arith.truncf %164 : vector<72x72xf32> to vector<72x72xbf16>
    %cst_74 = arith.constant dense<0.000000e+00> : vector<72x8xf32>
    %166 = tpu.matmul %165, %151, %cst_74 {dimension_numbers = #tpu.dot_dimension_numbers<[1], [0], [0], [1], [0, 0, 1, 1], [], []>} : vector<72x72xbf16>, vector<72x8xbf16>, vector<72x8xf32> -> vector<72x8xf32>
    %167 = arith.truncf %166 : vector<72x8xf32> to vector<72x8xbf16>
    %cst_75 = arith.constant dense<0.000000e+00> : vector<72x16xf32>
    %168 = tpu.matmul %167, %58, %cst_75 {dimension_numbers = #tpu.dot_dimension_numbers<[1], [0], [0], [1], [0, 0, 1, 1], [], []>} : vector<72x8xbf16>, vector<8x16xbf16>, vector<72x16xf32> -> vector<72x16xf32>
    %169 = arith.addf %145, %168 : vector<72x16xf32>
    %170 = tpu.concatenate %122, %169 in 0 : vector<72x16xf32>, vector<72x16xf32> -> vector<144x16xf32>
    %171 = vector.broadcast %75 : vector<1x16xf32> to vector<144x16xf32>
    %172 = arith.addf %170, %171 : vector<144x16xf32>
    %c0_76 = arith.constant 0 : index
    %c9 = arith.constant 9 : index
    %c0_77 = arith.constant 0 : index
    %173 = vector.load %arg5[%c0_76, %c9, %c0_77] : memref<2x16x32xf32, #tpu.memory_space<vmem>>, vector<1x1x16xf32>
    %174 = vector.shape_cast %173 : vector<1x1x16xf32> to vector<1x16xf32>
    %c0_78 = arith.constant 0 : index
    %c10 = arith.constant 10 : index
    %c0_79 = arith.constant 0 : index
    %175 = vector.load %arg5[%c0_78, %c10, %c0_79] : memref<2x16x32xf32, #tpu.memory_space<vmem>>, vector<1x1x16xf32>
    %176 = vector.shape_cast %175 : vector<1x1x16xf32> to vector<1x16xf32>
    %177 = arith.addf %26, %172 : vector<144x16xf32>
    %cst_80 = arith.constant dense<0.000000e+00> : vector<144xf32>
    %178 = vector.multi_reduction <add>, %177, %cst_80 [1] : vector<144x16xf32> to vector<144xf32>
    %179 = vector.shape_cast %178 : vector<144xf32> to vector<144x1xf32>
    %cst_81 = arith.constant 1.600000e+01 : f32
    %180 = vector.broadcast %cst_81 : f32 to vector<144x1xf32>
    %181 = arith.divf %179, %180 : vector<144x1xf32>
    %182 = vector.broadcast %181 : vector<144x1xf32> to vector<144x16xf32>
    %183 = arith.subf %177, %182 : vector<144x16xf32>
    %184 = arith.mulf %183, %183 : vector<144x16xf32>
    %cst_82 = arith.constant dense<0.000000e+00> : vector<144xf32>
    %185 = vector.multi_reduction <add>, %184, %cst_82 [1] : vector<144x16xf32> to vector<144xf32>
    %186 = vector.shape_cast %185 : vector<144xf32> to vector<144x1xf32>
    %cst_83 = arith.constant 1.600000e+01 : f32
    %187 = vector.broadcast %cst_83 : f32 to vector<144x1xf32>
    %188 = arith.divf %186, %187 : vector<144x1xf32>
    %189 = vector.broadcast %181 : vector<144x1xf32> to vector<144x16xf32>
    %190 = arith.subf %177, %189 : vector<144x16xf32>
    %cst_84 = arith.constant 9.99999974E-6 : f32
    %191 = vector.broadcast %cst_84 : f32 to vector<144x1xf32>
    %192 = arith.addf %188, %191 : vector<144x1xf32>
    %193 = math.rsqrt %192 : vector<144x1xf32>
    %194 = vector.broadcast %193 : vector<144x1xf32> to vector<144x16xf32>
    %195 = arith.mulf %190, %194 : vector<144x16xf32>
    %196 = vector.broadcast %174 : vector<1x16xf32> to vector<144x16xf32>
    %197 = arith.mulf %195, %196 : vector<144x16xf32>
    %198 = vector.broadcast %176 : vector<1x16xf32> to vector<144x16xf32>
    %199 = arith.addf %197, %198 : vector<144x16xf32>
    %c0_85 = arith.constant 0 : index
    %c128 = arith.constant 128 : index
    %c0_86 = arith.constant 0 : index
    %200 = vector.load %arg4[%c0_85, %c128, %c0_86] : memref<2x176x32xbf16, #tpu.memory_space<vmem>>, vector<1x16x32xbf16>
    %201 = vector.shape_cast %200 : vector<1x16x32xbf16> to vector<16x32xbf16>
    %c0_87 = arith.constant 0 : index
    %c144 = arith.constant 144 : index
    %c0_88 = arith.constant 0 : index
    %202 = vector.load %arg4[%c0_87, %c144, %c0_88] : memref<2x176x32xbf16, #tpu.memory_space<vmem>>, vector<1x32x16xbf16>
    %203 = vector.shape_cast %202 : vector<1x32x16xbf16> to vector<32x16xbf16>
    %c0_89 = arith.constant 0 : index
    %c7 = arith.constant 7 : index
    %c0_90 = arith.constant 0 : index
    %204 = vector.load %arg5[%c0_89, %c7, %c0_90] : memref<2x16x32xf32, #tpu.memory_space<vmem>>, vector<1x1x32xf32>
    %205 = vector.shape_cast %204 : vector<1x1x32xf32> to vector<1x32xf32>
    %c0_91 = arith.constant 0 : index
    %c8 = arith.constant 8 : index
    %c0_92 = arith.constant 0 : index
    %206 = vector.load %arg5[%c0_91, %c8, %c0_92] : memref<2x16x32xf32, #tpu.memory_space<vmem>>, vector<1x1x16xf32>
    %207 = vector.shape_cast %206 : vector<1x1x16xf32> to vector<1x16xf32>
    %208 = arith.truncf %199 : vector<144x16xf32> to vector<144x16xbf16>
    %cst_93 = arith.constant dense<0.000000e+00> : vector<144x32xf32>
    %209 = tpu.matmul %208, %201, %cst_93 {dimension_numbers = #tpu.dot_dimension_numbers<[1], [0], [0], [1], [0, 0, 1, 1], [], []>} : vector<144x16xbf16>, vector<16x32xbf16>, vector<144x32xf32> -> vector<144x32xf32>
    %210 = vector.broadcast %205 : vector<1x32xf32> to vector<144x32xf32>
    %211 = arith.addf %209, %210 : vector<144x32xf32>
    %cst_94 = arith.constant 0.000000e+00 : f32
    %212 = vector.broadcast %cst_94 : f32 to vector<144x32xf32>
    %213 = arith.maximumf %211, %212 : vector<144x32xf32>
    %214 = arith.truncf %213 : vector<144x32xf32> to vector<144x32xbf16>
    %cst_95 = arith.constant dense<0.000000e+00> : vector<144x16xf32>
    %215 = tpu.matmul %214, %203, %cst_95 {dimension_numbers = #tpu.dot_dimension_numbers<[1], [0], [0], [1], [0, 0, 1, 1], [], []>} : vector<144x32xbf16>, vector<32x16xbf16>, vector<144x16xf32> -> vector<144x16xf32>
    %216 = vector.broadcast %207 : vector<1x16xf32> to vector<144x16xf32>
    %217 = arith.addf %215, %216 : vector<144x16xf32>
    %c0_96 = arith.constant 0 : index
    %c11 = arith.constant 11 : index
    %c0_97 = arith.constant 0 : index
    %218 = vector.load %arg5[%c0_96, %c11, %c0_97] : memref<2x16x32xf32, #tpu.memory_space<vmem>>, vector<1x1x16xf32>
    %219 = vector.shape_cast %218 : vector<1x1x16xf32> to vector<1x16xf32>
    %c0_98 = arith.constant 0 : index
    %c12 = arith.constant 12 : index
    %c0_99 = arith.constant 0 : index
    %220 = vector.load %arg5[%c0_98, %c12, %c0_99] : memref<2x16x32xf32, #tpu.memory_space<vmem>>, vector<1x1x16xf32>
    %221 = vector.shape_cast %220 : vector<1x1x16xf32> to vector<1x16xf32>
    %222 = arith.addf %199, %217 : vector<144x16xf32>
    %cst_100 = arith.constant dense<0.000000e+00> : vector<144xf32>
    %223 = vector.multi_reduction <add>, %222, %cst_100 [1] : vector<144x16xf32> to vector<144xf32>
    %224 = vector.shape_cast %223 : vector<144xf32> to vector<144x1xf32>
    %cst_101 = arith.constant 1.600000e+01 : f32
    %225 = vector.broadcast %cst_101 : f32 to vector<144x1xf32>
    %226 = arith.divf %224, %225 : vector<144x1xf32>
    %227 = vector.broadcast %226 : vector<144x1xf32> to vector<144x16xf32>
    %228 = arith.subf %222, %227 : vector<144x16xf32>
    %229 = arith.mulf %228, %228 : vector<144x16xf32>
    %cst_102 = arith.constant dense<0.000000e+00> : vector<144xf32>
    %230 = vector.multi_reduction <add>, %229, %cst_102 [1] : vector<144x16xf32> to vector<144xf32>
    %231 = vector.shape_cast %230 : vector<144xf32> to vector<144x1xf32>
    %cst_103 = arith.constant 1.600000e+01 : f32
    %232 = vector.broadcast %cst_103 : f32 to vector<144x1xf32>
    %233 = arith.divf %231, %232 : vector<144x1xf32>
    %234 = vector.broadcast %226 : vector<144x1xf32> to vector<144x16xf32>
    %235 = arith.subf %222, %234 : vector<144x16xf32>
    %cst_104 = arith.constant 9.99999974E-6 : f32
    %236 = vector.broadcast %cst_104 : f32 to vector<144x1xf32>
    %237 = arith.addf %233, %236 : vector<144x1xf32>
    %238 = math.rsqrt %237 : vector<144x1xf32>
    %239 = vector.broadcast %238 : vector<144x1xf32> to vector<144x16xf32>
    %240 = arith.mulf %235, %239 : vector<144x16xf32>
    %241 = vector.broadcast %219 : vector<1x16xf32> to vector<144x16xf32>
    %242 = arith.mulf %240, %241 : vector<144x16xf32>
    %243 = vector.broadcast %221 : vector<1x16xf32> to vector<144x16xf32>
    %244 = arith.addf %242, %243 : vector<144x16xf32>
    %245 = arith.truncf %244 : vector<144x16xf32> to vector<144x16xbf16>
    %c1_105 = arith.constant 1 : index
    %c0_106 = arith.constant 0 : index
    %c0_107 = arith.constant 0 : index
    %246 = vector.load %arg4[%c1_105, %c0_106, %c0_107] : memref<2x176x32xbf16, #tpu.memory_space<vmem>>, vector<1x16x8xbf16>
    %247 = vector.shape_cast %246 : vector<1x16x8xbf16> to vector<16x8xbf16>
    %c1_108 = arith.constant 1 : index
    %c16_109 = arith.constant 16 : index
    %c0_110 = arith.constant 0 : index
    %248 = vector.load %arg4[%c1_108, %c16_109, %c0_110] : memref<2x176x32xbf16, #tpu.memory_space<vmem>>, vector<1x16x8xbf16>
    %249 = vector.shape_cast %248 : vector<1x16x8xbf16> to vector<16x8xbf16>
    %c1_111 = arith.constant 1 : index
    %c32_112 = arith.constant 32 : index
    %c0_113 = arith.constant 0 : index
    %250 = vector.load %arg4[%c1_111, %c32_112, %c0_113] : memref<2x176x32xbf16, #tpu.memory_space<vmem>>, vector<1x16x8xbf16>
    %251 = vector.shape_cast %250 : vector<1x16x8xbf16> to vector<16x8xbf16>
    %c1_114 = arith.constant 1 : index
    %c48_115 = arith.constant 48 : index
    %c0_116 = arith.constant 0 : index
    %252 = vector.load %arg4[%c1_114, %c48_115, %c0_116] : memref<2x176x32xbf16, #tpu.memory_space<vmem>>, vector<1x8x16xbf16>
    %253 = vector.shape_cast %252 : vector<1x8x16xbf16> to vector<8x16xbf16>
    %c1_117 = arith.constant 1 : index
    %c0_118 = arith.constant 0 : index
    %c0_119 = arith.constant 0 : index
    %254 = vector.load %arg5[%c1_117, %c0_118, %c0_119] : memref<2x16x32xf32, #tpu.memory_space<vmem>>, vector<1x1x8xf32>
    %255 = vector.shape_cast %254 : vector<1x1x8xf32> to vector<1x8xf32>
    %c1_120 = arith.constant 1 : index
    %c1_121 = arith.constant 1 : index
    %c0_122 = arith.constant 0 : index
    %256 = vector.load %arg5[%c1_120, %c1_121, %c0_122] : memref<2x16x32xf32, #tpu.memory_space<vmem>>, vector<1x1x8xf32>
    %257 = vector.shape_cast %256 : vector<1x1x8xf32> to vector<1x8xf32>
    %c1_123 = arith.constant 1 : index
    %c2_124 = arith.constant 2 : index
    %c0_125 = arith.constant 0 : index
    %258 = vector.load %arg5[%c1_123, %c2_124, %c0_125] : memref<2x16x32xf32, #tpu.memory_space<vmem>>, vector<1x1x8xf32>
    %259 = vector.shape_cast %258 : vector<1x1x8xf32> to vector<1x8xf32>
    %cst_126 = arith.constant dense<0.000000e+00> : vector<144x8xf32>
    %260 = tpu.matmul %245, %247, %cst_126 {dimension_numbers = #tpu.dot_dimension_numbers<[1], [0], [0], [1], [0, 0, 1, 1], [], []>} : vector<144x16xbf16>, vector<16x8xbf16>, vector<144x8xf32> -> vector<144x8xf32>
    %261 = vector.broadcast %255 : vector<1x8xf32> to vector<144x8xf32>
    %262 = arith.addf %260, %261 : vector<144x8xf32>
    %cst_127 = arith.constant dense<0.000000e+00> : vector<144x8xf32>
    %263 = tpu.matmul %245, %249, %cst_127 {dimension_numbers = #tpu.dot_dimension_numbers<[1], [0], [0], [1], [0, 0, 1, 1], [], []>} : vector<144x16xbf16>, vector<16x8xbf16>, vector<144x8xf32> -> vector<144x8xf32>
    %264 = vector.broadcast %257 : vector<1x8xf32> to vector<144x8xf32>
    %265 = arith.addf %263, %264 : vector<144x8xf32>
    %cst_128 = arith.constant dense<0.000000e+00> : vector<144x8xf32>
    %266 = tpu.matmul %245, %251, %cst_128 {dimension_numbers = #tpu.dot_dimension_numbers<[1], [0], [0], [1], [0, 0, 1, 1], [], []>} : vector<144x16xbf16>, vector<16x8xbf16>, vector<144x8xf32> -> vector<144x8xf32>
    %267 = vector.broadcast %259 : vector<1x8xf32> to vector<144x8xf32>
    %268 = arith.addf %266, %267 : vector<144x8xf32>
    %c1_129 = arith.constant 1 : index
    %c64_130 = arith.constant 64 : index
    %c0_131 = arith.constant 0 : index
    %269 = vector.load %arg4[%c1_129, %c64_130, %c0_131] : memref<2x176x32xbf16, #tpu.memory_space<vmem>>, vector<1x16x8xbf16>
    %270 = vector.shape_cast %269 : vector<1x16x8xbf16> to vector<16x8xbf16>
    %c1_132 = arith.constant 1 : index
    %c80_133 = arith.constant 80 : index
    %c0_134 = arith.constant 0 : index
    %271 = vector.load %arg4[%c1_132, %c80_133, %c0_134] : memref<2x176x32xbf16, #tpu.memory_space<vmem>>, vector<1x16x8xbf16>
    %272 = vector.shape_cast %271 : vector<1x16x8xbf16> to vector<16x8xbf16>
    %c1_135 = arith.constant 1 : index
    %c96_136 = arith.constant 96 : index
    %c0_137 = arith.constant 0 : index
    %273 = vector.load %arg4[%c1_135, %c96_136, %c0_137] : memref<2x176x32xbf16, #tpu.memory_space<vmem>>, vector<1x16x8xbf16>
    %274 = vector.shape_cast %273 : vector<1x16x8xbf16> to vector<16x8xbf16>
    %c1_138 = arith.constant 1 : index
    %c112_139 = arith.constant 112 : index
    %c0_140 = arith.constant 0 : index
    %275 = vector.load %arg4[%c1_138, %c112_139, %c0_140] : memref<2x176x32xbf16, #tpu.memory_space<vmem>>, vector<1x8x16xbf16>
    %276 = vector.shape_cast %275 : vector<1x8x16xbf16> to vector<8x16xbf16>
    %c1_141 = arith.constant 1 : index
    %c3_142 = arith.constant 3 : index
    %c0_143 = arith.constant 0 : index
    %277 = vector.load %arg5[%c1_141, %c3_142, %c0_143] : memref<2x16x32xf32, #tpu.memory_space<vmem>>, vector<1x1x8xf32>
    %278 = vector.shape_cast %277 : vector<1x1x8xf32> to vector<1x8xf32>
    %c1_144 = arith.constant 1 : index
    %c4_145 = arith.constant 4 : index
    %c0_146 = arith.constant 0 : index
    %279 = vector.load %arg5[%c1_144, %c4_145, %c0_146] : memref<2x16x32xf32, #tpu.memory_space<vmem>>, vector<1x1x8xf32>
    %280 = vector.shape_cast %279 : vector<1x1x8xf32> to vector<1x8xf32>
    %c1_147 = arith.constant 1 : index
    %c5_148 = arith.constant 5 : index
    %c0_149 = arith.constant 0 : index
    %281 = vector.load %arg5[%c1_147, %c5_148, %c0_149] : memref<2x16x32xf32, #tpu.memory_space<vmem>>, vector<1x1x8xf32>
    %282 = vector.shape_cast %281 : vector<1x1x8xf32> to vector<1x8xf32>
    %cst_150 = arith.constant dense<0.000000e+00> : vector<144x8xf32>
    %283 = tpu.matmul %245, %270, %cst_150 {dimension_numbers = #tpu.dot_dimension_numbers<[1], [0], [0], [1], [0, 0, 1, 1], [], []>} : vector<144x16xbf16>, vector<16x8xbf16>, vector<144x8xf32> -> vector<144x8xf32>
    %284 = vector.broadcast %278 : vector<1x8xf32> to vector<144x8xf32>
    %285 = arith.addf %283, %284 : vector<144x8xf32>
    %cst_151 = arith.constant dense<0.000000e+00> : vector<144x8xf32>
    %286 = tpu.matmul %245, %272, %cst_151 {dimension_numbers = #tpu.dot_dimension_numbers<[1], [0], [0], [1], [0, 0, 1, 1], [], []>} : vector<144x16xbf16>, vector<16x8xbf16>, vector<144x8xf32> -> vector<144x8xf32>
    %287 = vector.broadcast %280 : vector<1x8xf32> to vector<144x8xf32>
    %288 = arith.addf %286, %287 : vector<144x8xf32>
    %cst_152 = arith.constant dense<0.000000e+00> : vector<144x8xf32>
    %289 = tpu.matmul %245, %274, %cst_152 {dimension_numbers = #tpu.dot_dimension_numbers<[1], [0], [0], [1], [0, 0, 1, 1], [], []>} : vector<144x16xbf16>, vector<16x8xbf16>, vector<144x8xf32> -> vector<144x8xf32>
    %290 = vector.broadcast %282 : vector<1x8xf32> to vector<144x8xf32>
    %291 = arith.addf %289, %290 : vector<144x8xf32>
    %c1_153 = arith.constant 1 : index
    %c6_154 = arith.constant 6 : index
    %c0_155 = arith.constant 0 : index
    %292 = vector.load %arg5[%c1_153, %c6_154, %c0_155] : memref<2x16x32xf32, #tpu.memory_space<vmem>>, vector<1x1x16xf32>
    %293 = vector.shape_cast %292 : vector<1x1x16xf32> to vector<1x16xf32>
    %294 = vector.extract_strided_slice %262 {offsets = [0, 0], sizes = [72, 8], strides = [1, 1]} : vector<144x8xf32> to vector<72x8xf32>
    %295 = arith.truncf %294 : vector<72x8xf32> to vector<72x8xbf16>
    %296 = vector.extract_strided_slice %265 {offsets = [0, 0], sizes = [72, 8], strides = [1, 1]} : vector<144x8xf32> to vector<72x8xf32>
    %297 = arith.truncf %296 : vector<72x8xf32> to vector<72x8xbf16>
    %298 = vector.extract_strided_slice %268 {offsets = [0, 0], sizes = [72, 8], strides = [1, 1]} : vector<144x8xf32> to vector<72x8xf32>
    %299 = arith.truncf %298 : vector<72x8xf32> to vector<72x8xbf16>
    %cst_156 = arith.constant dense<0.000000e+00> : vector<72x72xf32>
    %300 = tpu.matmul %295, %297, %cst_156 {dimension_numbers = #tpu.dot_dimension_numbers<[1], [1], [0], [0], [0, 0, 1, 0], [], []>} : vector<72x8xbf16>, vector<72x8xbf16>, vector<72x72xf32> -> vector<72x72xf32>
    %301 = vector.broadcast %10 : vector<1x72xf32> to vector<72x72xf32>
    %302 = arith.addf %300, %301 : vector<72x72xf32>
    %cst_157 = arith.constant dense<0xFF800000> : vector<72xf32>
    %303 = vector.multi_reduction <maximumf>, %302, %cst_157 [1] : vector<72x72xf32> to vector<72xf32>
    %304 = vector.shape_cast %303 : vector<72xf32> to vector<72x1xf32>
    %305 = vector.broadcast %304 : vector<72x1xf32> to vector<72x72xf32>
    %306 = arith.subf %302, %305 : vector<72x72xf32>
    %307 = math.exp %306 : vector<72x72xf32>
    %cst_158 = arith.constant dense<0.000000e+00> : vector<72xf32>
    %308 = vector.multi_reduction <add>, %307, %cst_158 [1] : vector<72x72xf32> to vector<72xf32>
    %309 = vector.shape_cast %308 : vector<72xf32> to vector<72x1xf32>
    %310 = tpu.reciprocal %309 {approx = true} : vector<72x1xf32> -> vector<72x1xf32>
    %311 = vector.broadcast %310 : vector<72x1xf32> to vector<72x72xf32>
    %312 = arith.mulf %307, %311 : vector<72x72xf32>
    %313 = arith.truncf %312 : vector<72x72xf32> to vector<72x72xbf16>
    %cst_159 = arith.constant dense<0.000000e+00> : vector<72x8xf32>
    %314 = tpu.matmul %313, %299, %cst_159 {dimension_numbers = #tpu.dot_dimension_numbers<[1], [0], [0], [1], [0, 0, 1, 1], [], []>} : vector<72x72xbf16>, vector<72x8xbf16>, vector<72x8xf32> -> vector<72x8xf32>
    %315 = arith.truncf %314 : vector<72x8xf32> to vector<72x8xbf16>
    %cst_160 = arith.constant dense<0.000000e+00> : vector<72x16xf32>
    %316 = tpu.matmul %315, %253, %cst_160 {dimension_numbers = #tpu.dot_dimension_numbers<[1], [0], [0], [1], [0, 0, 1, 1], [], []>} : vector<72x8xbf16>, vector<8x16xbf16>, vector<72x16xf32> -> vector<72x16xf32>
    %317 = vector.extract_strided_slice %285 {offsets = [0, 0], sizes = [72, 8], strides = [1, 1]} : vector<144x8xf32> to vector<72x8xf32>
    %318 = arith.truncf %317 : vector<72x8xf32> to vector<72x8xbf16>
    %319 = vector.extract_strided_slice %288 {offsets = [0, 0], sizes = [72, 8], strides = [1, 1]} : vector<144x8xf32> to vector<72x8xf32>
    %320 = arith.truncf %319 : vector<72x8xf32> to vector<72x8xbf16>
    %321 = vector.extract_strided_slice %291 {offsets = [0, 0], sizes = [72, 8], strides = [1, 1]} : vector<144x8xf32> to vector<72x8xf32>
    %322 = arith.truncf %321 : vector<72x8xf32> to vector<72x8xbf16>
    %cst_161 = arith.constant dense<0.000000e+00> : vector<72x72xf32>
    %323 = tpu.matmul %318, %320, %cst_161 {dimension_numbers = #tpu.dot_dimension_numbers<[1], [1], [0], [0], [0, 0, 1, 0], [], []>} : vector<72x8xbf16>, vector<72x8xbf16>, vector<72x72xf32> -> vector<72x72xf32>
    %324 = vector.broadcast %10 : vector<1x72xf32> to vector<72x72xf32>
    %325 = arith.addf %323, %324 : vector<72x72xf32>
    %cst_162 = arith.constant dense<0xFF800000> : vector<72xf32>
    %326 = vector.multi_reduction <maximumf>, %325, %cst_162 [1] : vector<72x72xf32> to vector<72xf32>
    %327 = vector.shape_cast %326 : vector<72xf32> to vector<72x1xf32>
    %328 = vector.broadcast %327 : vector<72x1xf32> to vector<72x72xf32>
    %329 = arith.subf %325, %328 : vector<72x72xf32>
    %330 = math.exp %329 : vector<72x72xf32>
    %cst_163 = arith.constant dense<0.000000e+00> : vector<72xf32>
    %331 = vector.multi_reduction <add>, %330, %cst_163 [1] : vector<72x72xf32> to vector<72xf32>
    %332 = vector.shape_cast %331 : vector<72xf32> to vector<72x1xf32>
    %333 = tpu.reciprocal %332 {approx = true} : vector<72x1xf32> -> vector<72x1xf32>
    %334 = vector.broadcast %333 : vector<72x1xf32> to vector<72x72xf32>
    %335 = arith.mulf %330, %334 : vector<72x72xf32>
    %336 = arith.truncf %335 : vector<72x72xf32> to vector<72x72xbf16>
    %cst_164 = arith.constant dense<0.000000e+00> : vector<72x8xf32>
    %337 = tpu.matmul %336, %322, %cst_164 {dimension_numbers = #tpu.dot_dimension_numbers<[1], [0], [0], [1], [0, 0, 1, 1], [], []>} : vector<72x72xbf16>, vector<72x8xbf16>, vector<72x8xf32> -> vector<72x8xf32>
    %338 = arith.truncf %337 : vector<72x8xf32> to vector<72x8xbf16>
    %cst_165 = arith.constant dense<0.000000e+00> : vector<72x16xf32>
    %339 = tpu.matmul %338, %276, %cst_165 {dimension_numbers = #tpu.dot_dimension_numbers<[1], [0], [0], [1], [0, 0, 1, 1], [], []>} : vector<72x8xbf16>, vector<8x16xbf16>, vector<72x16xf32> -> vector<72x16xf32>
    %340 = arith.addf %316, %339 : vector<72x16xf32>
    %341 = vector.extract_strided_slice %262 {offsets = [72, 0], sizes = [72, 8], strides = [1, 1]} : vector<144x8xf32> to vector<72x8xf32>
    %342 = arith.truncf %341 : vector<72x8xf32> to vector<72x8xbf16>
    %343 = vector.extract_strided_slice %265 {offsets = [72, 0], sizes = [72, 8], strides = [1, 1]} : vector<144x8xf32> to vector<72x8xf32>
    %344 = arith.truncf %343 : vector<72x8xf32> to vector<72x8xbf16>
    %345 = vector.extract_strided_slice %268 {offsets = [72, 0], sizes = [72, 8], strides = [1, 1]} : vector<144x8xf32> to vector<72x8xf32>
    %346 = arith.truncf %345 : vector<72x8xf32> to vector<72x8xbf16>
    %cst_166 = arith.constant dense<0.000000e+00> : vector<72x72xf32>
    %347 = tpu.matmul %342, %344, %cst_166 {dimension_numbers = #tpu.dot_dimension_numbers<[1], [1], [0], [0], [0, 0, 1, 0], [], []>} : vector<72x8xbf16>, vector<72x8xbf16>, vector<72x72xf32> -> vector<72x72xf32>
    %348 = vector.broadcast %10 : vector<1x72xf32> to vector<72x72xf32>
    %349 = arith.addf %347, %348 : vector<72x72xf32>
    %cst_167 = arith.constant dense<0xFF800000> : vector<72xf32>
    %350 = vector.multi_reduction <maximumf>, %349, %cst_167 [1] : vector<72x72xf32> to vector<72xf32>
    %351 = vector.shape_cast %350 : vector<72xf32> to vector<72x1xf32>
    %352 = vector.broadcast %351 : vector<72x1xf32> to vector<72x72xf32>
    %353 = arith.subf %349, %352 : vector<72x72xf32>
    %354 = math.exp %353 : vector<72x72xf32>
    %cst_168 = arith.constant dense<0.000000e+00> : vector<72xf32>
    %355 = vector.multi_reduction <add>, %354, %cst_168 [1] : vector<72x72xf32> to vector<72xf32>
    %356 = vector.shape_cast %355 : vector<72xf32> to vector<72x1xf32>
    %357 = tpu.reciprocal %356 {approx = true} : vector<72x1xf32> -> vector<72x1xf32>
    %358 = vector.broadcast %357 : vector<72x1xf32> to vector<72x72xf32>
    %359 = arith.mulf %354, %358 : vector<72x72xf32>
    %360 = arith.truncf %359 : vector<72x72xf32> to vector<72x72xbf16>
    %cst_169 = arith.constant dense<0.000000e+00> : vector<72x8xf32>
    %361 = tpu.matmul %360, %346, %cst_169 {dimension_numbers = #tpu.dot_dimension_numbers<[1], [0], [0], [1], [0, 0, 1, 1], [], []>} : vector<72x72xbf16>, vector<72x8xbf16>, vector<72x8xf32> -> vector<72x8xf32>
    %362 = arith.truncf %361 : vector<72x8xf32> to vector<72x8xbf16>
    %cst_170 = arith.constant dense<0.000000e+00> : vector<72x16xf32>
    %363 = tpu.matmul %362, %253, %cst_170 {dimension_numbers = #tpu.dot_dimension_numbers<[1], [0], [0], [1], [0, 0, 1, 1], [], []>} : vector<72x8xbf16>, vector<8x16xbf16>, vector<72x16xf32> -> vector<72x16xf32>
    %364 = vector.extract_strided_slice %285 {offsets = [72, 0], sizes = [72, 8], strides = [1, 1]} : vector<144x8xf32> to vector<72x8xf32>
    %365 = arith.truncf %364 : vector<72x8xf32> to vector<72x8xbf16>
    %366 = vector.extract_strided_slice %288 {offsets = [72, 0], sizes = [72, 8], strides = [1, 1]} : vector<144x8xf32> to vector<72x8xf32>
    %367 = arith.truncf %366 : vector<72x8xf32> to vector<72x8xbf16>
    %368 = vector.extract_strided_slice %291 {offsets = [72, 0], sizes = [72, 8], strides = [1, 1]} : vector<144x8xf32> to vector<72x8xf32>
    %369 = arith.truncf %368 : vector<72x8xf32> to vector<72x8xbf16>
    %cst_171 = arith.constant dense<0.000000e+00> : vector<72x72xf32>
    %370 = tpu.matmul %365, %367, %cst_171 {dimension_numbers = #tpu.dot_dimension_numbers<[1], [1], [0], [0], [0, 0, 1, 0], [], []>} : vector<72x8xbf16>, vector<72x8xbf16>, vector<72x72xf32> -> vector<72x72xf32>
    %371 = vector.broadcast %10 : vector<1x72xf32> to vector<72x72xf32>
    %372 = arith.addf %370, %371 : vector<72x72xf32>
    %cst_172 = arith.constant dense<0xFF800000> : vector<72xf32>
    %373 = vector.multi_reduction <maximumf>, %372, %cst_172 [1] : vector<72x72xf32> to vector<72xf32>
    %374 = vector.shape_cast %373 : vector<72xf32> to vector<72x1xf32>
    %375 = vector.broadcast %374 : vector<72x1xf32> to vector<72x72xf32>
    %376 = arith.subf %372, %375 : vector<72x72xf32>
    %377 = math.exp %376 : vector<72x72xf32>
    %cst_173 = arith.constant dense<0.000000e+00> : vector<72xf32>
    %378 = vector.multi_reduction <add>, %377, %cst_173 [1] : vector<72x72xf32> to vector<72xf32>
    %379 = vector.shape_cast %378 : vector<72xf32> to vector<72x1xf32>
    %380 = tpu.reciprocal %379 {approx = true} : vector<72x1xf32> -> vector<72x1xf32>
    %381 = vector.broadcast %380 : vector<72x1xf32> to vector<72x72xf32>
    %382 = arith.mulf %377, %381 : vector<72x72xf32>
    %383 = arith.truncf %382 : vector<72x72xf32> to vector<72x72xbf16>
    %cst_174 = arith.constant dense<0.000000e+00> : vector<72x8xf32>
    %384 = tpu.matmul %383, %369, %cst_174 {dimension_numbers = #tpu.dot_dimension_numbers<[1], [0], [0], [1], [0, 0, 1, 1], [], []>} : vector<72x72xbf16>, vector<72x8xbf16>, vector<72x8xf32> -> vector<72x8xf32>
    %385 = arith.truncf %384 : vector<72x8xf32> to vector<72x8xbf16>
    %cst_175 = arith.constant dense<0.000000e+00> : vector<72x16xf32>
    %386 = tpu.matmul %385, %276, %cst_175 {dimension_numbers = #tpu.dot_dimension_numbers<[1], [0], [0], [1], [0, 0, 1, 1], [], []>} : vector<72x8xbf16>, vector<8x16xbf16>, vector<72x16xf32> -> vector<72x16xf32>
    %387 = arith.addf %363, %386 : vector<72x16xf32>
    %388 = tpu.concatenate %340, %387 in 0 : vector<72x16xf32>, vector<72x16xf32> -> vector<144x16xf32>
    %389 = vector.broadcast %293 : vector<1x16xf32> to vector<144x16xf32>
    %390 = arith.addf %388, %389 : vector<144x16xf32>
    %c1_176 = arith.constant 1 : index
    %c9_177 = arith.constant 9 : index
    %c0_178 = arith.constant 0 : index
    %391 = vector.load %arg5[%c1_176, %c9_177, %c0_178] : memref<2x16x32xf32, #tpu.memory_space<vmem>>, vector<1x1x16xf32>
    %392 = vector.shape_cast %391 : vector<1x1x16xf32> to vector<1x16xf32>
    %c1_179 = arith.constant 1 : index
    %c10_180 = arith.constant 10 : index
    %c0_181 = arith.constant 0 : index
    %393 = vector.load %arg5[%c1_179, %c10_180, %c0_181] : memref<2x16x32xf32, #tpu.memory_space<vmem>>, vector<1x1x16xf32>
    %394 = vector.shape_cast %393 : vector<1x1x16xf32> to vector<1x16xf32>
    %395 = arith.addf %244, %390 : vector<144x16xf32>
    %cst_182 = arith.constant dense<0.000000e+00> : vector<144xf32>
    %396 = vector.multi_reduction <add>, %395, %cst_182 [1] : vector<144x16xf32> to vector<144xf32>
    %397 = vector.shape_cast %396 : vector<144xf32> to vector<144x1xf32>
    %cst_183 = arith.constant 1.600000e+01 : f32
    %398 = vector.broadcast %cst_183 : f32 to vector<144x1xf32>
    %399 = arith.divf %397, %398 : vector<144x1xf32>
    %400 = vector.broadcast %399 : vector<144x1xf32> to vector<144x16xf32>
    %401 = arith.subf %395, %400 : vector<144x16xf32>
    %402 = arith.mulf %401, %401 : vector<144x16xf32>
    %cst_184 = arith.constant dense<0.000000e+00> : vector<144xf32>
    %403 = vector.multi_reduction <add>, %402, %cst_184 [1] : vector<144x16xf32> to vector<144xf32>
    %404 = vector.shape_cast %403 : vector<144xf32> to vector<144x1xf32>
    %cst_185 = arith.constant 1.600000e+01 : f32
    %405 = vector.broadcast %cst_185 : f32 to vector<144x1xf32>
    %406 = arith.divf %404, %405 : vector<144x1xf32>
    %407 = vector.broadcast %399 : vector<144x1xf32> to vector<144x16xf32>
    %408 = arith.subf %395, %407 : vector<144x16xf32>
    %cst_186 = arith.constant 9.99999974E-6 : f32
    %409 = vector.broadcast %cst_186 : f32 to vector<144x1xf32>
    %410 = arith.addf %406, %409 : vector<144x1xf32>
    %411 = math.rsqrt %410 : vector<144x1xf32>
    %412 = vector.broadcast %411 : vector<144x1xf32> to vector<144x16xf32>
    %413 = arith.mulf %408, %412 : vector<144x16xf32>
    %414 = vector.broadcast %392 : vector<1x16xf32> to vector<144x16xf32>
    %415 = arith.mulf %413, %414 : vector<144x16xf32>
    %416 = vector.broadcast %394 : vector<1x16xf32> to vector<144x16xf32>
    %417 = arith.addf %415, %416 : vector<144x16xf32>
    %c1_187 = arith.constant 1 : index
    %c128_188 = arith.constant 128 : index
    %c0_189 = arith.constant 0 : index
    %418 = vector.load %arg4[%c1_187, %c128_188, %c0_189] : memref<2x176x32xbf16, #tpu.memory_space<vmem>>, vector<1x16x32xbf16>
    %419 = vector.shape_cast %418 : vector<1x16x32xbf16> to vector<16x32xbf16>
    %c1_190 = arith.constant 1 : index
    %c144_191 = arith.constant 144 : index
    %c0_192 = arith.constant 0 : index
    %420 = vector.load %arg4[%c1_190, %c144_191, %c0_192] : memref<2x176x32xbf16, #tpu.memory_space<vmem>>, vector<1x32x16xbf16>
    %421 = vector.shape_cast %420 : vector<1x32x16xbf16> to vector<32x16xbf16>
    %c1_193 = arith.constant 1 : index
    %c7_194 = arith.constant 7 : index
    %c0_195 = arith.constant 0 : index
    %422 = vector.load %arg5[%c1_193, %c7_194, %c0_195] : memref<2x16x32xf32, #tpu.memory_space<vmem>>, vector<1x1x32xf32>
    %423 = vector.shape_cast %422 : vector<1x1x32xf32> to vector<1x32xf32>
    %c1_196 = arith.constant 1 : index
    %c8_197 = arith.constant 8 : index
    %c0_198 = arith.constant 0 : index
    %424 = vector.load %arg5[%c1_196, %c8_197, %c0_198] : memref<2x16x32xf32, #tpu.memory_space<vmem>>, vector<1x1x16xf32>
    %425 = vector.shape_cast %424 : vector<1x1x16xf32> to vector<1x16xf32>
    %426 = arith.truncf %417 : vector<144x16xf32> to vector<144x16xbf16>
    %cst_199 = arith.constant dense<0.000000e+00> : vector<144x32xf32>
    %427 = tpu.matmul %426, %419, %cst_199 {dimension_numbers = #tpu.dot_dimension_numbers<[1], [0], [0], [1], [0, 0, 1, 1], [], []>} : vector<144x16xbf16>, vector<16x32xbf16>, vector<144x32xf32> -> vector<144x32xf32>
    %428 = vector.broadcast %423 : vector<1x32xf32> to vector<144x32xf32>
    %429 = arith.addf %427, %428 : vector<144x32xf32>
    %cst_200 = arith.constant 0.000000e+00 : f32
    %430 = vector.broadcast %cst_200 : f32 to vector<144x32xf32>
    %431 = arith.maximumf %429, %430 : vector<144x32xf32>
    %432 = arith.truncf %431 : vector<144x32xf32> to vector<144x32xbf16>
    %cst_201 = arith.constant dense<0.000000e+00> : vector<144x16xf32>
    %433 = tpu.matmul %432, %421, %cst_201 {dimension_numbers = #tpu.dot_dimension_numbers<[1], [0], [0], [1], [0, 0, 1, 1], [], []>} : vector<144x32xbf16>, vector<32x16xbf16>, vector<144x16xf32> -> vector<144x16xf32>
    %434 = vector.broadcast %425 : vector<1x16xf32> to vector<144x16xf32>
    %435 = arith.addf %433, %434 : vector<144x16xf32>
    %c1_202 = arith.constant 1 : index
    %c11_203 = arith.constant 11 : index
    %c0_204 = arith.constant 0 : index
    %436 = vector.load %arg5[%c1_202, %c11_203, %c0_204] : memref<2x16x32xf32, #tpu.memory_space<vmem>>, vector<1x1x16xf32>
    %437 = vector.shape_cast %436 : vector<1x1x16xf32> to vector<1x16xf32>
    %c1_205 = arith.constant 1 : index
    %c12_206 = arith.constant 12 : index
    %c0_207 = arith.constant 0 : index
    %438 = vector.load %arg5[%c1_205, %c12_206, %c0_207] : memref<2x16x32xf32, #tpu.memory_space<vmem>>, vector<1x1x16xf32>
    %439 = vector.shape_cast %438 : vector<1x1x16xf32> to vector<1x16xf32>
    %440 = arith.addf %417, %435 : vector<144x16xf32>
    %cst_208 = arith.constant dense<0.000000e+00> : vector<144xf32>
    %441 = vector.multi_reduction <add>, %440, %cst_208 [1] : vector<144x16xf32> to vector<144xf32>
    %442 = vector.shape_cast %441 : vector<144xf32> to vector<144x1xf32>
    %cst_209 = arith.constant 1.600000e+01 : f32
    %443 = vector.broadcast %cst_209 : f32 to vector<144x1xf32>
    %444 = arith.divf %442, %443 : vector<144x1xf32>
    %445 = vector.broadcast %444 : vector<144x1xf32> to vector<144x16xf32>
    %446 = arith.subf %440, %445 : vector<144x16xf32>
    %447 = arith.mulf %446, %446 : vector<144x16xf32>
    %cst_210 = arith.constant dense<0.000000e+00> : vector<144xf32>
    %448 = vector.multi_reduction <add>, %447, %cst_210 [1] : vector<144x16xf32> to vector<144xf32>
    %449 = vector.shape_cast %448 : vector<144xf32> to vector<144x1xf32>
    %cst_211 = arith.constant 1.600000e+01 : f32
    %450 = vector.broadcast %cst_211 : f32 to vector<144x1xf32>
    %451 = arith.divf %449, %450 : vector<144x1xf32>
    %452 = vector.broadcast %444 : vector<144x1xf32> to vector<144x16xf32>
    %453 = arith.subf %440, %452 : vector<144x16xf32>
    %cst_212 = arith.constant 9.99999974E-6 : f32
    %454 = vector.broadcast %cst_212 : f32 to vector<144x1xf32>
    %455 = arith.addf %451, %454 : vector<144x1xf32>
    %456 = math.rsqrt %455 : vector<144x1xf32>
    %457 = vector.broadcast %456 : vector<144x1xf32> to vector<144x16xf32>
    %458 = arith.mulf %453, %457 : vector<144x16xf32>
    %459 = vector.broadcast %437 : vector<1x16xf32> to vector<144x16xf32>
    %460 = arith.mulf %458, %459 : vector<144x16xf32>
    %461 = vector.broadcast %439 : vector<1x16xf32> to vector<144x16xf32>
    %462 = arith.addf %460, %461 : vector<144x16xf32>
    %463 = arith.truncf %462 : vector<144x16xf32> to vector<144x16xbf16>
    %cst_213 = arith.constant dense<0.000000e+00> : vector<144x16xf32>
    %464 = tpu.matmul %463, %4, %cst_213 {dimension_numbers = #tpu.dot_dimension_numbers<[1], [0], [0], [1], [0, 0, 1, 1], [], []>} : vector<144x16xbf16>, vector<16x16xbf16>, vector<144x16xf32> -> vector<144x16xf32>
    %465 = vector.broadcast %2 : vector<1x16xf32> to vector<144x16xf32>
    %466 = arith.addf %464, %465 : vector<144x16xf32>
    %467 = vector.extract_strided_slice %466 {offsets = [0, 0], sizes = [72, 16], strides = [1, 1]} : vector<144x16xf32> to vector<72x16xf32>
    %468 = vector.extract_strided_slice %467 {offsets = [0, 0], sizes = [64, 16], strides = [1, 1]} : vector<72x16xf32> to vector<64x16xf32>
    %cst_214 = arith.constant dense<0xFF800000> : vector<16xf32>
    %469 = vector.multi_reduction <maximumf>, %468, %cst_214 [0] : vector<64x16xf32> to vector<16xf32>
    %470 = vector.shape_cast %469 : vector<16xf32> to vector<1x16xf32>
    %471 = vector.broadcast %470 : vector<1x16xf32> to vector<64x16xf32>
    %472 = arith.subf %468, %471 : vector<64x16xf32>
    %473 = math.exp %472 : vector<64x16xf32>
    %cst_215 = arith.constant dense<0.000000e+00> : vector<16xf32>
    %474 = vector.multi_reduction <add>, %473, %cst_215 [0] : vector<64x16xf32> to vector<16xf32>
    %475 = vector.shape_cast %474 : vector<16xf32> to vector<1x16xf32>
    %476 = vector.broadcast %475 : vector<1x16xf32> to vector<64x16xf32>
    %477 = arith.divf %473, %476 : vector<64x16xf32>
    %c0_216 = arith.constant 0 : index
    %c0_217 = arith.constant 0 : index
    %c0_218 = arith.constant 0 : index
    %478 = vector.load %arg6[%c0_216, %c0_217, %c0_218] : memref<2x72x16xf32, #tpu.memory_space<vmem>>, vector<1x64x16xf32>
    %479 = vector.shape_cast %478 : vector<1x64x16xf32> to vector<64x16xf32>
    %480 = vector.shape_cast %477 : vector<64x16xf32> to vector<1x64x16xf32>
    tpu.vector_store %arg6[%c0_216, %c0_217, %c0_218], %480 {strides = array<i32>} : memref<2x72x16xf32, #tpu.memory_space<vmem>>, vector<1x64x16xf32>,
    %481 = vector.extract_strided_slice %467 {offsets = [64, 0], sizes = [1, 16], strides = [1, 1]} : vector<72x16xf32> to vector<1x16xf32>
    %cst_219 = arith.constant 5.000000e-01 : f32
    %482 = vector.broadcast %cst_219 : f32 to vector<1x16xf32>
    %483 = arith.mulf %482, %481 : vector<1x16xf32>
    %484 = math.tanh %483 : vector<1x16xf32>
    %cst_220 = arith.constant 1.000000e+00 : f32
    %485 = vector.broadcast %cst_220 : f32 to vector<1x16xf32>
    %486 = arith.addf %484, %485 : vector<1x16xf32>
    %cst_221 = arith.constant 5.000000e-01 : f32
    %487 = vector.broadcast %cst_221 : f32 to vector<1x16xf32>
    %488 = arith.mulf %487, %486 : vector<1x16xf32>
    %c0_222 = arith.constant 0 : index
    %c64_223 = arith.constant 64 : index
    %c0_224 = arith.constant 0 : index
    %489 = vector.load %arg6[%c0_222, %c64_223, %c0_224] : memref<2x72x16xf32, #tpu.memory_space<vmem>>, vector<1x1x16xf32>
    %490 = vector.shape_cast %489 : vector<1x1x16xf32> to vector<1x16xf32>
    %491 = vector.shape_cast %488 : vector<1x16xf32> to vector<1x1x16xf32>
    tpu.vector_store %arg6[%c0_222, %c64_223, %c0_224], %491 {strides = array<i32>} : memref<2x72x16xf32, #tpu.memory_space<vmem>>, vector<1x1x16xf32>,
    %492 = vector.extract_strided_slice %466 {offsets = [72, 0], sizes = [72, 16], strides = [1, 1]} : vector<144x16xf32> to vector<72x16xf32>
    %493 = vector.extract_strided_slice %492 {offsets = [0, 0], sizes = [64, 16], strides = [1, 1]} : vector<72x16xf32> to vector<64x16xf32>
    %cst_225 = arith.constant dense<0xFF800000> : vector<16xf32>
    %494 = vector.multi_reduction <maximumf>, %493, %cst_225 [0] : vector<64x16xf32> to vector<16xf32>
    %495 = vector.shape_cast %494 : vector<16xf32> to vector<1x16xf32>
    %496 = vector.broadcast %495 : vector<1x16xf32> to vector<64x16xf32>
    %497 = arith.subf %493, %496 : vector<64x16xf32>
    %498 = math.exp %497 : vector<64x16xf32>
    %cst_226 = arith.constant dense<0.000000e+00> : vector<16xf32>
    %499 = vector.multi_reduction <add>, %498, %cst_226 [0] : vector<64x16xf32> to vector<16xf32>
    %500 = vector.shape_cast %499 : vector<16xf32> to vector<1x16xf32>
    %501 = vector.broadcast %500 : vector<1x16xf32> to vector<64x16xf32>
    %502 = arith.divf %498, %501 : vector<64x16xf32>
    %c1_227 = arith.constant 1 : index
    %c0_228 = arith.constant 0 : index
    %c0_229 = arith.constant 0 : index
    %503 = vector.load %arg6[%c1_227, %c0_228, %c0_229] : memref<2x72x16xf32, #tpu.memory_space<vmem>>, vector<1x64x16xf32>
    %504 = vector.shape_cast %503 : vector<1x64x16xf32> to vector<64x16xf32>
    %505 = vector.shape_cast %502 : vector<64x16xf32> to vector<1x64x16xf32>
    tpu.vector_store %arg6[%c1_227, %c0_228, %c0_229], %505 {strides = array<i32>} : memref<2x72x16xf32, #tpu.memory_space<vmem>>, vector<1x64x16xf32>,
    %506 = vector.extract_strided_slice %492 {offsets = [64, 0], sizes = [1, 16], strides = [1, 1]} : vector<72x16xf32> to vector<1x16xf32>
    %cst_230 = arith.constant 5.000000e-01 : f32
    %507 = vector.broadcast %cst_230 : f32 to vector<1x16xf32>
    %508 = arith.mulf %507, %506 : vector<1x16xf32>
    %509 = math.tanh %508 : vector<1x16xf32>
    %cst_231 = arith.constant 1.000000e+00 : f32
    %510 = vector.broadcast %cst_231 : f32 to vector<1x16xf32>
    %511 = arith.addf %509, %510 : vector<1x16xf32>
    %cst_232 = arith.constant 5.000000e-01 : f32
    %512 = vector.broadcast %cst_232 : f32 to vector<1x16xf32>
    %513 = arith.mulf %512, %511 : vector<1x16xf32>
    %c1_233 = arith.constant 1 : index
    %c64_234 = arith.constant 64 : index
    %c0_235 = arith.constant 0 : index
    %514 = vector.load %arg6[%c1_233, %c64_234, %c0_235] : memref<2x72x16xf32, #tpu.memory_space<vmem>>, vector<1x1x16xf32>
    %515 = vector.shape_cast %514 : vector<1x1x16xf32> to vector<1x16xf32>
    %516 = vector.shape_cast %513 : vector<1x16xf32> to vector<1x1x16xf32>
    tpu.vector_store %arg6[%c1_233, %c64_234, %c0_235], %516 {strides = array<i32>} : memref<2x72x16xf32, #tpu.memory_space<vmem>>, vector<1x1x16xf32>,
    return
  }
  func.func @transform_0(%arg0: i32) -> (i32, i32, i32) {
    %c0_i32 = arith.constant 0 : i32
    %c0_i32_0 = arith.constant 0 : i32
    %c0_i32_1 = arith.constant 0 : i32
    return %arg0, %c0_i32, %c0_i32_0 : i32, i32, i32
  }
  func.func @transform_1(%arg0: i32) -> (i32, i32) {
    %c0_i32 = arith.constant 0 : i32
    %c0_i32_0 = arith.constant 0 : i32
    %c0_i32_1 = arith.constant 0 : i32
    return %c0_i32, %c0_i32_0 : i32, i32
  }
  func.func @transform_2(%arg0: i32) -> (i32, i32) {
    %c0_i32 = arith.constant 0 : i32
    %c0_i32_0 = arith.constant 0 : i32
    %c0_i32_1 = arith.constant 0 : i32
    return %c0_i32, %c0_i32_0 : i32, i32
  }
  func.func @transform_3(%arg0: i32) -> (i32, i32, i32) {
    %c0_i32 = arith.constant 0 : i32
    %c0_i32_0 = arith.constant 0 : i32
    %c0_i32_1 = arith.constant 0 : i32
    %c0_i32_2 = arith.constant 0 : i32
    return %c0_i32, %c0_i32_0, %c0_i32_1 : i32, i32, i32
  }
  func.func @transform_4(%arg0: i32) -> (i32, i32, i32) {
    %c0_i32 = arith.constant 0 : i32
    %c0_i32_0 = arith.constant 0 : i32
    %c0_i32_1 = arith.constant 0 : i32
    %c0_i32_2 = arith.constant 0 : i32
    return %c0_i32, %c0_i32_0, %c0_i32_1 : i32, i32, i32
  }
  func.func @transform_5(%arg0: i32) -> (i32, i32, i32) {
    %c0_i32 = arith.constant 0 : i32
    %c0_i32_0 = arith.constant 0 : i32
    %c0_i32_1 = arith.constant 0 : i32
    return %arg0, %c0_i32, %c0_i32_0 : i32, i32, i32
  }
}

</mosaic_0001>

<llo_original>
// kernel: tf_encoder_forward.1
$region0: #{tf_encoder_forward.1}
  #allocation0 [shape = 'u32[]', space=smem, size = 0x4, offset = 0x4, fixed_abs, tag = 'smem constant byte address 0x4 - core index']
  #allocation1 [shape = 'u32[144,128]{1,0:T(1,128)}', space=vmem, size = 0x12000, scoped, tag = 'internal scratch']
  %s0 = inlined_call_operand.vmem [shape: f32[4,64,16], index: 0, kind: input, shape index: {}]
  %s1 = inlined_call_operand.vmem [shape: f32[72,16], index: 1, kind: input, shape index: {}]
  %s2 = inlined_call_operand.vmem [shape: bf16[32,16], index: 2, kind: input, shape index: {}]
  %s3 = inlined_call_operand.vmem [shape: bf16[2,176,32], index: 3, kind: input, shape index: {}]
  %s4 = inlined_call_operand.vmem [shape: f32[2,16,32], index: 4, kind: input, shape index: {}]
  %s5 = inlined_call_operand.vmem [shape: f32[4,72,16], index: 5, kind: output, shape index: {}]
  %s6 = sld [smem:[#allocation0]]
  $region53: #{tf_encoder_forward.1} parent=0
    _
  %s8 = ssub.s32 1, %s6
  %s9 = scalar_select 0, %s8, %s6
  loop: start=0, step=1, limit=4
  $region2: #{tf_encoder_forward.1} parent=0 // loop_pre_header
    _
  $region3: #{tf_encoder_forward.1} parent=0 // loop_header
    %s11 = sphi 0, %s15
    %p12 = scmp.ge.s32.totalorder %s11, 4
    %s21 = sphi 0, %s23
    %s24 = sphi 0, %s21
    %s25 = sphi 0, %s24
    %s41 = sphi 0, %s25
    %s45 = sphi 0, %s45
    %s47 = sphi 0, %s45
    %s48 = sphi 0, %s47
    %s62 = sphi 0, %s48
    %s66 = sphi 0, %s66
    %s68 = sphi 0, %s66
    %s69 = sphi 0, %s68
    %s83 = sphi 0, %s69
    %s87 = sphi 0, %s87
    %s89 = sphi 0, %s87
    %s90 = sphi 0, %s89
    %s104 = sphi 0, %s90
    %s108 = sphi 0, %s108
    %s110 = sphi 0, %s108
    %s111 = sphi 0, %s110
    %s125 = sphi 0, %s111
    %s131 = sphi 0, %s133
    %s134 = sphi 0, %s131
    %s135 = sphi 0, %s134
    %s151 = sphi 0, %s135
  $region4: #{tf_encoder_forward.1} parent=0 // loop_header_branch
    %14 = sbr.rel (%p12) target = $region8
  $region5: #{tf_encoder_forward.1} parent=0 // loop_body
    %s16 = ssub.s32 %s11, 1
    %s17 = ssub.s32 %s11, 2
    %s18 = sadd.s32 %s11, 1
    %s19 = ssub.s32 %s11, %s18
    %p20 = scmp.eq.s32.totalorder %s19, 0
    %s22 = sadd.s32 %s21, 1
    %s23 = scalar_select %p20, %s21, %s22
    %p26 = pneg %p20
    %p27 = scmp.eq.s32.totalorder %s11, 1
    %p28 = por %p26, %p27
    %p29 = scmp.ne.s32.totalorder %s21, %s24
    %p30 = scmp.eq.s32.totalorder %s11, 0
    %p31 = por %p29, %p30
    %p32 = scmp.ne.s32.totalorder %s21, %s24
    %p33 = scmp.eq.s32.totalorder %s16, 1
    %p34 = por %p32, %p33
    %p35 = scmp.ne.s32.totalorder %s24, %s25
    %p36 = scmp.eq.s32.totalorder %s16, 0
    %p37 = por %p35, %p36
    %p38 = scmp.ne.s32.totalorder %s24, %s25
    %p39 = scmp.eq.s32.totalorder %s17, 1
    %p40 = por %p38, %p39
    %p42 = scmp.ne.s32.totalorder %s25, %s41
    %p43 = scmp.eq.s32.totalorder %s17, 0
    %p44 = por %p42, %p43
    %s46 = sadd.s32 %s45, 1
    %p49 = scmp.eq.s32.totalorder %s11, 1
    %p50 = scmp.ne.s32.totalorder %s45, %s47
    %p51 = scmp.eq.s32.totalorder %s11, 0
    %p52 = por %p50, %p51
    %p53 = scmp.ne.s32.totalorder %s45, %s47
    %p54 = scmp.eq.s32.totalorder %s16, 1
    %p55 = por %p53, %p54
    %p56 = scmp.ne.s32.totalorder %s47, %s48
    %p57 = scmp.eq.s32.totalorder %s16, 0
    %p58 = por %p56, %p57
    %p59 = scmp.ne.s32.totalorder %s47, %s48
    %p60 = scmp.eq.s32.totalorder %s17, 1
    %p61 = por %p59, %p60
    %p63 = scmp.ne.s32.totalorder %s48, %s62
    %p64 = scmp.eq.s32.totalorder %s17, 0
    %p65 = por %p63, %p64
    %s67 = sadd.s32 %s66, 1
    %p70 = scmp.eq.s32.totalorder %s11, 1
    %p71 = scmp.ne.s32.totalorder %s66, %s68
    %p72 = scmp.eq.s32.totalorder %s11, 0
    %p73 = por %p71, %p72
    %p74 = scmp.ne.s32.totalorder %s66, %s68
    %p75 = scmp.eq.s32.totalorder %s16, 1
    %p76 = por %p74, %p75
    %p77 = scmp.ne.s32.totalorder %s68, %s69
    %p78 = scmp.eq.s32.totalorder %s16, 0
    %p79 = por %p77, %p78
    %p80 = scmp.ne.s32.totalorder %s68, %s69
    %p81 = scmp.eq.s32.totalorder %s17, 1
    %p82 = por %p80, %p81
    %p84 = scmp.ne.s32.totalorder %s69, %s83
    %p85 = scmp.eq.s32.totalorder %s17, 0
    %p86 = por %p84, %p85
    %s88 = sadd.s32 %s87, 1
    %p91 = scmp.eq.s32.totalorder %s11, 1
    %p92 = scmp.ne.s32.totalorder %s87, %s89
    %p93 = scmp.eq.s32.totalorder %s11, 0
    %p94 = por %p92, %p93
    %p95 = scmp.ne.s32.totalorder %s87, %s89
    %p96 = scmp.eq.s32.totalorder %s16, 1
    %p97 = por %p95, %p96
    %p98 = scmp.ne.s32.totalorder %s89, %s90
    %p99 = scmp.eq.s32.totalorder %s16, 0
    %p100 = por %p98, %p99
    %p101 = scmp.ne.s32.totalorder %s89, %s90
    %p102 = scmp.eq.s32.totalorder %s17, 1
    %p103 = por %p101, %p102
    %p105 = scmp.ne.s32.totalorder %s90, %s104
    %p106 = scmp.eq.s32.totalorder %s17, 0
    %p107 = por %p105, %p106
    %s109 = sadd.s32 %s108, 1
    %p112 = scmp.eq.s32.totalorder %s11, 1
    %p113 = scmp.ne.s32.totalorder %s108, %s110
    %p114 = scmp.eq.s32.totalorder %s11, 0
    %p115 = por %p113, %p114
    %p116 = scmp.ne.s32.totalorder %s108, %s110
    %p117 = scmp.eq.s32.totalorder %s16, 1
    %p118 = por %p116, %p117
    %p119 = scmp.ne.s32.totalorder %s110, %s111
    %p120 = scmp.eq.s32.totalorder %s16, 0
    %p121 = por %p119, %p120
    %p122 = scmp.ne.s32.totalorder %s110, %s111
    %p123 = scmp.eq.s32.totalorder %s17, 1
    %p124 = por %p122, %p123
    %p126 = scmp.ne.s32.totalorder %s111, %s125
    %p127 = scmp.eq.s32.totalorder %s17, 0
    %p128 = por %p126, %p127
    %s129 = ssub.s32 %s11, %s18
    %p130 = scmp.eq.s32.totalorder %s129, 0
    %s132 = sadd.s32 %s131, 1
    %s133 = scalar_select %p130, %s131, %s132
    %p136 = pneg %p130
    %p137 = scmp.eq.s32.totalorder %s11, 1
    %p138 = por %p136, %p137
    %p139 = scmp.ne.s32.totalorder %s131, %s134
    %p140 = scmp.eq.s32.totalorder %s11, 0
    %p141 = por %p139, %p140
    %p142 = scmp.ne.s32.totalorder %s131, %s134
    %p143 = scmp.eq.s32.totalorder %s16, 1
    %p144 = por %p142, %p143
    %p145 = scmp.ne.s32.totalorder %s134, %s135
    %p146 = scmp.eq.s32.totalorder %s16, 0
    %p147 = por %p145, %p146
    %p148 = scmp.ne.s32.totalorder %s134, %s135
    %p149 = scmp.eq.s32.totalorder %s17, 1
    %p150 = por %p148, %p149
    %p152 = scmp.ne.s32.totalorder %s135, %s151
    %p153 = scmp.eq.s32.totalorder %s17, 0
    %p154 = por %p152, %p153
    %p155 = scmp.le.s32.totalorder 1, %s11
    %p156 = scmp.lt.s32.totalorder %s11, 3
    %p157 = pnand %p155, %p156
    %p158 = pneg %p157
    // Predicated region
    $region9: #{tf_encoder_forward.1} parent=5 // pred_check
      _
    $region10: #{tf_encoder_forward.1} parent=5 // pred_check_branch
      %160 = sbr.rel (%p157) target = $region12
    $region11: #{tf_encoder_forward.1} parent=5 // pred_region
      %s161 = ssub.s32 %s11, 1
      // Predicated region
      $region13: #{tf_encoder_forward.1} parent=11 // pred_check
        %p162 = pneg %p58
      $region14: #{tf_encoder_forward.1} parent=11 // pred_check_branch
        %164 = sbr.rel (%p162) target = $region16
      $region15: #{tf_encoder_forward.1} parent=11 // pred_region
        _
      $region16: #{tf_encoder_forward.1} parent=11 // pred_fallthru
        _
      // Predicated region
      $region17: #{tf_encoder_forward.1} parent=11 // pred_check
        %p165 = pneg %p79
      $region18: #{tf_encoder_forward.1} parent=11 // pred_check_branch
        %167 = sbr.rel (%p165) target = $region20
      $region19: #{tf_encoder_forward.1} parent=11 // pred_region
        _
      $region20: #{tf_encoder_forward.1} parent=11 // pred_fallthru
        _
      // Predicated region
      $region21: #{tf_encoder_forward.1} parent=11 // pred_check
        %p168 = pneg %p100
      $region22: #{tf_encoder_forward.1} parent=11 // pred_check_branch
        %170 = sbr.rel (%p168) target = $region24
      $region23: #{tf_encoder_forward.1} parent=11 // pred_region
        _
      $region24: #{tf_encoder_forward.1} parent=11 // pred_fallthru
        _
      // Predicated region
      $region25: #{tf_encoder_forward.1} parent=11 // pred_check
        %p171 = pneg %p121
      $region26: #{tf_encoder_forward.1} parent=11 // pred_check_branch
        %173 = sbr.rel (%p171) target = $region28
      $region27: #{tf_encoder_forward.1} parent=11 // pred_region
        _
      $region28: #{tf_encoder_forward.1} parent=11 // pred_fallthru
        _
    $region12: #{tf_encoder_forward.1} parent=5 // pred_fallthru
      _
    %p174 = scmp.lt.s32.totalorder %s11, 2
    // Predicated region
    $region29: #{tf_encoder_forward.1} parent=5 // pred_check
      %p175 = pneg %p174
    $region30: #{tf_encoder_forward.1} parent=5 // pred_check_branch
      %177 = sbr.rel (%p175) target = $region32
    $region31: #{tf_encoder_forward.1} parent=5 // pred_region
      // Predicated region
      $region33: #{tf_encoder_forward.1} parent=31 // pred_check
        %p178 = pneg %p31
      $region34: #{tf_encoder_forward.1} parent=31 // pred_check_branch
        %180 = sbr.rel (%p178) target = $region36
      $region35: #{tf_encoder_forward.1} parent=31 // pred_region
        %s181 = smul.u32 2, %s11
        %p182 = scmp.lt.s32.totalorder %s181, 3
        %s183 = scalar_select %p182, %s181, 3
        %s184 = smul.addr %s183, 8
        %s185 = smul.addr %s184, 8
        %s186 = scalar_lea.vmem %s0, %s185
        %s187 = smul.u32 2, %s11
      $region36: #{tf_encoder_forward.1} parent=31 // pred_fallthru
        _
    $region32: #{tf_encoder_forward.1} parent=5 // pred_fallthru
      _
    %p188 = scmp.le.s32.totalorder 1, %s11
    %p189 = scmp.lt.s32.totalorder %s11, 3
    %p190 = pnand %p188, %p189
    %p191 = pneg %p190
    // Predicated region
    $region37: #{tf_encoder_forward.1} parent=5 // pred_check
      _
    $region38: #{tf_encoder_forward.1} parent=5 // pred_check_branch
      %193 = sbr.rel (%p190) target = $region40
    $region39: #{tf_encoder_forward.1} parent=5 // pred_region
      %s194 = ssub.s32 %s11, 1
      %s195 = smul.u32 2, %s16
      %p196 = scmp.lt.s32.totalorder %s195, 3
      %s197 = scalar_select %p196, %s195, 3
      %s198 = smul.addr %s197, 8
      %s199 = smul.addr %s198, 8
      %s200 = scalar_lea.vmem %s0, %s199
      %p201 = pneg %p37
      %p202 = pneg %p34
      %p203 = pneg %p58
      %p204 = pneg %p55
      %p205 = pneg %p79
      %p206 = pneg %p76
      %p207 = pneg %p100
      %p208 = pneg %p97
      %p209 = pneg %p121
      %p210 = pneg %p118
      %p211 = pneg %p147
      %p212 = pneg %p144
      %s213 = smul.u32 2, %s16
      %p214 = scmp.lt.s32.totalorder %s213, 3
      %s215 = scalar_select %p214, %s213, 3
      %s216 = smul.addr %s215, 9
      %s217 = smul.addr %s216, 8
      %s218 = scalar_lea.vmem %s5, %s217
      %s219 = smul.u32 2, %s16
      %p220 = scmp.lt.s32.totalorder %s219, 3
      %s221 = scalar_select %p220, %s219, 3
      %s222 = smul.addr %s221, 8
      %s223 = smul.addr %s222, 8
      %s224 = scalar_lea.vmem %s0, %s223
      %s225 = smul.u32 2, %s16
      %s226 = smul.u32 2, %s16
      %p227 = scmp.lt.s32.totalorder %s226, 3
      %s228 = scalar_select %p227, %s226, 3
      %s229 = smul.addr %s228, 9
      %s230 = smul.addr %s229, 8
      %s231 = scalar_lea.vmem %s5, %s230
      %s232 = smul.u32 2, %s16
      %v234 = vld [vmem:[%s1] sm:$0xff]
      %v235 = vld [vmem:[%s1 + $0x8] sm:$0xff]
      %v236 = vld [vmem:[%s1 + $0x10] sm:$0xff]
      %v237 = vld [vmem:[%s1 + $0x18] sm:$0xff]
      %v238 = vld [vmem:[%s1 + $0x20] sm:$0xff]
      %v239 = vld [vmem:[%s1 + $0x28] sm:$0xff]
      %v240 = vld [vmem:[%s1 + $0x30] sm:$0xff]
      %v241 = vld [vmem:[%s1 + $0x38] sm:$0xff]
      %v242 = vld [vmem:[%s1 + $0x40] sm:$0x1]
      %v243 = vld [vmem:[%s1 + $0x41] sm:$0x1]
      %v244 = vld [vmem:[%s2] sm:$0xf]
      %v245 = vld [vmem:[%s2 + $0x4] sm:$0xf]
      %v246 = vld [vmem:[%s2 + $0x8] sm:$0xf]
      %v247 = vld [vmem:[%s2 + $0xc] sm:$0xf]
      %v248 = vlaneseq
      %v249 = vand.u32 %v248, 127
      %vm250 = vcmp.lt.s32.totalorder %v249, 65
      %v251 = vsel %vm250, 0.0, -1e+30
      %v252 = vld [vmem:[%s224] sm:$0xff]
      %v253 = vld [vmem:[%s224 + $0x8] sm:$0xff]
      %v254 = vld [vmem:[%s224 + $0x10] sm:$0xff]
      %v255 = vld [vmem:[%s224 + $0x18] sm:$0xff]
      %v256 = vld [vmem:[%s224 + $0x20] sm:$0xff]
      %v257 = vld [vmem:[%s224 + $0x28] sm:$0xff]
      %v258 = vld [vmem:[%s224 + $0x30] sm:$0xff]
      %v259 = vld [vmem:[%s224 + $0x38] sm:$0xff]
      %v260 = vpack.c.bf16 %v253, %v252
      %v261 = vpack.c.bf16 %v255, %v254
      %v262 = vpack.c.bf16 %v257, %v256
      %v263 = vpack.c.bf16 %v259, %v258
      %v264 = vlaneseq
      %v265 = vshrl.u32 %v264, 7
      %v266 = vsub.s32 0, %v265
      %v267 = vrot.slane %v242, %v266
      %v270 = vunpack.c.l.b16 %v244
      %v271 = vunpack.c.l.b16 %v245
      %v272 = vpack.c.b16 %v271, %v270
      %vm274 = vcmask 130048
      %v276 = vsel %vm274, %v260, 0
      %v279 = vsel %vm274, %v261, 0
      %v282 = vsel %vm274, %v262, 0
      %v285 = vsel %vm274, %v263, 0
      %287 = vmatprep.subr.bf16.mxu0 0
      %288 = vmatpush1.bf16.msra.mxu0 %v272
      %289 = vmatprep.subr.bf16.mxu0 0
      %290 = vmatpush1.bf16.msra.mxu0 0
      %291 = vmatprep.subr.bf16.mxu0 0
      %292 = vmatpush1.bf16.msra.mxu0 0
      %293 = vmatprep.subr.bf16.mxu0 0
      %294 = vmatpush1.bf16.msra.mxu0 0
      %295 = vmatprep.subr.bf16.mxu0 0
      %296 = vmatpush1.bf16.msra.mxu0 0
      %297 = vmatprep.subr.bf16.mxu0 0
      %298 = vmatpush1.bf16.msra.mxu0 0
      %299 = vmatprep.subr.bf16.mxu0 0
      %300 = vmatpush1.bf16.msra.mxu0 0
      %301 = vmatprep.subr.bf16.mxu0 0
      %302 = vmatpush1.bf16.msra.mxu0 0
      %303 = vmatprep.subr.bf16.mxu0 0
      %304 = vmatpush1.bf16.msra.mxu0 0
      %305 = vmatprep.subr.bf16.mxu0 0
      %306 = vmatpush1.bf16.msra.mxu0 0
      %307 = vmatprep.subr.bf16.mxu0 0
      %308 = vmatpush1.bf16.msra.mxu0 0
      %309 = vmatprep.subr.bf16.mxu0 0
      %310 = vmatpush1.bf16.msra.mxu0 0
      %311 = vmatprep.subr.bf16.mxu0 0
      %312 = vmatpush1.bf16.msra.mxu0 0
      %313 = vmatprep.subr.bf16.mxu0 0
      %314 = vmatpush1.bf16.msra.mxu0 0
      %315 = vmatprep.subr.bf16.mxu0 0
      %316 = vmatpush1.bf16.msra.mxu0 0
      %317 = vmatprep.subr.bf16.mxu0 0
      %318 = vmatpush1.bf16.msra.mxu0 0
      %319 = vmatprep.mubr.bf16.mxu0 0
      %320 = vmatmul.mubr.bf16.gmra.mrb[0].mxu0 %v276
      %v321 = vpop.f32.mrb[0].mxu0
      %v322 = vadd.f32 %v267, %v321
      %v323 = vpop.f32.mrb[0].mxu0
      %v324 = vpop.f32.mrb[0].mxu0
      %v325 = vadd.f32 %v267, %v324
      %v326 = vpop.f32.mrb[0].mxu0
      %327 = vmatprep.mubr.bf16.mxu0 0
      %328 = vmatmul.mubr.bf16.gmra.mrb[0].mxu0 %v279
      %v329 = vpop.f32.mrb[0].mxu0
      %v330 = vadd.f32 %v267, %v329
      %v331 = vpop.f32.mrb[0].mxu0
      %v332 = vpop.f32.mrb[0].mxu0
      %v333 = vadd.f32 %v267, %v332
      %v334 = vpop.f32.mrb[0].mxu0
      %335 = vmatprep.mubr.bf16.mxu0 0
      %336 = vmatmul.mubr.bf16.gmra.mrb[0].mxu0 %v282
      %v337 = vpop.f32.mrb[0].mxu0
      %v338 = vadd.f32 %v267, %v337
      %v339 = vpop.f32.mrb[0].mxu0
      %v340 = vpop.f32.mrb[0].mxu0
      %v341 = vadd.f32 %v267, %v340
      %v342 = vpop.f32.mrb[0].mxu0
      %343 = vmatprep.mubr.bf16.mxu0 0
      %344 = vmatmul.mubr.bf16.gmra.mrb[0].mxu0 %v285
      %v345 = vpop.f32.mrb[0].mxu0
      %v346 = vadd.f32 %v267, %v345
      %v347 = vpop.f32.mrb[0].mxu0
      %v348 = vpop.f32.mrb[0].mxu0
      %v349 = vadd.f32 %v267, %v348
      %v350 = vpop.f32.mrb[0].mxu0
      %351 = vdwg.mxu0
      %v352 = vadd.f32 %v322, %v234
      %v353 = vadd.f32 %v325, %v235
      %v354 = vadd.f32 %v330, %v236
      %v355 = vadd.f32 %v333, %v237
      %v356 = vadd.f32 %v338, %v238
      %v357 = vadd.f32 %v341, %v239
      %v358 = vadd.f32 %v346, %v240
      %v359 = vadd.f32 %v349, %v241
      %s360 = scalar_lea.vmem %s224, 64
      %v361 = vld [vmem:[%s360] sm:$0xff]
      %v362 = vld [vmem:[%s360 + $0x8] sm:$0xff]
      %v363 = vld [vmem:[%s360 + $0x10] sm:$0xff]
      %v364 = vld [vmem:[%s360 + $0x18] sm:$0xff]
      %v365 = vld [vmem:[%s360 + $0x20] sm:$0xff]
      %v366 = vld [vmem:[%s360 + $0x28] sm:$0xff]
      %v367 = vld [vmem:[%s360 + $0x30] sm:$0xff]
      %v368 = vld [vmem:[%s360 + $0x38] sm:$0xff]
      %v369 = vpack.c.bf16 %v362, %v361
      %v370 = vpack.c.bf16 %v364, %v363
      %v371 = vpack.c.bf16 %v366, %v365
      %v372 = vpack.c.bf16 %v368, %v367
      %v374 = vsel %vm274, %v369, 0
      %v377 = vsel %vm274, %v370, 0
      %v380 = vsel %vm274, %v371, 0
      %v383 = vsel %vm274, %v372, 0
      %385 = vmatprep.subr.bf16.mxu0 0
      %386 = vmatpush1.bf16.msra.mxu0 %v272
      %387 = vmatprep.subr.bf16.mxu0 0
      %388 = vmatpush1.bf16.msra.mxu0 0
      %389 = vmatprep.subr.bf16.mxu0 0
      %390 = vmatpush1.bf16.msra.mxu0 0
      %391 = vmatprep.subr.bf16.mxu0 0
      %392 = vmatpush1.bf16.msra.mxu0 0
      %393 = vmatprep.subr.bf16.mxu0 0
      %394 = vmatpush1.bf16.msra.mxu0 0
      %395 = vmatprep.subr.bf16.mxu0 0
      %396 = vmatpush1.bf16.msra.mxu0 0
      %397 = vmatprep.subr.bf16.mxu0 0
      %398 = vmatpush1.bf16.msra.mxu0 0
      %399 = vmatprep.subr.bf16.mxu0 0
      %400 = vmatpush1.bf16.msra.mxu0 0
      %401 = vmatprep.subr.bf16.mxu0 0
      %402 = vmatpush1.bf16.msra.mxu0 0
      %403 = vmatprep.subr.bf16.mxu0 0
      %404 = vmatpush1.bf16.msra.mxu0 0
      %405 = vmatprep.subr.bf16.mxu0 0
      %406 = vmatpush1.bf16.msra.mxu0 0
      %407 = vmatprep.subr.bf16.mxu0 0
      %408 = vmatpush1.bf16.msra.mxu0 0
      %409 = vmatprep.subr.bf16.mxu0 0
      %410 = vmatpush1.bf16.msra.mxu0 0
      %411 = vmatprep.subr.bf16.mxu0 0
      %412 = vmatpush1.bf16.msra.mxu0 0
      %413 = vmatprep.subr.bf16.mxu0 0
      %414 = vmatpush1.bf16.msra.mxu0 0
      %415 = vmatprep.subr.bf16.mxu0 0
      %416 = vmatpush1.bf16.msra.mxu0 0
      %417 = vmatprep.mubr.bf16.mxu0 0
      %418 = vmatmul.mubr.bf16.gmra.mrb[0].mxu0 %v374
      %v419 = vpop.f32.mrb[0].mxu0
      %v420 = vadd.f32 %v267, %v419
      %v421 = vpop.f32.mrb[0].mxu0
      %v422 = vpop.f32.mrb[0].mxu0
      %v423 = vadd.f32 %v267, %v422
      %v424 = vpop.f32.mrb[0].mxu0
      %425 = vmatprep.mubr.bf16.mxu0 0
      %426 = vmatmul.mubr.bf16.gmra.mrb[0].mxu0 %v377
      %v427 = vpop.f32.mrb[0].mxu0
      %v428 = vadd.f32 %v267, %v427
      %v429 = vpop.f32.mrb[0].mxu0
      %v430 = vpop.f32.mrb[0].mxu0
      %v431 = vadd.f32 %v267, %v430
      %v432 = vpop.f32.mrb[0].mxu0
      %433 = vmatprep.mubr.bf16.mxu0 0
      %434 = vmatmul.mubr.bf16.gmra.mrb[0].mxu0 %v380
      %v435 = vpop.f32.mrb[0].mxu0
      %v436 = vadd.f32 %v267, %v435
      %v437 = vpop.f32.mrb[0].mxu0
      %v438 = vpop.f32.mrb[0].mxu0
      %v439 = vadd.f32 %v267, %v438
      %v440 = vpop.f32.mrb[0].mxu0
      %441 = vmatprep.mubr.bf16.mxu0 0
      %442 = vmatmul.mubr.bf16.gmra.mrb[0].mxu0 %v383
      %v443 = vpop.f32.mrb[0].mxu0
      %v444 = vadd.f32 %v267, %v443
      %v445 = vpop.f32.mrb[0].mxu0
      %v446 = vpop.f32.mrb[0].mxu0
      %v447 = vadd.f32 %v267, %v446
      %v448 = vpop.f32.mrb[0].mxu0
      %449 = vdwg.mxu0
      %v450 = vadd.f32 %v420, %v234
      %v451 = vadd.f32 %v423, %v235
      %v452 = vadd.f32 %v428, %v236
      %v453 = vadd.f32 %v431, %v237
      %v454 = vadd.f32 %v436, %v238
      %v455 = vadd.f32 %v439, %v239
      %v456 = vadd.f32 %v444, %v240
      %v457 = vadd.f32 %v447, %v241
      %v458 = vpack.c.bf16 %v353, %v352
      %v459 = vpack.c.bf16 %v355, %v354
      %v460 = vpack.c.bf16 %v357, %v356
      %v461 = vpack.c.bf16 %v359, %v358
      %v462 = vpack.c.bf16 %v450, 0.0
      %v463 = vpack.c.bf16 %v452, %v451
      %v464 = vpack.c.bf16 %v454, %v453
      %v465 = vpack.c.bf16 %v456, %v455
      %v466 = vpack.c.bf16 0.0, %v457
      %v467 = vld [vmem:[%s3] sm:$0xf]
      %v468 = vld [vmem:[%s3 + $0x4] sm:$0xf]
      %v469 = vld [vmem:[%s3 + $0x8] sm:$0xf]
      %v470 = vld [vmem:[%s3 + $0xc] sm:$0xf]
      %v471 = vld [vmem:[%s3 + $0x10] sm:$0xf]
      %v472 = vld [vmem:[%s3 + $0x14] sm:$0xf]
      %v473 = vld [vmem:[%s3 + $0x18] sm:$0xf]
      %v474 = vld [vmem:[%s4] sm:$0x1]
      %v475 = vld [vmem:[%s4 + $0x1] sm:$0x1]
      %v476 = vld [vmem:[%s4 + $0x2] sm:$0x1]
      %v477 = vlaneseq
      %v478 = vshrl.u32 %v477, 7
      %v479 = vsub.s32 0, %v478
      %v480 = vrot.slane %v474, %v479
      %v483 = vunpack.c.l.b16 %v467
      %v484 = vunpack.c.l.b16 %v468
      %v485 = vpack.c.b16 %v484, %v483
      %v488 = vsel %vm274, %v458, 0
      %v491 = vsel %vm274, %v459, 0
      %v494 = vsel %vm274, %v460, 0
      %v497 = vsel %vm274, %v461, 0
      %v500 = vsel %vm274, %v462, 0
      %v503 = vsel %vm274, %v463, 0
      %v506 = vsel %vm274, %v464, 0
      %v509 = vsel %vm274, %v465, 0
      %v512 = vsel %vm274, %v466, 0
      %514 = vmatprep.subr.bf16.mxu0 0
      %515 = vmatpush1.bf16.msra.mxu0 %v485
      %516 = vmatprep.subr.bf16.mxu0 0
      %517 = vmatpush1.bf16.msra.mxu0 0
      %518 = vmatprep.subr.bf16.mxu0 0
      %519 = vmatpush1.bf16.msra.mxu0 0
      %520 = vmatprep.subr.bf16.mxu0 0
      %521 = vmatpush1.bf16.msra.mxu0 0
      %522 = vmatprep.subr.bf16.mxu0 0
      %523 = vmatpush1.bf16.msra.mxu0 0
      %524 = vmatprep.subr.bf16.mxu0 0
      %525 = vmatpush1.bf16.msra.mxu0 0
      %526 = vmatprep.subr.bf16.mxu0 0
      %527 = vmatpush1.bf16.msra.mxu0 0
      %528 = vmatprep.subr.bf16.mxu0 0
      %529 = vmatpush1.bf16.msra.mxu0 0
      %530 = vmatprep.subr.bf16.mxu0 0
      %531 = vmatpush1.bf16.msra.mxu0 0
      %532 = vmatprep.subr.bf16.mxu0 0
      %533 = vmatpush1.bf16.msra.mxu0 0
      %534 = vmatprep.subr.bf16.mxu0 0
      %535 = vmatpush1.bf16.msra.mxu0 0
      %536 = vmatprep.subr.bf16.mxu0 0
      %537 = vmatpush1.bf16.msra.mxu0 0
      %538 = vmatprep.subr.bf16.mxu0 0
      %539 = vmatpush1.bf16.msra.mxu0 0
      %540 = vmatprep.subr.bf16.mxu0 0
      %541 = vmatpush1.bf16.msra.mxu0 0
      %542 = vmatprep.subr.bf16.mxu0 0
      %543 = vmatpush1.bf16.msra.mxu0 0
      %544 = vmatprep.subr.bf16.mxu0 0
      %545 = vmatpush1.bf16.msra.mxu0 0
      %546 = vmatprep.mubr.bf16.mxu0 0
      %547 = vmatmul.mubr.bf16.gmra.mrb[0].mxu0 %v488
      %v548 = vpop.f32.mrb[0].mxu0
      %v549 = vadd.f32 %v480, %v548
      %v550 = vpop.f32.mrb[0].mxu0
      %v551 = vpop.f32.mrb[0].mxu0
      %v552 = vadd.f32 %v480, %v551
      %v553 = vpop.f32.mrb[0].mxu0
      %554 = vmatprep.mubr.bf16.mxu0 0
      %555 = vmatmul.mubr.bf16.gmra.mrb[0].mxu0 %v491
      %v556 = vpop.f32.mrb[0].mxu0
      %v557 = vadd.f32 %v480, %v556
      %v558 = vpop.f32.mrb[0].mxu0
      %v559 = vpop.f32.mrb[0].mxu0
      %v560 = vadd.f32 %v480, %v559
      %v561 = vpop.f32.mrb[0].mxu0
      %562 = vmatprep.mubr.bf16.mxu0 0
      %563 = vmatmul.mubr.bf16.gmra.mrb[0].mxu0 %v494
      %v564 = vpop.f32.mrb[0].mxu0
      %v565 = vadd.f32 %v480, %v564
      %v566 = vpop.f32.mrb[0].mxu0
      %v567 = vpop.f32.mrb[0].mxu0
      %v568 = vadd.f32 %v480, %v567
      %v569 = vpop.f32.mrb[0].mxu0
      %570 = vmatprep.mubr.bf16.mxu0 0
      %571 = vmatmul.mubr.bf16.gmra.mrb[0].mxu0 %v497
      %v572 = vpop.f32.mrb[0].mxu0
      %v573 = vadd.f32 %v480, %v572
      %v574 = vpop.f32.mrb[0].mxu0
      %v575 = vpop.f32.mrb[0].mxu0
      %v576 = vadd.f32 %v480, %v575
      %v577 = vpop.f32.mrb[0].mxu0
      %578 = vmatprep.mubr.bf16.mxu0 0
      %579 = vmatmul.mubr.bf16.gmra.mrb[0].mxu0 %v500
      %v580 = vpop.f32.mrb[0].mxu0
      %v581 = vadd.f32 %v480, %v580
      %v582 = vpop.f32.mrb[0].mxu0
      %v583 = vpop.f32.mrb[0].mxu0
      %v584 = vadd.f32 %v480, %v583
      %v585 = vpop.f32.mrb[0].mxu0
      %586 = vmatprep.mubr.bf16.mxu0 0
      %587 = vmatmul.mubr.bf16.gmra.mrb[0].mxu0 %v503
      %v588 = vpop.f32.mrb[0].mxu0
      %v589 = vadd.f32 %v480, %v588
      %v590 = vpop.f32.mrb[0].mxu0
      %v591 = vpop.f32.mrb[0].mxu0
      %v592 = vadd.f32 %v480, %v591
      %v593 = vpop.f32.mrb[0].mxu0
      %594 = vmatprep.mubr.bf16.mxu0 0
      %595 = vmatmul.mubr.bf16.gmra.mrb[0].mxu0 %v506
      %v596 = vpop.f32.mrb[0].mxu0
      %v597 = vadd.f32 %v480, %v596
      %v598 = vpop.f32.mrb[0].mxu0
      %v599 = vpop.f32.mrb[0].mxu0
      %v600 = vadd.f32 %v480, %v599
      %v601 = vpop.f32.mrb[0].mxu0
      %602 = vmatprep.mubr.bf16.mxu0 0
      %603 = vmatmul.mubr.bf16.gmra.mrb[0].mxu0 %v509
      %v604 = vpop.f32.mrb[0].mxu0
      %v605 = vadd.f32 %v480, %v604
      %v606 = vpop.f32.mrb[0].mxu0
      %v607 = vpop.f32.mrb[0].mxu0
      %v608 = vadd.f32 %v480, %v607
      %v609 = vpop.f32.mrb[0].mxu0
      %610 = vmatprep.mubr.bf16.mxu0 0
      %611 = vmatmul.mubr.bf16.gmra.mrb[0].mxu0 %v512
      %v612 = vpop.f32.mrb[0].mxu0
      %v613 = vadd.f32 %v480, %v612
      %v614 = vpop.f32.mrb[0].mxu0
      %v615 = vpop.f32.mrb[0].mxu0
      %v616 = vadd.f32 %v480, %v615
      %v617 = vpop.f32.mrb[0].mxu0
      %618 = vdwg.mxu0
      %v619 = vlaneseq
      %v620 = vshrl.u32 %v619, 7
      %v621 = vsub.s32 0, %v620
      %v622 = vrot.slane %v475, %v621
      %v625 = vunpack.c.l.b16 %v469
      %v626 = vunpack.c.l.b16 %v470
      %v627 = vpack.c.b16 %v626, %v625
      %629 = vmatprep.subr.bf16.mxu0 0
      %630 = vmatpush1.bf16.msra.mxu0 %v627
      %631 = vmatprep.subr.bf16.mxu0 0
      %632 = vmatpush1.bf16.msra.mxu0 0
      %633 = vmatprep.subr.bf16.mxu0 0
      %634 = vmatpush1.bf16.msra.mxu0 0
      %635 = vmatprep.subr.bf16.mxu0 0
      %636 = vmatpush1.bf16.msra.mxu0 0
      %637 = vmatprep.subr.bf16.mxu0 0
      %638 = vmatpush1.bf16.msra.mxu0 0
      %639 = vmatprep.subr.bf16.mxu0 0
      %640 = vmatpush1.bf16.msra.mxu0 0
      %641 = vmatprep.subr.bf16.mxu0 0
      %642 = vmatpush1.bf16.msra.mxu0 0
      %643 = vmatprep.subr.bf16.mxu0 0
      %644 = vmatpush1.bf16.msra.mxu0 0
      %645 = vmatprep.subr.bf16.mxu0 0
      %646 = vmatpush1.bf16.msra.mxu0 0
      %647 = vmatprep.subr.bf16.mxu0 0
      %648 = vmatpush1.bf16.msra.mxu0 0
      %649 = vmatprep.subr.bf16.mxu0 0
      %650 = vmatpush1.bf16.msra.mxu0 0
      %651 = vmatprep.subr.bf16.mxu0 0
      %652 = vmatpush1.bf16.msra.mxu0 0
      %653 = vmatprep.subr.bf16.mxu0 0
      %654 = vmatpush1.bf16.msra.mxu0 0
      %655 = vmatprep.subr.bf16.mxu0 0
      %656 = vmatpush1.bf16.msra.mxu0 0
      %657 = vmatprep.subr.bf16.mxu0 0
      %658 = vmatpush1.bf16.msra.mxu0 0
      %659 = vmatprep.subr.bf16.mxu0 0
      %660 = vmatpush1.bf16.msra.mxu0 0
      %661 = vmatprep.mubr.bf16.mxu0 0
      %662 = vmatmul.mubr.bf16.gmra.mrb[0].mxu0 %v488
      %v663 = vpop.f32.mrb[0].mxu0
      %v664 = vadd.f32 %v622, %v663
      %v665 = vpop.f32.mrb[0].mxu0
      %v666 = vpop.f32.mrb[0].mxu0
      %v667 = vadd.f32 %v622, %v666
      %v668 = vpop.f32.mrb[0].mxu0
      %669 = vmatprep.mubr.bf16.mxu0 0
      %670 = vmatmul.mubr.bf16.gmra.mrb[0].mxu0 %v491
      %v671 = vpop.f32.mrb[0].mxu0
      %v672 = vadd.f32 %v622, %v671
      %v673 = vpop.f32.mrb[0].mxu0
      %v674 = vpop.f32.mrb[0].mxu0
      %v675 = vadd.f32 %v622, %v674
      %v676 = vpop.f32.mrb[0].mxu0
      %677 = vmatprep.mubr.bf16.mxu0 0
      %678 = vmatmul.mubr.bf16.gmra.mrb[0].mxu0 %v494
      %v679 = vpop.f32.mrb[0].mxu0
      %v680 = vadd.f32 %v622, %v679
      %v681 = vpop.f32.mrb[0].mxu0
      %v682 = vpop.f32.mrb[0].mxu0
      %v683 = vadd.f32 %v622, %v682
      %v684 = vpop.f32.mrb[0].mxu0
      %685 = vmatprep.mubr.bf16.mxu0 0
      %686 = vmatmul.mubr.bf16.gmra.mrb[0].mxu0 %v497
      %v687 = vpop.f32.mrb[0].mxu0
      %v688 = vadd.f32 %v622, %v687
      %v689 = vpop.f32.mrb[0].mxu0
      %v690 = vpop.f32.mrb[0].mxu0
      %v691 = vadd.f32 %v622, %v690
      %v692 = vpop.f32.mrb[0].mxu0
      %693 = vmatprep.mubr.bf16.mxu0 0
      %694 = vmatmul.mubr.bf16.gmra.mrb[0].mxu0 %v500
      %v695 = vpop.f32.mrb[0].mxu0
      %v696 = vadd.f32 %v622, %v695
      %v697 = vpop.f32.mrb[0].mxu0
      %v698 = vpop.f32.mrb[0].mxu0
      %v699 = vadd.f32 %v622, %v698
      %v700 = vpop.f32.mrb[0].mxu0
      %701 = vmatprep.mubr.bf16.mxu0 0
      %702 = vmatmul.mubr.bf16.gmra.mrb[0].mxu0 %v503
      %v703 = vpop.f32.mrb[0].mxu0
      %v704 = vadd.f32 %v622, %v703
      %v705 = vpop.f32.mrb[0].mxu0
      %v706 = vpop.f32.mrb[0].mxu0
      %v707 = vadd.f32 %v622, %v706
      %v708 = vpop.f32.mrb[0].mxu0
      %709 = vmatprep.mubr.bf16.mxu0 0
      %710 = vmatmul.mubr.bf16.gmra.mrb[0].mxu0 %v506
      %v711 = vpop.f32.mrb[0].mxu0
      %v712 = vadd.f32 %v622, %v711
      %v713 = vpop.f32.mrb[0].mxu0
      %v714 = vpop.f32.mrb[0].mxu0
      %v715 = vadd.f32 %v622, %v714
      %v716 = vpop.f32.mrb[0].mxu0
      %717 = vmatprep.mubr.bf16.mxu0 0
      %718 = vmatmul.mubr.bf16.gmra.mrb[0].mxu0 %v509
      %v719 = vpop.f32.mrb[0].mxu0
      %v720 = vadd.f32 %v622, %v719
      %v721 = vpop.f32.mrb[0].mxu0
      %v722 = vpop.f32.mrb[0].mxu0
      %v723 = vadd.f32 %v622, %v722
      %v724 = vpop.f32.mrb[0].mxu0
      %725 = vmatprep.mubr.bf16.mxu0 0
      %726 = vmatmul.mubr.bf16.gmra.mrb[0].mxu0 %v512
      %v727 = vpop.f32.mrb[0].mxu0
      %v728 = vadd.f32 %v622, %v727
      %v729 = vpop.f32.mrb[0].mxu0
      %v730 = vpop.f32.mrb[0].mxu0
      %v731 = vadd.f32 %v622, %v730
      %v732 = vpop.f32.mrb[0].mxu0
      %733 = vdwg.mxu0
      %v734 = vlaneseq
      %v735 = vshrl.u32 %v734, 7
      %v736 = vsub.s32 0, %v735
      %v737 = vrot.slane %v476, %v736
      %v740 = vunpack.c.l.b16 %v471
      %v741 = vunpack.c.l.b16 %v472
      %v742 = vpack.c.b16 %v741, %v740
      %744 = vmatprep.subr.bf16.mxu0 0
      %745 = vmatpush1.bf16.msra.mxu0 %v742
      %746 = vmatprep.subr.bf16.mxu0 0
      %747 = vmatpush1.bf16.msra.mxu0 0
      %748 = vmatprep.subr.bf16.mxu0 0
      %749 = vmatpush1.bf16.msra.mxu0 0
      %750 = vmatprep.subr.bf16.mxu0 0
      %751 = vmatpush1.bf16.msra.mxu0 0
      %752 = vmatprep.subr.bf16.mxu0 0
      %753 = vmatpush1.bf16.msra.mxu0 0
      %754 = vmatprep.subr.bf16.mxu0 0
      %755 = vmatpush1.bf16.msra.mxu0 0
      %756 = vmatprep.subr.bf16.mxu0 0
      %757 = vmatpush1.bf16.msra.mxu0 0
      %758 = vmatprep.subr.bf16.mxu0 0
      %759 = vmatpush1.bf16.msra.mxu0 0
      %760 = vmatprep.subr.bf16.mxu0 0
      %761 = vmatpush1.bf16.msra.mxu0 0
      %762 = vmatprep.subr.bf16.mxu0 0
      %763 = vmatpush1.bf16.msra.mxu0 0
      %764 = vmatprep.subr.bf16.mxu0 0
      %765 = vmatpush1.bf16.msra.mxu0 0
      %766 = vmatprep.subr.bf16.mxu0 0
      %767 = vmatpush1.bf16.msra.mxu0 0
      %768 = vmatprep.subr.bf16.mxu0 0
      %769 = vmatpush1.bf16.msra.mxu0 0
      %770 = vmatprep.subr.bf16.mxu0 0
      %771 = vmatpush1.bf16.msra.mxu0 0
      %772 = vmatprep.subr.bf16.mxu0 0
      %773 = vmatpush1.bf16.msra.mxu0 0
      %774 = vmatprep.subr.bf16.mxu0 0
      %775 = vmatpush1.bf16.msra.mxu0 0
      %776 = vmatprep.mubr.bf16.mxu0 0
      %777 = vmatmul.mubr.bf16.gmra.mrb[0].mxu0 %v488
      %v778 = vpop.f32.mrb[0].mxu0
      %v779 = vadd.f32 %v737, %v778
      %v780 = vpop.f32.mrb[0].mxu0
      %v781 = vpop.f32.mrb[0].mxu0
      %v782 = vadd.f32 %v737, %v781
      %v783 = vpop.f32.mrb[0].mxu0
      %784 = vmatprep.mubr.bf16.mxu0 0
      %785 = vmatmul.mubr.bf16.gmra.mrb[0].mxu0 %v491
      %v786 = vpop.f32.mrb[0].mxu0
      %v787 = vadd.f32 %v737, %v786
      %v788 = vpop.f32.mrb[0].mxu0
      %v789 = vpop.f32.mrb[0].mxu0
      %v790 = vadd.f32 %v737, %v789
      %v791 = vpop.f32.mrb[0].mxu0
      %792 = vmatprep.mubr.bf16.mxu0 0
      %793 = vmatmul.mubr.bf16.gmra.mrb[0].mxu0 %v494
      %v794 = vpop.f32.mrb[0].mxu0
      %v795 = vadd.f32 %v737, %v794
      %v796 = vpop.f32.mrb[0].mxu0
      %v797 = vpop.f32.mrb[0].mxu0
      %v798 = vadd.f32 %v737, %v797
      %v799 = vpop.f32.mrb[0].mxu0
      %800 = vmatprep.mubr.bf16.mxu0 0
      %801 = vmatmul.mubr.bf16.gmra.mrb[0].mxu0 %v497
      %v802 = vpop.f32.mrb[0].mxu0
      %v803 = vadd.f32 %v737, %v802
      %v804 = vpop.f32.mrb[0].mxu0
      %v805 = vpop.f32.mrb[0].mxu0
      %v806 = vadd.f32 %v737, %v805
      %v807 = vpop.f32.mrb[0].mxu0
      %808 = vmatprep.mubr.bf16.mxu0 0
      %809 = vmatmul.mubr.bf16.gmra.mrb[0].mxu0 %v500
      %v810 = vpop.f32.mrb[0].mxu0
      %v811 = vadd.f32 %v737, %v810
      %v812 = vpop.f32.mrb[0].mxu0
      %v813 = vpop.f32.mrb[0].mxu0
      %v814 = vadd.f32 %v737, %v813
      %v815 = vpop.f32.mrb[0].mxu0
      %816 = vmatprep.mubr.bf16.mxu0 0
      %817 = vmatmul.mubr.bf16.gmra.mrb[0].mxu0 %v503
      %v818 = vpop.f32.mrb[0].mxu0
      %v819 = vadd.f32 %v737, %v818
      %v820 = vpop.f32.mrb[0].mxu0
      %v821 = vpop.f32.mrb[0].mxu0
      %v822 = vadd.f32 %v737, %v821
      %v823 = vpop.f32.mrb[0].mxu0
      %824 = vmatprep.mubr.bf16.mxu0 0
      %825 = vmatmul.mubr.bf16.gmra.mrb[0].mxu0 %v506
      %v826 = vpop.f32.mrb[0].mxu0
      %v827 = vadd.f32 %v737, %v826
      %v828 = vpop.f32.mrb[0].mxu0
      %v829 = vpop.f32.mrb[0].mxu0
      %v830 = vadd.f32 %v737, %v829
      %v831 = vpop.f32.mrb[0].mxu0
      %832 = vmatprep.mubr.bf16.mxu0 0
      %833 = vmatmul.mubr.bf16.gmra.mrb[0].mxu0 %v509
      %v834 = vpop.f32.mrb[0].mxu0
      %v835 = vadd.f32 %v737, %v834
      %v836 = vpop.f32.mrb[0].mxu0
      %v837 = vpop.f32.mrb[0].mxu0
      %v838 = vadd.f32 %v737, %v837
      %v839 = vpop.f32.mrb[0].mxu0
      %840 = vmatprep.mubr.bf16.mxu0 0
      %841 = vmatmul.mubr.bf16.gmra.mrb[0].mxu0 %v512
      %v842 = vpop.f32.mrb[0].mxu0
      %v843 = vadd.f32 %v737, %v842
      %v844 = vpop.f32.mrb[0].mxu0
      %v845 = vpop.f32.mrb[0].mxu0
      %v846 = vadd.f32 %v737, %v845
      %v847 = vpop.f32.mrb[0].mxu0
      %848 = vdwg.mxu0
      %v849 = vld [vmem:[%s3 + $0x20] sm:$0xf]
      %v850 = vld [vmem:[%s3 + $0x24] sm:$0xf]
      %v851 = vld [vmem:[%s3 + $0x28] sm:$0xf]
      %v852 = vld [vmem:[%s3 + $0x2c] sm:$0xf]
      %v853 = vld [vmem:[%s3 + $0x30] sm:$0xf]
      %v854 = vld [vmem:[%s3 + $0x34] sm:$0xf]
      %v855 = vld [vmem:[%s3 + $0x38] sm:$0xf]
      %v856 = vld [vmem:[%s4 + $0x3] sm:$0x1]
      %v857 = vld [vmem:[%s4 + $0x4] sm:$0x1]
      %v858 = vld [vmem:[%s4 + $0x5] sm:$0x1]
      %v859 = vlaneseq
      %v860 = vshrl.u32 %v859, 7
      %v861 = vsub.s32 0, %v860
      %v862 = vrot.slane %v856, %v861
      %v865 = vunpack.c.l.b16 %v849
      %v866 = vunpack.c.l.b16 %v850
      %v867 = vpack.c.b16 %v866, %v865
      %869 = vmatprep.subr.bf16.mxu0 0
      %870 = vmatpush1.bf16.msra.mxu0 %v867
      %871 = vmatprep.subr.bf16.mxu0 0
      %872 = vmatpush1.bf16.msra.mxu0 0
      %873 = vmatprep.subr.bf16.mxu0 0
      %874 = vmatpush1.bf16.msra.mxu0 0
      %875 = vmatprep.subr.bf16.mxu0 0
      %876 = vmatpush1.bf16.msra.mxu0 0
      %877 = vmatprep.subr.bf16.mxu0 0
      %878 = vmatpush1.bf16.msra.mxu0 0
      %879 = vmatprep.subr.bf16.mxu0 0
      %880 = vmatpush1.bf16.msra.mxu0 0
      %881 = vmatprep.subr.bf16.mxu0 0
      %882 = vmatpush1.bf16.msra.mxu0 0
      %883 = vmatprep.subr.bf16.mxu0 0
      %884 = vmatpush1.bf16.msra.mxu0 0
      %885 = vmatprep.subr.bf16.mxu0 0
      %886 = vmatpush1.bf16.msra.mxu0 0
      %887 = vmatprep.subr.bf16.mxu0 0
      %888 = vmatpush1.bf16.msra.mxu0 0
      %889 = vmatprep.subr.bf16.mxu0 0
      %890 = vmatpush1.bf16.msra.mxu0 0
      %891 = vmatprep.subr.bf16.mxu0 0
      %892 = vmatpush1.bf16.msra.mxu0 0
      %893 = vmatprep.subr.bf16.mxu0 0
      %894 = vmatpush1.bf16.msra.mxu0 0
      %895 = vmatprep.subr.bf16.mxu0 0
      %896 = vmatpush1.bf16.msra.mxu0 0
      %897 = vmatprep.subr.bf16.mxu0 0
      %898 = vmatpush1.bf16.msra.mxu0 0
      %899 = vmatprep.subr.bf16.mxu0 0
      %900 = vmatpush1.bf16.msra.mxu0 0
      %901 = vmatprep.mubr.bf16.mxu0 0
      %902 = vmatmul.mubr.bf16.gmra.mrb[0].mxu0 %v488
      %v903 = vpop.f32.mrb[0].mxu0
      %v904 = vadd.f32 %v862, %v903
      %v905 = vpop.f32.mrb[0].mxu0
      %v906 = vpop.f32.mrb[0].mxu0
      %v907 = vadd.f32 %v862, %v906
      %v908 = vpop.f32.mrb[0].mxu0
      %909 = vmatprep.mubr.bf16.mxu0 0
      %910 = vmatmul.mubr.bf16.gmra.mrb[0].mxu0 %v491
      %v911 = vpop.f32.mrb[0].mxu0
      %v912 = vadd.f32 %v862, %v911
      %v913 = vpop.f32.mrb[0].mxu0
      %v914 = vpop.f32.mrb[0].mxu0
      %v915 = vadd.f32 %v862, %v914
      %v916 = vpop.f32.mrb[0].mxu0
      %917 = vmatprep.mubr.bf16.mxu0 0
      %918 = vmatmul.mubr.bf16.gmra.mrb[0].mxu0 %v494
      %v919 = vpop.f32.mrb[0].mxu0
      %v920 = vadd.f32 %v862, %v919
      %v921 = vpop.f32.mrb[0].mxu0
      %v922 = vpop.f32.mrb[0].mxu0
      %v923 = vadd.f32 %v862, %v922
      %v924 = vpop.f32.mrb[0].mxu0
      %925 = vmatprep.mubr.bf16.mxu0 0
      %926 = vmatmul.mubr.bf16.gmra.mrb[0].mxu0 %v497
      %v927 = vpop.f32.mrb[0].mxu0
      %v928 = vadd.f32 %v862, %v927
      %v929 = vpop.f32.mrb[0].mxu0
      %v930 = vpop.f32.mrb[0].mxu0
      %v931 = vadd.f32 %v862, %v930
      %v932 = vpop.f32.mrb[0].mxu0
      %933 = vmatprep.mubr.bf16.mxu0 0
      %934 = vmatmul.mubr.bf16.gmra.mrb[0].mxu0 %v500
      %v935 = vpop.f32.mrb[0].mxu0
      %v936 = vadd.f32 %v862, %v935
      %v937 = vpop.f32.mrb[0].mxu0
      %v938 = vpop.f32.mrb[0].mxu0
      %v939 = vadd.f32 %v862, %v938
      %v940 = vpop.f32.mrb[0].mxu0
      %941 = vmatprep.mubr.bf16.mxu0 0
      %942 = vmatmul.mubr.bf16.gmra.mrb[0].mxu0 %v503
      %v943 = vpop.f32.mrb[0].mxu0
      %v944 = vadd.f32 %v862, %v943
      %v945 = vpop.f32.mrb[0].mxu0
      %v946 = vpop.f32.mrb[0].mxu0
      %v947 = vadd.f32 %v862, %v946
      %v948 = vpop.f32.mrb[0].mxu0
      %949 = vmatprep.mubr.bf16.mxu0 0
      %950 = vmatmul.mubr.bf16.gmra.mrb[0].mxu0 %v506
      %v951 = vpop.f32.mrb[0].mxu0
      %v952 = vadd.f32 %v862, %v951
      %v953 = vpop.f32.mrb[0].mxu0
      %v954 = vpop.f32.mrb[0].mxu0
      %v955 = vadd.f32 %v862, %v954
      %v956 = vpop.f32.mrb[0].mxu0
      %957 = vmatprep.mubr.bf16.mxu0 0
      %958 = vmatmul.mubr.bf16.gmra.mrb[0].mxu0 %v509
      %v959 = vpop.f32.mrb[0].mxu0
      %v960 = vadd.f32 %v862, %v959
      %v961 = vpop.f32.mrb[0].mxu0
      %v962 = vpop.f32.mrb[0].mxu0
      %v963 = vadd.f32 %v862, %v962
      %v964 = vpop.f32.mrb[0].mxu0
      %965 = vmatprep.mubr.bf16.mxu0 0
      %966 = vmatmul.mubr.bf16.gmra.mrb[0].mxu0 %v512
      %v967 = vpop.f32.mrb[0].mxu0
      %v968 = vadd.f32 %v862, %v967
      %v969 = vpop.f32.mrb[0].mxu0
      %v970 = vpop.f32.mrb[0].mxu0
      %v971 = vadd.f32 %v862, %v970
      %v972 = vpop.f32.mrb[0].mxu0
      %973 = vdwg.mxu0
      %v974 = vlaneseq
      %v975 = vshrl.u32 %v974, 7
      %v976 = vsub.s32 0, %v975
      %v977 = vrot.slane %v857, %v976
      %v980 = vunpack.c.l.b16 %v851
      %v981 = vunpack.c.l.b16 %v852
      %v982 = vpack.c.b16 %v981, %v980
      %984 = vmatprep.subr.bf16.mxu0 0
      %985 = vmatpush1.bf16.msra.mxu0 %v982
      %986 = vmatprep.subr.bf16.mxu0 0
      %987 = vmatpush1.bf16.msra.mxu0 0
      %988 = vmatprep.subr.bf16.mxu0 0
      %989 = vmatpush1.bf16.msra.mxu0 0
      %990 = vmatprep.subr.bf16.mxu0 0
      %991 = vmatpush1.bf16.msra.mxu0 0
      %992 = vmatprep.subr.bf16.mxu0 0
      %993 = vmatpush1.bf16.msra.mxu0 0
      %994 = vmatprep.subr.bf16.mxu0 0
      %995 = vmatpush1.bf16.msra.mxu0 0
      %996 = vmatprep.subr.bf16.mxu0 0
      %997 = vmatpush1.bf16.msra.mxu0 0
      %998 = vmatprep.subr.bf16.mxu0 0
      %999 = vmatpush1.bf16.msra.mxu0 0
      %1000 = vmatprep.subr.bf16.mxu0 0
      %1001 = vmatpush1.bf16.msra.mxu0 0
      %1002 = vmatprep.subr.bf16.mxu0 0
      %1003 = vmatpush1.bf16.msra.mxu0 0
      %1004 = vmatprep.subr.bf16.mxu0 0
      %1005 = vmatpush1.bf16.msra.mxu0 0
      %1006 = vmatprep.subr.bf16.mxu0 0
      %1007 = vmatpush1.bf16.msra.mxu0 0
      %1008 = vmatprep.subr.bf16.mxu0 0
      %1009 = vmatpush1.bf16.msra.mxu0 0
      %1010 = vmatprep.subr.bf16.mxu0 0
      %1011 = vmatpush1.bf16.msra.mxu0 0
      %1012 = vmatprep.subr.bf16.mxu0 0
      %1013 = vmatpush1.bf16.msra.mxu0 0
      %1014 = vmatprep.subr.bf16.mxu0 0
      %1015 = vmatpush1.bf16.msra.mxu0 0
      %1016 = vmatprep.mubr.bf16.mxu0 0
      %1017 = vmatmul.mubr.bf16.gmra.mrb[0].mxu0 %v488
      %v1018 = vpop.f32.mrb[0].mxu0
      %v1019 = vadd.f32 %v977, %v1018
      %v1020 = vpop.f32.mrb[0].mxu0
      %v1021 = vpop.f32.mrb[0].mxu0
      %v1022 = vadd.f32 %v977, %v1021
      %v1023 = vpop.f32.mrb[0].mxu0
      %1024 = vmatprep.mubr.bf16.mxu0 0
      %1025 = vmatmul.mubr.bf16.gmra.mrb[0].mxu0 %v491
      %v1026 = vpop.f32.mrb[0].mxu0
      %v1027 = vadd.f32 %v977, %v1026
      %v1028 = vpop.f32.mrb[0].mxu0
      %v1029 = vpop.f32.mrb[0].mxu0
      %v1030 = vadd.f32 %v977, %v1029
      %v1031 = vpop.f32.mrb[0].mxu0
      %1032 = vmatprep.mubr.bf16.mxu0 0
      %1033 = vmatmul.mubr.bf16.gmra.mrb[0].mxu0 %v494
      %v1034 = vpop.f32.mrb[0].mxu0
      %v1035 = vadd.f32 %v977, %v1034
      %v1036 = vpop.f32.mrb[0].mxu0
      %v1037 = vpop.f32.mrb[0].mxu0
      %v1038 = vadd.f32 %v977, %v1037
      %v1039 = vpop.f32.mrb[0].mxu0
      %1040 = vmatprep.mubr.bf16.mxu0 0
      %1041 = vmatmul.mubr.bf16.gmra.mrb[0].mxu0 %v497
      %v1042 = vpop.f32.mrb[0].mxu0
      %v1043 = vadd.f32 %v977, %v1042
      %v1044 = vpop.f32.mrb[0].mxu0
      %v1045 = vpop.f32.mrb[0].mxu0
      %v1046 = vadd.f32 %v977, %v1045
      %v1047 = vpop.f32.mrb[0].mxu0
      %1048 = vmatprep.mubr.bf16.mxu0 0
      %1049 = vmatmul.mubr.bf16.gmra.mrb[0].mxu0 %v500
      %v1050 = vpop.f32.mrb[0].mxu0
      %v1051 = vadd.f32 %v977, %v1050
      %v1052 = vpop.f32.mrb[0].mxu0
      %v1053 = vpop.f32.mrb[0].mxu0
      %v1054 = vadd.f32 %v977, %v1053
      %v1055 = vpop.f32.mrb[0].mxu0
      %1056 = vmatprep.mubr.bf16.mxu0 0
      %1057 = vmatmul.mubr.bf16.gmra.mrb[0].mxu0 %v503
      %v1058 = vpop.f32.mrb[0].mxu0
      %v1059 = vadd.f32 %v977, %v1058
      %v1060 = vpop.f32.mrb[0].mxu0
      %v1061 = vpop.f32.mrb[0].mxu0
      %v1062 = vadd.f32 %v977, %v1061
      %v1063 = vpop.f32.mrb[0].mxu0
      %1064 = vmatprep.mubr.bf16.mxu0 0
      %1065 = vmatmul.mubr.bf16.gmra.mrb[0].mxu0 %v506
      %v1066 = vpop.f32.mrb[0].mxu0
      %v1067 = vadd.f32 %v977, %v1066
      %v1068 = vpop.f32.mrb[0].mxu0
      %v1069 = vpop.f32.mrb[0].mxu0
      %v1070 = vadd.f32 %v977, %v1069
      %v1071 = vpop.f32.mrb[0].mxu0
      %1072 = vmatprep.mubr.bf16.mxu0 0
      %1073 = vmatmul.mubr.bf16.gmra.mrb[0].mxu0 %v509
      %v1074 = vpop.f32.mrb[0].mxu0
      %v1075 = vadd.f32 %v977, %v1074
      %v1076 = vpop.f32.mrb[0].mxu0
      %v1077 = vpop.f32.mrb[0].mxu0
      %v1078 = vadd.f32 %v977, %v1077
      %v1079 = vpop.f32.mrb[0].mxu0
      %1080 = vmatprep.mubr.bf16.mxu0 0
      %1081 = vmatmul.mubr.bf16.gmra.mrb[0].mxu0 %v512
      %v1082 = vpop.f32.mrb[0].mxu0
      %v1083 = vadd.f32 %v977, %v1082
      %v1084 = vpop.f32.mrb[0].mxu0
      %v1085 = vpop.f32.mrb[0].mxu0
      %v1086 = vadd.f32 %v977, %v1085
      %v1087 = vpop.f32.mrb[0].mxu0
      %1088 = vdwg.mxu0
      %v1089 = vlaneseq
      %v1090 = vshrl.u32 %v1089, 7
      %v1091 = vsub.s32 0, %v1090
      %v1092 = vrot.slane %v858, %v1091
      %v1095 = vunpack.c.l.b16 %v853
      %v1096 = vunpack.c.l.b16 %v854
      %v1097 = vpack.c.b16 %v1096, %v1095
      %1099 = vmatprep.subr.bf16.mxu0 0
      %1100 = vmatpush1.bf16.msra.mxu0 %v1097
      %1101 = vmatprep.subr.bf16.mxu0 0
      %1102 = vmatpush1.bf16.msra.mxu0 0
      %1103 = vmatprep.subr.bf16.mxu0 0
      %1104 = vmatpush1.bf16.msra.mxu0 0
      %1105 = vmatprep.subr.bf16.mxu0 0
      %1106 = vmatpush1.bf16.msra.mxu0 0
      %1107 = vmatprep.subr.bf16.mxu0 0
      %1108 = vmatpush1.bf16.msra.mxu0 0
      %1109 = vmatprep.subr.bf16.mxu0 0
      %1110 = vmatpush1.bf16.msra.mxu0 0
      %1111 = vmatprep.subr.bf16.mxu0 0
      %1112 = vmatpush1.bf16.msra.mxu0 0
      %1113 = vmatprep.subr.bf16.mxu0 0
      %1114 = vmatpush1.bf16.msra.mxu0 0
      %1115 = vmatprep.subr.bf16.mxu0 0
      %1116 = vmatpush1.bf16.msra.mxu0 0
      %1117 = vmatprep.subr.bf16.mxu0 0
      %1118 = vmatpush1.bf16.msra.mxu0 0
      %1119 = vmatprep.subr.bf16.mxu0 0
      %1120 = vmatpush1.bf16.msra.mxu0 0
      %1121 = vmatprep.subr.bf16.mxu0 0
      %1122 = vmatpush1.bf16.msra.mxu0 0
      %1123 = vmatprep.subr.bf16.mxu0 0
      %1124 = vmatpush1.bf16.msra.mxu0 0
      %1125 = vmatprep.subr.bf16.mxu0 0
      %1126 = vmatpush1.bf16.msra.mxu0 0
      %1127 = vmatprep.subr.bf16.mxu0 0
      %1128 = vmatpush1.bf16.msra.mxu0 0
      %1129 = vmatprep.subr.bf16.mxu0 0
      %1130 = vmatpush1.bf16.msra.mxu0 0
      %1131 = vmatprep.mubr.bf16.mxu0 0
      %1132 = vmatmul.mubr.bf16.gmra.mrb[0].mxu0 %v488
      %v1133 = vpop.f32.mrb[0].mxu0
      %v1134 = vadd.f32 %v1092, %v1133
      %v1135 = vpop.f32.mrb[0].mxu0
      %v1136 = vpop.f32.mrb[0].mxu0
      %v1137 = vadd.f32 %v1092, %v1136
      %v1138 = vpop.f32.mrb[0].mxu0
      %1139 = vmatprep.mubr.bf16.mxu0 0
      %1140 = vmatmul.mubr.bf16.gmra.mrb[0].mxu0 %v491
      %v1141 = vpop.f32.mrb[0].mxu0
      %v1142 = vadd.f32 %v1092, %v1141
      %v1143 = vpop.f32.mrb[0].mxu0
      %v1144 = vpop.f32.mrb[0].mxu0
      %v1145 = vadd.f32 %v1092, %v1144
      %v1146 = vpop.f32.mrb[0].mxu0
      %1147 = vmatprep.mubr.bf16.mxu0 0
      %1148 = vmatmul.mubr.bf16.gmra.mrb[0].mxu0 %v494
      %v1149 = vpop.f32.mrb[0].mxu0
      %v1150 = vadd.f32 %v1092, %v1149
      %v1151 = vpop.f32.mrb[0].mxu0
      %v1152 = vpop.f32.mrb[0].mxu0
      %v1153 = vadd.f32 %v1092, %v1152
      %v1154 = vpop.f32.mrb[0].mxu0
      %1155 = vmatprep.mubr.bf16.mxu0 0
      %1156 = vmatmul.mubr.bf16.gmra.mrb[0].mxu0 %v497
      %v1157 = vpop.f32.mrb[0].mxu0
      %v1158 = vadd.f32 %v1092, %v1157
      %v1159 = vpop.f32.mrb[0].mxu0
      %v1160 = vpop.f32.mrb[0].mxu0
      %v1161 = vadd.f32 %v1092, %v1160
      %v1162 = vpop.f32.mrb[0].mxu0
      %1163 = vmatprep.mubr.bf16.mxu0 0
      %1164 = vmatmul.mubr.bf16.gmra.mrb[0].mxu0 %v500
      %v1165 = vpop.f32.mrb[0].mxu0
      %v1166 = vadd.f32 %v1092, %v1165
      %v1167 = vpop.f32.mrb[0].mxu0
      %v1168 = vpop.f32.mrb[0].mxu0
      %v1169 = vadd.f32 %v1092, %v1168
      %v1170 = vpop.f32.mrb[0].mxu0
      %1171 = vmatprep.mubr.bf16.mxu0 0
      %1172 = vmatmul.mubr.bf16.gmra.mrb[0].mxu0 %v503
      %v1173 = vpop.f32.mrb[0].mxu0
      %v1174 = vadd.f32 %v1092, %v1173
      %v1175 = vpop.f32.mrb[0].mxu0
      %v1176 = vpop.f32.mrb[0].mxu0
      %v1177 = vadd.f32 %v1092, %v1176
      %v1178 = vpop.f32.mrb[0].mxu0
      %1179 = vmatprep.mubr.bf16.mxu0 0
      %1180 = vmatmul.mubr.bf16.gmra.mrb[0].mxu0 %v506
      %v1181 = vpop.f32.mrb[0].mxu0
      %v1182 = vadd.f32 %v1092, %v1181
      %v1183 = vpop.f32.mrb[0].mxu0
      %v1184 = vpop.f32.mrb[0].mxu0
      %v1185 = vadd.f32 %v1092, %v1184
      %v1186 = vpop.f32.mrb[0].mxu0
      %1187 = vmatprep.mubr.bf16.mxu0 0
      %1188 = vmatmul.mubr.bf16.gmra.mrb[0].mxu0 %v509
      %v1189 = vpop.f32.mrb[0].mxu0
      %v1190 = vadd.f32 %v1092, %v1189
      %v1191 = vpop.f32.mrb[0].mxu0
      %v1192 = vpop.f32.mrb[0].mxu0
      %v1193 = vadd.f32 %v1092, %v1192
      %v1194 = vpop.f32.mrb[0].mxu0
      %1195 = vmatprep.mubr.bf16.mxu0 0
      %1196 = vmatmul.mubr.bf16.gmra.mrb[0].mxu0 %v512
      %v1197 = vpop.f32.mrb[0].mxu0
      %v1198 = vadd.f32 %v1092, %v1197
      %v1199 = vpop.f32.mrb[0].mxu0
      %v1200 = vpop.f32.mrb[0].mxu0
      %v1201 = vadd.f32 %v1092, %v1200
      %v1202 = vpop.f32.mrb[0].mxu0
      %1203 = vdwg.mxu0
      %v1204 = vld [vmem:[%s4 + $0x6] sm:$0x1]
      %v1205 = vpack.c.bf16 %v552, %v549
      %v1206 = vpack.c.bf16 %v560, %v557
      %v1207 = vpack.c.bf16 %v568, %v565
      %v1208 = vpack.c.bf16 %v576, %v573
      %v1209 = vpack.c.bf16 %v581, %v581
      %v1210 = vpack.c.bf16 %v667, %v664
      %v1211 = vpack.c.bf16 %v675, %v672
      %v1212 = vpack.c.bf16 %v683, %v680
      %v1213 = vpack.c.bf16 %v691, %v688
      %v1214 = vpack.c.bf16 %v696, %v696
      %v1215 = vpack.c.bf16 %v782, %v779
      %v1216 = vpack.c.bf16 %v790, %v787
      %v1217 = vpack.c.bf16 %v798, %v795
      %v1218 = vpack.c.bf16 %v806, %v803
      %v1219 = vpack.c.bf16 %v811, %v811
      %vm1220 = vcmask 64512
      %v1222 = vsel %vm1220, %v1205, 0
      %v1225 = vsel %vm1220, %v1206, 0
      %v1228 = vsel %vm1220, %v1207, 0
      %v1231 = vsel %vm1220, %v1208, 0
      %v1234 = vsel %vm1220, %v1209, 0
      %v1237 = vsel %vm1220, %v1210, 0
      %v1240 = vsel %vm1220, %v1211, 0
      %v1243 = vsel %vm1220, %v1212, 0
      %v1246 = vsel %vm1220, %v1213, 0
      %v1249 = vsel %vm1220, %v1214, 0
      %1251 = vmatprep.subr.bf16.mxu0 0
      %1252 = vmatpush1.bf16.xpose.msra.mxu0 %v1237
      %1253 = vmatprep.subr.bf16.mxu0 0
      %1254 = vmatpush1.bf16.xpose.msra.mxu0 %v1240
      %1255 = vmatprep.subr.bf16.mxu0 0
      %1256 = vmatpush1.bf16.xpose.msra.mxu0 %v1243
      %1257 = vmatprep.subr.bf16.mxu0 0
      %1258 = vmatpush1.bf16.xpose.msra.mxu0 %v1246
      %1259 = vmatprep.subr.bf16.mxu0 0
      %1260 = vmatpush1.bf16.xpose.msra.mxu0 %v1249
      %1261 = vmatprep.subr.bf16.mxu0 0
      %1262 = vmatpush1.bf16.xpose.msra.mxu0 0
      %1263 = vmatprep.subr.bf16.mxu0 0
      %1264 = vmatpush1.bf16.xpose.msra.mxu0 0
      %1265 = vmatprep.subr.bf16.mxu0 0
      %1266 = vmatpush1.bf16.xpose.msra.mxu0 0
      %1267 = vmatprep.subr.bf16.mxu0 0
      %1268 = vmatpush1.bf16.xpose.msra.mxu0 0
      %1269 = vmatprep.subr.bf16.mxu0 0
      %1270 = vmatpush1.bf16.xpose.msra.mxu0 0
      %1271 = vmatprep.subr.bf16.mxu0 0
      %1272 = vmatpush1.bf16.xpose.msra.mxu0 0
      %1273 = vmatprep.subr.bf16.mxu0 0
      %1274 = vmatpush1.bf16.xpose.msra.mxu0 0
      %1275 = vmatprep.subr.bf16.mxu0 0
      %1276 = vmatpush1.bf16.xpose.msra.mxu0 0
      %1277 = vmatprep.subr.bf16.mxu0 0
      %1278 = vmatpush1.bf16.xpose.msra.mxu0 0
      %1279 = vmatprep.subr.bf16.mxu0 0
      %1280 = vmatpush1.bf16.xpose.msra.mxu0 0
      %1281 = vmatprep.subr.bf16.mxu0 0
      %1282 = vmatpush1.bf16.xpose.msra.mxu0 0
      %1283 = vmatprep.mubr.bf16.mxu0 0
      %1284 = vmatmul.mubr.bf16.gmra.mrb[0].mxu0 %v1222
      %v1285 = vpop.f32.mrb[0].mxu0
      %v1286 = vadd.f32 %v251, %v1285
      %v1287 = vpop.f32.mrb[0].mxu0
      %v1288 = vpop.f32.mrb[0].mxu0
      %v1289 = vadd.f32 %v251, %v1288
      %v1290 = vpop.f32.mrb[0].mxu0
      %1291 = vmatprep.mubr.bf16.mxu0 0
      %1292 = vmatmul.mubr.bf16.gmra.mrb[0].mxu0 %v1225
      %v1293 = vpop.f32.mrb[0].mxu0
      %v1294 = vadd.f32 %v251, %v1293
      %v1295 = vpop.f32.mrb[0].mxu0
      %v1296 = vpop.f32.mrb[0].mxu0
      %v1297 = vadd.f32 %v251, %v1296
      %v1298 = vpop.f32.mrb[0].mxu0
      %1299 = vmatprep.mubr.bf16.mxu0 0
      %1300 = vmatmul.mubr.bf16.gmra.mrb[0].mxu0 %v1228
      %v1301 = vpop.f32.mrb[0].mxu0
      %v1302 = vadd.f32 %v251, %v1301
      %v1303 = vpop.f32.mrb[0].mxu0
      %v1304 = vpop.f32.mrb[0].mxu0
      %v1305 = vadd.f32 %v251, %v1304
      %v1306 = vpop.f32.mrb[0].mxu0
      %1307 = vmatprep.mubr.bf16.mxu0 0
      %1308 = vmatmul.mubr.bf16.gmra.mrb[0].mxu0 %v1231
      %v1309 = vpop.f32.mrb[0].mxu0
      %v1310 = vadd.f32 %v251, %v1309
      %v1311 = vpop.f32.mrb[0].mxu0
      %v1312 = vpop.f32.mrb[0].mxu0
      %v1313 = vadd.f32 %v251, %v1312
      %v1314 = vpop.f32.mrb[0].mxu0
      %1315 = vmatprep.mubr.bf16.mxu0 0
      %1316 = vmatmul.mubr.bf16.gmra.mrb[0].mxu0 %v1234
      %v1317 = vpop.f32.mrb[0].mxu0
      %v1318 = vadd.f32 %v251, %v1317
      %v1319 = vpop.f32.mrb[0].mxu0
      %v1320 = vpop.f32.mrb[0].mxu0
      %v1321 = vpop.f32.mrb[0].mxu0
      %1322 = vdwg.mxu0
      %vm1323 = vcmask 588800
      %v1324 = vsel %vm1323, %v1286, -inf
      %1325 = vmax.xlane.f32.xlu0 %v1324
      %v1326 = vpop.xlane.xlu0 %1325
      %v1327 = vsel %vm1323, %v1289, -inf
      %1328 = vmax.xlane.f32.xlu0 %v1327
      %v1329 = vpop.xlane.xlu0 %1328
      %v1330 = vsel %vm1323, %v1294, -inf
      %1331 = vmax.xlane.f32.xlu0 %v1330
      %v1332 = vpop.xlane.xlu0 %1331
      %v1333 = vsel %vm1323, %v1297, -inf
      %1334 = vmax.xlane.f32.xlu0 %v1333
      %v1335 = vpop.xlane.xlu0 %1334
      %v1336 = vsel %vm1323, %v1302, -inf
      %1337 = vmax.xlane.f32.xlu0 %v1336
      %v1338 = vpop.xlane.xlu0 %1337
      %v1339 = vsel %vm1323, %v1305, -inf
      %1340 = vmax.xlane.f32.xlu0 %v1339
      %v1341 = vpop.xlane.xlu0 %1340
      %v1342 = vsel %vm1323, %v1310, -inf
      %1343 = vmax.xlane.f32.xlu0 %v1342
      %v1344 = vpop.xlane.xlu0 %1343
      %v1345 = vsel %vm1323, %v1313, -inf
      %1346 = vmax.xlane.f32.xlu0 %v1345
      %v1347 = vpop.xlane.xlu0 %1346
      %v1348 = vsel %vm1323, %v1318, -inf
      %1349 = vmax.xlane.f32.xlu0 %v1348
      %v1350 = vpop.xlane.xlu0 %1349
      %v1351 = vsub.f32 %v1286, %v1326
      %v1352 = vsub.f32 %v1289, %v1329
      %v1353 = vsub.f32 %v1294, %v1332
      %v1354 = vsub.f32 %v1297, %v1335
      %v1355 = vsub.f32 %v1302, %v1338
      %v1356 = vsub.f32 %v1305, %v1341
      %v1357 = vsub.f32 %v1310, %v1344
      %v1358 = vsub.f32 %v1313, %v1347
      %v1359 = vsub.f32 %v1318, %v1350
      %v1360 = vmul.f32 %v1351, 1.442695
      %v1361 = vpow.pop %v1360
      %v1362 = vmul.f32 %v1352, 1.442695
      %v1363 = vpow.pop %v1362
      %v1364 = vmul.f32 %v1353, 1.442695
      %v1365 = vpow.pop %v1364
      %v1366 = vmul.f32 %v1354, 1.442695
      %v1367 = vpow.pop %v1366
      %v1368 = vmul.f32 %v1355, 1.442695
      %v1369 = vpow.pop %v1368
      %v1370 = vmul.f32 %v1356, 1.442695
      %v1371 = vpow.pop %v1370
      %v1372 = vmul.f32 %v1357, 1.442695
      %v1373 = vpow.pop %v1372
      %v1374 = vmul.f32 %v1358, 1.442695
      %v1375 = vpow.pop %v1374
      %v1376 = vmul.f32 %v1359, 1.442695
      %v1377 = vpow.pop %v1376
      %v1378 = vsel %vm1323, %v1361, 0.0
      %1379 = vadd.xlane.f32.xlu0 %v1378
      %v1380 = vpop.xlane.xlu0 %1379
      %v1381 = vsel %vm1323, %v1363, 0.0
      %1382 = vadd.xlane.f32.xlu0 %v1381
      %v1383 = vpop.xlane.xlu0 %1382
      %v1384 = vsel %vm1323, %v1365, 0.0
      %1385 = vadd.xlane.f32.xlu0 %v1384
      %v1386 = vpop.xlane.xlu0 %1385
      %v1387 = vsel %vm1323, %v1367, 0.0
      %1388 = vadd.xlane.f32.xlu0 %v1387
      %v1389 = vpop.xlane.xlu0 %1388
      %v1390 = vsel %vm1323, %v1369, 0.0
      %1391 = vadd.xlane.f32.xlu0 %v1390
      %v1392 = vpop.xlane.xlu0 %1391
      %v1393 = vsel %vm1323, %v1371, 0.0
      %1394 = vadd.xlane.f32.xlu0 %v1393
      %v1395 = vpop.xlane.xlu0 %1394
      %v1396 = vsel %vm1323, %v1373, 0.0
      %1397 = vadd.xlane.f32.xlu0 %v1396
      %v1398 = vpop.xlane.xlu0 %1397
      %v1399 = vsel %vm1323, %v1375, 0.0
      %1400 = vadd.xlane.f32.xlu0 %v1399
      %v1401 = vpop.xlane.xlu0 %1400
      %v1402 = vsel %vm1323, %v1377, 0.0
      %1403 = vadd.xlane.f32.xlu0 %v1402
      %v1404 = vpop.xlane.xlu0 %1403
      %v1405 = vrcp.pop %v1380
      %v1406 = vrcp.pop %v1383
      %v1407 = vrcp.pop %v1386
      %v1408 = vrcp.pop %v1389
      %v1409 = vrcp.pop %v1392
      %v1410 = vrcp.pop %v1395
      %v1411 = vrcp.pop %v1398
      %v1412 = vrcp.pop %v1401
      %v1413 = vrcp.pop %v1404
      %v1414 = vmul.f32 %v1361, %v1405
      %v1415 = vmul.f32 %v1363, %v1406
      %v1416 = vmul.f32 %v1365, %v1407
      %v1417 = vmul.f32 %v1367, %v1408
      %v1418 = vmul.f32 %v1369, %v1409
      %v1419 = vmul.f32 %v1371, %v1410
      %v1420 = vmul.f32 %v1373, %v1411
      %v1421 = vmul.f32 %v1375, %v1412
      %v1422 = vmul.f32 %v1377, %v1413
      %v1423 = vpack.c.bf16 %v1415, %v1414
      %v1424 = vpack.c.bf16 %v1417, %v1416
      %v1425 = vpack.c.bf16 %v1419, %v1418
      %v1426 = vpack.c.bf16 %v1421, %v1420
      %v1427 = vpack.c.bf16 %v1422, %v1422
      %v1429 = vsel %vm1323, %v1423, 0
      %v1432 = vsel %vm1323, %v1424, 0
      %v1435 = vsel %vm1323, %v1425, 0
      %v1438 = vsel %vm1323, %v1426, 0
      %v1441 = vsel %vm1323, %v1427, 0
      %vm1443 = vcmask 1043456
      %v1445 = vsel %vm1443, %v1219, 0
      %1447 = vmatprep.subr.bf16.mxu0 0
      %1448 = vmatpush1.bf16.msra.mxu0 %v1215
      %1449 = vmatprep.subr.bf16.mxu0 0
      %1450 = vmatpush1.bf16.msra.mxu0 %v1216
      %1451 = vmatprep.subr.bf16.mxu0 0
      %1452 = vmatpush1.bf16.msra.mxu0 %v1217
      %1453 = vmatprep.subr.bf16.mxu0 0
      %1454 = vmatpush1.bf16.msra.mxu0 %v1218
      %1455 = vmatprep.subr.bf16.mxu0 0
      %1456 = vmatpush1.bf16.msra.mxu0 %v1445
      %1457 = vmatprep.subr.bf16.mxu0 0
      %1458 = vmatpush1.bf16.msra.mxu0 0
      %1459 = vmatprep.subr.bf16.mxu0 0
      %1460 = vmatpush1.bf16.msra.mxu0 0
      %1461 = vmatprep.subr.bf16.mxu0 0
      %1462 = vmatpush1.bf16.msra.mxu0 0
      %1463 = vmatprep.subr.bf16.mxu0 0
      %1464 = vmatpush1.bf16.msra.mxu0 0
      %1465 = vmatprep.subr.bf16.mxu0 0
      %1466 = vmatpush1.bf16.msra.mxu0 0
      %1467 = vmatprep.subr.bf16.mxu0 0
      %1468 = vmatpush1.bf16.msra.mxu0 0
      %1469 = vmatprep.subr.bf16.mxu0 0
      %1470 = vmatpush1.bf16.msra.mxu0 0
      %1471 = vmatprep.subr.bf16.mxu0 0
      %1472 = vmatpush1.bf16.msra.mxu0 0
      %1473 = vmatprep.subr.bf16.mxu0 0
      %1474 = vmatpush1.bf16.msra.mxu0 0
      %1475 = vmatprep.subr.bf16.mxu0 0
      %1476 = vmatpush1.bf16.msra.mxu0 0
      %1477 = vmatprep.subr.bf16.mxu0 0
      %1478 = vmatpush1.bf16.msra.mxu0 0
      %1479 = vmatprep.mubr.bf16.mxu0 0
      %1480 = vmatmul.mubr.bf16.gmra.mrb[0].mxu0 %v1429
      %v1481 = vpop.f32.mrb[0].mxu0
      %v1482 = vadd.f32 0.0, %v1481
      %v1483 = vpop.f32.mrb[0].mxu0
      %v1484 = vpop.f32.mrb[0].mxu0
      %v1485 = vadd.f32 0.0, %v1484
      %v1486 = vpop.f32.mrb[0].mxu0
      %1487 = vmatprep.mubr.bf16.mxu0 0
      %1488 = vmatmul.mubr.bf16.gmra.mrb[0].mxu0 %v1432
      %v1489 = vpop.f32.mrb[0].mxu0
      %v1490 = vadd.f32 0.0, %v1489
      %v1491 = vpop.f32.mrb[0].mxu0
      %v1492 = vpop.f32.mrb[0].mxu0
      %v1493 = vadd.f32 0.0, %v1492
      %v1494 = vpop.f32.mrb[0].mxu0
      %1495 = vmatprep.mubr.bf16.mxu0 0
      %1496 = vmatmul.mubr.bf16.gmra.mrb[0].mxu0 %v1435
      %v1497 = vpop.f32.mrb[0].mxu0
      %v1498 = vadd.f32 0.0, %v1497
      %v1499 = vpop.f32.mrb[0].mxu0
      %v1500 = vpop.f32.mrb[0].mxu0
      %v1501 = vadd.f32 0.0, %v1500
      %v1502 = vpop.f32.mrb[0].mxu0
      %1503 = vmatprep.mubr.bf16.mxu0 0
      %1504 = vmatmul.mubr.bf16.gmra.mrb[0].mxu0 %v1438
      %v1505 = vpop.f32.mrb[0].mxu0
      %v1506 = vadd.f32 0.0, %v1505
      %v1507 = vpop.f32.mrb[0].mxu0
      %v1508 = vpop.f32.mrb[0].mxu0
      %v1509 = vadd.f32 0.0, %v1508
      %v1510 = vpop.f32.mrb[0].mxu0
      %1511 = vmatprep.mubr.bf16.mxu0 0
      %1512 = vmatmul.mubr.bf16.gmra.mrb[0].mxu0 %v1441
      %v1513 = vpop.f32.mrb[0].mxu0
      %v1514 = vadd.f32 0.0, %v1513
      %v1515 = vpop.f32.mrb[0].mxu0
      %v1516 = vpop.f32.mrb[0].mxu0
      %v1517 = vpop.f32.mrb[0].mxu0
      %1518 = vdwg.mxu0
      %v1519 = vpack.c.bf16 %v1485, %v1482
      %v1520 = vpack.c.bf16 %v1493, %v1490
      %v1521 = vpack.c.bf16 %v1501, %v1498
      %v1522 = vpack.c.bf16 %v1509, %v1506
      %v1523 = vpack.c.bf16 %v1514, %v1514
      %v1524 = vpack.c.bf16 %v907, %v904
      %v1525 = vpack.c.bf16 %v915, %v912
      %v1526 = vpack.c.bf16 %v923, %v920
      %v1527 = vpack.c.bf16 %v931, %v928
      %v1528 = vpack.c.bf16 %v936, %v936
      %v1529 = vpack.c.bf16 %v1022, %v1019
      %v1530 = vpack.c.bf16 %v1030, %v1027
      %v1531 = vpack.c.bf16 %v1038, %v1035
      %v1532 = vpack.c.bf16 %v1046, %v1043
      %v1533 = vpack.c.bf16 %v1051, %v1051
      %v1534 = vpack.c.bf16 %v1137, %v1134
      %v1535 = vpack.c.bf16 %v1145, %v1142
      %v1536 = vpack.c.bf16 %v1153, %v1150
      %v1537 = vpack.c.bf16 %v1161, %v1158
      %v1538 = vpack.c.bf16 %v1166, %v1166
      %v1540 = vsel %vm1220, %v1524, 0
      %v1543 = vsel %vm1220, %v1525, 0
      %v1546 = vsel %vm1220, %v1526, 0
      %v1549 = vsel %vm1220, %v1527, 0
      %v1552 = vsel %vm1220, %v1528, 0
      %v1555 = vsel %vm1220, %v1529, 0
      %v1558 = vsel %vm1220, %v1530, 0
      %v1561 = vsel %vm1220, %v1531, 0
      %v1564 = vsel %vm1220, %v1532, 0
      %v1567 = vsel %vm1220, %v1533, 0
      %1569 = vmatprep.subr.bf16.mxu0 0
      %1570 = vmatpush1.bf16.xpose.msra.mxu0 %v1555
      %1571 = vmatprep.subr.bf16.mxu0 0
      %1572 = vmatpush1.bf16.xpose.msra.mxu0 %v1558
      %1573 = vmatprep.subr.bf16.mxu0 0
      %1574 = vmatpush1.bf16.xpose.msra.mxu0 %v1561
      %1575 = vmatprep.subr.bf16.mxu0 0
      %1576 = vmatpush1.bf16.xpose.msra.mxu0 %v1564
      %1577 = vmatprep.subr.bf16.mxu0 0
      %1578 = vmatpush1.bf16.xpose.msra.mxu0 %v1567
      %1579 = vmatprep.subr.bf16.mxu0 0
      %1580 = vmatpush1.bf16.xpose.msra.mxu0 0
      %1581 = vmatprep.subr.bf16.mxu0 0
      %1582 = vmatpush1.bf16.xpose.msra.mxu0 0
      %1583 = vmatprep.subr.bf16.mxu0 0
      %1584 = vmatpush1.bf16.xpose.msra.mxu0 0
      %1585 = vmatprep.subr.bf16.mxu0 0
      %1586 = vmatpush1.bf16.xpose.msra.mxu0 0
      %1587 = vmatprep.subr.bf16.mxu0 0
      %1588 = vmatpush1.bf16.xpose.msra.mxu0 0
      %1589 = vmatprep.subr.bf16.mxu0 0
      %1590 = vmatpush1.bf16.xpose.msra.mxu0 0
      %1591 = vmatprep.subr.bf16.mxu0 0
      %1592 = vmatpush1.bf16.xpose.msra.mxu0 0
      %1593 = vmatprep.subr.bf16.mxu0 0
      %1594 = vmatpush1.bf16.xpose.msra.mxu0 0
      %1595 = vmatprep.subr.bf16.mxu0 0
      %1596 = vmatpush1.bf16.xpose.msra.mxu0 0
      %1597 = vmatprep.subr.bf16.mxu0 0
      %1598 = vmatpush1.bf16.xpose.msra.mxu0 0
      %1599 = vmatprep.subr.bf16.mxu0 0
      %1600 = vmatpush1.bf16.xpose.msra.mxu0 0
      %1601 = vmatprep.mubr.bf16.mxu0 0
      %1602 = vmatmul.mubr.bf16.gmra.mrb[0].mxu0 %v1540
      %v1603 = vpop.f32.mrb[0].mxu0
      %v1604 = vadd.f32 %v251, %v1603
      %v1605 = vpop.f32.mrb[0].mxu0
      %v1606 = vpop.f32.mrb[0].mxu0
      %v1607 = vadd.f32 %v251, %v1606
      %v1608 = vpop.f32.mrb[0].mxu0
      %1609 = vmatprep.mubr.bf16.mxu0 0
      %1610 = vmatmul.mubr.bf16.gmra.mrb[0].mxu0 %v1543
      %v1611 = vpop.f32.mrb[0].mxu0
      %v1612 = vadd.f32 %v251, %v1611
      %v1613 = vpop.f32.mrb[0].mxu0
      %v1614 = vpop.f32.mrb[0].mxu0
      %v1615 = vadd.f32 %v251, %v1614
      %v1616 = vpop.f32.mrb[0].mxu0
      %1617 = vmatprep.mubr.bf16.mxu0 0
      %1618 = vmatmul.mubr.bf16.gmra.mrb[0].mxu0 %v1546
      %v1619 = vpop.f32.mrb[0].mxu0
      %v1620 = vadd.f32 %v251, %v1619
      %v1621 = vpop.f32.mrb[0].mxu0
      %v1622 = vpop.f32.mrb[0].mxu0
      %v1623 = vadd.f32 %v251, %v1622
      %v1624 = vpop.f32.mrb[0].mxu0
      %1625 = vmatprep.mubr.bf16.mxu0 0
      %1626 = vmatmul.mubr.bf16.gmra.mrb[0].mxu0 %v1549
      %v1627 = vpop.f32.mrb[0].mxu0
      %v1628 = vadd.f32 %v251, %v1627
      %v1629 = vpop.f32.mrb[0].mxu0
      %v1630 = vpop.f32.mrb[0].mxu0
      %v1631 = vadd.f32 %v251, %v1630
      %v1632 = vpop.f32.mrb[0].mxu0
      %1633 = vmatprep.mubr.bf16.mxu0 0
      %1634 = vmatmul.mubr.bf16.gmra.mrb[0].mxu0 %v1552
      %v1635 = vpop.f32.mrb[0].mxu0
      %v1636 = vadd.f32 %v251, %v1635
      %v1637 = vpop.f32.mrb[0].mxu0
      %v1638 = vpop.f32.mrb[0].mxu0
      %v1639 = vpop.f32.mrb[0].mxu0
      %1640 = vdwg.mxu0
      %v1641 = vsel %vm1323, %v1604, -inf
      %1642 = vmax.xlane.f32.xlu0 %v1641
      %v1643 = vpop.xlane.xlu0 %1642
      %v1644 = vsel %vm1323, %v1607, -inf
      %1645 = vmax.xlane.f32.xlu0 %v1644
      %v1646 = vpop.xlane.xlu0 %1645
      %v1647 = vsel %vm1323, %v1612, -inf
      %1648 = vmax.xlane.f32.xlu0 %v1647
      %v1649 = vpop.xlane.xlu0 %1648
      %v1650 = vsel %vm1323, %v1615, -inf
      %1651 = vmax.xlane.f32.xlu0 %v1650
      %v1652 = vpop.xlane.xlu0 %1651
      %v1653 = vsel %vm1323, %v1620, -inf
      %1654 = vmax.xlane.f32.xlu0 %v1653
      %v1655 = vpop.xlane.xlu0 %1654
      %v1656 = vsel %vm1323, %v1623, -inf
      %1657 = vmax.xlane.f32.xlu0 %v1656
      %v1658 = vpop.xlane.xlu0 %1657
      %v1659 = vsel %vm1323, %v1628, -inf
      %1660 = vmax.xlane.f32.xlu0 %v1659
      %v1661 = vpop.xlane.xlu0 %1660
      %v1662 = vsel %vm1323, %v1631, -inf
      %1663 = vmax.xlane.f32.xlu0 %v1662
      %v1664 = vpop.xlane.xlu0 %1663
      %v1665 = vsel %vm1323, %v1636, -inf
      %1666 = vmax.xlane.f32.xlu0 %v1665
      %v1667 = vpop.xlane.xlu0 %1666
      %v1668 = vsub.f32 %v1604, %v1643
      %v1669 = vsub.f32 %v1607, %v1646
      %v1670 = vsub.f32 %v1612, %v1649
      %v1671 = vsub.f32 %v1615, %v1652
      %v1672 = vsub.f32 %v1620, %v1655
      %v1673 = vsub.f32 %v1623, %v1658
      %v1674 = vsub.f32 %v1628, %v1661
      %v1675 = vsub.f32 %v1631, %v1664
      %v1676 = vsub.f32 %v1636, %v1667
      %v1677 = vmul.f32 %v1668, 1.442695
      %v1678 = vpow.pop %v1677
      %v1679 = vmul.f32 %v1669, 1.442695
      %v1680 = vpow.pop %v1679
      %v1681 = vmul.f32 %v1670, 1.442695
      %v1682 = vpow.pop %v1681
      %v1683 = vmul.f32 %v1671, 1.442695
      %v1684 = vpow.pop %v1683
      %v1685 = vmul.f32 %v1672, 1.442695
      %v1686 = vpow.pop %v1685
      %v1687 = vmul.f32 %v1673, 1.442695
      %v1688 = vpow.pop %v1687
      %v1689 = vmul.f32 %v1674, 1.442695
      %v1690 = vpow.pop %v1689
      %v1691 = vmul.f32 %v1675, 1.442695
      %v1692 = vpow.pop %v1691
      %v1693 = vmul.f32 %v1676, 1.442695
      %v1694 = vpow.pop %v1693
      %v1695 = vsel %vm1323, %v1678, 0.0
      %1696 = vadd.xlane.f32.xlu0 %v1695
      %v1697 = vpop.xlane.xlu0 %1696
      %v1698 = vsel %vm1323, %v1680, 0.0
      %1699 = vadd.xlane.f32.xlu0 %v1698
      %v1700 = vpop.xlane.xlu0 %1699
      %v1701 = vsel %vm1323, %v1682, 0.0
      %1702 = vadd.xlane.f32.xlu0 %v1701
      %v1703 = vpop.xlane.xlu0 %1702
      %v1704 = vsel %vm1323, %v1684, 0.0
      %1705 = vadd.xlane.f32.xlu0 %v1704
      %v1706 = vpop.xlane.xlu0 %1705
      %v1707 = vsel %vm1323, %v1686, 0.0
      %1708 = vadd.xlane.f32.xlu0 %v1707
      %v1709 = vpop.xlane.xlu0 %1708
      %v1710 = vsel %vm1323, %v1688, 0.0
      %1711 = vadd.xlane.f32.xlu0 %v1710
      %v1712 = vpop.xlane.xlu0 %1711
      %v1713 = vsel %vm1323, %v1690, 0.0
      %1714 = vadd.xlane.f32.xlu0 %v1713
      %v1715 = vpop.xlane.xlu0 %1714
      %v1716 = vsel %vm1323, %v1692, 0.0
      %1717 = vadd.xlane.f32.xlu0 %v1716
      %v1718 = vpop.xlane.xlu0 %1717
      %v1719 = vsel %vm1323, %v1694, 0.0
      %1720 = vadd.xlane.f32.xlu0 %v1719
      %v1721 = vpop.xlane.xlu0 %1720
      %v1722 = vrcp.pop %v1697
      %v1723 = vrcp.pop %v1700
      %v1724 = vrcp.pop %v1703
      %v1725 = vrcp.pop %v1706
      %v1726 = vrcp.pop %v1709
      %v1727 = vrcp.pop %v1712
      %v1728 = vrcp.pop %v1715
      %v1729 = vrcp.pop %v1718
      %v1730 = vrcp.pop %v1721
      %v1731 = vmul.f32 %v1678, %v1722
      %v1732 = vmul.f32 %v1680, %v1723
      %v1733 = vmul.f32 %v1682, %v1724
      %v1734 = vmul.f32 %v1684, %v1725
      %v1735 = vmul.f32 %v1686, %v1726
      %v1736 = vmul.f32 %v1688, %v1727
      %v1737 = vmul.f32 %v1690, %v1728
      %v1738 = vmul.f32 %v1692, %v1729
      %v1739 = vmul.f32 %v1694, %v1730
      %v1740 = vpack.c.bf16 %v1732, %v1731
      %v1741 = vpack.c.bf16 %v1734, %v1733
      %v1742 = vpack.c.bf16 %v1736, %v1735
      %v1743 = vpack.c.bf16 %v1738, %v1737
      %v1744 = vpack.c.bf16 %v1739, %v1739
      %v1746 = vsel %vm1323, %v1740, 0
      %v1749 = vsel %vm1323, %v1741, 0
      %v1752 = vsel %vm1323, %v1742, 0
      %v1755 = vsel %vm1323, %v1743, 0
      %v1758 = vsel %vm1323, %v1744, 0
      %v1761 = vsel %vm1443, %v1538, 0
      %1763 = vmatprep.subr.bf16.mxu0 0
      %1764 = vmatpush1.bf16.msra.mxu0 %v1534
      %1765 = vmatprep.subr.bf16.mxu0 0
      %1766 = vmatpush1.bf16.msra.mxu0 %v1535
      %1767 = vmatprep.subr.bf16.mxu0 0
      %1768 = vmatpush1.bf16.msra.mxu0 %v1536
      %1769 = vmatprep.subr.bf16.mxu0 0
      %1770 = vmatpush1.bf16.msra.mxu0 %v1537
      %1771 = vmatprep.subr.bf16.mxu0 0
      %1772 = vmatpush1.bf16.msra.mxu0 %v1761
      %1773 = vmatprep.subr.bf16.mxu0 0
      %1774 = vmatpush1.bf16.msra.mxu0 0
      %1775 = vmatprep.subr.bf16.mxu0 0
      %1776 = vmatpush1.bf16.msra.mxu0 0
      %1777 = vmatprep.subr.bf16.mxu0 0
      %1778 = vmatpush1.bf16.msra.mxu0 0
      %1779 = vmatprep.subr.bf16.mxu0 0
      %1780 = vmatpush1.bf16.msra.mxu0 0
      %1781 = vmatprep.subr.bf16.mxu0 0
      %1782 = vmatpush1.bf16.msra.mxu0 0
      %1783 = vmatprep.subr.bf16.mxu0 0
      %1784 = vmatpush1.bf16.msra.mxu0 0
      %1785 = vmatprep.subr.bf16.mxu0 0
      %1786 = vmatpush1.bf16.msra.mxu0 0
      %1787 = vmatprep.subr.bf16.mxu0 0
      %1788 = vmatpush1.bf16.msra.mxu0 0
      %1789 = vmatprep.subr.bf16.mxu0 0
      %1790 = vmatpush1.bf16.msra.mxu0 0
      %1791 = vmatprep.subr.bf16.mxu0 0
      %1792 = vmatpush1.bf16.msra.mxu0 0
      %1793 = vmatprep.subr.bf16.mxu0 0
      %1794 = vmatpush1.bf16.msra.mxu0 0
      %1795 = vmatprep.mubr.bf16.mxu0 0
      %1796 = vmatmul.mubr.bf16.gmra.mrb[0].mxu0 %v1746
      %v1797 = vpop.f32.mrb[0].mxu0
      %v1798 = vadd.f32 0.0, %v1797
      %v1799 = vpop.f32.mrb[0].mxu0
      %v1800 = vpop.f32.mrb[0].mxu0
      %v1801 = vadd.f32 0.0, %v1800
      %v1802 = vpop.f32.mrb[0].mxu0
      %1803 = vmatprep.mubr.bf16.mxu0 0
      %1804 = vmatmul.mubr.bf16.gmra.mrb[0].mxu0 %v1749
      %v1805 = vpop.f32.mrb[0].mxu0
      %v1806 = vadd.f32 0.0, %v1805
      %v1807 = vpop.f32.mrb[0].mxu0
      %v1808 = vpop.f32.mrb[0].mxu0
      %v1809 = vadd.f32 0.0, %v1808
      %v1810 = vpop.f32.mrb[0].mxu0
      %1811 = vmatprep.mubr.bf16.mxu0 0
      %1812 = vmatmul.mubr.bf16.gmra.mrb[0].mxu0 %v1752
      %v1813 = vpop.f32.mrb[0].mxu0
      %v1814 = vadd.f32 0.0, %v1813
      %v1815 = vpop.f32.mrb[0].mxu0
      %v1816 = vpop.f32.mrb[0].mxu0
      %v1817 = vadd.f32 0.0, %v1816
      %v1818 = vpop.f32.mrb[0].mxu0
      %1819 = vmatprep.mubr.bf16.mxu0 0
      %1820 = vmatmul.mubr.bf16.gmra.mrb[0].mxu0 %v1755
      %v1821 = vpop.f32.mrb[0].mxu0
      %v1822 = vadd.f32 0.0, %v1821
      %v1823 = vpop.f32.mrb[0].mxu0
      %v1824 = vpop.f32.mrb[0].mxu0
      %v1825 = vadd.f32 0.0, %v1824
      %v1826 = vpop.f32.mrb[0].mxu0
      %1827 = vmatprep.mubr.bf16.mxu0 0
      %1828 = vmatmul.mubr.bf16.gmra.mrb[0].mxu0 %v1758
      %v1829 = vpop.f32.mrb[0].mxu0
      %v1830 = vadd.f32 0.0, %v1829
      %v1831 = vpop.f32.mrb[0].mxu0
      %v1832 = vpop.f32.mrb[0].mxu0
      %v1833 = vpop.f32.mrb[0].mxu0
      %1834 = vdwg.mxu0
      %v1835 = vpack.c.bf16 %v1801, %v1798
      %v1836 = vpack.c.bf16 %v1809, %v1806
      %v1837 = vpack.c.bf16 %v1817, %v1814
      %v1838 = vpack.c.bf16 %v1825, %v1822
      %v1839 = vpack.c.bf16 %v1830, %v1830
      %v1841 = vsel %vm1220, %v1835, 0
      %v1844 = vsel %vm1220, %v1836, 0
      %v1847 = vsel %vm1220, %v1837, 0
      %v1850 = vsel %vm1220, %v1838, 0
      %v1853 = vsel %vm1220, %v1839, 0
      %v1856 = vsel %vm1443, %v855, 0
      %1858 = vmatprep.subr.bf16.mxu0 0
      %1859 = vmatpush1.bf16.msra.mxu0 %v1856
      %1860 = vmatprep.subr.bf16.mxu0 0
      %1861 = vmatpush1.bf16.msra.mxu0 0
      %1862 = vmatprep.subr.bf16.mxu0 0
      %1863 = vmatpush1.bf16.msra.mxu0 0
      %1864 = vmatprep.subr.bf16.mxu0 0
      %1865 = vmatpush1.bf16.msra.mxu0 0
      %1866 = vmatprep.subr.bf16.mxu0 0
      %1867 = vmatpush1.bf16.msra.mxu0 0
      %1868 = vmatprep.subr.bf16.mxu0 0
      %1869 = vmatpush1.bf16.msra.mxu0 0
      %1870 = vmatprep.subr.bf16.mxu0 0
      %1871 = vmatpush1.bf16.msra.mxu0 0
      %1872 = vmatprep.subr.bf16.mxu0 0
      %1873 = vmatpush1.bf16.msra.mxu0 0
      %1874 = vmatprep.subr.bf16.mxu0 0
      %1875 = vmatpush1.bf16.msra.mxu0 0
      %1876 = vmatprep.subr.bf16.mxu0 0
      %1877 = vmatpush1.bf16.msra.mxu0 0
      %1878 = vmatprep.subr.bf16.mxu0 0
      %1879 = vmatpush1.bf16.msra.mxu0 0
      %1880 = vmatprep.subr.bf16.mxu0 0
      %1881 = vmatpush1.bf16.msra.mxu0 0
      %1882 = vmatprep.subr.bf16.mxu0 0
      %1883 = vmatpush1.bf16.msra.mxu0 0
      %1884 = vmatprep.subr.bf16.mxu0 0
      %1885 = vmatpush1.bf16.msra.mxu0 0
      %1886 = vmatprep.subr.bf16.mxu0 0
      %1887 = vmatpush1.bf16.msra.mxu0 0
      %1888 = vmatprep.subr.bf16.mxu0 0
      %1889 = vmatpush1.bf16.msra.mxu0 0
      %1890 = vmatprep.mubr.bf16.mxu0 0
      %1891 = vmatmul.mubr.bf16.gmra.mrb[0].mxu0 %v1841
      %v1892 = vpop.f32.mrb[0].mxu0
      %v1893 = vadd.f32 0.0, %v1892
      %v1894 = vpop.f32.mrb[0].mxu0
      %v1895 = vpop.f32.mrb[0].mxu0
      %v1896 = vadd.f32 0.0, %v1895
      %v1897 = vpop.f32.mrb[0].mxu0
      %1898 = vmatprep.mubr.bf16.mxu0 0
      %1899 = vmatmul.mubr.bf16.gmra.mrb[0].mxu0 %v1844
      %v1900 = vpop.f32.mrb[0].mxu0
      %v1901 = vadd.f32 0.0, %v1900
      %v1902 = vpop.f32.mrb[0].mxu0
      %v1903 = vpop.f32.mrb[0].mxu0
      %v1904 = vadd.f32 0.0, %v1903
      %v1905 = vpop.f32.mrb[0].mxu0
      %1906 = vmatprep.mubr.bf16.mxu0 0
      %1907 = vmatmul.mubr.bf16.gmra.mrb[0].mxu0 %v1847
      %v1908 = vpop.f32.mrb[0].mxu0
      %v1909 = vadd.f32 0.0, %v1908
      %v1910 = vpop.f32.mrb[0].mxu0
      %v1911 = vpop.f32.mrb[0].mxu0
      %v1912 = vadd.f32 0.0, %v1911
      %v1913 = vpop.f32.mrb[0].mxu0
      %1914 = vmatprep.mubr.bf16.mxu0 0
      %1915 = vmatmul.mubr.bf16.gmra.mrb[0].mxu0 %v1850
      %v1916 = vpop.f32.mrb[0].mxu0
      %v1917 = vadd.f32 0.0, %v1916
      %v1918 = vpop.f32.mrb[0].mxu0
      %v1919 = vpop.f32.mrb[0].mxu0
      %v1920 = vadd.f32 0.0, %v1919
      %v1921 = vpop.f32.mrb[0].mxu0
      %1922 = vmatprep.mubr.bf16.mxu0 0
      %1923 = vmatmul.mubr.bf16.gmra.mrb[0].mxu0 %v1853
      %v1924 = vpop.f32.mrb[0].mxu0
      %v1925 = vadd.f32 0.0, %v1924
      %v1926 = vpop.f32.mrb[0].mxu0
      %v1927 = vpop.f32.mrb[0].mxu0
      %v1928 = vpop.f32.mrb[0].mxu0
      %1929 = vdwg.mxu0
      %v1931 = vsel %vm1220, %v1519, 0
      %v1934 = vsel %vm1220, %v1520, 0
      %v1937 = vsel %vm1220, %v1521, 0
      %v1940 = vsel %vm1220, %v1522, 0
      %v1943 = vsel %vm1220, %v1523, 0
      %v1946 = vsel %vm1443, %v473, 0
      %1948 = vmatprep.subr.bf16.mxu0 0
      %1949 = vmatpush1.bf16.msra.mxu0 %v1946
      %1950 = vmatprep.subr.bf16.mxu0 0
      %1951 = vmatpush1.bf16.msra.mxu0 0
      %1952 = vmatprep.subr.bf16.mxu0 0
      %1953 = vmatpush1.bf16.msra.mxu0 0
      %1954 = vmatprep.subr.bf16.mxu0 0
      %1955 = vmatpush1.bf16.msra.mxu0 0
      %1956 = vmatprep.subr.bf16.mxu0 0
      %1957 = vmatpush1.bf16.msra.mxu0 0
      %1958 = vmatprep.subr.bf16.mxu0 0
      %1959 = vmatpush1.bf16.msra.mxu0 0
      %1960 = vmatprep.subr.bf16.mxu0 0
      %1961 = vmatpush1.bf16.msra.mxu0 0
      %1962 = vmatprep.subr.bf16.mxu0 0
      %1963 = vmatpush1.bf16.msra.mxu0 0
      %1964 = vmatprep.subr.bf16.mxu0 0
      %1965 = vmatpush1.bf16.msra.mxu0 0
      %1966 = vmatprep.subr.bf16.mxu0 0
      %1967 = vmatpush1.bf16.msra.mxu0 0
      %1968 = vmatprep.subr.bf16.mxu0 0
      %1969 = vmatpush1.bf16.msra.mxu0 0
      %1970 = vmatprep.subr.bf16.mxu0 0
      %1971 = vmatpush1.bf16.msra.mxu0 0
      %1972 = vmatprep.subr.bf16.mxu0 0
      %1973 = vmatpush1.bf16.msra.mxu0 0
      %1974 = vmatprep.subr.bf16.mxu0 0
      %1975 = vmatpush1.bf16.msra.mxu0 0
      %1976 = vmatprep.subr.bf16.mxu0 0
      %1977 = vmatpush1.bf16.msra.mxu0 0
      %1978 = vmatprep.subr.bf16.mxu0 0
      %1979 = vmatpush1.bf16.msra.mxu0 0
      %1980 = vmatprep.mubr.bf16.mxu0 0
      %1981 = vmatmul.mubr.bf16.gmra.mrb[0].mxu0 %v1931
      %v1982 = vpop.f32.mrb[0].mxu0
      %v1983 = vadd.f32 %v1893, %v1982
      %v1984 = vpop.f32.mrb[0].mxu0
      %v1985 = vpop.f32.mrb[0].mxu0
      %v1986 = vadd.f32 %v1896, %v1985
      %v1987 = vpop.f32.mrb[0].mxu0
      %1988 = vmatprep.mubr.bf16.mxu0 0
      %1989 = vmatmul.mubr.bf16.gmra.mrb[0].mxu0 %v1934
      %v1990 = vpop.f32.mrb[0].mxu0
      %v1991 = vadd.f32 %v1901, %v1990
      %v1992 = vpop.f32.mrb[0].mxu0
      %v1993 = vpop.f32.mrb[0].mxu0
      %v1994 = vadd.f32 %v1904, %v1993
      %v1995 = vpop.f32.mrb[0].mxu0
      %1996 = vmatprep.mubr.bf16.mxu0 0
      %1997 = vmatmul.mubr.bf16.gmra.mrb[0].mxu0 %v1937
      %v1998 = vpop.f32.mrb[0].mxu0
      %v1999 = vadd.f32 %v1909, %v1998
      %v2000 = vpop.f32.mrb[0].mxu0
      %v2001 = vpop.f32.mrb[0].mxu0
      %v2002 = vadd.f32 %v1912, %v2001
      %v2003 = vpop.f32.mrb[0].mxu0
      %2004 = vmatprep.mubr.bf16.mxu0 0
      %2005 = vmatmul.mubr.bf16.gmra.mrb[0].mxu0 %v1940
      %v2006 = vpop.f32.mrb[0].mxu0
      %v2007 = vadd.f32 %v1917, %v2006
      %v2008 = vpop.f32.mrb[0].mxu0
      %v2009 = vpop.f32.mrb[0].mxu0
      %v2010 = vadd.f32 %v1920, %v2009
      %v2011 = vpop.f32.mrb[0].mxu0
      %2012 = vmatprep.mubr.bf16.mxu0 0
      %2013 = vmatmul.mubr.bf16.gmra.mrb[0].mxu0 %v1943
      %v2014 = vpop.f32.mrb[0].mxu0
      %v2015 = vadd.f32 %v1925, %v2014
      %v2016 = vpop.f32.mrb[0].mxu0
      %v2017 = vpop.f32.mrb[0].mxu0
      %v2018 = vpop.f32.mrb[0].mxu0
      %2019 = vdwg.mxu0
      %v2020 = vpack.c.bf16 %v589, %v584
      %v2021 = vpack.c.bf16 %v597, %v592
      %v2022 = vpack.c.bf16 %v605, %v600
      %v2023 = vpack.c.bf16 %v613, %v608
      %v2024 = vpack.c.bf16 %v616, %v616
      %v2025 = vpack.c.bf16 %v704, %v699
      %v2026 = vpack.c.bf16 %v712, %v707
      %v2027 = vpack.c.bf16 %v720, %v715
      %v2028 = vpack.c.bf16 %v728, %v723
      %v2029 = vpack.c.bf16 %v731, %v731
      %v2030 = vpack.c.bf16 %v819, %v814
      %v2031 = vpack.c.bf16 %v827, %v822
      %v2032 = vpack.c.bf16 %v835, %v830
      %v2033 = vpack.c.bf16 %v843, %v838
      %v2034 = vpack.c.bf16 %v846, %v846
      %v2036 = vsel %vm1220, %v2020, 0
      %v2039 = vsel %vm1220, %v2021, 0
      %v2042 = vsel %vm1220, %v2022, 0
      %v2045 = vsel %vm1220, %v2023, 0
      %v2048 = vsel %vm1220, %v2024, 0
      %v2051 = vsel %vm1220, %v2025, 0
      %v2054 = vsel %vm1220, %v2026, 0
      %v2057 = vsel %vm1220, %v2027, 0
      %v2060 = vsel %vm1220, %v2028, 0
      %v2063 = vsel %vm1220, %v2029, 0
      %2065 = vmatprep.subr.bf16.mxu0 0
      %2066 = vmatpush1.bf16.xpose.msra.mxu0 %v2051
      %2067 = vmatprep.subr.bf16.mxu0 0
      %2068 = vmatpush1.bf16.xpose.msra.mxu0 %v2054
      %2069 = vmatprep.subr.bf16.mxu0 0
      %2070 = vmatpush1.bf16.xpose.msra.mxu0 %v2057
      %2071 = vmatprep.subr.bf16.mxu0 0
      %2072 = vmatpush1.bf16.xpose.msra.mxu0 %v2060
      %2073 = vmatprep.subr.bf16.mxu0 0
      %2074 = vmatpush1.bf16.xpose.msra.mxu0 %v2063
      %2075 = vmatprep.subr.bf16.mxu0 0
      %2076 = vmatpush1.bf16.xpose.msra.mxu0 0
      %2077 = vmatprep.subr.bf16.mxu0 0
      %2078 = vmatpush1.bf16.xpose.msra.mxu0 0
      %2079 = vmatprep.subr.bf16.mxu0 0
      %2080 = vmatpush1.bf16.xpose.msra.mxu0 0
      %2081 = vmatprep.subr.bf16.mxu0 0
      %2082 = vmatpush1.bf16.xpose.msra.mxu0 0
      %2083 = vmatprep.subr.bf16.mxu0 0
      %2084 = vmatpush1.bf16.xpose.msra.mxu0 0
      %2085 = vmatprep.subr.bf16.mxu0 0
      %2086 = vmatpush1.bf16.xpose.msra.mxu0 0
      %2087 = vmatprep.subr.bf16.mxu0 0
      %2088 = vmatpush1.bf16.xpose.msra.mxu0 0
      %2089 = vmatprep.subr.bf16.mxu0 0
      %2090 = vmatpush1.bf16.xpose.msra.mxu0 0
      %2091 = vmatprep.subr.bf16.mxu0 0
      %2092 = vmatpush1.bf16.xpose.msra.mxu0 0
      %2093 = vmatprep.subr.bf16.mxu0 0
      %2094 = vmatpush1.bf16.xpose.msra.mxu0 0
      %2095 = vmatprep.subr.bf16.mxu0 0
      %2096 = vmatpush1.bf16.xpose.msra.mxu0 0
      %2097 = vmatprep.mubr.bf16.mxu0 0
      %2098 = vmatmul.mubr.bf16.gmra.mrb[0].mxu0 %v2036
      %v2099 = vpop.f32.mrb[0].mxu0
      %v2100 = vadd.f32 %v251, %v2099
      %v2101 = vpop.f32.mrb[0].mxu0
      %v2102 = vpop.f32.mrb[0].mxu0
      %v2103 = vadd.f32 %v251, %v2102
      %v2104 = vpop.f32.mrb[0].mxu0
      %2105 = vmatprep.mubr.bf16.mxu0 0
      %2106 = vmatmul.mubr.bf16.gmra.mrb[0].mxu0 %v2039
      %v2107 = vpop.f32.mrb[0].mxu0
      %v2108 = vadd.f32 %v251, %v2107
      %v2109 = vpop.f32.mrb[0].mxu0
      %v2110 = vpop.f32.mrb[0].mxu0
      %v2111 = vadd.f32 %v251, %v2110
      %v2112 = vpop.f32.mrb[0].mxu0
      %2113 = vmatprep.mubr.bf16.mxu0 0
      %2114 = vmatmul.mubr.bf16.gmra.mrb[0].mxu0 %v2042
      %v2115 = vpop.f32.mrb[0].mxu0
      %v2116 = vadd.f32 %v251, %v2115
      %v2117 = vpop.f32.mrb[0].mxu0
      %v2118 = vpop.f32.mrb[0].mxu0
      %v2119 = vadd.f32 %v251, %v2118
      %v2120 = vpop.f32.mrb[0].mxu0
      %2121 = vmatprep.mubr.bf16.mxu0 0
      %2122 = vmatmul.mubr.bf16.gmra.mrb[0].mxu0 %v2045
      %v2123 = vpop.f32.mrb[0].mxu0
      %v2124 = vadd.f32 %v251, %v2123
      %v2125 = vpop.f32.mrb[0].mxu0
      %v2126 = vpop.f32.mrb[0].mxu0
      %v2127 = vadd.f32 %v251, %v2126
      %v2128 = vpop.f32.mrb[0].mxu0
      %2129 = vmatprep.mubr.bf16.mxu0 0
      %2130 = vmatmul.mubr.bf16.gmra.mrb[0].mxu0 %v2048
      %v2131 = vpop.f32.mrb[0].mxu0
      %v2132 = vadd.f32 %v251, %v2131
      %v2133 = vpop.f32.mrb[0].mxu0
      %v2134 = vpop.f32.mrb[0].mxu0
      %v2135 = vpop.f32.mrb[0].mxu0
      %2136 = vdwg.mxu0
      %v2137 = vsel %vm1323, %v2100, -inf
      %2138 = vmax.xlane.f32.xlu0 %v2137
      %v2139 = vpop.xlane.xlu0 %2138
      %v2140 = vsel %vm1323, %v2103, -inf
      %2141 = vmax.xlane.f32.xlu0 %v2140
      %v2142 = vpop.xlane.xlu0 %2141
      %v2143 = vsel %vm1323, %v2108, -inf
      %2144 = vmax.xlane.f32.xlu0 %v2143
      %v2145 = vpop.xlane.xlu0 %2144
      %v2146 = vsel %vm1323, %v2111, -inf
      %2147 = vmax.xlane.f32.xlu0 %v2146
      %v2148 = vpop.xlane.xlu0 %2147
      %v2149 = vsel %vm1323, %v2116, -inf
      %2150 = vmax.xlane.f32.xlu0 %v2149
      %v2151 = vpop.xlane.xlu0 %2150
      %v2152 = vsel %vm1323, %v2119, -inf
      %2153 = vmax.xlane.f32.xlu0 %v2152
      %v2154 = vpop.xlane.xlu0 %2153
      %v2155 = vsel %vm1323, %v2124, -inf
      %2156 = vmax.xlane.f32.xlu0 %v2155
      %v2157 = vpop.xlane.xlu0 %2156
      %v2158 = vsel %vm1323, %v2127, -inf
      %2159 = vmax.xlane.f32.xlu0 %v2158
      %v2160 = vpop.xlane.xlu0 %2159
      %v2161 = vsel %vm1323, %v2132, -inf
      %2162 = vmax.xlane.f32.xlu0 %v2161
      %v2163 = vpop.xlane.xlu0 %2162
      %v2164 = vsub.f32 %v2100, %v2139
      %v2165 = vsub.f32 %v2103, %v2142
      %v2166 = vsub.f32 %v2108, %v2145
      %v2167 = vsub.f32 %v2111, %v2148
      %v2168 = vsub.f32 %v2116, %v2151
      %v2169 = vsub.f32 %v2119, %v2154
      %v2170 = vsub.f32 %v2124, %v2157
      %v2171 = vsub.f32 %v2127, %v2160
      %v2172 = vsub.f32 %v2132, %v2163
      %v2173 = vmul.f32 %v2164, 1.442695
      %v2174 = vpow.pop %v2173
      %v2175 = vmul.f32 %v2165, 1.442695
      %v2176 = vpow.pop %v2175
      %v2177 = vmul.f32 %v2166, 1.442695
      %v2178 = vpow.pop %v2177
      %v2179 = vmul.f32 %v2167, 1.442695
      %v2180 = vpow.pop %v2179
      %v2181 = vmul.f32 %v2168, 1.442695
      %v2182 = vpow.pop %v2181
      %v2183 = vmul.f32 %v2169, 1.442695
      %v2184 = vpow.pop %v2183
      %v2185 = vmul.f32 %v2170, 1.442695
      %v2186 = vpow.pop %v2185
      %v2187 = vmul.f32 %v2171, 1.442695
      %v2188 = vpow.pop %v2187
      %v2189 = vmul.f32 %v2172, 1.442695
      %v2190 = vpow.pop %v2189
      %v2191 = vsel %vm1323, %v2174, 0.0
      %2192 = vadd.xlane.f32.xlu0 %v2191
      %v2193 = vpop.xlane.xlu0 %2192
      %v2194 = vsel %vm1323, %v2176, 0.0
      %2195 = vadd.xlane.f32.xlu0 %v2194
      %v2196 = vpop.xlane.xlu0 %2195
      %v2197 = vsel %vm1323, %v2178, 0.0
      %2198 = vadd.xlane.f32.xlu0 %v2197
      %v2199 = vpop.xlane.xlu0 %2198
      %v2200 = vsel %vm1323, %v2180, 0.0
      %2201 = vadd.xlane.f32.xlu0 %v2200
      %v2202 = vpop.xlane.xlu0 %2201
      %v2203 = vsel %vm1323, %v2182, 0.0
      %2204 = vadd.xlane.f32.xlu0 %v2203
      %v2205 = vpop.xlane.xlu0 %2204
      %v2206 = vsel %vm1323, %v2184, 0.0
      %2207 = vadd.xlane.f32.xlu0 %v2206
      %v2208 = vpop.xlane.xlu0 %2207
      %v2209 = vsel %vm1323, %v2186, 0.0
      %2210 = vadd.xlane.f32.xlu0 %v2209
      %v2211 = vpop.xlane.xlu0 %2210
      %v2212 = vsel %vm1323, %v2188, 0.0
      %2213 = vadd.xlane.f32.xlu0 %v2212
      %v2214 = vpop.xlane.xlu0 %2213
      %v2215 = vsel %vm1323, %v2190, 0.0
      %2216 = vadd.xlane.f32.xlu0 %v2215
      %v2217 = vpop.xlane.xlu0 %2216
      %v2218 = vrcp.pop %v2193
      %v2219 = vrcp.pop %v2196
      %v2220 = vrcp.pop %v2199
      %v2221 = vrcp.pop %v2202
      %v2222 = vrcp.pop %v2205
      %v2223 = vrcp.pop %v2208
      %v2224 = vrcp.pop %v2211
      %v2225 = vrcp.pop %v2214
      %v2226 = vrcp.pop %v2217
      %v2227 = vmul.f32 %v2174, %v2218
      %v2228 = vmul.f32 %v2176, %v2219
      %v2229 = vmul.f32 %v2178, %v2220
      %v2230 = vmul.f32 %v2180, %v2221
      %v2231 = vmul.f32 %v2182, %v2222
      %v2232 = vmul.f32 %v2184, %v2223
      %v2233 = vmul.f32 %v2186, %v2224
      %v2234 = vmul.f32 %v2188, %v2225
      %v2235 = vmul.f32 %v2190, %v2226
      %v2236 = vpack.c.bf16 %v2228, %v2227
      %v2237 = vpack.c.bf16 %v2230, %v2229
      %v2238 = vpack.c.bf16 %v2232, %v2231
      %v2239 = vpack.c.bf16 %v2234, %v2233
      %v2240 = vpack.c.bf16 %v2235, %v2235
      %v2242 = vsel %vm1323, %v2236, 0
      %v2245 = vsel %vm1323, %v2237, 0
      %v2248 = vsel %vm1323, %v2238, 0
      %v2251 = vsel %vm1323, %v2239, 0
      %v2254 = vsel %vm1323, %v2240, 0
      %v2257 = vsel %vm1443, %v2034, 0
      %2259 = vmatprep.subr.bf16.mxu0 0
      %2260 = vmatpush1.bf16.msra.mxu0 %v2030
      %2261 = vmatprep.subr.bf16.mxu0 0
      %2262 = vmatpush1.bf16.msra.mxu0 %v2031
      %2263 = vmatprep.subr.bf16.mxu0 0
      %2264 = vmatpush1.bf16.msra.mxu0 %v2032
      %2265 = vmatprep.subr.bf16.mxu0 0
      %2266 = vmatpush1.bf16.msra.mxu0 %v2033
      %2267 = vmatprep.subr.bf16.mxu0 0
      %2268 = vmatpush1.bf16.msra.mxu0 %v2257
      %2269 = vmatprep.subr.bf16.mxu0 0
      %2270 = vmatpush1.bf16.msra.mxu0 0
      %2271 = vmatprep.subr.bf16.mxu0 0
      %2272 = vmatpush1.bf16.msra.mxu0 0
      %2273 = vmatprep.subr.bf16.mxu0 0
      %2274 = vmatpush1.bf16.msra.mxu0 0
      %2275 = vmatprep.subr.bf16.mxu0 0
      %2276 = vmatpush1.bf16.msra.mxu0 0
      %2277 = vmatprep.subr.bf16.mxu0 0
      %2278 = vmatpush1.bf16.msra.mxu0 0
      %2279 = vmatprep.subr.bf16.mxu0 0
      %2280 = vmatpush1.bf16.msra.mxu0 0
      %2281 = vmatprep.subr.bf16.mxu0 0
      %2282 = vmatpush1.bf16.msra.mxu0 0
      %2283 = vmatprep.subr.bf16.mxu0 0
      %2284 = vmatpush1.bf16.msra.mxu0 0
      %2285 = vmatprep.subr.bf16.mxu0 0
      %2286 = vmatpush1.bf16.msra.mxu0 0
      %2287 = vmatprep.subr.bf16.mxu0 0
      %2288 = vmatpush1.bf16.msra.mxu0 0
      %2289 = vmatprep.subr.bf16.mxu0 0
      %2290 = vmatpush1.bf16.msra.mxu0 0
      %2291 = vmatprep.mubr.bf16.mxu0 0
      %2292 = vmatmul.mubr.bf16.gmra.mrb[0].mxu0 %v2242
      %v2293 = vpop.f32.mrb[0].mxu0
      %v2294 = vadd.f32 0.0, %v2293
      %v2295 = vpop.f32.mrb[0].mxu0
      %v2296 = vpop.f32.mrb[0].mxu0
      %v2297 = vadd.f32 0.0, %v2296
      %v2298 = vpop.f32.mrb[0].mxu0
      %2299 = vmatprep.mubr.bf16.mxu0 0
      %2300 = vmatmul.mubr.bf16.gmra.mrb[0].mxu0 %v2245
      %v2301 = vpop.f32.mrb[0].mxu0
      %v2302 = vadd.f32 0.0, %v2301
      %v2303 = vpop.f32.mrb[0].mxu0
      %v2304 = vpop.f32.mrb[0].mxu0
      %v2305 = vadd.f32 0.0, %v2304
      %v2306 = vpop.f32.mrb[0].mxu0
      %2307 = vmatprep.mubr.bf16.mxu0 0
      %2308 = vmatmul.mubr.bf16.gmra.mrb[0].mxu0 %v2248
      %v2309 = vpop.f32.mrb[0].mxu0
      %v2310 = vadd.f32 0.0, %v2309
      %v2311 = vpop.f32.mrb[0].mxu0
      %v2312 = vpop.f32.mrb[0].mxu0
      %v2313 = vadd.f32 0.0, %v2312
      %v2314 = vpop.f32.mrb[0].mxu0
      %2315 = vmatprep.mubr.bf16.mxu0 0
      %2316 = vmatmul.mubr.bf16.gmra.mrb[0].mxu0 %v2251
      %v2317 = vpop.f32.mrb[0].mxu0
      %v2318 = vadd.f32 0.0, %v2317
      %v2319 = vpop.f32.mrb[0].mxu0
      %v2320 = vpop.f32.mrb[0].mxu0
      %v2321 = vadd.f32 0.0, %v2320
      %v2322 = vpop.f32.mrb[0].mxu0
      %2323 = vmatprep.mubr.bf16.mxu0 0
      %2324 = vmatmul.mubr.bf16.gmra.mrb[0].mxu0 %v2254
      %v2325 = vpop.f32.mrb[0].mxu0
      %v2326 = vadd.f32 0.0, %v2325
      %v2327 = vpop.f32.mrb[0].mxu0
      %v2328 = vpop.f32.mrb[0].mxu0
      %v2329 = vpop.f32.mrb[0].mxu0
      %2330 = vdwg.mxu0
      %v2331 = vpack.c.bf16 %v2297, %v2294
      %v2332 = vpack.c.bf16 %v2305, %v2302
      %v2333 = vpack.c.bf16 %v2313, %v2310
      %v2334 = vpack.c.bf16 %v2321, %v2318
      %v2335 = vpack.c.bf16 %v2326, %v2326
      %v2336 = vpack.c.bf16 %v944, %v939
      %v2337 = vpack.c.bf16 %v952, %v947
      %v2338 = vpack.c.bf16 %v960, %v955
      %v2339 = vpack.c.bf16 %v968, %v963
      %v2340 = vpack.c.bf16 %v971, %v971
      %v2341 = vpack.c.bf16 %v1059, %v1054
      %v2342 = vpack.c.bf16 %v1067, %v1062
      %v2343 = vpack.c.bf16 %v1075, %v1070
      %v2344 = vpack.c.bf16 %v1083, %v1078
      %v2345 = vpack.c.bf16 %v1086, %v1086
      %v2346 = vpack.c.bf16 %v1174, %v1169
      %v2347 = vpack.c.bf16 %v1182, %v1177
      %v2348 = vpack.c.bf16 %v1190, %v1185
      %v2349 = vpack.c.bf16 %v1198, %v1193
      %v2350 = vpack.c.bf16 %v1201, %v1201
      %v2352 = vsel %vm1220, %v2336, 0
      %v2355 = vsel %vm1220, %v2337, 0
      %v2358 = vsel %vm1220, %v2338, 0
      %v2361 = vsel %vm1220, %v2339, 0
      %v2364 = vsel %vm1220, %v2340, 0
      %v2367 = vsel %vm1220, %v2341, 0
      %v2370 = vsel %vm1220, %v2342, 0
      %v2373 = vsel %vm1220, %v2343, 0
      %v2376 = vsel %vm1220, %v2344, 0
      %v2379 = vsel %vm1220, %v2345, 0
      %2381 = vmatprep.subr.bf16.mxu0 0
      %2382 = vmatpush1.bf16.xpose.msra.mxu0 %v2367
      %2383 = vmatprep.subr.bf16.mxu0 0
      %2384 = vmatpush1.bf16.xpose.msra.mxu0 %v2370
      %2385 = vmatprep.subr.bf16.mxu0 0
      %2386 = vmatpush1.bf16.xpose.msra.mxu0 %v2373
      %2387 = vmatprep.subr.bf16.mxu0 0
      %2388 = vmatpush1.bf16.xpose.msra.mxu0 %v2376
      %2389 = vmatprep.subr.bf16.mxu0 0
      %2390 = vmatpush1.bf16.xpose.msra.mxu0 %v2379
      %2391 = vmatprep.subr.bf16.mxu0 0
      %2392 = vmatpush1.bf16.xpose.msra.mxu0 0
      %2393 = vmatprep.subr.bf16.mxu0 0
      %2394 = vmatpush1.bf16.xpose.msra.mxu0 0
      %2395 = vmatprep.subr.bf16.mxu0 0
      %2396 = vmatpush1.bf16.xpose.msra.mxu0 0
      %2397 = vmatprep.subr.bf16.mxu0 0
      %2398 = vmatpush1.bf16.xpose.msra.mxu0 0
      %2399 = vmatprep.subr.bf16.mxu0 0
      %2400 = vmatpush1.bf16.xpose.msra.mxu0 0
      %2401 = vmatprep.subr.bf16.mxu0 0
      %2402 = vmatpush1.bf16.xpose.msra.mxu0 0
      %2403 = vmatprep.subr.bf16.mxu0 0
      %2404 = vmatpush1.bf16.xpose.msra.mxu0 0
      %2405 = vmatprep.subr.bf16.mxu0 0
      %2406 = vmatpush1.bf16.xpose.msra.mxu0 0
      %2407 = vmatprep.subr.bf16.mxu0 0
      %2408 = vmatpush1.bf16.xpose.msra.mxu0 0
      %2409 = vmatprep.subr.bf16.mxu0 0
      %2410 = vmatpush1.bf16.xpose.msra.mxu0 0
      %2411 = vmatprep.subr.bf16.mxu0 0
      %2412 = vmatpush1.bf16.xpose.msra.mxu0 0
      %2413 = vmatprep.mubr.bf16.mxu0 0
      %2414 = vmatmul.mubr.bf16.gmra.mrb[0].mxu0 %v2352
      %v2415 = vpop.f32.mrb[0].mxu0
      %v2416 = vadd.f32 %v251, %v2415
      %v2417 = vpop.f32.mrb[0].mxu0
      %v2418 = vpop.f32.mrb[0].mxu0
      %v2419 = vadd.f32 %v251, %v2418
      %v2420 = vpop.f32.mrb[0].mxu0
      %2421 = vmatprep.mubr.bf16.mxu0 0
      %2422 = vmatmul.mubr.bf16.gmra.mrb[0].mxu0 %v2355
      %v2423 = vpop.f32.mrb[0].mxu0
      %v2424 = vadd.f32 %v251, %v2423
      %v2425 = vpop.f32.mrb[0].mxu0
      %v2426 = vpop.f32.mrb[0].mxu0
      %v2427 = vadd.f32 %v251, %v2426
      %v2428 = vpop.f32.mrb[0].mxu0
      %2429 = vmatprep.mubr.bf16.mxu0 0
      %2430 = vmatmul.mubr.bf16.gmra.mrb[0].mxu0 %v2358
      %v2431 = vpop.f32.mrb[0].mxu0
      %v2432 = vadd.f32 %v251, %v2431
      %v2433 = vpop.f32.mrb[0].mxu0
      %v2434 = vpop.f32.mrb[0].mxu0
      %v2435 = vadd.f32 %v251, %v2434
      %v2436 = vpop.f32.mrb[0].mxu0
      %2437 = vmatprep.mubr.bf16.mxu0 0
      %2438 = vmatmul.mubr.bf16.gmra.mrb[0].mxu0 %v2361
      %v2439 = vpop.f32.mrb[0].mxu0
      %v2440 = vadd.f32 %v251, %v2439
      %v2441 = vpop.f32.mrb[0].mxu0
      %v2442 = vpop.f32.mrb[0].mxu0
      %v2443 = vadd.f32 %v251, %v2442
      %v2444 = vpop.f32.mrb[0].mxu0
      %2445 = vmatprep.mubr.bf16.mxu0 0
      %2446 = vmatmul.mubr.bf16.gmra.mrb[0].mxu0 %v2364
      %v2447 = vpop.f32.mrb[0].mxu0
      %v2448 = vadd.f32 %v251, %v2447
      %v2449 = vpop.f32.mrb[0].mxu0
      %v2450 = vpop.f32.mrb[0].mxu0
      %v2451 = vpop.f32.mrb[0].mxu0
      %2452 = vdwg.mxu0
      %v2453 = vsel %vm1323, %v2416, -inf
      %2454 = vmax.xlane.f32.xlu0 %v2453
      %v2455 = vpop.xlane.xlu0 %2454
      %v2456 = vsel %vm1323, %v2419, -inf
      %2457 = vmax.xlane.f32.xlu0 %v2456
      %v2458 = vpop.xlane.xlu0 %2457
      %v2459 = vsel %vm1323, %v2424, -inf
      %2460 = vmax.xlane.f32.xlu0 %v2459
      %v2461 = vpop.xlane.xlu0 %2460
      %v2462 = vsel %vm1323, %v2427, -inf
      %2463 = vmax.xlane.f32.xlu0 %v2462
      %v2464 = vpop.xlane.xlu0 %2463
      %v2465 = vsel %vm1323, %v2432, -inf
      %2466 = vmax.xlane.f32.xlu0 %v2465
      %v2467 = vpop.xlane.xlu0 %2466
      %v2468 = vsel %vm1323, %v2435, -inf
      %2469 = vmax.xlane.f32.xlu0 %v2468
      %v2470 = vpop.xlane.xlu0 %2469
      %v2471 = vsel %vm1323, %v2440, -inf
      %2472 = vmax.xlane.f32.xlu0 %v2471
      %v2473 = vpop.xlane.xlu0 %2472
      %v2474 = vsel %vm1323, %v2443, -inf
      %2475 = vmax.xlane.f32.xlu0 %v2474
      %v2476 = vpop.xlane.xlu0 %2475
      %v2477 = vsel %vm1323, %v2448, -inf
      %2478 = vmax.xlane.f32.xlu0 %v2477
      %v2479 = vpop.xlane.xlu0 %2478
      %v2480 = vsub.f32 %v2416, %v2455
      %v2481 = vsub.f32 %v2419, %v2458
      %v2482 = vsub.f32 %v2424, %v2461
      %v2483 = vsub.f32 %v2427, %v2464
      %v2484 = vsub.f32 %v2432, %v2467
      %v2485 = vsub.f32 %v2435, %v2470
      %v2486 = vsub.f32 %v2440, %v2473
      %v2487 = vsub.f32 %v2443, %v2476
      %v2488 = vsub.f32 %v2448, %v2479
      %v2489 = vmul.f32 %v2480, 1.442695
      %v2490 = vpow.pop %v2489
      %v2491 = vmul.f32 %v2481, 1.442695
      %v2492 = vpow.pop %v2491
      %v2493 = vmul.f32 %v2482, 1.442695
      %v2494 = vpow.pop %v2493
      %v2495 = vmul.f32 %v2483, 1.442695
      %v2496 = vpow.pop %v2495
      %v2497 = vmul.f32 %v2484, 1.442695
      %v2498 = vpow.pop %v2497
      %v2499 = vmul.f32 %v2485, 1.442695
      %v2500 = vpow.pop %v2499
      %v2501 = vmul.f32 %v2486, 1.442695
      %v2502 = vpow.pop %v2501
      %v2503 = vmul.f32 %v2487, 1.442695
      %v2504 = vpow.pop %v2503
      %v2505 = vmul.f32 %v2488, 1.442695
      %v2506 = vpow.pop %v2505
      %v2507 = vsel %vm1323, %v2490, 0.0
      %2508 = vadd.xlane.f32.xlu0 %v2507
      %v2509 = vpop.xlane.xlu0 %2508
      %v2510 = vsel %vm1323, %v2492, 0.0
      %2511 = vadd.xlane.f32.xlu0 %v2510
      %v2512 = vpop.xlane.xlu0 %2511
      %v2513 = vsel %vm1323, %v2494, 0.0
      %2514 = vadd.xlane.f32.xlu0 %v2513
      %v2515 = vpop.xlane.xlu0 %2514
      %v2516 = vsel %vm1323, %v2496, 0.0
      %2517 = vadd.xlane.f32.xlu0 %v2516
      %v2518 = vpop.xlane.xlu0 %2517
      %v2519 = vsel %vm1323, %v2498, 0.0
      %2520 = vadd.xlane.f32.xlu0 %v2519
      %v2521 = vpop.xlane.xlu0 %2520
      %v2522 = vsel %vm1323, %v2500, 0.0
      %2523 = vadd.xlane.f32.xlu0 %v2522
      %v2524 = vpop.xlane.xlu0 %2523
      %v2525 = vsel %vm1323, %v2502, 0.0
      %2526 = vadd.xlane.f32.xlu0 %v2525
      %v2527 = vpop.xlane.xlu0 %2526
      %v2528 = vsel %vm1323, %v2504, 0.0
      %2529 = vadd.xlane.f32.xlu0 %v2528
      %v2530 = vpop.xlane.xlu0 %2529
      %v2531 = vsel %vm1323, %v2506, 0.0
      %2532 = vadd.xlane.f32.xlu0 %v2531
      %v2533 = vpop.xlane.xlu0 %2532
      %v2534 = vrcp.pop %v2509
      %v2535 = vrcp.pop %v2512
      %v2536 = vrcp.pop %v2515
      %v2537 = vrcp.pop %v2518
      %v2538 = vrcp.pop %v2521
      %v2539 = vrcp.pop %v2524
      %v2540 = vrcp.pop %v2527
      %v2541 = vrcp.pop %v2530
      %v2542 = vrcp.pop %v2533
      %v2543 = vmul.f32 %v2490, %v2534
      %v2544 = vmul.f32 %v2492, %v2535
      %v2545 = vmul.f32 %v2494, %v2536
      %v2546 = vmul.f32 %v2496, %v2537
      %v2547 = vmul.f32 %v2498, %v2538
      %v2548 = vmul.f32 %v2500, %v2539
      %v2549 = vmul.f32 %v2502, %v2540
      %v2550 = vmul.f32 %v2504, %v2541
      %v2551 = vmul.f32 %v2506, %v2542
      %v2552 = vpack.c.bf16 %v2544, %v2543
      %v2553 = vpack.c.bf16 %v2546, %v2545
      %v2554 = vpack.c.bf16 %v2548, %v2547
      %v2555 = vpack.c.bf16 %v2550, %v2549
      %v2556 = vpack.c.bf16 %v2551, %v2551
      %v2558 = vsel %vm1323, %v2552, 0
      %v2561 = vsel %vm1323, %v2553, 0
      %v2564 = vsel %vm1323, %v2554, 0
      %v2567 = vsel %vm1323, %v2555, 0
      %v2570 = vsel %vm1323, %v2556, 0
      %v2573 = vsel %vm1443, %v2350, 0
      %2575 = vmatprep.subr.bf16.mxu0 0
      %2576 = vmatpush1.bf16.msra.mxu0 %v2346
      %2577 = vmatprep.subr.bf16.mxu0 0
      %2578 = vmatpush1.bf16.msra.mxu0 %v2347
      %2579 = vmatprep.subr.bf16.mxu0 0
      %2580 = vmatpush1.bf16.msra.mxu0 %v2348
      %2581 = vmatprep.subr.bf16.mxu0 0
      %2582 = vmatpush1.bf16.msra.mxu0 %v2349
      %2583 = vmatprep.subr.bf16.mxu0 0
      %2584 = vmatpush1.bf16.msra.mxu0 %v2573
      %2585 = vmatprep.subr.bf16.mxu0 0
      %2586 = vmatpush1.bf16.msra.mxu0 0
      %2587 = vmatprep.subr.bf16.mxu0 0
      %2588 = vmatpush1.bf16.msra.mxu0 0
      %2589 = vmatprep.subr.bf16.mxu0 0
      %2590 = vmatpush1.bf16.msra.mxu0 0
      %2591 = vmatprep.subr.bf16.mxu0 0
      %2592 = vmatpush1.bf16.msra.mxu0 0
      %2593 = vmatprep.subr.bf16.mxu0 0
      %2594 = vmatpush1.bf16.msra.mxu0 0
      %2595 = vmatprep.subr.bf16.mxu0 0
      %2596 = vmatpush1.bf16.msra.mxu0 0
      %2597 = vmatprep.subr.bf16.mxu0 0
      %2598 = vmatpush1.bf16.msra.mxu0 0
      %2599 = vmatprep.subr.bf16.mxu0 0
      %2600 = vmatpush1.bf16.msra.mxu0 0
      %2601 = vmatprep.subr.bf16.mxu0 0
      %2602 = vmatpush1.bf16.msra.mxu0 0
      %2603 = vmatprep.subr.bf16.mxu0 0
      %2604 = vmatpush1.bf16.msra.mxu0 0
      %2605 = vmatprep.subr.bf16.mxu0 0
      %2606 = vmatpush1.bf16.msra.mxu0 0
      %2607 = vmatprep.mubr.bf16.mxu0 0
      %2608 = vmatmul.mubr.bf16.gmra.mrb[0].mxu0 %v2558
      %v2609 = vpop.f32.mrb[0].mxu0
      %v2610 = vadd.f32 0.0, %v2609
      %v2611 = vpop.f32.mrb[0].mxu0
      %v2612 = vpop.f32.mrb[0].mxu0
      %v2613 = vadd.f32 0.0, %v2612
      %v2614 = vpop.f32.mrb[0].mxu0
      %2615 = vmatprep.mubr.bf16.mxu0 0
      %2616 = vmatmul.mubr.bf16.gmra.mrb[0].mxu0 %v2561
      %v2617 = vpop.f32.mrb[0].mxu0
      %v2618 = vadd.f32 0.0, %v2617
      %v2619 = vpop.f32.mrb[0].mxu0
      %v2620 = vpop.f32.mrb[0].mxu0
      %v2621 = vadd.f32 0.0, %v2620
      %v2622 = vpop.f32.mrb[0].mxu0
      %2623 = vmatprep.mubr.bf16.mxu0 0
      %2624 = vmatmul.mubr.bf16.gmra.mrb[0].mxu0 %v2564
      %v2625 = vpop.f32.mrb[0].mxu0
      %v2626 = vadd.f32 0.0, %v2625
      %v2627 = vpop.f32.mrb[0].mxu0
      %v2628 = vpop.f32.mrb[0].mxu0
      %v2629 = vadd.f32 0.0, %v2628
      %v2630 = vpop.f32.mrb[0].mxu0
      %2631 = vmatprep.mubr.bf16.mxu0 0
      %2632 = vmatmul.mubr.bf16.gmra.mrb[0].mxu0 %v2567
      %v2633 = vpop.f32.mrb[0].mxu0
      %v2634 = vadd.f32 0.0, %v2633
      %v2635 = vpop.f32.mrb[0].mxu0
      %v2636 = vpop.f32.mrb[0].mxu0
      %v2637 = vadd.f32 0.0, %v2636
      %v2638 = vpop.f32.mrb[0].mxu0
      %2639 = vmatprep.mubr.bf16.mxu0 0
      %2640 = vmatmul.mubr.bf16.gmra.mrb[0].mxu0 %v2570
      %v2641 = vpop.f32.mrb[0].mxu0
      %v2642 = vadd.f32 0.0, %v2641
      %v2643 = vpop.f32.mrb[0].mxu0
      %v2644 = vpop.f32.mrb[0].mxu0
      %v2645 = vpop.f32.mrb[0].mxu0
      %2646 = vdwg.mxu0
      %v2647 = vpack.c.bf16 %v2613, %v2610
      %v2648 = vpack.c.bf16 %v2621, %v2618
      %v2649 = vpack.c.bf16 %v2629, %v2626
      %v2650 = vpack.c.bf16 %v2637, %v2634
      %v2651 = vpack.c.bf16 %v2642, %v2642
      %v2653 = vsel %vm1220, %v2647, 0
      %v2656 = vsel %vm1220, %v2648, 0
      %v2659 = vsel %vm1220, %v2649, 0
      %v2662 = vsel %vm1220, %v2650, 0
      %v2665 = vsel %vm1220, %v2651, 0
      %2667 = vmatprep.subr.bf16.mxu0 0
      %2668 = vmatpush1.bf16.msra.mxu0 %v1856
      %2669 = vmatprep.subr.bf16.mxu0 0
      %2670 = vmatpush1.bf16.msra.mxu0 0
      %2671 = vmatprep.subr.bf16.mxu0 0
      %2672 = vmatpush1.bf16.msra.mxu0 0
      %2673 = vmatprep.subr.bf16.mxu0 0
      %2674 = vmatpush1.bf16.msra.mxu0 0
      %2675 = vmatprep.subr.bf16.mxu0 0
      %2676 = vmatpush1.bf16.msra.mxu0 0
      %2677 = vmatprep.subr.bf16.mxu0 0
      %2678 = vmatpush1.bf16.msra.mxu0 0
      %2679 = vmatprep.subr.bf16.mxu0 0
      %2680 = vmatpush1.bf16.msra.mxu0 0
      %2681 = vmatprep.subr.bf16.mxu0 0
      %2682 = vmatpush1.bf16.msra.mxu0 0
      %2683 = vmatprep.subr.bf16.mxu0 0
      %2684 = vmatpush1.bf16.msra.mxu0 0
      %2685 = vmatprep.subr.bf16.mxu0 0
      %2686 = vmatpush1.bf16.msra.mxu0 0
      %2687 = vmatprep.subr.bf16.mxu0 0
      %2688 = vmatpush1.bf16.msra.mxu0 0
      %2689 = vmatprep.subr.bf16.mxu0 0
      %2690 = vmatpush1.bf16.msra.mxu0 0
      %2691 = vmatprep.subr.bf16.mxu0 0
      %2692 = vmatpush1.bf16.msra.mxu0 0
      %2693 = vmatprep.subr.bf16.mxu0 0
      %2694 = vmatpush1.bf16.msra.mxu0 0
      %2695 = vmatprep.subr.bf16.mxu0 0
      %2696 = vmatpush1.bf16.msra.mxu0 0
      %2697 = vmatprep.subr.bf16.mxu0 0
      %2698 = vmatpush1.bf16.msra.mxu0 0
      %2699 = vmatprep.mubr.bf16.mxu0 0
      %2700 = vmatmul.mubr.bf16.gmra.mrb[0].mxu0 %v2653
      %v2701 = vpop.f32.mrb[0].mxu0
      %v2702 = vadd.f32 0.0, %v2701
      %v2703 = vpop.f32.mrb[0].mxu0
      %v2704 = vpop.f32.mrb[0].mxu0
      %v2705 = vadd.f32 0.0, %v2704
      %v2706 = vpop.f32.mrb[0].mxu0
      %2707 = vmatprep.mubr.bf16.mxu0 0
      %2708 = vmatmul.mubr.bf16.gmra.mrb[0].mxu0 %v2656
      %v2709 = vpop.f32.mrb[0].mxu0
      %v2710 = vadd.f32 0.0, %v2709
      %v2711 = vpop.f32.mrb[0].mxu0
      %v2712 = vpop.f32.mrb[0].mxu0
      %v2713 = vadd.f32 0.0, %v2712
      %v2714 = vpop.f32.mrb[0].mxu0
      %2715 = vmatprep.mubr.bf16.mxu0 0
      %2716 = vmatmul.mubr.bf16.gmra.mrb[0].mxu0 %v2659
      %v2717 = vpop.f32.mrb[0].mxu0
      %v2718 = vadd.f32 0.0, %v2717
      %v2719 = vpop.f32.mrb[0].mxu0
      %v2720 = vpop.f32.mrb[0].mxu0
      %v2721 = vadd.f32 0.0, %v2720
      %v2722 = vpop.f32.mrb[0].mxu0
      %2723 = vmatprep.mubr.bf16.mxu0 0
      %2724 = vmatmul.mubr.bf16.gmra.mrb[0].mxu0 %v2662
      %v2725 = vpop.f32.mrb[0].mxu0
      %v2726 = vadd.f32 0.0, %v2725
      %v2727 = vpop.f32.mrb[0].mxu0
      %v2728 = vpop.f32.mrb[0].mxu0
      %v2729 = vadd.f32 0.0, %v2728
      %v2730 = vpop.f32.mrb[0].mxu0
      %2731 = vmatprep.mubr.bf16.mxu0 0
      %2732 = vmatmul.mubr.bf16.gmra.mrb[0].mxu0 %v2665
      %v2733 = vpop.f32.mrb[0].mxu0
      %v2734 = vadd.f32 0.0, %v2733
      %v2735 = vpop.f32.mrb[0].mxu0
      %v2736 = vpop.f32.mrb[0].mxu0
      %v2737 = vpop.f32.mrb[0].mxu0
      %2738 = vdwg.mxu0
      %v2740 = vsel %vm1220, %v2331, 0
      %v2743 = vsel %vm1220, %v2332, 0
      %v2746 = vsel %vm1220, %v2333, 0
      %v2749 = vsel %vm1220, %v2334, 0
      %v2752 = vsel %vm1220, %v2335, 0
      %2754 = vmatprep.subr.bf16.mxu0 0
      %2755 = vmatpush1.bf16.msra.mxu0 %v1946
      %2756 = vmatprep.subr.bf16.mxu0 0
      %2757 = vmatpush1.bf16.msra.mxu0 0
      %2758 = vmatprep.subr.bf16.mxu0 0
      %2759 = vmatpush1.bf16.msra.mxu0 0
      %2760 = vmatprep.subr.bf16.mxu0 0
      %2761 = vmatpush1.bf16.msra.mxu0 0
      %2762 = vmatprep.subr.bf16.mxu0 0
      %2763 = vmatpush1.bf16.msra.mxu0 0
      %2764 = vmatprep.subr.bf16.mxu0 0
      %2765 = vmatpush1.bf16.msra.mxu0 0
      %2766 = vmatprep.subr.bf16.mxu0 0
      %2767 = vmatpush1.bf16.msra.mxu0 0
      %2768 = vmatprep.subr.bf16.mxu0 0
      %2769 = vmatpush1.bf16.msra.mxu0 0
      %2770 = vmatprep.subr.bf16.mxu0 0
      %2771 = vmatpush1.bf16.msra.mxu0 0
      %2772 = vmatprep.subr.bf16.mxu0 0
      %2773 = vmatpush1.bf16.msra.mxu0 0
      %2774 = vmatprep.subr.bf16.mxu0 0
      %2775 = vmatpush1.bf16.msra.mxu0 0
      %2776 = vmatprep.subr.bf16.mxu0 0
      %2777 = vmatpush1.bf16.msra.mxu0 0
      %2778 = vmatprep.subr.bf16.mxu0 0
      %2779 = vmatpush1.bf16.msra.mxu0 0
      %2780 = vmatprep.subr.bf16.mxu0 0
      %2781 = vmatpush1.bf16.msra.mxu0 0
      %2782 = vmatprep.subr.bf16.mxu0 0
      %2783 = vmatpush1.bf16.msra.mxu0 0
      %2784 = vmatprep.subr.bf16.mxu0 0
      %2785 = vmatpush1.bf16.msra.mxu0 0
      %2786 = vmatprep.mubr.bf16.mxu0 0
      %2787 = vmatmul.mubr.bf16.gmra.mrb[0].mxu0 %v2740
      %v2788 = vpop.f32.mrb[0].mxu0
      %v2789 = vadd.f32 %v2702, %v2788
      %v2790 = vpop.f32.mrb[0].mxu0
      %v2791 = vpop.f32.mrb[0].mxu0
      %v2792 = vadd.f32 %v2705, %v2791
      %v2793 = vpop.f32.mrb[0].mxu0
      %2794 = vmatprep.mubr.bf16.mxu0 0
      %2795 = vmatmul.mubr.bf16.gmra.mrb[0].mxu0 %v2743
      %v2796 = vpop.f32.mrb[0].mxu0
      %v2797 = vadd.f32 %v2710, %v2796
      %v2798 = vpop.f32.mrb[0].mxu0
      %v2799 = vpop.f32.mrb[0].mxu0
      %v2800 = vadd.f32 %v2713, %v2799
      %v2801 = vpop.f32.mrb[0].mxu0
      %2802 = vmatprep.mubr.bf16.mxu0 0
      %2803 = vmatmul.mubr.bf16.gmra.mrb[0].mxu0 %v2746
      %v2804 = vpop.f32.mrb[0].mxu0
      %v2805 = vadd.f32 %v2718, %v2804
      %v2806 = vpop.f32.mrb[0].mxu0
      %v2807 = vpop.f32.mrb[0].mxu0
      %v2808 = vadd.f32 %v2721, %v2807
      %v2809 = vpop.f32.mrb[0].mxu0
      %2810 = vmatprep.mubr.bf16.mxu0 0
      %2811 = vmatmul.mubr.bf16.gmra.mrb[0].mxu0 %v2749
      %v2812 = vpop.f32.mrb[0].mxu0
      %v2813 = vadd.f32 %v2726, %v2812
      %v2814 = vpop.f32.mrb[0].mxu0
      %v2815 = vpop.f32.mrb[0].mxu0
      %v2816 = vadd.f32 %v2729, %v2815
      %v2817 = vpop.f32.mrb[0].mxu0
      %2818 = vmatprep.mubr.bf16.mxu0 0
      %2819 = vmatmul.mubr.bf16.gmra.mrb[0].mxu0 %v2752
      %v2820 = vpop.f32.mrb[0].mxu0
      %v2821 = vadd.f32 %v2734, %v2820
      %v2822 = vpop.f32.mrb[0].mxu0
      %v2823 = vpop.f32.mrb[0].mxu0
      %v2824 = vpop.f32.mrb[0].mxu0
      %2825 = vdwg.mxu0
      %v2826 = vlaneseq
      %v2827 = vshrl.u32 %v2826, 7
      %v2828 = vsub.s32 0, %v2827
      %v2829 = vrot.slane %v1204, %v2828
      %v2830 = vadd.f32 %v1983, %v2829
      %v2831 = vadd.f32 %v1986, %v2829
      %v2832 = vadd.f32 %v1991, %v2829
      %v2833 = vadd.f32 %v1994, %v2829
      %v2834 = vadd.f32 %v1999, %v2829
      %v2835 = vadd.f32 %v2002, %v2829
      %v2836 = vadd.f32 %v2007, %v2829
      %v2837 = vadd.f32 %v2010, %v2829
      %v2838 = vadd.f32 %v2015, %v2829
      %v2839 = vadd.f32 %v2789, %v2829
      %v2840 = vadd.f32 %v2792, %v2829
      %v2841 = vadd.f32 %v2797, %v2829
      %v2842 = vadd.f32 %v2800, %v2829
      %v2843 = vadd.f32 %v2805, %v2829
      %v2844 = vadd.f32 %v2808, %v2829
      %v2845 = vadd.f32 %v2813, %v2829
      %v2846 = vadd.f32 %v2816, %v2829
      %v2847 = vadd.f32 %v2821, %v2829
      %v2848 = vld [vmem:[%s4 + $0x9] sm:$0x1]
      %v2849 = vld [vmem:[%s4 + $0xa] sm:$0x1]
      %v2850 = vadd.f32 %v352, %v2830
      %v2851 = vadd.f32 %v353, %v2831
      %v2852 = vadd.f32 %v354, %v2832
      %v2853 = vadd.f32 %v355, %v2833
      %v2854 = vadd.f32 %v356, %v2834
      %v2855 = vadd.f32 %v357, %v2835
      %v2856 = vadd.f32 %v358, %v2836
      %v2857 = vadd.f32 %v359, %v2837
      %v2858 = vadd.f32 %v2838, 0.0
      %v2859 = vadd.f32 %v450, %v2839
      %v2860 = vadd.f32 %v451, %v2840
      %v2861 = vadd.f32 %v452, %v2841
      %v2862 = vadd.f32 %v453, %v2842
      %v2863 = vadd.f32 %v454, %v2843
      %v2864 = vadd.f32 %v455, %v2844
      %v2865 = vadd.f32 %v456, %v2845
      %v2866 = vadd.f32 %v457, %v2846
      %v2867 = vadd.f32 %v2847, 0.0
      %v2868 = vsel %vm274, %v2850, 0.0
      %2869 = vadd.xlane.f32.xlu0 %v2868
      %v2870 = vpop.xlane.xlu0 %2869
      %v2871 = vsel %vm274, %v2851, 0.0
      %2872 = vadd.xlane.f32.xlu0 %v2871
      %v2873 = vpop.xlane.xlu0 %2872
      %v2874 = vsel %vm274, %v2852, 0.0
      %2875 = vadd.xlane.f32.xlu0 %v2874
      %v2876 = vpop.xlane.xlu0 %2875
      %v2877 = vsel %vm274, %v2853, 0.0
      %2878 = vadd.xlane.f32.xlu0 %v2877
      %v2879 = vpop.xlane.xlu0 %2878
      %v2880 = vsel %vm274, %v2854, 0.0
      %2881 = vadd.xlane.f32.xlu0 %v2880
      %v2882 = vpop.xlane.xlu0 %2881
      %v2883 = vsel %vm274, %v2855, 0.0
      %2884 = vadd.xlane.f32.xlu0 %v2883
      %v2885 = vpop.xlane.xlu0 %2884
      %v2886 = vsel %vm274, %v2856, 0.0
      %2887 = vadd.xlane.f32.xlu0 %v2886
      %v2888 = vpop.xlane.xlu0 %2887
      %v2889 = vsel %vm274, %v2857, 0.0
      %2890 = vadd.xlane.f32.xlu0 %v2889
      %v2891 = vpop.xlane.xlu0 %2890
      %v2892 = vsel %vm274, %v2858, 0.0
      %2893 = vadd.xlane.f32.xlu0 %v2892
      %v2894 = vpop.xlane.xlu0 %2893
      %v2895 = vsel %vm274, %v2859, 0.0
      %2896 = vadd.xlane.f32.xlu0 %v2895
      %v2897 = vpop.xlane.xlu0 %2896
      %v2898 = vsel %vm274, %v2860, 0.0
      %2899 = vadd.xlane.f32.xlu0 %v2898
      %v2900 = vpop.xlane.xlu0 %2899
      %v2901 = vsel %vm274, %v2861, 0.0
      %2902 = vadd.xlane.f32.xlu0 %v2901
      %v2903 = vpop.xlane.xlu0 %2902
      %v2904 = vsel %vm274, %v2862, 0.0
      %2905 = vadd.xlane.f32.xlu0 %v2904
      %v2906 = vpop.xlane.xlu0 %2905
      %v2907 = vsel %vm274, %v2863, 0.0
      %2908 = vadd.xlane.f32.xlu0 %v2907
      %v2909 = vpop.xlane.xlu0 %2908
      %v2910 = vsel %vm274, %v2864, 0.0
      %2911 = vadd.xlane.f32.xlu0 %v2910
      %v2912 = vpop.xlane.xlu0 %2911
      %v2913 = vsel %vm274, %v2865, 0.0
      %2914 = vadd.xlane.f32.xlu0 %v2913
      %v2915 = vpop.xlane.xlu0 %2914
      %v2916 = vsel %vm274, %v2866, 0.0
      %2917 = vadd.xlane.f32.xlu0 %v2916
      %v2918 = vpop.xlane.xlu0 %2917
      %v2919 = vsel %vm274, %v2867, 0.0
      %2920 = vadd.xlane.f32.xlu0 %v2919
      %v2921 = vpop.xlane.xlu0 %2920
      %v2922 = vrcp.pop 16.0
      %v2923 = vmul.f32 %v2870, %v2922
      %v2924 = vmul.f32 %v2873, %v2922
      %v2925 = vmul.f32 %v2876, %v2922
      %v2926 = vmul.f32 %v2879, %v2922
      %v2927 = vmul.f32 %v2882, %v2922
      %v2928 = vmul.f32 %v2885, %v2922
      %v2929 = vmul.f32 %v2888, %v2922
      %v2930 = vmul.f32 %v2891, %v2922
      %v2931 = vmul.f32 %v2894, %v2922
      %v2932 = vmul.f32 %v2897, %v2922
      %v2933 = vmul.f32 %v2900, %v2922
      %v2934 = vmul.f32 %v2903, %v2922
      %v2935 = vmul.f32 %v2906, %v2922
      %v2936 = vmul.f32 %v2909, %v2922
      %v2937 = vmul.f32 %v2912, %v2922
      %v2938 = vmul.f32 %v2915, %v2922
      %v2939 = vmul.f32 %v2918, %v2922
      %v2940 = vmul.f32 %v2921, %v2922
      %v2941 = vsub.f32 %v2850, %v2923
      %v2942 = vsub.f32 %v2851, %v2924
      %v2943 = vsub.f32 %v2852, %v2925
      %v2944 = vsub.f32 %v2853, %v2926
      %v2945 = vsub.f32 %v2854, %v2927
      %v2946 = vsub.f32 %v2855, %v2928
      %v2947 = vsub.f32 %v2856, %v2929
      %v2948 = vsub.f32 %v2857, %v2930
      %v2949 = vsub.f32 %v2858, %v2931
      %v2950 = vsub.f32 %v2859, %v2932
      %v2951 = vsub.f32 %v2860, %v2933
      %v2952 = vsub.f32 %v2861, %v2934
      %v2953 = vsub.f32 %v2862, %v2935
      %v2954 = vsub.f32 %v2863, %v2936
      %v2955 = vsub.f32 %v2864, %v2937
      %v2956 = vsub.f32 %v2865, %v2938
      %v2957 = vsub.f32 %v2866, %v2939
      %v2958 = vsub.f32 %v2867, %v2940
      %v2959 = vmul.f32 %v2941, %v2941
      %v2960 = vmul.f32 %v2942, %v2942
      %v2961 = vmul.f32 %v2943, %v2943
      %v2962 = vmul.f32 %v2944, %v2944
      %v2963 = vmul.f32 %v2945, %v2945
      %v2964 = vmul.f32 %v2946, %v2946
      %v2965 = vmul.f32 %v2947, %v2947
      %v2966 = vmul.f32 %v2948, %v2948
      %v2967 = vmul.f32 %v2949, %v2949
      %v2968 = vmul.f32 %v2950, %v2950
      %v2969 = vmul.f32 %v2951, %v2951
      %v2970 = vmul.f32 %v2952, %v2952
      %v2971 = vmul.f32 %v2953, %v2953
      %v2972 = vmul.f32 %v2954, %v2954
      %v2973 = vmul.f32 %v2955, %v2955
      %v2974 = vmul.f32 %v2956, %v2956
      %v2975 = vmul.f32 %v2957, %v2957
      %v2976 = vmul.f32 %v2958, %v2958
      %v2977 = vsel %vm274, %v2959, 0.0
      %2978 = vadd.xlane.f32.xlu0 %v2977
      %v2979 = vpop.xlane.xlu0 %2978
      %v2980 = vsel %vm274, %v2960, 0.0
      %2981 = vadd.xlane.f32.xlu0 %v2980
      %v2982 = vpop.xlane.xlu0 %2981
      %v2983 = vsel %vm274, %v2961, 0.0
      %2984 = vadd.xlane.f32.xlu0 %v2983
      %v2985 = vpop.xlane.xlu0 %2984
      %v2986 = vsel %vm274, %v2962, 0.0
      %2987 = vadd.xlane.f32.xlu0 %v2986
      %v2988 = vpop.xlane.xlu0 %2987
      %v2989 = vsel %vm274, %v2963, 0.0
      %2990 = vadd.xlane.f32.xlu0 %v2989
      %v2991 = vpop.xlane.xlu0 %2990
      %v2992 = vsel %vm274, %v2964, 0.0
      %2993 = vadd.xlane.f32.xlu0 %v2992
      %v2994 = vpop.xlane.xlu0 %2993
      %v2995 = vsel %vm274, %v2965, 0.0
      %2996 = vadd.xlane.f32.xlu0 %v2995
      %v2997 = vpop.xlane.xlu0 %2996
      %v2998 = vsel %vm274, %v2966, 0.0
      %2999 = vadd.xlane.f32.xlu0 %v2998
      %v3000 = vpop.xlane.xlu0 %2999
      %v3001 = vsel %vm274, %v2967, 0.0
      %3002 = vadd.xlane.f32.xlu0 %v3001
      %v3003 = vpop.xlane.xlu0 %3002
      %v3004 = vsel %vm274, %v2968, 0.0
      %3005 = vadd.xlane.f32.xlu0 %v3004
      %v3006 = vpop.xlane.xlu0 %3005
      %v3007 = vsel %vm274, %v2969, 0.0
      %3008 = vadd.xlane.f32.xlu0 %v3007
      %v3009 = vpop.xlane.xlu0 %3008
      %v3010 = vsel %vm274, %v2970, 0.0
      %3011 = vadd.xlane.f32.xlu0 %v3010
      %v3012 = vpop.xlane.xlu0 %3011
      %v3013 = vsel %vm274, %v2971, 0.0
      %3014 = vadd.xlane.f32.xlu0 %v3013
      %v3015 = vpop.xlane.xlu0 %3014
      %v3016 = vsel %vm274, %v2972, 0.0
      %3017 = vadd.xlane.f32.xlu0 %v3016
      %v3018 = vpop.xlane.xlu0 %3017
      %v3019 = vsel %vm274, %v2973, 0.0
      %3020 = vadd.xlane.f32.xlu0 %v3019
      %v3021 = vpop.xlane.xlu0 %3020
      %v3022 = vsel %vm274, %v2974, 0.0
      %3023 = vadd.xlane.f32.xlu0 %v3022
      %v3024 = vpop.xlane.xlu0 %3023
      %v3025 = vsel %vm274, %v2975, 0.0
      %3026 = vadd.xlane.f32.xlu0 %v3025
      %v3027 = vpop.xlane.xlu0 %3026
      %v3028 = vsel %vm274, %v2976, 0.0
      %3029 = vadd.xlane.f32.xlu0 %v3028
      %v3030 = vpop.xlane.xlu0 %3029
      %v3031 = vmul.f32 %v2979, %v2922
      %v3032 = vmul.f32 %v2982, %v2922
      %v3033 = vmul.f32 %v2985, %v2922
      %v3034 = vmul.f32 %v2988, %v2922
      %v3035 = vmul.f32 %v2991, %v2922
      %v3036 = vmul.f32 %v2994, %v2922
      %v3037 = vmul.f32 %v2997, %v2922
      %v3038 = vmul.f32 %v3000, %v2922
      %v3039 = vmul.f32 %v3003, %v2922
      %v3040 = vmul.f32 %v3006, %v2922
      %v3041 = vmul.f32 %v3009, %v2922
      %v3042 = vmul.f32 %v3012, %v2922
      %v3043 = vmul.f32 %v3015, %v2922
      %v3044 = vmul.f32 %v3018, %v2922
      %v3045 = vmul.f32 %v3021, %v2922
      %v3046 = vmul.f32 %v3024, %v2922
      %v3047 = vmul.f32 %v3027, %v2922
      %v3048 = vmul.f32 %v3030, %v2922
      %v3049 = vadd.f32 %v3031, 1e-05
      %v3050 = vadd.f32 %v3032, 1e-05
      %v3051 = vadd.f32 %v3033, 1e-05
      %v3052 = vadd.f32 %v3034, 1e-05
      %v3053 = vadd.f32 %v3035, 1e-05
      %v3054 = vadd.f32 %v3036, 1e-05
      %v3055 = vadd.f32 %v3037, 1e-05
      %v3056 = vadd.f32 %v3038, 1e-05
      %v3057 = vadd.f32 %v3039, 1e-05
      %v3058 = vadd.f32 %v3040, 1e-05
      %v3059 = vadd.f32 %v3041, 1e-05
      %v3060 = vadd.f32 %v3042, 1e-05
      %v3061 = vadd.f32 %v3043, 1e-05
      %v3062 = vadd.f32 %v3044, 1e-05
      %v3063 = vadd.f32 %v3045, 1e-05
      %v3064 = vadd.f32 %v3046, 1e-05
      %v3065 = vadd.f32 %v3047, 1e-05
      %v3066 = vadd.f32 %v3048, 1e-05
      %v3067 = vrsqrt.pop %v3049
      %v3068 = vrsqrt.pop %v3050
      %v3069 = vrsqrt.pop %v3051
      %v3070 = vrsqrt.pop %v3052
      %v3071 = vrsqrt.pop %v3053
      %v3072 = vrsqrt.pop %v3054
      %v3073 = vrsqrt.pop %v3055
      %v3074 = vrsqrt.pop %v3056
      %v3075 = vrsqrt.pop %v3057
      %v3076 = vrsqrt.pop %v3058
      %v3077 = vrsqrt.pop %v3059
      %v3078 = vrsqrt.pop %v3060
      %v3079 = vrsqrt.pop %v3061
      %v3080 = vrsqrt.pop %v3062
      %v3081 = vrsqrt.pop %v3063
      %v3082 = vrsqrt.pop %v3064
      %v3083 = vrsqrt.pop %v3065
      %v3084 = vrsqrt.pop %v3066
      %v3085 = vmul.f32 %v2941, %v3067
      %v3086 = vmul.f32 %v2942, %v3068
      %v3087 = vmul.f32 %v2943, %v3069
      %v3088 = vmul.f32 %v2944, %v3070
      %v3089 = vmul.f32 %v2945, %v3071
      %v3090 = vmul.f32 %v2946, %v3072
      %v3091 = vmul.f32 %v2947, %v3073
      %v3092 = vmul.f32 %v2948, %v3074
      %v3093 = vmul.f32 %v2949, %v3075
      %v3094 = vmul.f32 %v2950, %v3076
      %v3095 = vmul.f32 %v2951, %v3077
      %v3096 = vmul.f32 %v2952, %v3078
      %v3097 = vmul.f32 %v2953, %v3079
      %v3098 = vmul.f32 %v2954, %v3080
      %v3099 = vmul.f32 %v2955, %v3081
      %v3100 = vmul.f32 %v2956, %v3082
      %v3101 = vmul.f32 %v2957, %v3083
      %v3102 = vmul.f32 %v2958, %v3084
      %v3103 = vlaneseq
      %v3104 = vshrl.u32 %v3103, 7
      %v3105 = vsub.s32 0, %v3104
      %v3106 = vrot.slane %v2848, %v3105
      %v3107 = vmul.f32 %v3085, %v3106
      %v3108 = vmul.f32 %v3086, %v3106
      %v3109 = vmul.f32 %v3087, %v3106
      %v3110 = vmul.f32 %v3088, %v3106
      %v3111 = vmul.f32 %v3089, %v3106
      %v3112 = vmul.f32 %v3090, %v3106
      %v3113 = vmul.f32 %v3091, %v3106
      %v3114 = vmul.f32 %v3092, %v3106
      %v3115 = vmul.f32 %v3093, %v3106
      %v3116 = vmul.f32 %v3094, %v3106
      %v3117 = vmul.f32 %v3095, %v3106
      %v3118 = vmul.f32 %v3096, %v3106
      %v3119 = vmul.f32 %v3097, %v3106
      %v3120 = vmul.f32 %v3098, %v3106
      %v3121 = vmul.f32 %v3099, %v3106
      %v3122 = vmul.f32 %v3100, %v3106
      %v3123 = vmul.f32 %v3101, %v3106
      %v3124 = vmul.f32 %v3102, %v3106
      %v3125 = vlaneseq
      %v3126 = vshrl.u32 %v3125, 7
      %v3127 = vsub.s32 0, %v3126
      %v3128 = vrot.slane %v2849, %v3127
      %v3129 = vadd.f32 %v3107, %v3128
      %v3130 = vadd.f32 %v3108, %v3128
      %v3131 = vadd.f32 %v3109, %v3128
      %v3132 = vadd.f32 %v3110, %v3128
      %v3133 = vadd.f32 %v3111, %v3128
      %v3134 = vadd.f32 %v3112, %v3128
      %v3135 = vadd.f32 %v3113, %v3128
      %v3136 = vadd.f32 %v3114, %v3128
      %v3137 = vadd.f32 %v3115, %v3128
      %v3138 = vadd.f32 %v3116, %v3128
      %v3139 = vadd.f32 %v3117, %v3128
      %v3140 = vadd.f32 %v3118, %v3128
      %v3141 = vadd.f32 %v3119, %v3128
      %v3142 = vadd.f32 %v3120, %v3128
      %v3143 = vadd.f32 %v3121, %v3128
      %v3144 = vadd.f32 %v3122, %v3128
      %v3145 = vadd.f32 %v3123, %v3128
      %v3146 = vadd.f32 %v3124, %v3128
      %v3147 = vld [vmem:[%s3 + $0x40] sm:$0xf]
      %v3148 = vld [vmem:[%s3 + $0x44] sm:$0xf]
      %v3149 = vld [vmem:[%s3 + $0x48] sm:$0xf]
      %v3150 = vld [vmem:[%s3 + $0x4c] sm:$0xf]
      %v3151 = vld [vmem:[%s3 + $0x50] sm:$0xf]
      %v3152 = vld [vmem:[%s3 + $0x54] sm:$0xf]
      %v3153 = vld [vmem:[%s4 + $0x7] sm:$0x1]
      %v3154 = vld [vmem:[%s4 + $0x8] sm:$0x1]
      %v3155 = vpack.c.bf16 %v3130, %v3129
      %v3156 = vpack.c.bf16 %v3132, %v3131
      %v3157 = vpack.c.bf16 %v3134, %v3133
      %v3158 = vpack.c.bf16 %v3136, %v3135
      %v3159 = vpack.c.bf16 %v3138, %v3137
      %v3160 = vpack.c.bf16 %v3140, %v3139
      %v3161 = vpack.c.bf16 %v3142, %v3141
      %v3162 = vpack.c.bf16 %v3144, %v3143
      %v3163 = vpack.c.bf16 %v3146, %v3145
      %v3164 = vlaneseq
      %v3165 = vshrl.u32 %v3164, 7
      %v3166 = vsub.s32 0, %v3165
      %v3167 = vrot.slane %v3153, %v3166
      %v3170 = vunpack.c.l.b16 %v3147
      %v3171 = vunpack.c.l.b16 %v3148
      %v3172 = vpack.c.b16 %v3171, %v3170
      %v3175 = vsel %vm274, %v3155, 0
      %v3178 = vsel %vm274, %v3156, 0
      %v3181 = vsel %vm274, %v3157, 0
      %v3184 = vsel %vm274, %v3158, 0
      %v3187 = vsel %vm274, %v3159, 0
      %v3190 = vsel %vm274, %v3160, 0
      %v3193 = vsel %vm274, %v3161, 0
      %v3196 = vsel %vm274, %v3162, 0
      %v3199 = vsel %vm274, %v3163, 0
      %3201 = vmatprep.subr.bf16.mxu0 0
      %3202 = vmatpush1.bf16.msra.mxu0 %v3172
      %3203 = vmatprep.subr.bf16.mxu0 0
      %3204 = vmatpush1.bf16.msra.mxu0 0
      %3205 = vmatprep.subr.bf16.mxu0 0
      %3206 = vmatpush1.bf16.msra.mxu0 0
      %3207 = vmatprep.subr.bf16.mxu0 0
      %3208 = vmatpush1.bf16.msra.mxu0 0
      %3209 = vmatprep.subr.bf16.mxu0 0
      %3210 = vmatpush1.bf16.msra.mxu0 0
      %3211 = vmatprep.subr.bf16.mxu0 0
      %3212 = vmatpush1.bf16.msra.mxu0 0
      %3213 = vmatprep.subr.bf16.mxu0 0
      %3214 = vmatpush1.bf16.msra.mxu0 0
      %3215 = vmatprep.subr.bf16.mxu0 0
      %3216 = vmatpush1.bf16.msra.mxu0 0
      %3217 = vmatprep.subr.bf16.mxu0 0
      %3218 = vmatpush1.bf16.msra.mxu0 0
      %3219 = vmatprep.subr.bf16.mxu0 0
      %3220 = vmatpush1.bf16.msra.mxu0 0
      %3221 = vmatprep.subr.bf16.mxu0 0
      %3222 = vmatpush1.bf16.msra.mxu0 0
      %3223 = vmatprep.subr.bf16.mxu0 0
      %3224 = vmatpush1.bf16.msra.mxu0 0
      %3225 = vmatprep.subr.bf16.mxu0 0
      %3226 = vmatpush1.bf16.msra.mxu0 0
      %3227 = vmatprep.subr.bf16.mxu0 0
      %3228 = vmatpush1.bf16.msra.mxu0 0
      %3229 = vmatprep.subr.bf16.mxu0 0
      %3230 = vmatpush1.bf16.msra.mxu0 0
      %3231 = vmatprep.subr.bf16.mxu0 0
      %3232 = vmatpush1.bf16.msra.mxu0 0
      %3233 = vmatprep.mubr.bf16.mxu0 0
      %3234 = vmatmul.mubr.bf16.gmra.mrb[0].mxu0 %v3175
      %v3235 = vpop.f32.mrb[0].mxu0
      %v3236 = vadd.f32 %v3167, %v3235
      %v3237 = vpop.f32.mrb[0].mxu0
      %v3238 = vpop.f32.mrb[0].mxu0
      %v3239 = vadd.f32 %v3167, %v3238
      %v3240 = vpop.f32.mrb[0].mxu0
      %3241 = vmatprep.mubr.bf16.mxu0 0
      %3242 = vmatmul.mubr.bf16.gmra.mrb[0].mxu0 %v3178
      %v3243 = vpop.f32.mrb[0].mxu0
      %v3244 = vadd.f32 %v3167, %v3243
      %v3245 = vpop.f32.mrb[0].mxu0
      %v3246 = vpop.f32.mrb[0].mxu0
      %v3247 = vadd.f32 %v3167, %v3246
      %v3248 = vpop.f32.mrb[0].mxu0
      %3249 = vmatprep.mubr.bf16.mxu0 0
      %3250 = vmatmul.mubr.bf16.gmra.mrb[0].mxu0 %v3181
      %v3251 = vpop.f32.mrb[0].mxu0
      %v3252 = vadd.f32 %v3167, %v3251
      %v3253 = vpop.f32.mrb[0].mxu0
      %v3254 = vpop.f32.mrb[0].mxu0
      %v3255 = vadd.f32 %v3167, %v3254
      %v3256 = vpop.f32.mrb[0].mxu0
      %3257 = vmatprep.mubr.bf16.mxu0 0
      %3258 = vmatmul.mubr.bf16.gmra.mrb[0].mxu0 %v3184
      %v3259 = vpop.f32.mrb[0].mxu0
      %v3260 = vadd.f32 %v3167, %v3259
      %v3261 = vpop.f32.mrb[0].mxu0
      %v3262 = vpop.f32.mrb[0].mxu0
      %v3263 = vadd.f32 %v3167, %v3262
      %v3264 = vpop.f32.mrb[0].mxu0
      %3265 = vmatprep.mubr.bf16.mxu0 0
      %3266 = vmatmul.mubr.bf16.gmra.mrb[0].mxu0 %v3187
      %v3267 = vpop.f32.mrb[0].mxu0
      %v3268 = vadd.f32 %v3167, %v3267
      %v3269 = vpop.f32.mrb[0].mxu0
      %v3270 = vpop.f32.mrb[0].mxu0
      %v3271 = vadd.f32 %v3167, %v3270
      %v3272 = vpop.f32.mrb[0].mxu0
      %3273 = vmatprep.mubr.bf16.mxu0 0
      %3274 = vmatmul.mubr.bf16.gmra.mrb[0].mxu0 %v3190
      %v3275 = vpop.f32.mrb[0].mxu0
      %v3276 = vadd.f32 %v3167, %v3275
      %v3277 = vpop.f32.mrb[0].mxu0
      %v3278 = vpop.f32.mrb[0].mxu0
      %v3279 = vadd.f32 %v3167, %v3278
      %v3280 = vpop.f32.mrb[0].mxu0
      %3281 = vmatprep.mubr.bf16.mxu0 0
      %3282 = vmatmul.mubr.bf16.gmra.mrb[0].mxu0 %v3193
      %v3283 = vpop.f32.mrb[0].mxu0
      %v3284 = vadd.f32 %v3167, %v3283
      %v3285 = vpop.f32.mrb[0].mxu0
      %v3286 = vpop.f32.mrb[0].mxu0
      %v3287 = vadd.f32 %v3167, %v3286
      %v3288 = vpop.f32.mrb[0].mxu0
      %3289 = vmatprep.mubr.bf16.mxu0 0
      %3290 = vmatmul.mubr.bf16.gmra.mrb[0].mxu0 %v3196
      %v3291 = vpop.f32.mrb[0].mxu0
      %v3292 = vadd.f32 %v3167, %v3291
      %v3293 = vpop.f32.mrb[0].mxu0
      %v3294 = vpop.f32.mrb[0].mxu0
      %v3295 = vadd.f32 %v3167, %v3294
      %v3296 = vpop.f32.mrb[0].mxu0
      %3297 = vmatprep.mubr.bf16.mxu0 0
      %3298 = vmatmul.mubr.bf16.gmra.mrb[0].mxu0 %v3199
      %v3299 = vpop.f32.mrb[0].mxu0
      %v3300 = vadd.f32 %v3167, %v3299
      %v3301 = vpop.f32.mrb[0].mxu0
      %v3302 = vpop.f32.mrb[0].mxu0
      %v3303 = vadd.f32 %v3167, %v3302
      %v3304 = vpop.f32.mrb[0].mxu0
      %3305 = vdwg.mxu0
      %v3306 = vmax.f32 %v3236, 0.0
      %v3307 = vmax.f32 %v3239, 0.0
      %v3308 = vmax.f32 %v3244, 0.0
      %v3309 = vmax.f32 %v3247, 0.0
      %v3310 = vmax.f32 %v3252, 0.0
      %v3311 = vmax.f32 %v3255, 0.0
      %v3312 = vmax.f32 %v3260, 0.0
      %v3313 = vmax.f32 %v3263, 0.0
      %v3314 = vmax.f32 %v3268, 0.0
      %v3315 = vmax.f32 %v3271, 0.0
      %v3316 = vmax.f32 %v3276, 0.0
      %v3317 = vmax.f32 %v3279, 0.0
      %v3318 = vmax.f32 %v3284, 0.0
      %v3319 = vmax.f32 %v3287, 0.0
      %v3320 = vmax.f32 %v3292, 0.0
      %v3321 = vmax.f32 %v3295, 0.0
      %v3322 = vmax.f32 %v3300, 0.0
      %v3323 = vmax.f32 %v3303, 0.0
      %v3324 = vpack.c.bf16 %v3307, %v3306
      %v3325 = vpack.c.bf16 %v3309, %v3308
      %v3326 = vpack.c.bf16 %v3311, %v3310
      %v3327 = vpack.c.bf16 %v3313, %v3312
      %v3328 = vpack.c.bf16 %v3315, %v3314
      %v3329 = vpack.c.bf16 %v3317, %v3316
      %v3330 = vpack.c.bf16 %v3319, %v3318
      %v3331 = vpack.c.bf16 %v3321, %v3320
      %v3332 = vpack.c.bf16 %v3323, %v3322
      %v3333 = vlaneseq
      %v3334 = vshrl.u32 %v3333, 7
      %v3335 = vsub.s32 0, %v3334
      %v3336 = vrot.slane %v3154, %v3335
      %v3341 = vunpack.c.l.b16 %v3149
      %v3342 = vunpack.c.l.b16 %v3150
      %v3343 = vunpack.c.l.b16 %v3151
      %v3344 = vunpack.c.l.b16 %v3152
      %v3345 = vpack.c.b16 %v3342, %v3341
      %v3346 = vpack.c.b16 %v3344, %v3343
      %vm3349 = vcmask 261120
      %v3351 = vsel %vm3349, %v3324, 0
      %v3354 = vsel %vm3349, %v3325, 0
      %v3357 = vsel %vm3349, %v3326, 0
      %v3360 = vsel %vm3349, %v3327, 0
      %v3363 = vsel %vm3349, %v3328, 0
      %v3366 = vsel %vm3349, %v3329, 0
      %v3369 = vsel %vm3349, %v3330, 0
      %v3372 = vsel %vm3349, %v3331, 0
      %v3375 = vsel %vm3349, %v3332, 0
      %3377 = vmatprep.subr.bf16.mxu0 0
      %3378 = vmatpush1.bf16.msra.mxu0 %v3345
      %3379 = vmatprep.subr.bf16.mxu0 0
      %3380 = vmatpush1.bf16.msra.mxu0 %v3346
      %3381 = vmatprep.subr.bf16.mxu0 0
      %3382 = vmatpush1.bf16.msra.mxu0 0
      %3383 = vmatprep.subr.bf16.mxu0 0
      %3384 = vmatpush1.bf16.msra.mxu0 0
      %3385 = vmatprep.subr.bf16.mxu0 0
      %3386 = vmatpush1.bf16.msra.mxu0 0
      %3387 = vmatprep.subr.bf16.mxu0 0
      %3388 = vmatpush1.bf16.msra.mxu0 0
      %3389 = vmatprep.subr.bf16.mxu0 0
      %3390 = vmatpush1.bf16.msra.mxu0 0
      %3391 = vmatprep.subr.bf16.mxu0 0
      %3392 = vmatpush1.bf16.msra.mxu0 0
      %3393 = vmatprep.subr.bf16.mxu0 0
      %3394 = vmatpush1.bf16.msra.mxu0 0
      %3395 = vmatprep.subr.bf16.mxu0 0
      %3396 = vmatpush1.bf16.msra.mxu0 0
      %3397 = vmatprep.subr.bf16.mxu0 0
      %3398 = vmatpush1.bf16.msra.mxu0 0
      %3399 = vmatprep.subr.bf16.mxu0 0
      %3400 = vmatpush1.bf16.msra.mxu0 0
      %3401 = vmatprep.subr.bf16.mxu0 0
      %3402 = vmatpush1.bf16.msra.mxu0 0
      %3403 = vmatprep.subr.bf16.mxu0 0
      %3404 = vmatpush1.bf16.msra.mxu0 0
      %3405 = vmatprep.subr.bf16.mxu0 0
      %3406 = vmatpush1.bf16.msra.mxu0 0
      %3407 = vmatprep.subr.bf16.mxu0 0
      %3408 = vmatpush1.bf16.msra.mxu0 0
      %3409 = vmatprep.mubr.bf16.mxu0 0
      %3410 = vmatmul.mubr.bf16.gmra.mrb[0].mxu0 %v3351
      %v3411 = vpop.f32.mrb[0].mxu0
      %v3412 = vadd.f32 %v3336, %v3411
      %v3413 = vpop.f32.mrb[0].mxu0
      %v3414 = vpop.f32.mrb[0].mxu0
      %v3415 = vadd.f32 %v3336, %v3414
      %v3416 = vpop.f32.mrb[0].mxu0
      %3417 = vmatprep.mubr.bf16.mxu0 0
      %3418 = vmatmul.mubr.bf16.gmra.mrb[0].mxu0 %v3354
      %v3419 = vpop.f32.mrb[0].mxu0
      %v3420 = vadd.f32 %v3336, %v3419
      %v3421 = vpop.f32.mrb[0].mxu0
      %v3422 = vpop.f32.mrb[0].mxu0
      %v3423 = vadd.f32 %v3336, %v3422
      %v3424 = vpop.f32.mrb[0].mxu0
      %3425 = vmatprep.mubr.bf16.mxu0 0
      %3426 = vmatmul.mubr.bf16.gmra.mrb[0].mxu0 %v3357
      %v3427 = vpop.f32.mrb[0].mxu0
      %v3428 = vadd.f32 %v3336, %v3427
      %v3429 = vpop.f32.mrb[0].mxu0
      %v3430 = vpop.f32.mrb[0].mxu0
      %v3431 = vadd.f32 %v3336, %v3430
      %v3432 = vpop.f32.mrb[0].mxu0
      %3433 = vmatprep.mubr.bf16.mxu0 0
      %3434 = vmatmul.mubr.bf16.gmra.mrb[0].mxu0 %v3360
      %v3435 = vpop.f32.mrb[0].mxu0
      %v3436 = vadd.f32 %v3336, %v3435
      %v3437 = vpop.f32.mrb[0].mxu0
      %v3438 = vpop.f32.mrb[0].mxu0
      %v3439 = vadd.f32 %v3336, %v3438
      %v3440 = vpop.f32.mrb[0].mxu0
      %3441 = vmatprep.mubr.bf16.mxu0 0
      %3442 = vmatmul.mubr.bf16.gmra.mrb[0].mxu0 %v3363
      %v3443 = vpop.f32.mrb[0].mxu0
      %v3444 = vadd.f32 %v3336, %v3443
      %v3445 = vpop.f32.mrb[0].mxu0
      %v3446 = vpop.f32.mrb[0].mxu0
      %v3447 = vadd.f32 %v3336, %v3446
      %v3448 = vpop.f32.mrb[0].mxu0
      %3449 = vmatprep.mubr.bf16.mxu0 0
      %3450 = vmatmul.mubr.bf16.gmra.mrb[0].mxu0 %v3366
      %v3451 = vpop.f32.mrb[0].mxu0
      %v3452 = vadd.f32 %v3336, %v3451
      %v3453 = vpop.f32.mrb[0].mxu0
      %v3454 = vpop.f32.mrb[0].mxu0
      %v3455 = vadd.f32 %v3336, %v3454
      %v3456 = vpop.f32.mrb[0].mxu0
      %3457 = vmatprep.mubr.bf16.mxu0 0
      %3458 = vmatmul.mubr.bf16.gmra.mrb[0].mxu0 %v3369
      %v3459 = vpop.f32.mrb[0].mxu0
      %v3460 = vadd.f32 %v3336, %v3459
      %v3461 = vpop.f32.mrb[0].mxu0
      %v3462 = vpop.f32.mrb[0].mxu0
      %v3463 = vadd.f32 %v3336, %v3462
      %v3464 = vpop.f32.mrb[0].mxu0
      %3465 = vmatprep.mubr.bf16.mxu0 0
      %3466 = vmatmul.mubr.bf16.gmra.mrb[0].mxu0 %v3372
      %v3467 = vpop.f32.mrb[0].mxu0
      %v3468 = vadd.f32 %v3336, %v3467
      %v3469 = vpop.f32.mrb[0].mxu0
      %v3470 = vpop.f32.mrb[0].mxu0
      %v3471 = vadd.f32 %v3336, %v3470
      %v3472 = vpop.f32.mrb[0].mxu0
      %3473 = vmatprep.mubr.bf16.mxu0 0
      %3474 = vmatmul.mubr.bf16.gmra.mrb[0].mxu0 %v3375
      %v3475 = vpop.f32.mrb[0].mxu0
      %v3476 = vadd.f32 %v3336, %v3475
      %v3477 = vpop.f32.mrb[0].mxu0
      %v3478 = vpop.f32.mrb[0].mxu0
      %v3479 = vadd.f32 %v3336, %v3478
      %v3480 = vpop.f32.mrb[0].mxu0
      %3481 = vdwg.mxu0
      %v3482 = vld [vmem:[%s4 + $0xb] sm:$0x1]
      %v3483 = vld [vmem:[%s4 + $0xc] sm:$0x1]
      %v3484 = vadd.f32 %v3129, %v3412
      %v3485 = vadd.f32 %v3130, %v3415
      %v3486 = vadd.f32 %v3131, %v3420
      %v3487 = vadd.f32 %v3132, %v3423
      %v3488 = vadd.f32 %v3133, %v3428
      %v3489 = vadd.f32 %v3134, %v3431
      %v3490 = vadd.f32 %v3135, %v3436
      %v3491 = vadd.f32 %v3136, %v3439
      %v3492 = vadd.f32 %v3137, %v3444
      %v3493 = vadd.f32 %v3138, %v3447
      %v3494 = vadd.f32 %v3139, %v3452
      %v3495 = vadd.f32 %v3140, %v3455
      %v3496 = vadd.f32 %v3141, %v3460
      %v3497 = vadd.f32 %v3142, %v3463
      %v3498 = vadd.f32 %v3143, %v3468
      %v3499 = vadd.f32 %v3144, %v3471
      %v3500 = vadd.f32 %v3145, %v3476
      %v3501 = vadd.f32 %v3146, %v3479
      %v3502 = vsel %vm274, %v3484, 0.0
      %3503 = vadd.xlane.f32.xlu0 %v3502
      %v3504 = vpop.xlane.xlu0 %3503
      %v3505 = vsel %vm274, %v3485, 0.0
      %3506 = vadd.xlane.f32.xlu0 %v3505
      %v3507 = vpop.xlane.xlu0 %3506
      %v3508 = vsel %vm274, %v3486, 0.0
      %3509 = vadd.xlane.f32.xlu0 %v3508
      %v3510 = vpop.xlane.xlu0 %3509
      %v3511 = vsel %vm274, %v3487, 0.0
      %3512 = vadd.xlane.f32.xlu0 %v3511
      %v3513 = vpop.xlane.xlu0 %3512
      %v3514 = vsel %vm274, %v3488, 0.0
      %3515 = vadd.xlane.f32.xlu0 %v3514
      %v3516 = vpop.xlane.xlu0 %3515
      %v3517 = vsel %vm274, %v3489, 0.0
      %3518 = vadd.xlane.f32.xlu0 %v3517
      %v3519 = vpop.xlane.xlu0 %3518
      %v3520 = vsel %vm274, %v3490, 0.0
      %3521 = vadd.xlane.f32.xlu0 %v3520
      %v3522 = vpop.xlane.xlu0 %3521
      %v3523 = vsel %vm274, %v3491, 0.0
      %3524 = vadd.xlane.f32.xlu0 %v3523
      %v3525 = vpop.xlane.xlu0 %3524
      %v3526 = vsel %vm274, %v3492, 0.0
      %3527 = vadd.xlane.f32.xlu0 %v3526
      %v3528 = vpop.xlane.xlu0 %3527
      %v3529 = vsel %vm274, %v3493, 0.0
      %3530 = vadd.xlane.f32.xlu0 %v3529
      %v3531 = vpop.xlane.xlu0 %3530
      %v3532 = vsel %vm274, %v3494, 0.0
      %3533 = vadd.xlane.f32.xlu0 %v3532
      %v3534 = vpop.xlane.xlu0 %3533
      %v3535 = vsel %vm274, %v3495, 0.0
      %3536 = vadd.xlane.f32.xlu0 %v3535
      %v3537 = vpop.xlane.xlu0 %3536
      %v3538 = vsel %vm274, %v3496, 0.0
      %3539 = vadd.xlane.f32.xlu0 %v3538
      %v3540 = vpop.xlane.xlu0 %3539
      %v3541 = vsel %vm274, %v3497, 0.0
      %3542 = vadd.xlane.f32.xlu0 %v3541
      %v3543 = vpop.xlane.xlu0 %3542
      %v3544 = vsel %vm274, %v3498, 0.0
      %3545 = vadd.xlane.f32.xlu0 %v3544
      %v3546 = vpop.xlane.xlu0 %3545
      %v3547 = vsel %vm274, %v3499, 0.0
      %3548 = vadd.xlane.f32.xlu0 %v3547
      %v3549 = vpop.xlane.xlu0 %3548
      %v3550 = vsel %vm274, %v3500, 0.0
      %3551 = vadd.xlane.f32.xlu0 %v3550
      %v3552 = vpop.xlane.xlu0 %3551
      %v3553 = vsel %vm274, %v3501, 0.0
      %3554 = vadd.xlane.f32.xlu0 %v3553
      %v3555 = vpop.xlane.xlu0 %3554
      %v3556 = vmul.f32 %v3504, %v2922
      %v3557 = vmul.f32 %v3507, %v2922
      %v3558 = vmul.f32 %v3510, %v2922
      %v3559 = vmul.f32 %v3513, %v2922
      %v3560 = vmul.f32 %v3516, %v2922
      %v3561 = vmul.f32 %v3519, %v2922
      %v3562 = vmul.f32 %v3522, %v2922
      %v3563 = vmul.f32 %v3525, %v2922
      %v3564 = vmul.f32 %v3528, %v2922
      %v3565 = vmul.f32 %v3531, %v2922
      %v3566 = vmul.f32 %v3534, %v2922
      %v3567 = vmul.f32 %v3537, %v2922
      %v3568 = vmul.f32 %v3540, %v2922
      %v3569 = vmul.f32 %v3543, %v2922
      %v3570 = vmul.f32 %v3546, %v2922
      %v3571 = vmul.f32 %v3549, %v2922
      %v3572 = vmul.f32 %v3552, %v2922
      %v3573 = vmul.f32 %v3555, %v2922
      %v3574 = vsub.f32 %v3484, %v3556
      %v3575 = vsub.f32 %v3485, %v3557
      %v3576 = vsub.f32 %v3486, %v3558
      %v3577 = vsub.f32 %v3487, %v3559
      %v3578 = vsub.f32 %v3488, %v3560
      %v3579 = vsub.f32 %v3489, %v3561
      %v3580 = vsub.f32 %v3490, %v3562
      %v3581 = vsub.f32 %v3491, %v3563
      %v3582 = vsub.f32 %v3492, %v3564
      %v3583 = vsub.f32 %v3493, %v3565
      %v3584 = vsub.f32 %v3494, %v3566
      %v3585 = vsub.f32 %v3495, %v3567
      %v3586 = vsub.f32 %v3496, %v3568
      %v3587 = vsub.f32 %v3497, %v3569
      %v3588 = vsub.f32 %v3498, %v3570
      %v3589 = vsub.f32 %v3499, %v3571
      %v3590 = vsub.f32 %v3500, %v3572
      %v3591 = vsub.f32 %v3501, %v3573
      %v3592 = vmul.f32 %v3574, %v3574
      %v3593 = vmul.f32 %v3575, %v3575
      %v3594 = vmul.f32 %v3576, %v3576
      %v3595 = vmul.f32 %v3577, %v3577
      %v3596 = vmul.f32 %v3578, %v3578
      %v3597 = vmul.f32 %v3579, %v3579
      %v3598 = vmul.f32 %v3580, %v3580
      %v3599 = vmul.f32 %v3581, %v3581
      %v3600 = vmul.f32 %v3582, %v3582
      %v3601 = vmul.f32 %v3583, %v3583
      %v3602 = vmul.f32 %v3584, %v3584
      %v3603 = vmul.f32 %v3585, %v3585
      %v3604 = vmul.f32 %v3586, %v3586
      %v3605 = vmul.f32 %v3587, %v3587
      %v3606 = vmul.f32 %v3588, %v3588
      %v3607 = vmul.f32 %v3589, %v3589
      %v3608 = vmul.f32 %v3590, %v3590
      %v3609 = vmul.f32 %v3591, %v3591
      %v3610 = vsel %vm274, %v3592, 0.0
      %3611 = vadd.xlane.f32.xlu0 %v3610
      %v3612 = vpop.xlane.xlu0 %3611
      %v3613 = vsel %vm274, %v3593, 0.0
      %3614 = vadd.xlane.f32.xlu0 %v3613
      %v3615 = vpop.xlane.xlu0 %3614
      %v3616 = vsel %vm274, %v3594, 0.0
      %3617 = vadd.xlane.f32.xlu0 %v3616
      %v3618 = vpop.xlane.xlu0 %3617
      %v3619 = vsel %vm274, %v3595, 0.0
      %3620 = vadd.xlane.f32.xlu0 %v3619
      %v3621 = vpop.xlane.xlu0 %3620
      %v3622 = vsel %vm274, %v3596, 0.0
      %3623 = vadd.xlane.f32.xlu0 %v3622
      %v3624 = vpop.xlane.xlu0 %3623
      %v3625 = vsel %vm274, %v3597, 0.0
      %3626 = vadd.xlane.f32.xlu0 %v3625
      %v3627 = vpop.xlane.xlu0 %3626
      %v3628 = vsel %vm274, %v3598, 0.0
      %3629 = vadd.xlane.f32.xlu0 %v3628
      %v3630 = vpop.xlane.xlu0 %3629
      %v3631 = vsel %vm274, %v3599, 0.0
      %3632 = vadd.xlane.f32.xlu0 %v3631
      %v3633 = vpop.xlane.xlu0 %3632
      %v3634 = vsel %vm274, %v3600, 0.0
      %3635 = vadd.xlane.f32.xlu0 %v3634
      %v3636 = vpop.xlane.xlu0 %3635
      %v3637 = vsel %vm274, %v3601, 0.0
      %3638 = vadd.xlane.f32.xlu0 %v3637
      %v3639 = vpop.xlane.xlu0 %3638
      %v3640 = vsel %vm274, %v3602, 0.0
      %3641 = vadd.xlane.f32.xlu0 %v3640
      %v3642 = vpop.xlane.xlu0 %3641
      %v3643 = vsel %vm274, %v3603, 0.0
      %3644 = vadd.xlane.f32.xlu0 %v3643
      %v3645 = vpop.xlane.xlu0 %3644
      %v3646 = vsel %vm274, %v3604, 0.0
      %3647 = vadd.xlane.f32.xlu0 %v3646
      %v3648 = vpop.xlane.xlu0 %3647
      %v3649 = vsel %vm274, %v3605, 0.0
      %3650 = vadd.xlane.f32.xlu0 %v3649
      %v3651 = vpop.xlane.xlu0 %3650
      %v3652 = vsel %vm274, %v3606, 0.0
      %3653 = vadd.xlane.f32.xlu0 %v3652
      %v3654 = vpop.xlane.xlu0 %3653
      %v3655 = vsel %vm274, %v3607, 0.0
      %3656 = vadd.xlane.f32.xlu0 %v3655
      %v3657 = vpop.xlane.xlu0 %3656
      %v3658 = vsel %vm274, %v3608, 0.0
      %3659 = vadd.xlane.f32.xlu0 %v3658
      %v3660 = vpop.xlane.xlu0 %3659
      %v3661 = vsel %vm274, %v3609, 0.0
      %3662 = vadd.xlane.f32.xlu0 %v3661
      %v3663 = vpop.xlane.xlu0 %3662
      %v3664 = vmul.f32 %v3612, %v2922
      %v3665 = vmul.f32 %v3615, %v2922
      %v3666 = vmul.f32 %v3618, %v2922
      %v3667 = vmul.f32 %v3621, %v2922
      %v3668 = vmul.f32 %v3624, %v2922
      %v3669 = vmul.f32 %v3627, %v2922
      %v3670 = vmul.f32 %v3630, %v2922
      %v3671 = vmul.f32 %v3633, %v2922
      %v3672 = vmul.f32 %v3636, %v2922
      %v3673 = vmul.f32 %v3639, %v2922
      %v3674 = vmul.f32 %v3642, %v2922
      %v3675 = vmul.f32 %v3645, %v2922
      %v3676 = vmul.f32 %v3648, %v2922
      %v3677 = vmul.f32 %v3651, %v2922
      %v3678 = vmul.f32 %v3654, %v2922
      %v3679 = vmul.f32 %v3657, %v2922
      %v3680 = vmul.f32 %v3660, %v2922
      %v3681 = vmul.f32 %v3663, %v2922
      %v3682 = vadd.f32 %v3664, 1e-05
      %v3683 = vadd.f32 %v3665, 1e-05
      %v3684 = vadd.f32 %v3666, 1e-05
      %v3685 = vadd.f32 %v3667, 1e-05
      %v3686 = vadd.f32 %v3668, 1e-05
      %v3687 = vadd.f32 %v3669, 1e-05
      %v3688 = vadd.f32 %v3670, 1e-05
      %v3689 = vadd.f32 %v3671, 1e-05
      %v3690 = vadd.f32 %v3672, 1e-05
      %v3691 = vadd.f32 %v3673, 1e-05
      %v3692 = vadd.f32 %v3674, 1e-05
      %v3693 = vadd.f32 %v3675, 1e-05
      %v3694 = vadd.f32 %v3676, 1e-05
      %v3695 = vadd.f32 %v3677, 1e-05
      %v3696 = vadd.f32 %v3678, 1e-05
      %v3697 = vadd.f32 %v3679, 1e-05
      %v3698 = vadd.f32 %v3680, 1e-05
      %v3699 = vadd.f32 %v3681, 1e-05
      %v3700 = vrsqrt.pop %v3682
      %v3701 = vrsqrt.pop %v3683
      %v3702 = vrsqrt.pop %v3684
      %v3703 = vrsqrt.pop %v3685
      %v3704 = vrsqrt.pop %v3686
      %v3705 = vrsqrt.pop %v3687
      %v3706 = vrsqrt.pop %v3688
      %v3707 = vrsqrt.pop %v3689
      %v3708 = vrsqrt.pop %v3690
      %v3709 = vrsqrt.pop %v3691
      %v3710 = vrsqrt.pop %v3692
      %v3711 = vrsqrt.pop %v3693
      %v3712 = vrsqrt.pop %v3694
      %v3713 = vrsqrt.pop %v3695
      %v3714 = vrsqrt.pop %v3696
      %v3715 = vrsqrt.pop %v3697
      %v3716 = vrsqrt.pop %v3698
      %v3717 = vrsqrt.pop %v3699
      %v3718 = vmul.f32 %v3574, %v3700
      %v3719 = vmul.f32 %v3575, %v3701
      %v3720 = vmul.f32 %v3576, %v3702
      %v3721 = vmul.f32 %v3577, %v3703
      %v3722 = vmul.f32 %v3578, %v3704
      %v3723 = vmul.f32 %v3579, %v3705
      %v3724 = vmul.f32 %v3580, %v3706
      %v3725 = vmul.f32 %v3581, %v3707
      %v3726 = vmul.f32 %v3582, %v3708
      %v3727 = vmul.f32 %v3583, %v3709
      %v3728 = vmul.f32 %v3584, %v3710
      %v3729 = vmul.f32 %v3585, %v3711
      %v3730 = vmul.f32 %v3586, %v3712
      %v3731 = vmul.f32 %v3587, %v3713
      %v3732 = vmul.f32 %v3588, %v3714
      %v3733 = vmul.f32 %v3589, %v3715
      %v3734 = vmul.f32 %v3590, %v3716
      %v3735 = vmul.f32 %v3591, %v3717
      %v3736 = vlaneseq
      %v3737 = vshrl.u32 %v3736, 7
      %v3738 = vsub.s32 0, %v3737
      %v3739 = vrot.slane %v3482, %v3738
      %v3740 = vmul.f32 %v3718, %v3739
      %v3741 = vmul.f32 %v3719, %v3739
      %v3742 = vmul.f32 %v3720, %v3739
      %v3743 = vmul.f32 %v3721, %v3739
      %v3744 = vmul.f32 %v3722, %v3739
      %v3745 = vmul.f32 %v3723, %v3739
      %v3746 = vmul.f32 %v3724, %v3739
      %v3747 = vmul.f32 %v3725, %v3739
      %v3748 = vmul.f32 %v3726, %v3739
      %v3749 = vmul.f32 %v3727, %v3739
      %v3750 = vmul.f32 %v3728, %v3739
      %v3751 = vmul.f32 %v3729, %v3739
      %v3752 = vmul.f32 %v3730, %v3739
      %v3753 = vmul.f32 %v3731, %v3739
      %v3754 = vmul.f32 %v3732, %v3739
      %v3755 = vmul.f32 %v3733, %v3739
      %v3756 = vmul.f32 %v3734, %v3739
      %v3757 = vmul.f32 %v3735, %v3739
      %v3758 = vlaneseq
      %v3759 = vshrl.u32 %v3758, 7
      %v3760 = vsub.s32 0, %v3759
      %v3761 = vrot.slane %v3483, %v3760
      %v3762 = vadd.f32 %v3740, %v3761
      %v3763 = vadd.f32 %v3741, %v3761
      %v3764 = vadd.f32 %v3742, %v3761
      %v3765 = vadd.f32 %v3743, %v3761
      %v3766 = vadd.f32 %v3744, %v3761
      %v3767 = vadd.f32 %v3745, %v3761
      %v3768 = vadd.f32 %v3746, %v3761
      %v3769 = vadd.f32 %v3747, %v3761
      %v3770 = vadd.f32 %v3748, %v3761
      %v3771 = vadd.f32 %v3749, %v3761
      %v3772 = vadd.f32 %v3750, %v3761
      %v3773 = vadd.f32 %v3751, %v3761
      %v3774 = vadd.f32 %v3752, %v3761
      %v3775 = vadd.f32 %v3753, %v3761
      %v3776 = vadd.f32 %v3754, %v3761
      %v3777 = vadd.f32 %v3755, %v3761
      %v3778 = vadd.f32 %v3756, %v3761
      %v3779 = vadd.f32 %v3757, %v3761
      %v3780 = vpack.c.bf16 %v3763, %v3762
      %v3781 = vpack.c.bf16 %v3765, %v3764
      %v3782 = vpack.c.bf16 %v3767, %v3766
      %v3783 = vpack.c.bf16 %v3769, %v3768
      %v3784 = vpack.c.bf16 %v3771, %v3770
      %v3785 = vpack.c.bf16 %v3773, %v3772
      %v3786 = vpack.c.bf16 %v3775, %v3774
      %v3787 = vpack.c.bf16 %v3777, %v3776
      %v3788 = vpack.c.bf16 %v3779, %v3778
      %s3789 = scalar_lea.vmem %s3, 88
      %v3790 = vld [vmem:[%s3789] sm:$0xf]
      %v3791 = vld [vmem:[%s3789 + $0x4] sm:$0xf]
      %v3792 = vld [vmem:[%s3789 + $0x8] sm:$0xf]
      %v3793 = vld [vmem:[%s3789 + $0xc] sm:$0xf]
      %v3794 = vld [vmem:[%s3789 + $0x10] sm:$0xf]
      %v3795 = vld [vmem:[%s3789 + $0x14] sm:$0xf]
      %v3796 = vld [vmem:[%s3789 + $0x18] sm:$0xf]
      %s3797 = scalar_lea.vmem %s4, 16
      %v3798 = vld [vmem:[%s3797] sm:$0x1]
      %v3799 = vld [vmem:[%s3797 + $0x1] sm:$0x1]
      %v3800 = vld [vmem:[%s3797 + $0x2] sm:$0x1]
      %v3801 = vlaneseq
      %v3802 = vshrl.u32 %v3801, 7
      %v3803 = vsub.s32 0, %v3802
      %v3804 = vrot.slane %v3798, %v3803
      %v3807 = vunpack.c.l.b16 %v3790
      %v3808 = vunpack.c.l.b16 %v3791
      %v3809 = vpack.c.b16 %v3808, %v3807
      %v3812 = vsel %vm274, %v3780, 0
      %v3815 = vsel %vm274, %v3781, 0
      %v3818 = vsel %vm274, %v3782, 0
      %v3821 = vsel %vm274, %v3783, 0
      %v3824 = vsel %vm274, %v3784, 0
      %v3827 = vsel %vm274, %v3785, 0
      %v3830 = vsel %vm274, %v3786, 0
      %v3833 = vsel %vm274, %v3787, 0
      %v3836 = vsel %vm274, %v3788, 0
      %3838 = vmatprep.subr.bf16.mxu0 0
      %3839 = vmatpush1.bf16.msra.mxu0 %v3809
      %3840 = vmatprep.subr.bf16.mxu0 0
      %3841 = vmatpush1.bf16.msra.mxu0 0
      %3842 = vmatprep.subr.bf16.mxu0 0
      %3843 = vmatpush1.bf16.msra.mxu0 0
      %3844 = vmatprep.subr.bf16.mxu0 0
      %3845 = vmatpush1.bf16.msra.mxu0 0
      %3846 = vmatprep.subr.bf16.mxu0 0
      %3847 = vmatpush1.bf16.msra.mxu0 0
      %3848 = vmatprep.subr.bf16.mxu0 0
      %3849 = vmatpush1.bf16.msra.mxu0 0
      %3850 = vmatprep.subr.bf16.mxu0 0
      %3851 = vmatpush1.bf16.msra.mxu0 0
      %3852 = vmatprep.subr.bf16.mxu0 0
      %3853 = vmatpush1.bf16.msra.mxu0 0
      %3854 = vmatprep.subr.bf16.mxu0 0
      %3855 = vmatpush1.bf16.msra.mxu0 0
      %3856 = vmatprep.subr.bf16.mxu0 0
      %3857 = vmatpush1.bf16.msra.mxu0 0
      %3858 = vmatprep.subr.bf16.mxu0 0
      %3859 = vmatpush1.bf16.msra.mxu0 0
      %3860 = vmatprep.subr.bf16.mxu0 0
      %3861 = vmatpush1.bf16.msra.mxu0 0
      %3862 = vmatprep.subr.bf16.mxu0 0
      %3863 = vmatpush1.bf16.msra.mxu0 0
      %3864 = vmatprep.subr.bf16.mxu0 0
      %3865 = vmatpush1.bf16.msra.mxu0 0
      %3866 = vmatprep.subr.bf16.mxu0 0
      %3867 = vmatpush1.bf16.msra.mxu0 0
      %3868 = vmatprep.subr.bf16.mxu0 0
      %3869 = vmatpush1.bf16.msra.mxu0 0
      %3870 = vmatprep.mubr.bf16.mxu0 0
      %3871 = vmatmul.mubr.bf16.gmra.mrb[0].mxu0 %v3812
      %v3872 = vpop.f32.mrb[0].mxu0
      %v3873 = vadd.f32 %v3804, %v3872
      %v3874 = vpop.f32.mrb[0].mxu0
      %v3875 = vpop.f32.mrb[0].mxu0
      %v3876 = vadd.f32 %v3804, %v3875
      %v3877 = vpop.f32.mrb[0].mxu0
      %3878 = vmatprep.mubr.bf16.mxu0 0
      %3879 = vmatmul.mubr.bf16.gmra.mrb[0].mxu0 %v3815
      %v3880 = vpop.f32.mrb[0].mxu0
      %v3881 = vadd.f32 %v3804, %v3880
      %v3882 = vpop.f32.mrb[0].mxu0
      %v3883 = vpop.f32.mrb[0].mxu0
      %v3884 = vadd.f32 %v3804, %v3883
      %v3885 = vpop.f32.mrb[0].mxu0
      %3886 = vmatprep.mubr.bf16.mxu0 0
      %3887 = vmatmul.mubr.bf16.gmra.mrb[0].mxu0 %v3818
      %v3888 = vpop.f32.mrb[0].mxu0
      %v3889 = vadd.f32 %v3804, %v3888
      %v3890 = vpop.f32.mrb[0].mxu0
      %v3891 = vpop.f32.mrb[0].mxu0
      %v3892 = vadd.f32 %v3804, %v3891
      %v3893 = vpop.f32.mrb[0].mxu0
      %3894 = vmatprep.mubr.bf16.mxu0 0
      %3895 = vmatmul.mubr.bf16.gmra.mrb[0].mxu0 %v3821
      %v3896 = vpop.f32.mrb[0].mxu0
      %v3897 = vadd.f32 %v3804, %v3896
      %v3898 = vpop.f32.mrb[0].mxu0
      %v3899 = vpop.f32.mrb[0].mxu0
      %v3900 = vadd.f32 %v3804, %v3899
      %v3901 = vpop.f32.mrb[0].mxu0
      %3902 = vmatprep.mubr.bf16.mxu0 0
      %3903 = vmatmul.mubr.bf16.gmra.mrb[0].mxu0 %v3824
      %v3904 = vpop.f32.mrb[0].mxu0
      %v3905 = vadd.f32 %v3804, %v3904
      %v3906 = vpop.f32.mrb[0].mxu0
      %v3907 = vpop.f32.mrb[0].mxu0
      %v3908 = vadd.f32 %v3804, %v3907
      %v3909 = vpop.f32.mrb[0].mxu0
      %3910 = vmatprep.mubr.bf16.mxu0 0
      %3911 = vmatmul.mubr.bf16.gmra.mrb[0].mxu0 %v3827
      %v3912 = vpop.f32.mrb[0].mxu0
      %v3913 = vadd.f32 %v3804, %v3912
      %v3914 = vpop.f32.mrb[0].mxu0
      %v3915 = vpop.f32.mrb[0].mxu0
      %v3916 = vadd.f32 %v3804, %v3915
      %v3917 = vpop.f32.mrb[0].mxu0
      %3918 = vmatprep.mubr.bf16.mxu0 0
      %3919 = vmatmul.mubr.bf16.gmra.mrb[0].mxu0 %v3830
      %v3920 = vpop.f32.mrb[0].mxu0
      %v3921 = vadd.f32 %v3804, %v3920
      %v3922 = vpop.f32.mrb[0].mxu0
      %v3923 = vpop.f32.mrb[0].mxu0
      %v3924 = vadd.f32 %v3804, %v3923
      %v3925 = vpop.f32.mrb[0].mxu0
      %3926 = vmatprep.mubr.bf16.mxu0 0
      %3927 = vmatmul.mubr.bf16.gmra.mrb[0].mxu0 %v3833
      %v3928 = vpop.f32.mrb[0].mxu0
      %v3929 = vadd.f32 %v3804, %v3928
      %v3930 = vpop.f32.mrb[0].mxu0
      %v3931 = vpop.f32.mrb[0].mxu0
      %v3932 = vadd.f32 %v3804, %v3931
      %v3933 = vpop.f32.mrb[0].mxu0
      %3934 = vmatprep.mubr.bf16.mxu0 0
      %3935 = vmatmul.mubr.bf16.gmra.mrb[0].mxu0 %v3836
      %v3936 = vpop.f32.mrb[0].mxu0
      %v3937 = vadd.f32 %v3804, %v3936
      %v3938 = vpop.f32.mrb[0].mxu0
      %v3939 = vpop.f32.mrb[0].mxu0
      %v3940 = vadd.f32 %v3804, %v3939
      %v3941 = vpop.f32.mrb[0].mxu0
      %3942 = vdwg.mxu0
      %v3943 = vlaneseq
      %v3944 = vshrl.u32 %v3943, 7
      %v3945 = vsub.s32 0, %v3944
      %v3946 = vrot.slane %v3799, %v3945
      %v3949 = vunpack.c.l.b16 %v3792
      %v3950 = vunpack.c.l.b16 %v3793
      %v3951 = vpack.c.b16 %v3950, %v3949
      %3953 = vmatprep.subr.bf16.mxu0 0
      %3954 = vmatpush1.bf16.msra.mxu0 %v3951
      %3955 = vmatprep.subr.bf16.mxu0 0
      %3956 = vmatpush1.bf16.msra.mxu0 0
      %3957 = vmatprep.subr.bf16.mxu0 0
      %3958 = vmatpush1.bf16.msra.mxu0 0
      %3959 = vmatprep.subr.bf16.mxu0 0
      %3960 = vmatpush1.bf16.msra.mxu0 0
      %3961 = vmatprep.subr.bf16.mxu0 0
      %3962 = vmatpush1.bf16.msra.mxu0 0
      %3963 = vmatprep.subr.bf16.mxu0 0
      %3964 = vmatpush1.bf16.msra.mxu0 0
      %3965 = vmatprep.subr.bf16.mxu0 0
      %3966 = vmatpush1.bf16.msra.mxu0 0
      %3967 = vmatprep.subr.bf16.mxu0 0
      %3968 = vmatpush1.bf16.msra.mxu0 0
      %3969 = vmatprep.subr.bf16.mxu0 0
      %3970 = vmatpush1.bf16.msra.mxu0 0
      %3971 = vmatprep.subr.bf16.mxu0 0
      %3972 = vmatpush1.bf16.msra.mxu0 0
      %3973 = vmatprep.subr.bf16.mxu0 0
      %3974 = vmatpush1.bf16.msra.mxu0 0
      %3975 = vmatprep.subr.bf16.mxu0 0
      %3976 = vmatpush1.bf16.msra.mxu0 0
      %3977 = vmatprep.subr.bf16.mxu0 0
      %3978 = vmatpush1.bf16.msra.mxu0 0
      %3979 = vmatprep.subr.bf16.mxu0 0
      %3980 = vmatpush1.bf16.msra.mxu0 0
      %3981 = vmatprep.subr.bf16.mxu0 0
      %3982 = vmatpush1.bf16.msra.mxu0 0
      %3983 = vmatprep.subr.bf16.mxu0 0
      %3984 = vmatpush1.bf16.msra.mxu0 0
      %3985 = vmatprep.mubr.bf16.mxu0 0
      %3986 = vmatmul.mubr.bf16.gmra.mrb[0].mxu0 %v3812
      %v3987 = vpop.f32.mrb[0].mxu0
      %v3988 = vadd.f32 %v3946, %v3987
      %v3989 = vpop.f32.mrb[0].mxu0
      %v3990 = vpop.f32.mrb[0].mxu0
      %v3991 = vadd.f32 %v3946, %v3990
      %v3992 = vpop.f32.mrb[0].mxu0
      %3993 = vmatprep.mubr.bf16.mxu0 0
      %3994 = vmatmul.mubr.bf16.gmra.mrb[0].mxu0 %v3815
      %v3995 = vpop.f32.mrb[0].mxu0
      %v3996 = vadd.f32 %v3946, %v3995
      %v3997 = vpop.f32.mrb[0].mxu0
      %v3998 = vpop.f32.mrb[0].mxu0
      %v3999 = vadd.f32 %v3946, %v3998
      %v4000 = vpop.f32.mrb[0].mxu0
      %4001 = vmatprep.mubr.bf16.mxu0 0
      %4002 = vmatmul.mubr.bf16.gmra.mrb[0].mxu0 %v3818
      %v4003 = vpop.f32.mrb[0].mxu0
      %v4004 = vadd.f32 %v3946, %v4003
      %v4005 = vpop.f32.mrb[0].mxu0
      %v4006 = vpop.f32.mrb[0].mxu0
      %v4007 = vadd.f32 %v3946, %v4006
      %v4008 = vpop.f32.mrb[0].mxu0
      %4009 = vmatprep.mubr.bf16.mxu0 0
      %4010 = vmatmul.mubr.bf16.gmra.mrb[0].mxu0 %v3821
      %v4011 = vpop.f32.mrb[0].mxu0
      %v4012 = vadd.f32 %v3946, %v4011
      %v4013 = vpop.f32.mrb[0].mxu0
      %v4014 = vpop.f32.mrb[0].mxu0
      %v4015 = vadd.f32 %v3946, %v4014
      %v4016 = vpop.f32.mrb[0].mxu0
      %4017 = vmatprep.mubr.bf16.mxu0 0
      %4018 = vmatmul.mubr.bf16.gmra.mrb[0].mxu0 %v3824
      %v4019 = vpop.f32.mrb[0].mxu0
      %v4020 = vadd.f32 %v3946, %v4019
      %v4021 = vpop.f32.mrb[0].mxu0
      %v4022 = vpop.f32.mrb[0].mxu0
      %v4023 = vadd.f32 %v3946, %v4022
      %v4024 = vpop.f32.mrb[0].mxu0
      %4025 = vmatprep.mubr.bf16.mxu0 0
      %4026 = vmatmul.mubr.bf16.gmra.mrb[0].mxu0 %v3827
      %v4027 = vpop.f32.mrb[0].mxu0
      %v4028 = vadd.f32 %v3946, %v4027
      %v4029 = vpop.f32.mrb[0].mxu0
      %v4030 = vpop.f32.mrb[0].mxu0
      %v4031 = vadd.f32 %v3946, %v4030
      %v4032 = vpop.f32.mrb[0].mxu0
      %4033 = vmatprep.mubr.bf16.mxu0 0
      %4034 = vmatmul.mubr.bf16.gmra.mrb[0].mxu0 %v3830
      %v4035 = vpop.f32.mrb[0].mxu0
      %v4036 = vadd.f32 %v3946, %v4035
      %v4037 = vpop.f32.mrb[0].mxu0
      %v4038 = vpop.f32.mrb[0].mxu0
      %v4039 = vadd.f32 %v3946, %v4038
      %v4040 = vpop.f32.mrb[0].mxu0
      %4041 = vmatprep.mubr.bf16.mxu0 0
      %4042 = vmatmul.mubr.bf16.gmra.mrb[0].mxu0 %v3833
      %v4043 = vpop.f32.mrb[0].mxu0
      %v4044 = vadd.f32 %v3946, %v4043
      %v4045 = vpop.f32.mrb[0].mxu0
      %v4046 = vpop.f32.mrb[0].mxu0
      %v4047 = vadd.f32 %v3946, %v4046
      %v4048 = vpop.f32.mrb[0].mxu0
      %4049 = vmatprep.mubr.bf16.mxu0 0
      %4050 = vmatmul.mubr.bf16.gmra.mrb[0].mxu0 %v3836
      %v4051 = vpop.f32.mrb[0].mxu0
      %v4052 = vadd.f32 %v3946, %v4051
      %v4053 = vpop.f32.mrb[0].mxu0
      %v4054 = vpop.f32.mrb[0].mxu0
      %v4055 = vadd.f32 %v3946, %v4054
      %v4056 = vpop.f32.mrb[0].mxu0
      %4057 = vdwg.mxu0
      %v4058 = vlaneseq
      %v4059 = vshrl.u32 %v4058, 7
      %v4060 = vsub.s32 0, %v4059
      %v4061 = vrot.slane %v3800, %v4060
      %v4064 = vunpack.c.l.b16 %v3794
      %v4065 = vunpack.c.l.b16 %v3795
      %v4066 = vpack.c.b16 %v4065, %v4064
      %4068 = vmatprep.subr.bf16.mxu0 0
      %4069 = vmatpush1.bf16.msra.mxu0 %v4066
      %4070 = vmatprep.subr.bf16.mxu0 0
      %4071 = vmatpush1.bf16.msra.mxu0 0
      %4072 = vmatprep.subr.bf16.mxu0 0
      %4073 = vmatpush1.bf16.msra.mxu0 0
      %4074 = vmatprep.subr.bf16.mxu0 0
      %4075 = vmatpush1.bf16.msra.mxu0 0
      %4076 = vmatprep.subr.bf16.mxu0 0
      %4077 = vmatpush1.bf16.msra.mxu0 0
      %4078 = vmatprep.subr.bf16.mxu0 0
      %4079 = vmatpush1.bf16.msra.mxu0 0
      %4080 = vmatprep.subr.bf16.mxu0 0
      %4081 = vmatpush1.bf16.msra.mxu0 0
      %4082 = vmatprep.subr.bf16.mxu0 0
      %4083 = vmatpush1.bf16.msra.mxu0 0
      %4084 = vmatprep.subr.bf16.mxu0 0
      %4085 = vmatpush1.bf16.msra.mxu0 0
      %4086 = vmatprep.subr.bf16.mxu0 0
      %4087 = vmatpush1.bf16.msra.mxu0 0
      %4088 = vmatprep.subr.bf16.mxu0 0
      %4089 = vmatpush1.bf16.msra.mxu0 0
      %4090 = vmatprep.subr.bf16.mxu0 0
      %4091 = vmatpush1.bf16.msra.mxu0 0
      %4092 = vmatprep.subr.bf16.mxu0 0
      %4093 = vmatpush1.bf16.msra.mxu0 0
      %4094 = vmatprep.subr.bf16.mxu0 0
      %4095 = vmatpush1.bf16.msra.mxu0 0
      %4096 = vmatprep.subr.bf16.mxu0 0
      %4097 = vmatpush1.bf16.msra.mxu0 0
      %4098 = vmatprep.subr.bf16.mxu0 0
      %4099 = vmatpush1.bf16.msra.mxu0 0
      %4100 = vmatprep.mubr.bf16.mxu0 0
      %4101 = vmatmul.mubr.bf16.gmra.mrb[0].mxu0 %v3812
      %v4102 = vpop.f32.mrb[0].mxu0
      %v4103 = vadd.f32 %v4061, %v4102
      %v4104 = vpop.f32.mrb[0].mxu0
      %v4105 = vpop.f32.mrb[0].mxu0
      %v4106 = vadd.f32 %v4061, %v4105
      %v4107 = vpop.f32.mrb[0].mxu0
      %4108 = vmatprep.mubr.bf16.mxu0 0
      %4109 = vmatmul.mubr.bf16.gmra.mrb[0].mxu0 %v3815
      %v4110 = vpop.f32.mrb[0].mxu0
      %v4111 = vadd.f32 %v4061, %v4110
      %v4112 = vpop.f32.mrb[0].mxu0
      %v4113 = vpop.f32.mrb[0].mxu0
      %v4114 = vadd.f32 %v4061, %v4113
      %v4115 = vpop.f32.mrb[0].mxu0
      %4116 = vmatprep.mubr.bf16.mxu0 0
      %4117 = vmatmul.mubr.bf16.gmra.mrb[0].mxu0 %v3818
      %v4118 = vpop.f32.mrb[0].mxu0
      %v4119 = vadd.f32 %v4061, %v4118
      %v4120 = vpop.f32.mrb[0].mxu0
      %v4121 = vpop.f32.mrb[0].mxu0
      %v4122 = vadd.f32 %v4061, %v4121
      %v4123 = vpop.f32.mrb[0].mxu0
      %4124 = vmatprep.mubr.bf16.mxu0 0
      %4125 = vmatmul.mubr.bf16.gmra.mrb[0].mxu0 %v3821
      %v4126 = vpop.f32.mrb[0].mxu0
      %v4127 = vadd.f32 %v4061, %v4126
      %v4128 = vpop.f32.mrb[0].mxu0
      %v4129 = vpop.f32.mrb[0].mxu0
      %v4130 = vadd.f32 %v4061, %v4129
      %v4131 = vpop.f32.mrb[0].mxu0
      %4132 = vmatprep.mubr.bf16.mxu0 0
      %4133 = vmatmul.mubr.bf16.gmra.mrb[0].mxu0 %v3824
      %v4134 = vpop.f32.mrb[0].mxu0
      %v4135 = vadd.f32 %v4061, %v4134
      %v4136 = vpop.f32.mrb[0].mxu0
      %v4137 = vpop.f32.mrb[0].mxu0
      %v4138 = vadd.f32 %v4061, %v4137
      %v4139 = vpop.f32.mrb[0].mxu0
      %4140 = vmatprep.mubr.bf16.mxu0 0
      %4141 = vmatmul.mubr.bf16.gmra.mrb[0].mxu0 %v3827
      %v4142 = vpop.f32.mrb[0].mxu0
      %v4143 = vadd.f32 %v4061, %v4142
      %v4144 = vpop.f32.mrb[0].mxu0
      %v4145 = vpop.f32.mrb[0].mxu0
      %v4146 = vadd.f32 %v4061, %v4145
      %v4147 = vpop.f32.mrb[0].mxu0
      %4148 = vmatprep.mubr.bf16.mxu0 0
      %4149 = vmatmul.mubr.bf16.gmra.mrb[0].mxu0 %v3830
      %v4150 = vpop.f32.mrb[0].mxu0
      %v4151 = vadd.f32 %v4061, %v4150
      %v4152 = vpop.f32.mrb[0].mxu0
      %v4153 = vpop.f32.mrb[0].mxu0
      %v4154 = vadd.f32 %v4061, %v4153
      %v4155 = vpop.f32.mrb[0].mxu0
      %4156 = vmatprep.mubr.bf16.mxu0 0
      %4157 = vmatmul.mubr.bf16.gmra.mrb[0].mxu0 %v3833
      %v4158 = vpop.f32.mrb[0].mxu0
      %v4159 = vadd.f32 %v4061, %v4158
      %v4160 = vpop.f32.mrb[0].mxu0
      %v4161 = vpop.f32.mrb[0].mxu0
      %v4162 = vadd.f32 %v4061, %v4161
      %v4163 = vpop.f32.mrb[0].mxu0
      %4164 = vmatprep.mubr.bf16.mxu0 0
      %4165 = vmatmul.mubr.bf16.gmra.mrb[0].mxu0 %v3836
      %v4166 = vpop.f32.mrb[0].mxu0
      %v4167 = vadd.f32 %v4061, %v4166
      %v4168 = vpop.f32.mrb[0].mxu0
      %v4169 = vpop.f32.mrb[0].mxu0
      %v4170 = vadd.f32 %v4061, %v4169
      %v4171 = vpop.f32.mrb[0].mxu0
      %4172 = vdwg.mxu0
      %v4173 = vld [vmem:[%s3789 + $0x20] sm:$0xf]
      %v4174 = vld [vmem:[%s3789 + $0x24] sm:$0xf]
      %v4175 = vld [vmem:[%s3789 + $0x28] sm:$0xf]
      %v4176 = vld [vmem:[%s3789 + $0x2c] sm:$0xf]
      %v4177 = vld [vmem:[%s3789 + $0x30] sm:$0xf]
      %v4178 = vld [vmem:[%s3789 + $0x34] sm:$0xf]
      %v4179 = vld [vmem:[%s3789 + $0x38] sm:$0xf]
      %v4180 = vld [vmem:[%s3797 + $0x3] sm:$0x1]
      %v4181 = vld [vmem:[%s3797 + $0x4] sm:$0x1]
      %v4182 = vld [vmem:[%s3797 + $0x5] sm:$0x1]
      %v4183 = vlaneseq
      %v4184 = vshrl.u32 %v4183, 7
      %v4185 = vsub.s32 0, %v4184
      %v4186 = vrot.slane %v4180, %v4185
      %v4189 = vunpack.c.l.b16 %v4173
      %v4190 = vunpack.c.l.b16 %v4174
      %v4191 = vpack.c.b16 %v4190, %v4189
      %4193 = vmatprep.subr.bf16.mxu0 0
      %4194 = vmatpush1.bf16.msra.mxu0 %v4191
      %4195 = vmatprep.subr.bf16.mxu0 0
      %4196 = vmatpush1.bf16.msra.mxu0 0
      %4197 = vmatprep.subr.bf16.mxu0 0
      %4198 = vmatpush1.bf16.msra.mxu0 0
      %4199 = vmatprep.subr.bf16.mxu0 0
      %4200 = vmatpush1.bf16.msra.mxu0 0
      %4201 = vmatprep.subr.bf16.mxu0 0
      %4202 = vmatpush1.bf16.msra.mxu0 0
      %4203 = vmatprep.subr.bf16.mxu0 0
      %4204 = vmatpush1.bf16.msra.mxu0 0
      %4205 = vmatprep.subr.bf16.mxu0 0
      %4206 = vmatpush1.bf16.msra.mxu0 0
      %4207 = vmatprep.subr.bf16.mxu0 0
      %4208 = vmatpush1.bf16.msra.mxu0 0
      %4209 = vmatprep.subr.bf16.mxu0 0
      %4210 = vmatpush1.bf16.msra.mxu0 0
      %4211 = vmatprep.subr.bf16.mxu0 0
      %4212 = vmatpush1.bf16.msra.mxu0 0
      %4213 = vmatprep.subr.bf16.mxu0 0
      %4214 = vmatpush1.bf16.msra.mxu0 0
      %4215 = vmatprep.subr.bf16.mxu0 0
      %4216 = vmatpush1.bf16.msra.mxu0 0
      %4217 = vmatprep.subr.bf16.mxu0 0
      %4218 = vmatpush1.bf16.msra.mxu0 0
      %4219 = vmatprep.subr.bf16.mxu0 0
      %4220 = vmatpush1.bf16.msra.mxu0 0
      %4221 = vmatprep.subr.bf16.mxu0 0
      %4222 = vmatpush1.bf16.msra.mxu0 0
      %4223 = vmatprep.subr.bf16.mxu0 0
      %4224 = vmatpush1.bf16.msra.mxu0 0
      %4225 = vmatprep.mubr.bf16.mxu0 0
      %4226 = vmatmul.mubr.bf16.gmra.mrb[0].mxu0 %v3812
      %v4227 = vpop.f32.mrb[0].mxu0
      %v4228 = vadd.f32 %v4186, %v4227
      %v4229 = vpop.f32.mrb[0].mxu0
      %v4230 = vpop.f32.mrb[0].mxu0
      %v4231 = vadd.f32 %v4186, %v4230
      %v4232 = vpop.f32.mrb[0].mxu0
      %4233 = vmatprep.mubr.bf16.mxu0 0
      %4234 = vmatmul.mubr.bf16.gmra.mrb[0].mxu0 %v3815
      %v4235 = vpop.f32.mrb[0].mxu0
      %v4236 = vadd.f32 %v4186, %v4235
      %v4237 = vpop.f32.mrb[0].mxu0
      %v4238 = vpop.f32.mrb[0].mxu0
      %v4239 = vadd.f32 %v4186, %v4238
      %v4240 = vpop.f32.mrb[0].mxu0
      %4241 = vmatprep.mubr.bf16.mxu0 0
      %4242 = vmatmul.mubr.bf16.gmra.mrb[0].mxu0 %v3818
      %v4243 = vpop.f32.mrb[0].mxu0
      %v4244 = vadd.f32 %v4186, %v4243
      %v4245 = vpop.f32.mrb[0].mxu0
      %v4246 = vpop.f32.mrb[0].mxu0
      %v4247 = vadd.f32 %v4186, %v4246
      %v4248 = vpop.f32.mrb[0].mxu0
      %4249 = vmatprep.mubr.bf16.mxu0 0
      %4250 = vmatmul.mubr.bf16.gmra.mrb[0].mxu0 %v3821
      %v4251 = vpop.f32.mrb[0].mxu0
      %v4252 = vadd.f32 %v4186, %v4251
      %v4253 = vpop.f32.mrb[0].mxu0
      %v4254 = vpop.f32.mrb[0].mxu0
      %v4255 = vadd.f32 %v4186, %v4254
      %v4256 = vpop.f32.mrb[0].mxu0
      %4257 = vmatprep.mubr.bf16.mxu0 0
      %4258 = vmatmul.mubr.bf16.gmra.mrb[0].mxu0 %v3824
      %v4259 = vpop.f32.mrb[0].mxu0
      %v4260 = vadd.f32 %v4186, %v4259
      %v4261 = vpop.f32.mrb[0].mxu0
      %v4262 = vpop.f32.mrb[0].mxu0
      %v4263 = vadd.f32 %v4186, %v4262
      %v4264 = vpop.f32.mrb[0].mxu0
      %4265 = vmatprep.mubr.bf16.mxu0 0
      %4266 = vmatmul.mubr.bf16.gmra.mrb[0].mxu0 %v3827
      %v4267 = vpop.f32.mrb[0].mxu0
      %v4268 = vadd.f32 %v4186, %v4267
      %v4269 = vpop.f32.mrb[0].mxu0
      %v4270 = vpop.f32.mrb[0].mxu0
      %v4271 = vadd.f32 %v4186, %v4270
      %v4272 = vpop.f32.mrb[0].mxu0
      %4273 = vmatprep.mubr.bf16.mxu0 0
      %4274 = vmatmul.mubr.bf16.gmra.mrb[0].mxu0 %v3830
      %v4275 = vpop.f32.mrb[0].mxu0
      %v4276 = vadd.f32 %v4186, %v4275
      %v4277 = vpop.f32.mrb[0].mxu0
      %v4278 = vpop.f32.mrb[0].mxu0
      %v4279 = vadd.f32 %v4186, %v4278
      %v4280 = vpop.f32.mrb[0].mxu0
      %4281 = vmatprep.mubr.bf16.mxu0 0
      %4282 = vmatmul.mubr.bf16.gmra.mrb[0].mxu0 %v3833
      %v4283 = vpop.f32.mrb[0].mxu0
      %v4284 = vadd.f32 %v4186, %v4283
      %v4285 = vpop.f32.mrb[0].mxu0
      %v4286 = vpop.f32.mrb[0].mxu0
      %v4287 = vadd.f32 %v4186, %v4286
      %v4288 = vpop.f32.mrb[0].mxu0
      %4289 = vmatprep.mubr.bf16.mxu0 0
      %4290 = vmatmul.mubr.bf16.gmra.mrb[0].mxu0 %v3836
      %v4291 = vpop.f32.mrb[0].mxu0
      %v4292 = vadd.f32 %v4186, %v4291
      %v4293 = vpop.f32.mrb[0].mxu0
      %v4294 = vpop.f32.mrb[0].mxu0
      %v4295 = vadd.f32 %v4186, %v4294
      %v4296 = vpop.f32.mrb[0].mxu0
      %4297 = vdwg.mxu0
      %v4298 = vlaneseq
      %v4299 = vshrl.u32 %v4298, 7
      %v4300 = vsub.s32 0, %v4299
      %v4301 = vrot.slane %v4181, %v4300
      %v4304 = vunpack.c.l.b16 %v4175
      %v4305 = vunpack.c.l.b16 %v4176
      %v4306 = vpack.c.b16 %v4305, %v4304
      %4308 = vmatprep.subr.bf16.mxu0 0
      %4309 = vmatpush1.bf16.msra.mxu0 %v4306
      %4310 = vmatprep.subr.bf16.mxu0 0
      %4311 = vmatpush1.bf16.msra.mxu0 0
      %4312 = vmatprep.subr.bf16.mxu0 0
      %4313 = vmatpush1.bf16.msra.mxu0 0
      %4314 = vmatprep.subr.bf16.mxu0 0
      %4315 = vmatpush1.bf16.msra.mxu0 0
      %4316 = vmatprep.subr.bf16.mxu0 0
      %4317 = vmatpush1.bf16.msra.mxu0 0
      %4318 = vmatprep.subr.bf16.mxu0 0
      %4319 = vmatpush1.bf16.msra.mxu0 0
      %4320 = vmatprep.subr.bf16.mxu0 0
      %4321 = vmatpush1.bf16.msra.mxu0 0
      %4322 = vmatprep.subr.bf16.mxu0 0
      %4323 = vmatpush1.bf16.msra.mxu0 0
      %4324 = vmatprep.subr.bf16.mxu0 0
      %4325 = vmatpush1.bf16.msra.mxu0 0
      %4326 = vmatprep.subr.bf16.mxu0 0
      %4327 = vmatpush1.bf16.msra.mxu0 0
      %4328 = vmatprep.subr.bf16.mxu0 0
      %4329 = vmatpush1.bf16.msra.mxu0 0
      %4330 = vmatprep.subr.bf16.mxu0 0
      %4331 = vmatpush1.bf16.msra.mxu0 0
      %4332 = vmatprep.subr.bf16.mxu0 0
      %4333 = vmatpush1.bf16.msra.mxu0 0
      %4334 = vmatprep.subr.bf16.mxu0 0
      %4335 = vmatpush1.bf16.msra.mxu0 0
      %4336 = vmatprep.subr.bf16.mxu0 0
      %4337 = vmatpush1.bf16.msra.mxu0 0
      %4338 = vmatprep.subr.bf16.mxu0 0
      %4339 = vmatpush1.bf16.msra.mxu0 0
      %4340 = vmatprep.mubr.bf16.mxu0 0
      %4341 = vmatmul.mubr.bf16.gmra.mrb[0].mxu0 %v3812
      %v4342 = vpop.f32.mrb[0].mxu0
      %v4343 = vadd.f32 %v4301, %v4342
      %v4344 = vpop.f32.mrb[0].mxu0
      %v4345 = vpop.f32.mrb[0].mxu0
      %v4346 = vadd.f32 %v4301, %v4345
      %v4347 = vpop.f32.mrb[0].mxu0
      %4348 = vmatprep.mubr.bf16.mxu0 0
      %4349 = vmatmul.mubr.bf16.gmra.mrb[0].mxu0 %v3815
      %v4350 = vpop.f32.mrb[0].mxu0
      %v4351 = vadd.f32 %v4301, %v4350
      %v4352 = vpop.f32.mrb[0].mxu0
      %v4353 = vpop.f32.mrb[0].mxu0
      %v4354 = vadd.f32 %v4301, %v4353
      %v4355 = vpop.f32.mrb[0].mxu0
      %4356 = vmatprep.mubr.bf16.mxu0 0
      %4357 = vmatmul.mubr.bf16.gmra.mrb[0].mxu0 %v3818
      %v4358 = vpop.f32.mrb[0].mxu0
      %v4359 = vadd.f32 %v4301, %v4358
      %v4360 = vpop.f32.mrb[0].mxu0
      %v4361 = vpop.f32.mrb[0].mxu0
      %v4362 = vadd.f32 %v4301, %v4361
      %v4363 = vpop.f32.mrb[0].mxu0
      %4364 = vmatprep.mubr.bf16.mxu0 0
      %4365 = vmatmul.mubr.bf16.gmra.mrb[0].mxu0 %v3821
      %v4366 = vpop.f32.mrb[0].mxu0
      %v4367 = vadd.f32 %v4301, %v4366
      %v4368 = vpop.f32.mrb[0].mxu0
      %v4369 = vpop.f32.mrb[0].mxu0
      %v4370 = vadd.f32 %v4301, %v4369
      %v4371 = vpop.f32.mrb[0].mxu0
      %4372 = vmatprep.mubr.bf16.mxu0 0
      %4373 = vmatmul.mubr.bf16.gmra.mrb[0].mxu0 %v3824
      %v4374 = vpop.f32.mrb[0].mxu0
      %v4375 = vadd.f32 %v4301, %v4374
      %v4376 = vpop.f32.mrb[0].mxu0
      %v4377 = vpop.f32.mrb[0].mxu0
      %v4378 = vadd.f32 %v4301, %v4377
      %v4379 = vpop.f32.mrb[0].mxu0
      %4380 = vmatprep.mubr.bf16.mxu0 0
      %4381 = vmatmul.mubr.bf16.gmra.mrb[0].mxu0 %v3827
      %v4382 = vpop.f32.mrb[0].mxu0
      %v4383 = vadd.f32 %v4301, %v4382
      %v4384 = vpop.f32.mrb[0].mxu0
      %v4385 = vpop.f32.mrb[0].mxu0
      %v4386 = vadd.f32 %v4301, %v4385
      %v4387 = vpop.f32.mrb[0].mxu0
      %4388 = vmatprep.mubr.bf16.mxu0 0
      %4389 = vmatmul.mubr.bf16.gmra.mrb[0].mxu0 %v3830
      %v4390 = vpop.f32.mrb[0].mxu0
      %v4391 = vadd.f32 %v4301, %v4390
      %v4392 = vpop.f32.mrb[0].mxu0
      %v4393 = vpop.f32.mrb[0].mxu0
      %v4394 = vadd.f32 %v4301, %v4393
      %v4395 = vpop.f32.mrb[0].mxu0
      %4396 = vmatprep.mubr.bf16.mxu0 0
      %4397 = vmatmul.mubr.bf16.gmra.mrb[0].mxu0 %v3833
      %v4398 = vpop.f32.mrb[0].mxu0
      %v4399 = vadd.f32 %v4301, %v4398
      %v4400 = vpop.f32.mrb[0].mxu0
      %v4401 = vpop.f32.mrb[0].mxu0
      %v4402 = vadd.f32 %v4301, %v4401
      %v4403 = vpop.f32.mrb[0].mxu0
      %4404 = vmatprep.mubr.bf16.mxu0 0
      %4405 = vmatmul.mubr.bf16.gmra.mrb[0].mxu0 %v3836
      %v4406 = vpop.f32.mrb[0].mxu0
      %v4407 = vadd.f32 %v4301, %v4406
      %v4408 = vpop.f32.mrb[0].mxu0
      %v4409 = vpop.f32.mrb[0].mxu0
      %v4410 = vadd.f32 %v4301, %v4409
      %v4411 = vpop.f32.mrb[0].mxu0
      %4412 = vdwg.mxu0
      %v4413 = vlaneseq
      %v4414 = vshrl.u32 %v4413, 7
      %v4415 = vsub.s32 0, %v4414
      %v4416 = vrot.slane %v4182, %v4415
      %v4419 = vunpack.c.l.b16 %v4177
      %v4420 = vunpack.c.l.b16 %v4178
      %v4421 = vpack.c.b16 %v4420, %v4419
      %4423 = vmatprep.subr.bf16.mxu0 0
      %4424 = vmatpush1.bf16.msra.mxu0 %v4421
      %4425 = vmatprep.subr.bf16.mxu0 0
      %4426 = vmatpush1.bf16.msra.mxu0 0
      %4427 = vmatprep.subr.bf16.mxu0 0
      %4428 = vmatpush1.bf16.msra.mxu0 0
      %4429 = vmatprep.subr.bf16.mxu0 0
      %4430 = vmatpush1.bf16.msra.mxu0 0
      %4431 = vmatprep.subr.bf16.mxu0 0
      %4432 = vmatpush1.bf16.msra.mxu0 0
      %4433 = vmatprep.subr.bf16.mxu0 0
      %4434 = vmatpush1.bf16.msra.mxu0 0
      %4435 = vmatprep.subr.bf16.mxu0 0
      %4436 = vmatpush1.bf16.msra.mxu0 0
      %4437 = vmatprep.subr.bf16.mxu0 0
      %4438 = vmatpush1.bf16.msra.mxu0 0
      %4439 = vmatprep.subr.bf16.mxu0 0
      %4440 = vmatpush1.bf16.msra.mxu0 0
      %4441 = vmatprep.subr.bf16.mxu0 0
      %4442 = vmatpush1.bf16.msra.mxu0 0
      %4443 = vmatprep.subr.bf16.mxu0 0
      %4444 = vmatpush1.bf16.msra.mxu0 0
      %4445 = vmatprep.subr.bf16.mxu0 0
      %4446 = vmatpush1.bf16.msra.mxu0 0
      %4447 = vmatprep.subr.bf16.mxu0 0
      %4448 = vmatpush1.bf16.msra.mxu0 0
      %4449 = vmatprep.subr.bf16.mxu0 0
      %4450 = vmatpush1.bf16.msra.mxu0 0
      %4451 = vmatprep.subr.bf16.mxu0 0
      %4452 = vmatpush1.bf16.msra.mxu0 0
      %4453 = vmatprep.subr.bf16.mxu0 0
      %4454 = vmatpush1.bf16.msra.mxu0 0
      %4455 = vmatprep.mubr.bf16.mxu0 0
      %4456 = vmatmul.mubr.bf16.gmra.mrb[0].mxu0 %v3812
      %v4457 = vpop.f32.mrb[0].mxu0
      %v4458 = vadd.f32 %v4416, %v4457
      %v4459 = vpop.f32.mrb[0].mxu0
      %v4460 = vpop.f32.mrb[0].mxu0
      %v4461 = vadd.f32 %v4416, %v4460
      %v4462 = vpop.f32.mrb[0].mxu0
      %4463 = vmatprep.mubr.bf16.mxu0 0
      %4464 = vmatmul.mubr.bf16.gmra.mrb[0].mxu0 %v3815
      %v4465 = vpop.f32.mrb[0].mxu0
      %v4466 = vadd.f32 %v4416, %v4465
      %v4467 = vpop.f32.mrb[0].mxu0
      %v4468 = vpop.f32.mrb[0].mxu0
      %v4469 = vadd.f32 %v4416, %v4468
      %v4470 = vpop.f32.mrb[0].mxu0
      %4471 = vmatprep.mubr.bf16.mxu0 0
      %4472 = vmatmul.mubr.bf16.gmra.mrb[0].mxu0 %v3818
      %v4473 = vpop.f32.mrb[0].mxu0
      %v4474 = vadd.f32 %v4416, %v4473
      %v4475 = vpop.f32.mrb[0].mxu0
      %v4476 = vpop.f32.mrb[0].mxu0
      %v4477 = vadd.f32 %v4416, %v4476
      %v4478 = vpop.f32.mrb[0].mxu0
      %4479 = vmatprep.mubr.bf16.mxu0 0
      %4480 = vmatmul.mubr.bf16.gmra.mrb[0].mxu0 %v3821
      %v4481 = vpop.f32.mrb[0].mxu0
      %v4482 = vadd.f32 %v4416, %v4481
      %v4483 = vpop.f32.mrb[0].mxu0
      %v4484 = vpop.f32.mrb[0].mxu0
      %v4485 = vadd.f32 %v4416, %v4484
      %v4486 = vpop.f32.mrb[0].mxu0
      %4487 = vmatprep.mubr.bf16.mxu0 0
      %4488 = vmatmul.mubr.bf16.gmra.mrb[0].mxu0 %v3824
      %v4489 = vpop.f32.mrb[0].mxu0
      %v4490 = vadd.f32 %v4416, %v4489
      %v4491 = vpop.f32.mrb[0].mxu0
      %v4492 = vpop.f32.mrb[0].mxu0
      %v4493 = vadd.f32 %v4416, %v4492
      %v4494 = vpop.f32.mrb[0].mxu0
      %4495 = vmatprep.mubr.bf16.mxu0 0
      %4496 = vmatmul.mubr.bf16.gmra.mrb[0].mxu0 %v3827
      %v4497 = vpop.f32.mrb[0].mxu0
      %v4498 = vadd.f32 %v4416, %v4497
      %v4499 = vpop.f32.mrb[0].mxu0
      %v4500 = vpop.f32.mrb[0].mxu0
      %v4501 = vadd.f32 %v4416, %v4500
      %v4502 = vpop.f32.mrb[0].mxu0
      %4503 = vmatprep.mubr.bf16.mxu0 0
      %4504 = vmatmul.mubr.bf16.gmra.mrb[0].mxu0 %v3830
      %v4505 = vpop.f32.mrb[0].mxu0
      %v4506 = vadd.f32 %v4416, %v4505
      %v4507 = vpop.f32.mrb[0].mxu0
      %v4508 = vpop.f32.mrb[0].mxu0
      %v4509 = vadd.f32 %v4416, %v4508
      %v4510 = vpop.f32.mrb[0].mxu0
      %4511 = vmatprep.mubr.bf16.mxu0 0
      %4512 = vmatmul.mubr.bf16.gmra.mrb[0].mxu0 %v3833
      %v4513 = vpop.f32.mrb[0].mxu0
      %v4514 = vadd.f32 %v4416, %v4513
      %v4515 = vpop.f32.mrb[0].mxu0
      %v4516 = vpop.f32.mrb[0].mxu0
      %v4517 = vadd.f32 %v4416, %v4516
      %v4518 = vpop.f32.mrb[0].mxu0
      %4519 = vmatprep.mubr.bf16.mxu0 0
      %4520 = vmatmul.mubr.bf16.gmra.mrb[0].mxu0 %v3836
      %v4521 = vpop.f32.mrb[0].mxu0
      %v4522 = vadd.f32 %v4416, %v4521
      %v4523 = vpop.f32.mrb[0].mxu0
      %v4524 = vpop.f32.mrb[0].mxu0
      %v4525 = vadd.f32 %v4416, %v4524
      %v4526 = vpop.f32.mrb[0].mxu0
      %4527 = vdwg.mxu0
      %v4528 = vld [vmem:[%s3797 + $0x6] sm:$0x1]
      %v4529 = vpack.c.bf16 %v3876, %v3873
      %v4530 = vpack.c.bf16 %v3884, %v3881
      %v4531 = vpack.c.bf16 %v3892, %v3889
      %v4532 = vpack.c.bf16 %v3900, %v3897
      %v4533 = vpack.c.bf16 %v3905, %v3905
      %v4534 = vpack.c.bf16 %v3991, %v3988
      %v4535 = vpack.c.bf16 %v3999, %v3996
      %v4536 = vpack.c.bf16 %v4007, %v4004
      %v4537 = vpack.c.bf16 %v4015, %v4012
      %v4538 = vpack.c.bf16 %v4020, %v4020
      %v4539 = vpack.c.bf16 %v4106, %v4103
      %v4540 = vpack.c.bf16 %v4114, %v4111
      %v4541 = vpack.c.bf16 %v4122, %v4119
      %v4542 = vpack.c.bf16 %v4130, %v4127
      %v4543 = vpack.c.bf16 %v4135, %v4135
      %v4545 = vsel %vm1220, %v4529, 0
      %v4548 = vsel %vm1220, %v4530, 0
      %v4551 = vsel %vm1220, %v4531, 0
      %v4554 = vsel %vm1220, %v4532, 0
      %v4557 = vsel %vm1220, %v4533, 0
      %v4560 = vsel %vm1220, %v4534, 0
      %v4563 = vsel %vm1220, %v4535, 0
      %v4566 = vsel %vm1220, %v4536, 0
      %v4569 = vsel %vm1220, %v4537, 0
      %v4572 = vsel %vm1220, %v4538, 0
      %4574 = vmatprep.subr.bf16.mxu0 0
      %4575 = vmatpush1.bf16.xpose.msra.mxu0 %v4560
      %4576 = vmatprep.subr.bf16.mxu0 0
      %4577 = vmatpush1.bf16.xpose.msra.mxu0 %v4563
      %4578 = vmatprep.subr.bf16.mxu0 0
      %4579 = vmatpush1.bf16.xpose.msra.mxu0 %v4566
      %4580 = vmatprep.subr.bf16.mxu0 0
      %4581 = vmatpush1.bf16.xpose.msra.mxu0 %v4569
      %4582 = vmatprep.subr.bf16.mxu0 0
      %4583 = vmatpush1.bf16.xpose.msra.mxu0 %v4572
      %4584 = vmatprep.subr.bf16.mxu0 0
      %4585 = vmatpush1.bf16.xpose.msra.mxu0 0
      %4586 = vmatprep.subr.bf16.mxu0 0
      %4587 = vmatpush1.bf16.xpose.msra.mxu0 0
      %4588 = vmatprep.subr.bf16.mxu0 0
      %4589 = vmatpush1.bf16.xpose.msra.mxu0 0
      %4590 = vmatprep.subr.bf16.mxu0 0
      %4591 = vmatpush1.bf16.xpose.msra.mxu0 0
      %4592 = vmatprep.subr.bf16.mxu0 0
      %4593 = vmatpush1.bf16.xpose.msra.mxu0 0
      %4594 = vmatprep.subr.bf16.mxu0 0
      %4595 = vmatpush1.bf16.xpose.msra.mxu0 0
      %4596 = vmatprep.subr.bf16.mxu0 0
      %4597 = vmatpush1.bf16.xpose.msra.mxu0 0
      %4598 = vmatprep.subr.bf16.mxu0 0
      %4599 = vmatpush1.bf16.xpose.msra.mxu0 0
      %4600 = vmatprep.subr.bf16.mxu0 0
      %4601 = vmatpush1.bf16.xpose.msra.mxu0 0
      %4602 = vmatprep.subr.bf16.mxu0 0
      %4603 = vmatpush1.bf16.xpose.msra.mxu0 0
      %4604 = vmatprep.subr.bf16.mxu0 0
      %4605 = vmatpush1.bf16.xpose.msra.mxu0 0
      %4606 = vmatprep.mubr.bf16.mxu0 0
      %4607 = vmatmul.mubr.bf16.gmra.mrb[0].mxu0 %v4545
      %v4608 = vpop.f32.mrb[0].mxu0
      %v4609 = vadd.f32 %v251, %v4608
      %v4610 = vpop.f32.mrb[0].mxu0
      %v4611 = vpop.f32.mrb[0].mxu0
      %v4612 = vadd.f32 %v251, %v4611
      %v4613 = vpop.f32.mrb[0].mxu0
      %4614 = vmatprep.mubr.bf16.mxu0 0
      %4615 = vmatmul.mubr.bf16.gmra.mrb[0].mxu0 %v4548
      %v4616 = vpop.f32.mrb[0].mxu0
      %v4617 = vadd.f32 %v251, %v4616
      %v4618 = vpop.f32.mrb[0].mxu0
      %v4619 = vpop.f32.mrb[0].mxu0
      %v4620 = vadd.f32 %v251, %v4619
      %v4621 = vpop.f32.mrb[0].mxu0
      %4622 = vmatprep.mubr.bf16.mxu0 0
      %4623 = vmatmul.mubr.bf16.gmra.mrb[0].mxu0 %v4551
      %v4624 = vpop.f32.mrb[0].mxu0
      %v4625 = vadd.f32 %v251, %v4624
      %v4626 = vpop.f32.mrb[0].mxu0
      %v4627 = vpop.f32.mrb[0].mxu0
      %v4628 = vadd.f32 %v251, %v4627
      %v4629 = vpop.f32.mrb[0].mxu0
      %4630 = vmatprep.mubr.bf16.mxu0 0
      %4631 = vmatmul.mubr.bf16.gmra.mrb[0].mxu0 %v4554
      %v4632 = vpop.f32.mrb[0].mxu0
      %v4633 = vadd.f32 %v251, %v4632
      %v4634 = vpop.f32.mrb[0].mxu0
      %v4635 = vpop.f32.mrb[0].mxu0
      %v4636 = vadd.f32 %v251, %v4635
      %v4637 = vpop.f32.mrb[0].mxu0
      %4638 = vmatprep.mubr.bf16.mxu0 0
      %4639 = vmatmul.mubr.bf16.gmra.mrb[0].mxu0 %v4557
      %v4640 = vpop.f32.mrb[0].mxu0
      %v4641 = vadd.f32 %v251, %v4640
      %v4642 = vpop.f32.mrb[0].mxu0
      %v4643 = vpop.f32.mrb[0].mxu0
      %v4644 = vpop.f32.mrb[0].mxu0
      %4645 = vdwg.mxu0
      %v4646 = vsel %vm1323, %v4609, -inf
      %4647 = vmax.xlane.f32.xlu0 %v4646
      %v4648 = vpop.xlane.xlu0 %4647
      %v4649 = vsel %vm1323, %v4612, -inf
      %4650 = vmax.xlane.f32.xlu0 %v4649
      %v4651 = vpop.xlane.xlu0 %4650
      %v4652 = vsel %vm1323, %v4617, -inf
      %4653 = vmax.xlane.f32.xlu0 %v4652
      %v4654 = vpop.xlane.xlu0 %4653
      %v4655 = vsel %vm1323, %v4620, -inf
      %4656 = vmax.xlane.f32.xlu0 %v4655
      %v4657 = vpop.xlane.xlu0 %4656
      %v4658 = vsel %vm1323, %v4625, -inf
      %4659 = vmax.xlane.f32.xlu0 %v4658
      %v4660 = vpop.xlane.xlu0 %4659
      %v4661 = vsel %vm1323, %v4628, -inf
      %4662 = vmax.xlane.f32.xlu0 %v4661
      %v4663 = vpop.xlane.xlu0 %4662
      %v4664 = vsel %vm1323, %v4633, -inf
      %4665 = vmax.xlane.f32.xlu0 %v4664
      %v4666 = vpop.xlane.xlu0 %4665
      %v4667 = vsel %vm1323, %v4636, -inf
      %4668 = vmax.xlane.f32.xlu0 %v4667
      %v4669 = vpop.xlane.xlu0 %4668
      %v4670 = vsel %vm1323, %v4641, -inf
      %4671 = vmax.xlane.f32.xlu0 %v4670
      %v4672 = vpop.xlane.xlu0 %4671
      %v4673 = vsub.f32 %v4609, %v4648
      %v4674 = vsub.f32 %v4612, %v4651
      %v4675 = vsub.f32 %v4617, %v4654
      %v4676 = vsub.f32 %v4620, %v4657
      %v4677 = vsub.f32 %v4625, %v4660
      %v4678 = vsub.f32 %v4628, %v4663
      %v4679 = vsub.f32 %v4633, %v4666
      %v4680 = vsub.f32 %v4636, %v4669
      %v4681 = vsub.f32 %v4641, %v4672
      %v4682 = vmul.f32 %v4673, 1.442695
      %v4683 = vpow.pop %v4682
      %v4684 = vmul.f32 %v4674, 1.442695
      %v4685 = vpow.pop %v4684
      %v4686 = vmul.f32 %v4675, 1.442695
      %v4687 = vpow.pop %v4686
      %v4688 = vmul.f32 %v4676, 1.442695
      %v4689 = vpow.pop %v4688
      %v4690 = vmul.f32 %v4677, 1.442695
      %v4691 = vpow.pop %v4690
      %v4692 = vmul.f32 %v4678, 1.442695
      %v4693 = vpow.pop %v4692
      %v4694 = vmul.f32 %v4679, 1.442695
      %v4695 = vpow.pop %v4694
      %v4696 = vmul.f32 %v4680, 1.442695
      %v4697 = vpow.pop %v4696
      %v4698 = vmul.f32 %v4681, 1.442695
      %v4699 = vpow.pop %v4698
      %v4700 = vsel %vm1323, %v4683, 0.0
      %4701 = vadd.xlane.f32.xlu0 %v4700
      %v4702 = vpop.xlane.xlu0 %4701
      %v4703 = vsel %vm1323, %v4685, 0.0
      %4704 = vadd.xlane.f32.xlu0 %v4703
      %v4705 = vpop.xlane.xlu0 %4704
      %v4706 = vsel %vm1323, %v4687, 0.0
      %4707 = vadd.xlane.f32.xlu0 %v4706
      %v4708 = vpop.xlane.xlu0 %4707
      %v4709 = vsel %vm1323, %v4689, 0.0
      %4710 = vadd.xlane.f32.xlu0 %v4709
      %v4711 = vpop.xlane.xlu0 %4710
      %v4712 = vsel %vm1323, %v4691, 0.0
      %4713 = vadd.xlane.f32.xlu0 %v4712
      %v4714 = vpop.xlane.xlu0 %4713
      %v4715 = vsel %vm1323, %v4693, 0.0
      %4716 = vadd.xlane.f32.xlu0 %v4715
      %v4717 = vpop.xlane.xlu0 %4716
      %v4718 = vsel %vm1323, %v4695, 0.0
      %4719 = vadd.xlane.f32.xlu0 %v4718
      %v4720 = vpop.xlane.xlu0 %4719
      %v4721 = vsel %vm1323, %v4697, 0.0
      %4722 = vadd.xlane.f32.xlu0 %v4721
      %v4723 = vpop.xlane.xlu0 %4722
      %v4724 = vsel %vm1323, %v4699, 0.0
      %4725 = vadd.xlane.f32.xlu0 %v4724
      %v4726 = vpop.xlane.xlu0 %4725
      %v4727 = vrcp.pop %v4702
      %v4728 = vrcp.pop %v4705
      %v4729 = vrcp.pop %v4708
      %v4730 = vrcp.pop %v4711
      %v4731 = vrcp.pop %v4714
      %v4732 = vrcp.pop %v4717
      %v4733 = vrcp.pop %v4720
      %v4734 = vrcp.pop %v4723
      %v4735 = vrcp.pop %v4726
      %v4736 = vmul.f32 %v4683, %v4727
      %v4737 = vmul.f32 %v4685, %v4728
      %v4738 = vmul.f32 %v4687, %v4729
      %v4739 = vmul.f32 %v4689, %v4730
      %v4740 = vmul.f32 %v4691, %v4731
      %v4741 = vmul.f32 %v4693, %v4732
      %v4742 = vmul.f32 %v4695, %v4733
      %v4743 = vmul.f32 %v4697, %v4734
      %v4744 = vmul.f32 %v4699, %v4735
      %v4745 = vpack.c.bf16 %v4737, %v4736
      %v4746 = vpack.c.bf16 %v4739, %v4738
      %v4747 = vpack.c.bf16 %v4741, %v4740
      %v4748 = vpack.c.bf16 %v4743, %v4742
      %v4749 = vpack.c.bf16 %v4744, %v4744
      %v4751 = vsel %vm1323, %v4745, 0
      %v4754 = vsel %vm1323, %v4746, 0
      %v4757 = vsel %vm1323, %v4747, 0
      %v4760 = vsel %vm1323, %v4748, 0
      %v4763 = vsel %vm1323, %v4749, 0
      %v4766 = vsel %vm1443, %v4543, 0
      %4768 = vmatprep.subr.bf16.mxu0 0
      %4769 = vmatpush1.bf16.msra.mxu0 %v4539
      %4770 = vmatprep.subr.bf16.mxu0 0
      %4771 = vmatpush1.bf16.msra.mxu0 %v4540
      %4772 = vmatprep.subr.bf16.mxu0 0
      %4773 = vmatpush1.bf16.msra.mxu0 %v4541
      %4774 = vmatprep.subr.bf16.mxu0 0
      %4775 = vmatpush1.bf16.msra.mxu0 %v4542
      %4776 = vmatprep.subr.bf16.mxu0 0
      %4777 = vmatpush1.bf16.msra.mxu0 %v4766
      %4778 = vmatprep.subr.bf16.mxu0 0
      %4779 = vmatpush1.bf16.msra.mxu0 0
      %4780 = vmatprep.subr.bf16.mxu0 0
      %4781 = vmatpush1.bf16.msra.mxu0 0
      %4782 = vmatprep.subr.bf16.mxu0 0
      %4783 = vmatpush1.bf16.msra.mxu0 0
      %4784 = vmatprep.subr.bf16.mxu0 0
      %4785 = vmatpush1.bf16.msra.mxu0 0
      %4786 = vmatprep.subr.bf16.mxu0 0
      %4787 = vmatpush1.bf16.msra.mxu0 0
      %4788 = vmatprep.subr.bf16.mxu0 0
      %4789 = vmatpush1.bf16.msra.mxu0 0
      %4790 = vmatprep.subr.bf16.mxu0 0
      %4791 = vmatpush1.bf16.msra.mxu0 0
      %4792 = vmatprep.subr.bf16.mxu0 0
      %4793 = vmatpush1.bf16.msra.mxu0 0
      %4794 = vmatprep.subr.bf16.mxu0 0
      %4795 = vmatpush1.bf16.msra.mxu0 0
      %4796 = vmatprep.subr.bf16.mxu0 0
      %4797 = vmatpush1.bf16.msra.mxu0 0
      %4798 = vmatprep.subr.bf16.mxu0 0
      %4799 = vmatpush1.bf16.msra.mxu0 0
      %4800 = vmatprep.mubr.bf16.mxu0 0
      %4801 = vmatmul.mubr.bf16.gmra.mrb[0].mxu0 %v4751
      %v4802 = vpop.f32.mrb[0].mxu0
      %v4803 = vadd.f32 0.0, %v4802
      %v4804 = vpop.f32.mrb[0].mxu0
      %v4805 = vpop.f32.mrb[0].mxu0
      %v4806 = vadd.f32 0.0, %v4805
      %v4807 = vpop.f32.mrb[0].mxu0
      %4808 = vmatprep.mubr.bf16.mxu0 0
      %4809 = vmatmul.mubr.bf16.gmra.mrb[0].mxu0 %v4754
      %v4810 = vpop.f32.mrb[0].mxu0
      %v4811 = vadd.f32 0.0, %v4810
      %v4812 = vpop.f32.mrb[0].mxu0
      %v4813 = vpop.f32.mrb[0].mxu0
      %v4814 = vadd.f32 0.0, %v4813
      %v4815 = vpop.f32.mrb[0].mxu0
      %4816 = vmatprep.mubr.bf16.mxu0 0
      %4817 = vmatmul.mubr.bf16.gmra.mrb[0].mxu0 %v4757
      %v4818 = vpop.f32.mrb[0].mxu0
      %v4819 = vadd.f32 0.0, %v4818
      %v4820 = vpop.f32.mrb[0].mxu0
      %v4821 = vpop.f32.mrb[0].mxu0
      %v4822 = vadd.f32 0.0, %v4821
      %v4823 = vpop.f32.mrb[0].mxu0
      %4824 = vmatprep.mubr.bf16.mxu0 0
      %4825 = vmatmul.mubr.bf16.gmra.mrb[0].mxu0 %v4760
      %v4826 = vpop.f32.mrb[0].mxu0
      %v4827 = vadd.f32 0.0, %v4826
      %v4828 = vpop.f32.mrb[0].mxu0
      %v4829 = vpop.f32.mrb[0].mxu0
      %v4830 = vadd.f32 0.0, %v4829
      %v4831 = vpop.f32.mrb[0].mxu0
      %4832 = vmatprep.mubr.bf16.mxu0 0
      %4833 = vmatmul.mubr.bf16.gmra.mrb[0].mxu0 %v4763
      %v4834 = vpop.f32.mrb[0].mxu0
      %v4835 = vadd.f32 0.0, %v4834
      %v4836 = vpop.f32.mrb[0].mxu0
      %v4837 = vpop.f32.mrb[0].mxu0
      %v4838 = vpop.f32.mrb[0].mxu0
      %4839 = vdwg.mxu0
      %v4840 = vpack.c.bf16 %v4806, %v4803
      %v4841 = vpack.c.bf16 %v4814, %v4811
      %v4842 = vpack.c.bf16 %v4822, %v4819
      %v4843 = vpack.c.bf16 %v4830, %v4827
      %v4844 = vpack.c.bf16 %v4835, %v4835
      %v4845 = vpack.c.bf16 %v4231, %v4228
      %v4846 = vpack.c.bf16 %v4239, %v4236
      %v4847 = vpack.c.bf16 %v4247, %v4244
      %v4848 = vpack.c.bf16 %v4255, %v4252
      %v4849 = vpack.c.bf16 %v4260, %v4260
      %v4850 = vpack.c.bf16 %v4346, %v4343
      %v4851 = vpack.c.bf16 %v4354, %v4351
      %v4852 = vpack.c.bf16 %v4362, %v4359
      %v4853 = vpack.c.bf16 %v4370, %v4367
      %v4854 = vpack.c.bf16 %v4375, %v4375
      %v4855 = vpack.c.bf16 %v4461, %v4458
      %v4856 = vpack.c.bf16 %v4469, %v4466
      %v4857 = vpack.c.bf16 %v4477, %v4474
      %v4858 = vpack.c.bf16 %v4485, %v4482
      %v4859 = vpack.c.bf16 %v4490, %v4490
      %v4861 = vsel %vm1220, %v4845, 0
      %v4864 = vsel %vm1220, %v4846, 0
      %v4867 = vsel %vm1220, %v4847, 0
      %v4870 = vsel %vm1220, %v4848, 0
      %v4873 = vsel %vm1220, %v4849, 0
      %v4876 = vsel %vm1220, %v4850, 0
      %v4879 = vsel %vm1220, %v4851, 0
      %v4882 = vsel %vm1220, %v4852, 0
      %v4885 = vsel %vm1220, %v4853, 0
      %v4888 = vsel %vm1220, %v4854, 0
      %4890 = vmatprep.subr.bf16.mxu0 0
      %4891 = vmatpush1.bf16.xpose.msra.mxu0 %v4876
      %4892 = vmatprep.subr.bf16.mxu0 0
      %4893 = vmatpush1.bf16.xpose.msra.mxu0 %v4879
      %4894 = vmatprep.subr.bf16.mxu0 0
      %4895 = vmatpush1.bf16.xpose.msra.mxu0 %v4882
      %4896 = vmatprep.subr.bf16.mxu0 0
      %4897 = vmatpush1.bf16.xpose.msra.mxu0 %v4885
      %4898 = vmatprep.subr.bf16.mxu0 0
      %4899 = vmatpush1.bf16.xpose.msra.mxu0 %v4888
      %4900 = vmatprep.subr.bf16.mxu0 0
      %4901 = vmatpush1.bf16.xpose.msra.mxu0 0
      %4902 = vmatprep.subr.bf16.mxu0 0
      %4903 = vmatpush1.bf16.xpose.msra.mxu0 0
      %4904 = vmatprep.subr.bf16.mxu0 0
      %4905 = vmatpush1.bf16.xpose.msra.mxu0 0
      %4906 = vmatprep.subr.bf16.mxu0 0
      %4907 = vmatpush1.bf16.xpose.msra.mxu0 0
      %4908 = vmatprep.subr.bf16.mxu0 0
      %4909 = vmatpush1.bf16.xpose.msra.mxu0 0
      %4910 = vmatprep.subr.bf16.mxu0 0
      %4911 = vmatpush1.bf16.xpose.msra.mxu0 0
      %4912 = vmatprep.subr.bf16.mxu0 0
      %4913 = vmatpush1.bf16.xpose.msra.mxu0 0
      %4914 = vmatprep.subr.bf16.mxu0 0
      %4915 = vmatpush1.bf16.xpose.msra.mxu0 0
      %4916 = vmatprep.subr.bf16.mxu0 0
      %4917 = vmatpush1.bf16.xpose.msra.mxu0 0
      %4918 = vmatprep.subr.bf16.mxu0 0
      %4919 = vmatpush1.bf16.xpose.msra.mxu0 0
      %4920 = vmatprep.subr.bf16.mxu0 0
      %4921 = vmatpush1.bf16.xpose.msra.mxu0 0
      %4922 = vmatprep.mubr.bf16.mxu0 0
      %4923 = vmatmul.mubr.bf16.gmra.mrb[0].mxu0 %v4861
      %v4924 = vpop.f32.mrb[0].mxu0
      %v4925 = vadd.f32 %v251, %v4924
      %v4926 = vpop.f32.mrb[0].mxu0
      %v4927 = vpop.f32.mrb[0].mxu0
      %v4928 = vadd.f32 %v251, %v4927
      %v4929 = vpop.f32.mrb[0].mxu0
      %4930 = vmatprep.mubr.bf16.mxu0 0
      %4931 = vmatmul.mubr.bf16.gmra.mrb[0].mxu0 %v4864
      %v4932 = vpop.f32.mrb[0].mxu0
      %v4933 = vadd.f32 %v251, %v4932
      %v4934 = vpop.f32.mrb[0].mxu0
      %v4935 = vpop.f32.mrb[0].mxu0
      %v4936 = vadd.f32 %v251, %v4935
      %v4937 = vpop.f32.mrb[0].mxu0
      %4938 = vmatprep.mubr.bf16.mxu0 0
      %4939 = vmatmul.mubr.bf16.gmra.mrb[0].mxu0 %v4867
      %v4940 = vpop.f32.mrb[0].mxu0
      %v4941 = vadd.f32 %v251, %v4940
      %v4942 = vpop.f32.mrb[0].mxu0
      %v4943 = vpop.f32.mrb[0].mxu0
      %v4944 = vadd.f32 %v251, %v4943
      %v4945 = vpop.f32.mrb[0].mxu0
      %4946 = vmatprep.mubr.bf16.mxu0 0
      %4947 = vmatmul.mubr.bf16.gmra.mrb[0].mxu0 %v4870
      %v4948 = vpop.f32.mrb[0].mxu0
      %v4949 = vadd.f32 %v251, %v4948
      %v4950 = vpop.f32.mrb[0].mxu0
      %v4951 = vpop.f32.mrb[0].mxu0
      %v4952 = vadd.f32 %v251, %v4951
      %v4953 = vpop.f32.mrb[0].mxu0
      %4954 = vmatprep.mubr.bf16.mxu0 0
      %4955 = vmatmul.mubr.bf16.gmra.mrb[0].mxu0 %v4873
      %v4956 = vpop.f32.mrb[0].mxu0
      %v4957 = vadd.f32 %v251, %v4956
      %v4958 = vpop.f32.mrb[0].mxu0
      %v4959 = vpop.f32.mrb[0].mxu0
      %v4960 = vpop.f32.mrb[0].mxu0
      %4961 = vdwg.mxu0
      %v4962 = vsel %vm1323, %v4925, -inf
      %4963 = vmax.xlane.f32.xlu0 %v4962
      %v4964 = vpop.xlane.xlu0 %4963
      %v4965 = vsel %vm1323, %v4928, -inf
      %4966 = vmax.xlane.f32.xlu0 %v4965
      %v4967 = vpop.xlane.xlu0 %4966
      %v4968 = vsel %vm1323, %v4933, -inf
      %4969 = vmax.xlane.f32.xlu0 %v4968
      %v4970 = vpop.xlane.xlu0 %4969
      %v4971 = vsel %vm1323, %v4936, -inf
      %4972 = vmax.xlane.f32.xlu0 %v4971
      %v4973 = vpop.xlane.xlu0 %4972
      %v4974 = vsel %vm1323, %v4941, -inf
      %4975 = vmax.xlane.f32.xlu0 %v4974
      %v4976 = vpop.xlane.xlu0 %4975
      %v4977 = vsel %vm1323, %v4944, -inf
      %4978 = vmax.xlane.f32.xlu0 %v4977
      %v4979 = vpop.xlane.xlu0 %4978
      %v4980 = vsel %vm1323, %v4949, -inf
      %4981 = vmax.xlane.f32.xlu0 %v4980
      %v4982 = vpop.xlane.xlu0 %4981
      %v4983 = vsel %vm1323, %v4952, -inf
      %4984 = vmax.xlane.f32.xlu0 %v4983
      %v4985 = vpop.xlane.xlu0 %4984
      %v4986 = vsel %vm1323, %v4957, -inf
      %4987 = vmax.xlane.f32.xlu0 %v4986
      %v4988 = vpop.xlane.xlu0 %4987
      %v4989 = vsub.f32 %v4925, %v4964
      %v4990 = vsub.f32 %v4928, %v4967
      %v4991 = vsub.f32 %v4933, %v4970
      %v4992 = vsub.f32 %v4936, %v4973
      %v4993 = vsub.f32 %v4941, %v4976
      %v4994 = vsub.f32 %v4944, %v4979
      %v4995 = vsub.f32 %v4949, %v4982
      %v4996 = vsub.f32 %v4952, %v4985
      %v4997 = vsub.f32 %v4957, %v4988
      %v4998 = vmul.f32 %v4989, 1.442695
      %v4999 = vpow.pop %v4998
      %v5000 = vmul.f32 %v4990, 1.442695
      %v5001 = vpow.pop %v5000
      %v5002 = vmul.f32 %v4991, 1.442695
      %v5003 = vpow.pop %v5002
      %v5004 = vmul.f32 %v4992, 1.442695
      %v5005 = vpow.pop %v5004
      %v5006 = vmul.f32 %v4993, 1.442695
      %v5007 = vpow.pop %v5006
      %v5008 = vmul.f32 %v4994, 1.442695
      %v5009 = vpow.pop %v5008
      %v5010 = vmul.f32 %v4995, 1.442695
      %v5011 = vpow.pop %v5010
      %v5012 = vmul.f32 %v4996, 1.442695
      %v5013 = vpow.pop %v5012
      %v5014 = vmul.f32 %v4997, 1.442695
      %v5015 = vpow.pop %v5014
      %v5016 = vsel %vm1323, %v4999, 0.0
      %5017 = vadd.xlane.f32.xlu0 %v5016
      %v5018 = vpop.xlane.xlu0 %5017
      %v5019 = vsel %vm1323, %v5001, 0.0
      %5020 = vadd.xlane.f32.xlu0 %v5019
      %v5021 = vpop.xlane.xlu0 %5020
      %v5022 = vsel %vm1323, %v5003, 0.0
      %5023 = vadd.xlane.f32.xlu0 %v5022
      %v5024 = vpop.xlane.xlu0 %5023
      %v5025 = vsel %vm1323, %v5005, 0.0
      %5026 = vadd.xlane.f32.xlu0 %v5025
      %v5027 = vpop.xlane.xlu0 %5026
      %v5028 = vsel %vm1323, %v5007, 0.0
      %5029 = vadd.xlane.f32.xlu0 %v5028
      %v5030 = vpop.xlane.xlu0 %5029
      %v5031 = vsel %vm1323, %v5009, 0.0
      %5032 = vadd.xlane.f32.xlu0 %v5031
      %v5033 = vpop.xlane.xlu0 %5032
      %v5034 = vsel %vm1323, %v5011, 0.0
      %5035 = vadd.xlane.f32.xlu0 %v5034
      %v5036 = vpop.xlane.xlu0 %5035
      %v5037 = vsel %vm1323, %v5013, 0.0
      %5038 = vadd.xlane.f32.xlu0 %v5037
      %v5039 = vpop.xlane.xlu0 %5038
      %v5040 = vsel %vm1323, %v5015, 0.0
      %5041 = vadd.xlane.f32.xlu0 %v5040
      %v5042 = vpop.xlane.xlu0 %5041
      %v5043 = vrcp.pop %v5018
      %v5044 = vrcp.pop %v5021
      %v5045 = vrcp.pop %v5024
      %v5046 = vrcp.pop %v5027
      %v5047 = vrcp.pop %v5030
      %v5048 = vrcp.pop %v5033
      %v5049 = vrcp.pop %v5036
      %v5050 = vrcp.pop %v5039
      %v5051 = vrcp.pop %v5042
      %v5052 = vmul.f32 %v4999, %v5043
      %v5053 = vmul.f32 %v5001, %v5044
      %v5054 = vmul.f32 %v5003, %v5045
      %v5055 = vmul.f32 %v5005, %v5046
      %v5056 = vmul.f32 %v5007, %v5047
      %v5057 = vmul.f32 %v5009, %v5048
      %v5058 = vmul.f32 %v5011, %v5049
      %v5059 = vmul.f32 %v5013, %v5050
      %v5060 = vmul.f32 %v5015, %v5051
      %v5061 = vpack.c.bf16 %v5053, %v5052
      %v5062 = vpack.c.bf16 %v5055, %v5054
      %v5063 = vpack.c.bf16 %v5057, %v5056
      %v5064 = vpack.c.bf16 %v5059, %v5058
      %v5065 = vpack.c.bf16 %v5060, %v5060
      %v5067 = vsel %vm1323, %v5061, 0
      %v5070 = vsel %vm1323, %v5062, 0
      %v5073 = vsel %vm1323, %v5063, 0
      %v5076 = vsel %vm1323, %v5064, 0
      %v5079 = vsel %vm1323, %v5065, 0
      %v5082 = vsel %vm1443, %v4859, 0
      %5084 = vmatprep.subr.bf16.mxu0 0
      %5085 = vmatpush1.bf16.msra.mxu0 %v4855
      %5086 = vmatprep.subr.bf16.mxu0 0
      %5087 = vmatpush1.bf16.msra.mxu0 %v4856
      %5088 = vmatprep.subr.bf16.mxu0 0
      %5089 = vmatpush1.bf16.msra.mxu0 %v4857
      %5090 = vmatprep.subr.bf16.mxu0 0
      %5091 = vmatpush1.bf16.msra.mxu0 %v4858
      %5092 = vmatprep.subr.bf16.mxu0 0
      %5093 = vmatpush1.bf16.msra.mxu0 %v5082
      %5094 = vmatprep.subr.bf16.mxu0 0
      %5095 = vmatpush1.bf16.msra.mxu0 0
      %5096 = vmatprep.subr.bf16.mxu0 0
      %5097 = vmatpush1.bf16.msra.mxu0 0
      %5098 = vmatprep.subr.bf16.mxu0 0
      %5099 = vmatpush1.bf16.msra.mxu0 0
      %5100 = vmatprep.subr.bf16.mxu0 0
      %5101 = vmatpush1.bf16.msra.mxu0 0
      %5102 = vmatprep.subr.bf16.mxu0 0
      %5103 = vmatpush1.bf16.msra.mxu0 0
      %5104 = vmatprep.subr.bf16.mxu0 0
      %5105 = vmatpush1.bf16.msra.mxu0 0
      %5106 = vmatprep.subr.bf16.mxu0 0
      %5107 = vmatpush1.bf16.msra.mxu0 0
      %5108 = vmatprep.subr.bf16.mxu0 0
      %5109 = vmatpush1.bf16.msra.mxu0 0
      %5110 = vmatprep.subr.bf16.mxu0 0
      %5111 = vmatpush1.bf16.msra.mxu0 0
      %5112 = vmatprep.subr.bf16.mxu0 0
      %5113 = vmatpush1.bf16.msra.mxu0 0
      %5114 = vmatprep.subr.bf16.mxu0 0
      %5115 = vmatpush1.bf16.msra.mxu0 0
      %5116 = vmatprep.mubr.bf16.mxu0 0
      %5117 = vmatmul.mubr.bf16.gmra.mrb[0].mxu0 %v5067
      %v5118 = vpop.f32.mrb[0].mxu0
      %v5119 = vadd.f32 0.0, %v5118
      %v5120 = vpop.f32.mrb[0].mxu0
      %v5121 = vpop.f32.mrb[0].mxu0
      %v5122 = vadd.f32 0.0, %v5121
      %v5123 = vpop.f32.mrb[0].mxu0
      %5124 = vmatprep.mubr.bf16.mxu0 0
      %5125 = vmatmul.mubr.bf16.gmra.mrb[0].mxu0 %v5070
      %v5126 = vpop.f32.mrb[0].mxu0
      %v5127 = vadd.f32 0.0, %v5126
      %v5128 = vpop.f32.mrb[0].mxu0
      %v5129 = vpop.f32.mrb[0].mxu0
      %v5130 = vadd.f32 0.0, %v5129
      %v5131 = vpop.f32.mrb[0].mxu0
      %5132 = vmatprep.mubr.bf16.mxu0 0
      %5133 = vmatmul.mubr.bf16.gmra.mrb[0].mxu0 %v5073
      %v5134 = vpop.f32.mrb[0].mxu0
      %v5135 = vadd.f32 0.0, %v5134
      %v5136 = vpop.f32.mrb[0].mxu0
      %v5137 = vpop.f32.mrb[0].mxu0
      %v5138 = vadd.f32 0.0, %v5137
      %v5139 = vpop.f32.mrb[0].mxu0
      %5140 = vmatprep.mubr.bf16.mxu0 0
      %5141 = vmatmul.mubr.bf16.gmra.mrb[0].mxu0 %v5076
      %v5142 = vpop.f32.mrb[0].mxu0
      %v5143 = vadd.f32 0.0, %v5142
      %v5144 = vpop.f32.mrb[0].mxu0
      %v5145 = vpop.f32.mrb[0].mxu0
      %v5146 = vadd.f32 0.0, %v5145
      %v5147 = vpop.f32.mrb[0].mxu0
      %5148 = vmatprep.mubr.bf16.mxu0 0
      %5149 = vmatmul.mubr.bf16.gmra.mrb[0].mxu0 %v5079
      %v5150 = vpop.f32.mrb[0].mxu0
      %v5151 = vadd.f32 0.0, %v5150
      %v5152 = vpop.f32.mrb[0].mxu0
      %v5153 = vpop.f32.mrb[0].mxu0
      %v5154 = vpop.f32.mrb[0].mxu0
      %5155 = vdwg.mxu0
      %v5156 = vpack.c.bf16 %v5122, %v5119
      %v5157 = vpack.c.bf16 %v5130, %v5127
      %v5158 = vpack.c.bf16 %v5138, %v5135
      %v5159 = vpack.c.bf16 %v5146, %v5143
      %v5160 = vpack.c.bf16 %v5151, %v5151
      %v5162 = vsel %vm1220, %v5156, 0
      %v5165 = vsel %vm1220, %v5157, 0
      %v5168 = vsel %vm1220, %v5158, 0
      %v5171 = vsel %vm1220, %v5159, 0
      %v5174 = vsel %vm1220, %v5160, 0
      %v5177 = vsel %vm1443, %v4179, 0
      %5179 = vmatprep.subr.bf16.mxu0 0
      %5180 = vmatpush1.bf16.msra.mxu0 %v5177
      %5181 = vmatprep.subr.bf16.mxu0 0
      %5182 = vmatpush1.bf16.msra.mxu0 0
      %5183 = vmatprep.subr.bf16.mxu0 0
      %5184 = vmatpush1.bf16.msra.mxu0 0
      %5185 = vmatprep.subr.bf16.mxu0 0
      %5186 = vmatpush1.bf16.msra.mxu0 0
      %5187 = vmatprep.subr.bf16.mxu0 0
      %5188 = vmatpush1.bf16.msra.mxu0 0
      %5189 = vmatprep.subr.bf16.mxu0 0
      %5190 = vmatpush1.bf16.msra.mxu0 0
      %5191 = vmatprep.subr.bf16.mxu0 0
      %5192 = vmatpush1.bf16.msra.mxu0 0
      %5193 = vmatprep.subr.bf16.mxu0 0
      %5194 = vmatpush1.bf16.msra.mxu0 0
      %5195 = vmatprep.subr.bf16.mxu0 0
      %5196 = vmatpush1.bf16.msra.mxu0 0
      %5197 = vmatprep.subr.bf16.mxu0 0
      %5198 = vmatpush1.bf16.msra.mxu0 0
      %5199 = vmatprep.subr.bf16.mxu0 0
      %5200 = vmatpush1.bf16.msra.mxu0 0
      %5201 = vmatprep.subr.bf16.mxu0 0
      %5202 = vmatpush1.bf16.msra.mxu0 0
      %5203 = vmatprep.subr.bf16.mxu0 0
      %5204 = vmatpush1.bf16.msra.mxu0 0
      %5205 = vmatprep.subr.bf16.mxu0 0
      %5206 = vmatpush1.bf16.msra.mxu0 0
      %5207 = vmatprep.subr.bf16.mxu0 0
      %5208 = vmatpush1.bf16.msra.mxu0 0
      %5209 = vmatprep.subr.bf16.mxu0 0
      %5210 = vmatpush1.bf16.msra.mxu0 0
      %5211 = vmatprep.mubr.bf16.mxu0 0
      %5212 = vmatmul.mubr.bf16.gmra.mrb[0].mxu0 %v5162
      %v5213 = vpop.f32.mrb[0].mxu0
      %v5214 = vadd.f32 0.0, %v5213
      %v5215 = vpop.f32.mrb[0].mxu0
      %v5216 = vpop.f32.mrb[0].mxu0
      %v5217 = vadd.f32 0.0, %v5216
      %v5218 = vpop.f32.mrb[0].mxu0
      %5219 = vmatprep.mubr.bf16.mxu0 0
      %5220 = vmatmul.mubr.bf16.gmra.mrb[0].mxu0 %v5165
      %v5221 = vpop.f32.mrb[0].mxu0
      %v5222 = vadd.f32 0.0, %v5221
      %v5223 = vpop.f32.mrb[0].mxu0
      %v5224 = vpop.f32.mrb[0].mxu0
      %v5225 = vadd.f32 0.0, %v5224
      %v5226 = vpop.f32.mrb[0].mxu0
      %5227 = vmatprep.mubr.bf16.mxu0 0
      %5228 = vmatmul.mubr.bf16.gmra.mrb[0].mxu0 %v5168
      %v5229 = vpop.f32.mrb[0].mxu0
      %v5230 = vadd.f32 0.0, %v5229
      %v5231 = vpop.f32.mrb[0].mxu0
      %v5232 = vpop.f32.mrb[0].mxu0
      %v5233 = vadd.f32 0.0, %v5232
      %v5234 = vpop.f32.mrb[0].mxu0
      %5235 = vmatprep.mubr.bf16.mxu0 0
      %5236 = vmatmul.mubr.bf16.gmra.mrb[0].mxu0 %v5171
      %v5237 = vpop.f32.mrb[0].mxu0
      %v5238 = vadd.f32 0.0, %v5237
      %v5239 = vpop.f32.mrb[0].mxu0
      %v5240 = vpop.f32.mrb[0].mxu0
      %v5241 = vadd.f32 0.0, %v5240
      %v5242 = vpop.f32.mrb[0].mxu0
      %5243 = vmatprep.mubr.bf16.mxu0 0
      %5244 = vmatmul.mubr.bf16.gmra.mrb[0].mxu0 %v5174
      %v5245 = vpop.f32.mrb[0].mxu0
      %v5246 = vadd.f32 0.0, %v5245
      %v5247 = vpop.f32.mrb[0].mxu0
      %v5248 = vpop.f32.mrb[0].mxu0
      %v5249 = vpop.f32.mrb[0].mxu0
      %5250 = vdwg.mxu0
      %v5252 = vsel %vm1220, %v4840, 0
      %v5255 = vsel %vm1220, %v4841, 0
      %v5258 = vsel %vm1220, %v4842, 0
      %v5261 = vsel %vm1220, %v4843, 0
      %v5264 = vsel %vm1220, %v4844, 0
      %v5267 = vsel %vm1443, %v3796, 0
      %5269 = vmatprep.subr.bf16.mxu0 0
      %5270 = vmatpush1.bf16.msra.mxu0 %v5267
      %5271 = vmatprep.subr.bf16.mxu0 0
      %5272 = vmatpush1.bf16.msra.mxu0 0
      %5273 = vmatprep.subr.bf16.mxu0 0
      %5274 = vmatpush1.bf16.msra.mxu0 0
      %5275 = vmatprep.subr.bf16.mxu0 0
      %5276 = vmatpush1.bf16.msra.mxu0 0
      %5277 = vmatprep.subr.bf16.mxu0 0
      %5278 = vmatpush1.bf16.msra.mxu0 0
      %5279 = vmatprep.subr.bf16.mxu0 0
      %5280 = vmatpush1.bf16.msra.mxu0 0
      %5281 = vmatprep.subr.bf16.mxu0 0
      %5282 = vmatpush1.bf16.msra.mxu0 0
      %5283 = vmatprep.subr.bf16.mxu0 0
      %5284 = vmatpush1.bf16.msra.mxu0 0
      %5285 = vmatprep.subr.bf16.mxu0 0
      %5286 = vmatpush1.bf16.msra.mxu0 0
      %5287 = vmatprep.subr.bf16.mxu0 0
      %5288 = vmatpush1.bf16.msra.mxu0 0
      %5289 = vmatprep.subr.bf16.mxu0 0
      %5290 = vmatpush1.bf16.msra.mxu0 0
      %5291 = vmatprep.subr.bf16.mxu0 0
      %5292 = vmatpush1.bf16.msra.mxu0 0
      %5293 = vmatprep.subr.bf16.mxu0 0
      %5294 = vmatpush1.bf16.msra.mxu0 0
      %5295 = vmatprep.subr.bf16.mxu0 0
      %5296 = vmatpush1.bf16.msra.mxu0 0
      %5297 = vmatprep.subr.bf16.mxu0 0
      %5298 = vmatpush1.bf16.msra.mxu0 0
      %5299 = vmatprep.subr.bf16.mxu0 0
      %5300 = vmatpush1.bf16.msra.mxu0 0
      %5301 = vmatprep.mubr.bf16.mxu0 0
      %5302 = vmatmul.mubr.bf16.gmra.mrb[0].mxu0 %v5252
      %v5303 = vpop.f32.mrb[0].mxu0
      %v5304 = vadd.f32 %v5214, %v5303
      %v5305 = vpop.f32.mrb[0].mxu0
      %v5306 = vpop.f32.mrb[0].mxu0
      %v5307 = vadd.f32 %v5217, %v5306
      %v5308 = vpop.f32.mrb[0].mxu0
      %5309 = vmatprep.mubr.bf16.mxu0 0
      %5310 = vmatmul.mubr.bf16.gmra.mrb[0].mxu0 %v5255
      %v5311 = vpop.f32.mrb[0].mxu0
      %v5312 = vadd.f32 %v5222, %v5311
      %v5313 = vpop.f32.mrb[0].mxu0
      %v5314 = vpop.f32.mrb[0].mxu0
      %v5315 = vadd.f32 %v5225, %v5314
      %v5316 = vpop.f32.mrb[0].mxu0
      %5317 = vmatprep.mubr.bf16.mxu0 0
      %5318 = vmatmul.mubr.bf16.gmra.mrb[0].mxu0 %v5258
      %v5319 = vpop.f32.mrb[0].mxu0
      %v5320 = vadd.f32 %v5230, %v5319
      %v5321 = vpop.f32.mrb[0].mxu0
      %v5322 = vpop.f32.mrb[0].mxu0
      %v5323 = vadd.f32 %v5233, %v5322
      %v5324 = vpop.f32.mrb[0].mxu0
      %5325 = vmatprep.mubr.bf16.mxu0 0
      %5326 = vmatmul.mubr.bf16.gmra.mrb[0].mxu0 %v5261
      %v5327 = vpop.f32.mrb[0].mxu0
      %v5328 = vadd.f32 %v5238, %v5327
      %v5329 = vpop.f32.mrb[0].mxu0
      %v5330 = vpop.f32.mrb[0].mxu0
      %v5331 = vadd.f32 %v5241, %v5330
      %v5332 = vpop.f32.mrb[0].mxu0
      %5333 = vmatprep.mubr.bf16.mxu0 0
      %5334 = vmatmul.mubr.bf16.gmra.mrb[0].mxu0 %v5264
      %v5335 = vpop.f32.mrb[0].mxu0
      %v5336 = vadd.f32 %v5246, %v5335
      %v5337 = vpop.f32.mrb[0].mxu0
      %v5338 = vpop.f32.mrb[0].mxu0
      %v5339 = vpop.f32.mrb[0].mxu0
      %5340 = vdwg.mxu0
      %v5341 = vpack.c.bf16 %v3913, %v3908
      %v5342 = vpack.c.bf16 %v3921, %v3916
      %v5343 = vpack.c.bf16 %v3929, %v3924
      %v5344 = vpack.c.bf16 %v3937, %v3932
      %v5345 = vpack.c.bf16 %v3940, %v3940
      %v5346 = vpack.c.bf16 %v4028, %v4023
      %v5347 = vpack.c.bf16 %v4036, %v4031
      %v5348 = vpack.c.bf16 %v4044, %v4039
      %v5349 = vpack.c.bf16 %v4052, %v4047
      %v5350 = vpack.c.bf16 %v4055, %v4055
      %v5351 = vpack.c.bf16 %v4143, %v4138
      %v5352 = vpack.c.bf16 %v4151, %v4146
      %v5353 = vpack.c.bf16 %v4159, %v4154
      %v5354 = vpack.c.bf16 %v4167, %v4162
      %v5355 = vpack.c.bf16 %v4170, %v4170
      %v5357 = vsel %vm1220, %v5341, 0
      %v5360 = vsel %vm1220, %v5342, 0
      %v5363 = vsel %vm1220, %v5343, 0
      %v5366 = vsel %vm1220, %v5344, 0
      %v5369 = vsel %vm1220, %v5345, 0
      %v5372 = vsel %vm1220, %v5346, 0
      %v5375 = vsel %vm1220, %v5347, 0
      %v5378 = vsel %vm1220, %v5348, 0
      %v5381 = vsel %vm1220, %v5349, 0
      %v5384 = vsel %vm1220, %v5350, 0
      %5386 = vmatprep.subr.bf16.mxu0 0
      %5387 = vmatpush1.bf16.xpose.msra.mxu0 %v5372
      %5388 = vmatprep.subr.bf16.mxu0 0
      %5389 = vmatpush1.bf16.xpose.msra.mxu0 %v5375
      %5390 = vmatprep.subr.bf16.mxu0 0
      %5391 = vmatpush1.bf16.xpose.msra.mxu0 %v5378
      %5392 = vmatprep.subr.bf16.mxu0 0
      %5393 = vmatpush1.bf16.xpose.msra.mxu0 %v5381
      %5394 = vmatprep.subr.bf16.mxu0 0
      %5395 = vmatpush1.bf16.xpose.msra.mxu0 %v5384
      %5396 = vmatprep.subr.bf16.mxu0 0
      %5397 = vmatpush1.bf16.xpose.msra.mxu0 0
      %5398 = vmatprep.subr.bf16.mxu0 0
      %5399 = vmatpush1.bf16.xpose.msra.mxu0 0
      %5400 = vmatprep.subr.bf16.mxu0 0
      %5401 = vmatpush1.bf16.xpose.msra.mxu0 0
      %5402 = vmatprep.subr.bf16.mxu0 0
      %5403 = vmatpush1.bf16.xpose.msra.mxu0 0
      %5404 = vmatprep.subr.bf16.mxu0 0
      %5405 = vmatpush1.bf16.xpose.msra.mxu0 0
      %5406 = vmatprep.subr.bf16.mxu0 0
      %5407 = vmatpush1.bf16.xpose.msra.mxu0 0
      %5408 = vmatprep.subr.bf16.mxu0 0
      %5409 = vmatpush1.bf16.xpose.msra.mxu0 0
      %5410 = vmatprep.subr.bf16.mxu0 0
      %5411 = vmatpush1.bf16.xpose.msra.mxu0 0
      %5412 = vmatprep.subr.bf16.mxu0 0
      %5413 = vmatpush1.bf16.xpose.msra.mxu0 0
      %5414 = vmatprep.subr.bf16.mxu0 0
      %5415 = vmatpush1.bf16.xpose.msra.mxu0 0
      %5416 = vmatprep.subr.bf16.mxu0 0
      %5417 = vmatpush1.bf16.xpose.msra.mxu0 0
      %5418 = vmatprep.mubr.bf16.mxu0 0
      %5419 = vmatmul.mubr.bf16.gmra.mrb[0].mxu0 %v5357
      %v5420 = vpop.f32.mrb[0].mxu0
      %v5421 = vadd.f32 %v251, %v5420
      %v5422 = vpop.f32.mrb[0].mxu0
      %v5423 = vpop.f32.mrb[0].mxu0
      %v5424 = vadd.f32 %v251, %v5423
      %v5425 = vpop.f32.mrb[0].mxu0
      %5426 = vmatprep.mubr.bf16.mxu0 0
      %5427 = vmatmul.mubr.bf16.gmra.mrb[0].mxu0 %v5360
      %v5428 = vpop.f32.mrb[0].mxu0
      %v5429 = vadd.f32 %v251, %v5428
      %v5430 = vpop.f32.mrb[0].mxu0
      %v5431 = vpop.f32.mrb[0].mxu0
      %v5432 = vadd.f32 %v251, %v5431
      %v5433 = vpop.f32.mrb[0].mxu0
      %5434 = vmatprep.mubr.bf16.mxu0 0
      %5435 = vmatmul.mubr.bf16.gmra.mrb[0].mxu0 %v5363
      %v5436 = vpop.f32.mrb[0].mxu0
      %v5437 = vadd.f32 %v251, %v5436
      %v5438 = vpop.f32.mrb[0].mxu0
      %v5439 = vpop.f32.mrb[0].mxu0
      %v5440 = vadd.f32 %v251, %v5439
      %v5441 = vpop.f32.mrb[0].mxu0
      %5442 = vmatprep.mubr.bf16.mxu0 0
      %5443 = vmatmul.mubr.bf16.gmra.mrb[0].mxu0 %v5366
      %v5444 = vpop.f32.mrb[0].mxu0
      %v5445 = vadd.f32 %v251, %v5444
      %v5446 = vpop.f32.mrb[0].mxu0
      %v5447 = vpop.f32.mrb[0].mxu0
      %v5448 = vadd.f32 %v251, %v5447
      %v5449 = vpop.f32.mrb[0].mxu0
      %5450 = vmatprep.mubr.bf16.mxu0 0
      %5451 = vmatmul.mubr.bf16.gmra.mrb[0].mxu0 %v5369
      %v5452 = vpop.f32.mrb[0].mxu0
      %v5453 = vadd.f32 %v251, %v5452
      %v5454 = vpop.f32.mrb[0].mxu0
      %v5455 = vpop.f32.mrb[0].mxu0
      %v5456 = vpop.f32.mrb[0].mxu0
      %5457 = vdwg.mxu0
      %v5458 = vsel %vm1323, %v5421, -inf
      %5459 = vmax.xlane.f32.xlu0 %v5458
      %v5460 = vpop.xlane.xlu0 %5459
      %v5461 = vsel %vm1323, %v5424, -inf
      %5462 = vmax.xlane.f32.xlu0 %v5461
      %v5463 = vpop.xlane.xlu0 %5462
      %v5464 = vsel %vm1323, %v5429, -inf
      %5465 = vmax.xlane.f32.xlu0 %v5464
      %v5466 = vpop.xlane.xlu0 %5465
      %v5467 = vsel %vm1323, %v5432, -inf
      %5468 = vmax.xlane.f32.xlu0 %v5467
      %v5469 = vpop.xlane.xlu0 %5468
      %v5470 = vsel %vm1323, %v5437, -inf
      %5471 = vmax.xlane.f32.xlu0 %v5470
      %v5472 = vpop.xlane.xlu0 %5471
      %v5473 = vsel %vm1323, %v5440, -inf
      %5474 = vmax.xlane.f32.xlu0 %v5473
      %v5475 = vpop.xlane.xlu0 %5474
      %v5476 = vsel %vm1323, %v5445, -inf
      %5477 = vmax.xlane.f32.xlu0 %v5476
      %v5478 = vpop.xlane.xlu0 %5477
      %v5479 = vsel %vm1323, %v5448, -inf
      %5480 = vmax.xlane.f32.xlu0 %v5479
      %v5481 = vpop.xlane.xlu0 %5480
      %v5482 = vsel %vm1323, %v5453, -inf
      %5483 = vmax.xlane.f32.xlu0 %v5482
      %v5484 = vpop.xlane.xlu0 %5483
      %v5485 = vsub.f32 %v5421, %v5460
      %v5486 = vsub.f32 %v5424, %v5463
      %v5487 = vsub.f32 %v5429, %v5466
      %v5488 = vsub.f32 %v5432, %v5469
      %v5489 = vsub.f32 %v5437, %v5472
      %v5490 = vsub.f32 %v5440, %v5475
      %v5491 = vsub.f32 %v5445, %v5478
      %v5492 = vsub.f32 %v5448, %v5481
      %v5493 = vsub.f32 %v5453, %v5484
      %v5494 = vmul.f32 %v5485, 1.442695
      %v5495 = vpow.pop %v5494
      %v5496 = vmul.f32 %v5486, 1.442695
      %v5497 = vpow.pop %v5496
      %v5498 = vmul.f32 %v5487, 1.442695
      %v5499 = vpow.pop %v5498
      %v5500 = vmul.f32 %v5488, 1.442695
      %v5501 = vpow.pop %v5500
      %v5502 = vmul.f32 %v5489, 1.442695
      %v5503 = vpow.pop %v5502
      %v5504 = vmul.f32 %v5490, 1.442695
      %v5505 = vpow.pop %v5504
      %v5506 = vmul.f32 %v5491, 1.442695
      %v5507 = vpow.pop %v5506
      %v5508 = vmul.f32 %v5492, 1.442695
      %v5509 = vpow.pop %v5508
      %v5510 = vmul.f32 %v5493, 1.442695
      %v5511 = vpow.pop %v5510
      %v5512 = vsel %vm1323, %v5495, 0.0
      %5513 = vadd.xlane.f32.xlu0 %v5512
      %v5514 = vpop.xlane.xlu0 %5513
      %v5515 = vsel %vm1323, %v5497, 0.0
      %5516 = vadd.xlane.f32.xlu0 %v5515
      %v5517 = vpop.xlane.xlu0 %5516
      %v5518 = vsel %vm1323, %v5499, 0.0
      %5519 = vadd.xlane.f32.xlu0 %v5518
      %v5520 = vpop.xlane.xlu0 %5519
      %v5521 = vsel %vm1323, %v5501, 0.0
      %5522 = vadd.xlane.f32.xlu0 %v5521
      %v5523 = vpop.xlane.xlu0 %5522
      %v5524 = vsel %vm1323, %v5503, 0.0
      %5525 = vadd.xlane.f32.xlu0 %v5524
      %v5526 = vpop.xlane.xlu0 %5525
      %v5527 = vsel %vm1323, %v5505, 0.0
      %5528 = vadd.xlane.f32.xlu0 %v5527
      %v5529 = vpop.xlane.xlu0 %5528
      %v5530 = vsel %vm1323, %v5507, 0.0
      %5531 = vadd.xlane.f32.xlu0 %v5530
      %v5532 = vpop.xlane.xlu0 %5531
      %v5533 = vsel %vm1323, %v5509, 0.0
      %5534 = vadd.xlane.f32.xlu0 %v5533
      %v5535 = vpop.xlane.xlu0 %5534
      %v5536 = vsel %vm1323, %v5511, 0.0
      %5537 = vadd.xlane.f32.xlu0 %v5536
      %v5538 = vpop.xlane.xlu0 %5537
      %v5539 = vrcp.pop %v5514
      %v5540 = vrcp.pop %v5517
      %v5541 = vrcp.pop %v5520
      %v5542 = vrcp.pop %v5523
      %v5543 = vrcp.pop %v5526
      %v5544 = vrcp.pop %v5529
      %v5545 = vrcp.pop %v5532
      %v5546 = vrcp.pop %v5535
      %v5547 = vrcp.pop %v5538
      %v5548 = vmul.f32 %v5495, %v5539
      %v5549 = vmul.f32 %v5497, %v5540
      %v5550 = vmul.f32 %v5499, %v5541
      %v5551 = vmul.f32 %v5501, %v5542
      %v5552 = vmul.f32 %v5503, %v5543
      %v5553 = vmul.f32 %v5505, %v5544
      %v5554 = vmul.f32 %v5507, %v5545
      %v5555 = vmul.f32 %v5509, %v5546
      %v5556 = vmul.f32 %v5511, %v5547
      %v5557 = vpack.c.bf16 %v5549, %v5548
      %v5558 = vpack.c.bf16 %v5551, %v5550
      %v5559 = vpack.c.bf16 %v5553, %v5552
      %v5560 = vpack.c.bf16 %v5555, %v5554
      %v5561 = vpack.c.bf16 %v5556, %v5556
      %v5563 = vsel %vm1323, %v5557, 0
      %v5566 = vsel %vm1323, %v5558, 0
      %v5569 = vsel %vm1323, %v5559, 0
      %v5572 = vsel %vm1323, %v5560, 0
      %v5575 = vsel %vm1323, %v5561, 0
      %v5578 = vsel %vm1443, %v5355, 0
      %5580 = vmatprep.subr.bf16.mxu0 0
      %5581 = vmatpush1.bf16.msra.mxu0 %v5351
      %5582 = vmatprep.subr.bf16.mxu0 0
      %5583 = vmatpush1.bf16.msra.mxu0 %v5352
      %5584 = vmatprep.subr.bf16.mxu0 0
      %5585 = vmatpush1.bf16.msra.mxu0 %v5353
      %5586 = vmatprep.subr.bf16.mxu0 0
      %5587 = vmatpush1.bf16.msra.mxu0 %v5354
      %5588 = vmatprep.subr.bf16.mxu0 0
      %5589 = vmatpush1.bf16.msra.mxu0 %v5578
      %5590 = vmatprep.subr.bf16.mxu0 0
      %5591 = vmatpush1.bf16.msra.mxu0 0
      %5592 = vmatprep.subr.bf16.mxu0 0
      %5593 = vmatpush1.bf16.msra.mxu0 0
      %5594 = vmatprep.subr.bf16.mxu0 0
      %5595 = vmatpush1.bf16.msra.mxu0 0
      %5596 = vmatprep.subr.bf16.mxu0 0
      %5597 = vmatpush1.bf16.msra.mxu0 0
      %5598 = vmatprep.subr.bf16.mxu0 0
      %5599 = vmatpush1.bf16.msra.mxu0 0
      %5600 = vmatprep.subr.bf16.mxu0 0
      %5601 = vmatpush1.bf16.msra.mxu0 0
      %5602 = vmatprep.subr.bf16.mxu0 0
      %5603 = vmatpush1.bf16.msra.mxu0 0
      %5604 = vmatprep.subr.bf16.mxu0 0
      %5605 = vmatpush1.bf16.msra.mxu0 0
      %5606 = vmatprep.subr.bf16.mxu0 0
      %5607 = vmatpush1.bf16.msra.mxu0 0
      %5608 = vmatprep.subr.bf16.mxu0 0
      %5609 = vmatpush1.bf16.msra.mxu0 0
      %5610 = vmatprep.subr.bf16.mxu0 0
      %5611 = vmatpush1.bf16.msra.mxu0 0
      %5612 = vmatprep.mubr.bf16.mxu0 0
      %5613 = vmatmul.mubr.bf16.gmra.mrb[0].mxu0 %v5563
      %v5614 = vpop.f32.mrb[0].mxu0
      %v5615 = vadd.f32 0.0, %v5614
      %v5616 = vpop.f32.mrb[0].mxu0
      %v5617 = vpop.f32.mrb[0].mxu0
      %v5618 = vadd.f32 0.0, %v5617
      %v5619 = vpop.f32.mrb[0].mxu0
      %5620 = vmatprep.mubr.bf16.mxu0 0
      %5621 = vmatmul.mubr.bf16.gmra.mrb[0].mxu0 %v5566
      %v5622 = vpop.f32.mrb[0].mxu0
      %v5623 = vadd.f32 0.0, %v5622
      %v5624 = vpop.f32.mrb[0].mxu0
      %v5625 = vpop.f32.mrb[0].mxu0
      %v5626 = vadd.f32 0.0, %v5625
      %v5627 = vpop.f32.mrb[0].mxu0
      %5628 = vmatprep.mubr.bf16.mxu0 0
      %5629 = vmatmul.mubr.bf16.gmra.mrb[0].mxu0 %v5569
      %v5630 = vpop.f32.mrb[0].mxu0
      %v5631 = vadd.f32 0.0, %v5630
      %v5632 = vpop.f32.mrb[0].mxu0
      %v5633 = vpop.f32.mrb[0].mxu0
      %v5634 = vadd.f32 0.0, %v5633
      %v5635 = vpop.f32.mrb[0].mxu0
      %5636 = vmatprep.mubr.bf16.mxu0 0
      %5637 = vmatmul.mubr.bf16.gmra.mrb[0].mxu0 %v5572
      %v5638 = vpop.f32.mrb[0].mxu0
      %v5639 = vadd.f32 0.0, %v5638
      %v5640 = vpop.f32.mrb[0].mxu0
      %v5641 = vpop.f32.mrb[0].mxu0
      %v5642 = vadd.f32 0.0, %v5641
      %v5643 = vpop.f32.mrb[0].mxu0
      %5644 = vmatprep.mubr.bf16.mxu0 0
      %5645 = vmatmul.mubr.bf16.gmra.mrb[0].mxu0 %v5575
      %v5646 = vpop.f32.mrb[0].mxu0
      %v5647 = vadd.f32 0.0, %v5646
      %v5648 = vpop.f32.mrb[0].mxu0
      %v5649 = vpop.f32.mrb[0].mxu0
      %v5650 = vpop.f32.mrb[0].mxu0
      %5651 = vdwg.mxu0
      %v5652 = vpack.c.bf16 %v5618, %v5615
      %v5653 = vpack.c.bf16 %v5626, %v5623
      %v5654 = vpack.c.bf16 %v5634, %v5631
      %v5655 = vpack.c.bf16 %v5642, %v5639
      %v5656 = vpack.c.bf16 %v5647, %v5647
      %v5657 = vpack.c.bf16 %v4268, %v4263
      %v5658 = vpack.c.bf16 %v4276, %v4271
      %v5659 = vpack.c.bf16 %v4284, %v4279
      %v5660 = vpack.c.bf16 %v4292, %v4287
      %v5661 = vpack.c.bf16 %v4295, %v4295
      %v5662 = vpack.c.bf16 %v4383, %v4378
      %v5663 = vpack.c.bf16 %v4391, %v4386
      %v5664 = vpack.c.bf16 %v4399, %v4394
      %v5665 = vpack.c.bf16 %v4407, %v4402
      %v5666 = vpack.c.bf16 %v4410, %v4410
      %v5667 = vpack.c.bf16 %v4498, %v4493
      %v5668 = vpack.c.bf16 %v4506, %v4501
      %v5669 = vpack.c.bf16 %v4514, %v4509
      %v5670 = vpack.c.bf16 %v4522, %v4517
      %v5671 = vpack.c.bf16 %v4525, %v4525
      %v5673 = vsel %vm1220, %v5657, 0
      %v5676 = vsel %vm1220, %v5658, 0
      %v5679 = vsel %vm1220, %v5659, 0
      %v5682 = vsel %vm1220, %v5660, 0
      %v5685 = vsel %vm1220, %v5661, 0
      %v5688 = vsel %vm1220, %v5662, 0
      %v5691 = vsel %vm1220, %v5663, 0
      %v5694 = vsel %vm1220, %v5664, 0
      %v5697 = vsel %vm1220, %v5665, 0
      %v5700 = vsel %vm1220, %v5666, 0
      %5702 = vmatprep.subr.bf16.mxu0 0
      %5703 = vmatpush1.bf16.xpose.msra.mxu0 %v5688
      %5704 = vmatprep.subr.bf16.mxu0 0
      %5705 = vmatpush1.bf16.xpose.msra.mxu0 %v5691
      %5706 = vmatprep.subr.bf16.mxu0 0
      %5707 = vmatpush1.bf16.xpose.msra.mxu0 %v5694
      %5708 = vmatprep.subr.bf16.mxu0 0
      %5709 = vmatpush1.bf16.xpose.msra.mxu0 %v5697
      %5710 = vmatprep.subr.bf16.mxu0 0
      %5711 = vmatpush1.bf16.xpose.msra.mxu0 %v5700
      %5712 = vmatprep.subr.bf16.mxu0 0
      %5713 = vmatpush1.bf16.xpose.msra.mxu0 0
      %5714 = vmatprep.subr.bf16.mxu0 0
      %5715 = vmatpush1.bf16.xpose.msra.mxu0 0
      %5716 = vmatprep.subr.bf16.mxu0 0
      %5717 = vmatpush1.bf16.xpose.msra.mxu0 0
      %5718 = vmatprep.subr.bf16.mxu0 0
      %5719 = vmatpush1.bf16.xpose.msra.mxu0 0
      %5720 = vmatprep.subr.bf16.mxu0 0
      %5721 = vmatpush1.bf16.xpose.msra.mxu0 0
      %5722 = vmatprep.subr.bf16.mxu0 0
      %5723 = vmatpush1.bf16.xpose.msra.mxu0 0
      %5724 = vmatprep.subr.bf16.mxu0 0
      %5725 = vmatpush1.bf16.xpose.msra.mxu0 0
      %5726 = vmatprep.subr.bf16.mxu0 0
      %5727 = vmatpush1.bf16.xpose.msra.mxu0 0
      %5728 = vmatprep.subr.bf16.mxu0 0
      %5729 = vmatpush1.bf16.xpose.msra.mxu0 0
      %5730 = vmatprep.subr.bf16.mxu0 0
      %5731 = vmatpush1.bf16.xpose.msra.mxu0 0
      %5732 = vmatprep.subr.bf16.mxu0 0
      %5733 = vmatpush1.bf16.xpose.msra.mxu0 0
      %5734 = vmatprep.mubr.bf16.mxu0 0
      %5735 = vmatmul.mubr.bf16.gmra.mrb[0].mxu0 %v5673
      %v5736 = vpop.f32.mrb[0].mxu0
      %v5737 = vadd.f32 %v251, %v5736
      %v5738 = vpop.f32.mrb[0].mxu0
      %v5739 = vpop.f32.mrb[0].mxu0
      %v5740 = vadd.f32 %v251, %v5739
      %v5741 = vpop.f32.mrb[0].mxu0
      %5742 = vmatprep.mubr.bf16.mxu0 0
      %5743 = vmatmul.mubr.bf16.gmra.mrb[0].mxu0 %v5676
      %v5744 = vpop.f32.mrb[0].mxu0
      %v5745 = vadd.f32 %v251, %v5744
      %v5746 = vpop.f32.mrb[0].mxu0
      %v5747 = vpop.f32.mrb[0].mxu0
      %v5748 = vadd.f32 %v251, %v5747
      %v5749 = vpop.f32.mrb[0].mxu0
      %5750 = vmatprep.mubr.bf16.mxu0 0
      %5751 = vmatmul.mubr.bf16.gmra.mrb[0].mxu0 %v5679
      %v5752 = vpop.f32.mrb[0].mxu0
      %v5753 = vadd.f32 %v251, %v5752
      %v5754 = vpop.f32.mrb[0].mxu0
      %v5755 = vpop.f32.mrb[0].mxu0
      %v5756 = vadd.f32 %v251, %v5755
      %v5757 = vpop.f32.mrb[0].mxu0
      %5758 = vmatprep.mubr.bf16.mxu0 0
      %5759 = vmatmul.mubr.bf16.gmra.mrb[0].mxu0 %v5682
      %v5760 = vpop.f32.mrb[0].mxu0
      %v5761 = vadd.f32 %v251, %v5760
      %v5762 = vpop.f32.mrb[0].mxu0
      %v5763 = vpop.f32.mrb[0].mxu0
      %v5764 = vadd.f32 %v251, %v5763
      %v5765 = vpop.f32.mrb[0].mxu0
      %5766 = vmatprep.mubr.bf16.mxu0 0
      %5767 = vmatmul.mubr.bf16.gmra.mrb[0].mxu0 %v5685
      %v5768 = vpop.f32.mrb[0].mxu0
      %v5769 = vadd.f32 %v251, %v5768
      %v5770 = vpop.f32.mrb[0].mxu0
      %v5771 = vpop.f32.mrb[0].mxu0
      %v5772 = vpop.f32.mrb[0].mxu0
      %5773 = vdwg.mxu0
      %v5774 = vsel %vm1323, %v5737, -inf
      %5775 = vmax.xlane.f32.xlu0 %v5774
      %v5776 = vpop.xlane.xlu0 %5775
      %v5777 = vsel %vm1323, %v5740, -inf
      %5778 = vmax.xlane.f32.xlu0 %v5777
      %v5779 = vpop.xlane.xlu0 %5778
      %v5780 = vsel %vm1323, %v5745, -inf
      %5781 = vmax.xlane.f32.xlu0 %v5780
      %v5782 = vpop.xlane.xlu0 %5781
      %v5783 = vsel %vm1323, %v5748, -inf
      %5784 = vmax.xlane.f32.xlu0 %v5783
      %v5785 = vpop.xlane.xlu0 %5784
      %v5786 = vsel %vm1323, %v5753, -inf
      %5787 = vmax.xlane.f32.xlu0 %v5786
      %v5788 = vpop.xlane.xlu0 %5787
      %v5789 = vsel %vm1323, %v5756, -inf
      %5790 = vmax.xlane.f32.xlu0 %v5789
      %v5791 = vpop.xlane.xlu0 %5790
      %v5792 = vsel %vm1323, %v5761, -inf
      %5793 = vmax.xlane.f32.xlu0 %v5792
      %v5794 = vpop.xlane.xlu0 %5793
      %v5795 = vsel %vm1323, %v5764, -inf
      %5796 = vmax.xlane.f32.xlu0 %v5795
      %v5797 = vpop.xlane.xlu0 %5796
      %v5798 = vsel %vm1323, %v5769, -inf
      %5799 = vmax.xlane.f32.xlu0 %v5798
      %v5800 = vpop.xlane.xlu0 %5799
      %v5801 = vsub.f32 %v5737, %v5776
      %v5802 = vsub.f32 %v5740, %v5779
      %v5803 = vsub.f32 %v5745, %v5782
      %v5804 = vsub.f32 %v5748, %v5785
      %v5805 = vsub.f32 %v5753, %v5788
      %v5806 = vsub.f32 %v5756, %v5791
      %v5807 = vsub.f32 %v5761, %v5794
      %v5808 = vsub.f32 %v5764, %v5797
      %v5809 = vsub.f32 %v5769, %v5800
      %v5810 = vmul.f32 %v5801, 1.442695
      %v5811 = vpow.pop %v5810
      %v5812 = vmul.f32 %v5802, 1.442695
      %v5813 = vpow.pop %v5812
      %v5814 = vmul.f32 %v5803, 1.442695
      %v5815 = vpow.pop %v5814
      %v5816 = vmul.f32 %v5804, 1.442695
      %v5817 = vpow.pop %v5816
      %v5818 = vmul.f32 %v5805, 1.442695
      %v5819 = vpow.pop %v5818
      %v5820 = vmul.f32 %v5806, 1.442695
      %v5821 = vpow.pop %v5820
      %v5822 = vmul.f32 %v5807, 1.442695
      %v5823 = vpow.pop %v5822
      %v5824 = vmul.f32 %v5808, 1.442695
      %v5825 = vpow.pop %v5824
      %v5826 = vmul.f32 %v5809, 1.442695
      %v5827 = vpow.pop %v5826
      %v5828 = vsel %vm1323, %v5811, 0.0
      %5829 = vadd.xlane.f32.xlu0 %v5828
      %v5830 = vpop.xlane.xlu0 %5829
      %v5831 = vsel %vm1323, %v5813, 0.0
      %5832 = vadd.xlane.f32.xlu0 %v5831
      %v5833 = vpop.xlane.xlu0 %5832
      %v5834 = vsel %vm1323, %v5815, 0.0
      %5835 = vadd.xlane.f32.xlu0 %v5834
      %v5836 = vpop.xlane.xlu0 %5835
      %v5837 = vsel %vm1323, %v5817, 0.0
      %5838 = vadd.xlane.f32.xlu0 %v5837
      %v5839 = vpop.xlane.xlu0 %5838
      %v5840 = vsel %vm1323, %v5819, 0.0
      %5841 = vadd.xlane.f32.xlu0 %v5840
      %v5842 = vpop.xlane.xlu0 %5841
      %v5843 = vsel %vm1323, %v5821, 0.0
      %5844 = vadd.xlane.f32.xlu0 %v5843
      %v5845 = vpop.xlane.xlu0 %5844
      %v5846 = vsel %vm1323, %v5823, 0.0
      %5847 = vadd.xlane.f32.xlu0 %v5846
      %v5848 = vpop.xlane.xlu0 %5847
      %v5849 = vsel %vm1323, %v5825, 0.0
      %5850 = vadd.xlane.f32.xlu0 %v5849
      %v5851 = vpop.xlane.xlu0 %5850
      %v5852 = vsel %vm1323, %v5827, 0.0
      %5853 = vadd.xlane.f32.xlu0 %v5852
      %v5854 = vpop.xlane.xlu0 %5853
      %v5855 = vrcp.pop %v5830
      %v5856 = vrcp.pop %v5833
      %v5857 = vrcp.pop %v5836
      %v5858 = vrcp.pop %v5839
      %v5859 = vrcp.pop %v5842
      %v5860 = vrcp.pop %v5845
      %v5861 = vrcp.pop %v5848
      %v5862 = vrcp.pop %v5851
      %v5863 = vrcp.pop %v5854
      %v5864 = vmul.f32 %v5811, %v5855
      %v5865 = vmul.f32 %v5813, %v5856
      %v5866 = vmul.f32 %v5815, %v5857
      %v5867 = vmul.f32 %v5817, %v5858
      %v5868 = vmul.f32 %v5819, %v5859
      %v5869 = vmul.f32 %v5821, %v5860
      %v5870 = vmul.f32 %v5823, %v5861
      %v5871 = vmul.f32 %v5825, %v5862
      %v5872 = vmul.f32 %v5827, %v5863
      %v5873 = vpack.c.bf16 %v5865, %v5864
      %v5874 = vpack.c.bf16 %v5867, %v5866
      %v5875 = vpack.c.bf16 %v5869, %v5868
      %v5876 = vpack.c.bf16 %v5871, %v5870
      %v5877 = vpack.c.bf16 %v5872, %v5872
      %v5879 = vsel %vm1323, %v5873, 0
      %v5882 = vsel %vm1323, %v5874, 0
      %v5885 = vsel %vm1323, %v5875, 0
      %v5888 = vsel %vm1323, %v5876, 0
      %v5891 = vsel %vm1323, %v5877, 0
      %v5894 = vsel %vm1443, %v5671, 0
      %5896 = vmatprep.subr.bf16.mxu0 0
      %5897 = vmatpush1.bf16.msra.mxu0 %v5667
      %5898 = vmatprep.subr.bf16.mxu0 0
      %5899 = vmatpush1.bf16.msra.mxu0 %v5668
      %5900 = vmatprep.subr.bf16.mxu0 0
      %5901 = vmatpush1.bf16.msra.mxu0 %v5669
      %5902 = vmatprep.subr.bf16.mxu0 0
      %5903 = vmatpush1.bf16.msra.mxu0 %v5670
      %5904 = vmatprep.subr.bf16.mxu0 0
      %5905 = vmatpush1.bf16.msra.mxu0 %v5894
      %5906 = vmatprep.subr.bf16.mxu0 0
      %5907 = vmatpush1.bf16.msra.mxu0 0
      %5908 = vmatprep.subr.bf16.mxu0 0
      %5909 = vmatpush1.bf16.msra.mxu0 0
      %5910 = vmatprep.subr.bf16.mxu0 0
      %5911 = vmatpush1.bf16.msra.mxu0 0
      %5912 = vmatprep.subr.bf16.mxu0 0
      %5913 = vmatpush1.bf16.msra.mxu0 0
      %5914 = vmatprep.subr.bf16.mxu0 0
      %5915 = vmatpush1.bf16.msra.mxu0 0
      %5916 = vmatprep.subr.bf16.mxu0 0
      %5917 = vmatpush1.bf16.msra.mxu0 0
      %5918 = vmatprep.subr.bf16.mxu0 0
      %5919 = vmatpush1.bf16.msra.mxu0 0
      %5920 = vmatprep.subr.bf16.mxu0 0
      %5921 = vmatpush1.bf16.msra.mxu0 0
      %5922 = vmatprep.subr.bf16.mxu0 0
      %5923 = vmatpush1.bf16.msra.mxu0 0
      %5924 = vmatprep.subr.bf16.mxu0 0
      %5925 = vmatpush1.bf16.msra.mxu0 0
      %5926 = vmatprep.subr.bf16.mxu0 0
      %5927 = vmatpush1.bf16.msra.mxu0 0
      %5928 = vmatprep.mubr.bf16.mxu0 0
      %5929 = vmatmul.mubr.bf16.gmra.mrb[0].mxu0 %v5879
      %v5930 = vpop.f32.mrb[0].mxu0
      %v5931 = vadd.f32 0.0, %v5930
      %v5932 = vpop.f32.mrb[0].mxu0
      %v5933 = vpop.f32.mrb[0].mxu0
      %v5934 = vadd.f32 0.0, %v5933
      %v5935 = vpop.f32.mrb[0].mxu0
      %5936 = vmatprep.mubr.bf16.mxu0 0
      %5937 = vmatmul.mubr.bf16.gmra.mrb[0].mxu0 %v5882
      %v5938 = vpop.f32.mrb[0].mxu0
      %v5939 = vadd.f32 0.0, %v5938
      %v5940 = vpop.f32.mrb[0].mxu0
      %v5941 = vpop.f32.mrb[0].mxu0
      %v5942 = vadd.f32 0.0, %v5941
      %v5943 = vpop.f32.mrb[0].mxu0
      %5944 = vmatprep.mubr.bf16.mxu0 0
      %5945 = vmatmul.mubr.bf16.gmra.mrb[0].mxu0 %v5885
      %v5946 = vpop.f32.mrb[0].mxu0
      %v5947 = vadd.f32 0.0, %v5946
      %v5948 = vpop.f32.mrb[0].mxu0
      %v5949 = vpop.f32.mrb[0].mxu0
      %v5950 = vadd.f32 0.0, %v5949
      %v5951 = vpop.f32.mrb[0].mxu0
      %5952 = vmatprep.mubr.bf16.mxu0 0
      %5953 = vmatmul.mubr.bf16.gmra.mrb[0].mxu0 %v5888
      %v5954 = vpop.f32.mrb[0].mxu0
      %v5955 = vadd.f32 0.0, %v5954
      %v5956 = vpop.f32.mrb[0].mxu0
      %v5957 = vpop.f32.mrb[0].mxu0
      %v5958 = vadd.f32 0.0, %v5957
      %v5959 = vpop.f32.mrb[0].mxu0
      %5960 = vmatprep.mubr.bf16.mxu0 0
      %5961 = vmatmul.mubr.bf16.gmra.mrb[0].mxu0 %v5891
      %v5962 = vpop.f32.mrb[0].mxu0
      %v5963 = vadd.f32 0.0, %v5962
      %v5964 = vpop.f32.mrb[0].mxu0
      %v5965 = vpop.f32.mrb[0].mxu0
      %v5966 = vpop.f32.mrb[0].mxu0
      %5967 = vdwg.mxu0
      %v5968 = vpack.c.bf16 %v5934, %v5931
      %v5969 = vpack.c.bf16 %v5942, %v5939
      %v5970 = vpack.c.bf16 %v5950, %v5947
      %v5971 = vpack.c.bf16 %v5958, %v5955
      %v5972 = vpack.c.bf16 %v5963, %v5963
      %v5974 = vsel %vm1220, %v5968, 0
      %v5977 = vsel %vm1220, %v5969, 0
      %v5980 = vsel %vm1220, %v5970, 0
      %v5983 = vsel %vm1220, %v5971, 0
      %v5986 = vsel %vm1220, %v5972, 0
      %5988 = vmatprep.subr.bf16.mxu0 0
      %5989 = vmatpush1.bf16.msra.mxu0 %v5177
      %5990 = vmatprep.subr.bf16.mxu0 0
      %5991 = vmatpush1.bf16.msra.mxu0 0
      %5992 = vmatprep.subr.bf16.mxu0 0
      %5993 = vmatpush1.bf16.msra.mxu0 0
      %5994 = vmatprep.subr.bf16.mxu0 0
      %5995 = vmatpush1.bf16.msra.mxu0 0
      %5996 = vmatprep.subr.bf16.mxu0 0
      %5997 = vmatpush1.bf16.msra.mxu0 0
      %5998 = vmatprep.subr.bf16.mxu0 0
      %5999 = vmatpush1.bf16.msra.mxu0 0
      %6000 = vmatprep.subr.bf16.mxu0 0
      %6001 = vmatpush1.bf16.msra.mxu0 0
      %6002 = vmatprep.subr.bf16.mxu0 0
      %6003 = vmatpush1.bf16.msra.mxu0 0
      %6004 = vmatprep.subr.bf16.mxu0 0
      %6005 = vmatpush1.bf16.msra.mxu0 0
      %6006 = vmatprep.subr.bf16.mxu0 0
      %6007 = vmatpush1.bf16.msra.mxu0 0
      %6008 = vmatprep.subr.bf16.mxu0 0
      %6009 = vmatpush1.bf16.msra.mxu0 0
      %6010 = vmatprep.subr.bf16.mxu0 0
      %6011 = vmatpush1.bf16.msra.mxu0 0
      %6012 = vmatprep.subr.bf16.mxu0 0
      %6013 = vmatpush1.bf16.msra.mxu0 0
      %6014 = vmatprep.subr.bf16.mxu0 0
      %6015 = vmatpush1.bf16.msra.mxu0 0
      %6016 = vmatprep.subr.bf16.mxu0 0
      %6017 = vmatpush1.bf16.msra.mxu0 0
      %6018 = vmatprep.subr.bf16.mxu0 0
      %6019 = vmatpush1.bf16.msra.mxu0 0
      %6020 = vmatprep.mubr.bf16.mxu0 0
      %6021 = vmatmul.mubr.bf16.gmra.mrb[0].mxu0 %v5974
      %v6022 = vpop.f32.mrb[0].mxu0
      %v6023 = vadd.f32 0.0, %v6022
      %v6024 = vpop.f32.mrb[0].mxu0
      %v6025 = vpop.f32.mrb[0].mxu0
      %v6026 = vadd.f32 0.0, %v6025
      %v6027 = vpop.f32.mrb[0].mxu0
      %6028 = vmatprep.mubr.bf16.mxu0 0
      %6029 = vmatmul.mubr.bf16.gmra.mrb[0].mxu0 %v5977
      %v6030 = vpop.f32.mrb[0].mxu0
      %v6031 = vadd.f32 0.0, %v6030
      %v6032 = vpop.f32.mrb[0].mxu0
      %v6033 = vpop.f32.mrb[0].mxu0
      %v6034 = vadd.f32 0.0, %v6033
      %v6035 = vpop.f32.mrb[0].mxu0
      %6036 = vmatprep.mubr.bf16.mxu0 0
      %6037 = vmatmul.mubr.bf16.gmra.mrb[0].mxu0 %v5980
      %v6038 = vpop.f32.mrb[0].mxu0
      %v6039 = vadd.f32 0.0, %v6038
      %v6040 = vpop.f32.mrb[0].mxu0
      %v6041 = vpop.f32.mrb[0].mxu0
      %v6042 = vadd.f32 0.0, %v6041
      %v6043 = vpop.f32.mrb[0].mxu0
      %6044 = vmatprep.mubr.bf16.mxu0 0
      %6045 = vmatmul.mubr.bf16.gmra.mrb[0].mxu0 %v5983
      %v6046 = vpop.f32.mrb[0].mxu0
      %v6047 = vadd.f32 0.0, %v6046
      %v6048 = vpop.f32.mrb[0].mxu0
      %v6049 = vpop.f32.mrb[0].mxu0
      %v6050 = vadd.f32 0.0, %v6049
      %v6051 = vpop.f32.mrb[0].mxu0
      %6052 = vmatprep.mubr.bf16.mxu0 0
      %6053 = vmatmul.mubr.bf16.gmra.mrb[0].mxu0 %v5986
      %v6054 = vpop.f32.mrb[0].mxu0
      %v6055 = vadd.f32 0.0, %v6054
      %v6056 = vpop.f32.mrb[0].mxu0
      %v6057 = vpop.f32.mrb[0].mxu0
      %v6058 = vpop.f32.mrb[0].mxu0
      %6059 = vdwg.mxu0
      %v6061 = vsel %vm1220, %v5652, 0
      %v6064 = vsel %vm1220, %v5653, 0
      %v6067 = vsel %vm1220, %v5654, 0
      %v6070 = vsel %vm1220, %v5655, 0
      %v6073 = vsel %vm1220, %v5656, 0
      %6075 = vmatprep.subr.bf16.mxu0 0
      %6076 = vmatpush1.bf16.msra.mxu0 %v5267
      %6077 = vmatprep.subr.bf16.mxu0 0
      %6078 = vmatpush1.bf16.msra.mxu0 0
      %6079 = vmatprep.subr.bf16.mxu0 0
      %6080 = vmatpush1.bf16.msra.mxu0 0
      %6081 = vmatprep.subr.bf16.mxu0 0
      %6082 = vmatpush1.bf16.msra.mxu0 0
      %6083 = vmatprep.subr.bf16.mxu0 0
      %6084 = vmatpush1.bf16.msra.mxu0 0
      %6085 = vmatprep.subr.bf16.mxu0 0
      %6086 = vmatpush1.bf16.msra.mxu0 0
      %6087 = vmatprep.subr.bf16.mxu0 0
      %6088 = vmatpush1.bf16.msra.mxu0 0
      %6089 = vmatprep.subr.bf16.mxu0 0
      %6090 = vmatpush1.bf16.msra.mxu0 0
      %6091 = vmatprep.subr.bf16.mxu0 0
      %6092 = vmatpush1.bf16.msra.mxu0 0
      %6093 = vmatprep.subr.bf16.mxu0 0
      %6094 = vmatpush1.bf16.msra.mxu0 0
      %6095 = vmatprep.subr.bf16.mxu0 0
      %6096 = vmatpush1.bf16.msra.mxu0 0
      %6097 = vmatprep.subr.bf16.mxu0 0
      %6098 = vmatpush1.bf16.msra.mxu0 0
      %6099 = vmatprep.subr.bf16.mxu0 0
      %6100 = vmatpush1.bf16.msra.mxu0 0
      %6101 = vmatprep.subr.bf16.mxu0 0
      %6102 = vmatpush1.bf16.msra.mxu0 0
      %6103 = vmatprep.subr.bf16.mxu0 0
      %6104 = vmatpush1.bf16.msra.mxu0 0
      %6105 = vmatprep.subr.bf16.mxu0 0
      %6106 = vmatpush1.bf16.msra.mxu0 0
      %6107 = vmatprep.mubr.bf16.mxu0 0
      %6108 = vmatmul.mubr.bf16.gmra.mrb[0].mxu0 %v6061
      %v6109 = vpop.f32.mrb[0].mxu0
      %v6110 = vadd.f32 %v6023, %v6109
      %v6111 = vpop.f32.mrb[0].mxu0
      %v6112 = vpop.f32.mrb[0].mxu0
      %v6113 = vadd.f32 %v6026, %v6112
      %v6114 = vpop.f32.mrb[0].mxu0
      %6115 = vmatprep.mubr.bf16.mxu0 0
      %6116 = vmatmul.mubr.bf16.gmra.mrb[0].mxu0 %v6064
      %v6117 = vpop.f32.mrb[0].mxu0
      %v6118 = vadd.f32 %v6031, %v6117
      %v6119 = vpop.f32.mrb[0].mxu0
      %v6120 = vpop.f32.mrb[0].mxu0
      %v6121 = vadd.f32 %v6034, %v6120
      %v6122 = vpop.f32.mrb[0].mxu0
      %6123 = vmatprep.mubr.bf16.mxu0 0
      %6124 = vmatmul.mubr.bf16.gmra.mrb[0].mxu0 %v6067
      %v6125 = vpop.f32.mrb[0].mxu0
      %v6126 = vadd.f32 %v6039, %v6125
      %v6127 = vpop.f32.mrb[0].mxu0
      %v6128 = vpop.f32.mrb[0].mxu0
      %v6129 = vadd.f32 %v6042, %v6128
      %v6130 = vpop.f32.mrb[0].mxu0
      %6131 = vmatprep.mubr.bf16.mxu0 0
      %6132 = vmatmul.mubr.bf16.gmra.mrb[0].mxu0 %v6070
      %v6133 = vpop.f32.mrb[0].mxu0
      %v6134 = vadd.f32 %v6047, %v6133
      %v6135 = vpop.f32.mrb[0].mxu0
      %v6136 = vpop.f32.mrb[0].mxu0
      %v6137 = vadd.f32 %v6050, %v6136
      %v6138 = vpop.f32.mrb[0].mxu0
      %6139 = vmatprep.mubr.bf16.mxu0 0
      %6140 = vmatmul.mubr.bf16.gmra.mrb[0].mxu0 %v6073
      %v6141 = vpop.f32.mrb[0].mxu0
      %v6142 = vadd.f32 %v6055, %v6141
      %v6143 = vpop.f32.mrb[0].mxu0
      %v6144 = vpop.f32.mrb[0].mxu0
      %v6145 = vpop.f32.mrb[0].mxu0
      %6146 = vdwg.mxu0
      %v6147 = vlaneseq
      %v6148 = vshrl.u32 %v6147, 7
      %v6149 = vsub.s32 0, %v6148
      %v6150 = vrot.slane %v4528, %v6149
      %v6151 = vadd.f32 %v5304, %v6150
      %v6152 = vadd.f32 %v5307, %v6150
      %v6153 = vadd.f32 %v5312, %v6150
      %v6154 = vadd.f32 %v5315, %v6150
      %v6155 = vadd.f32 %v5320, %v6150
      %v6156 = vadd.f32 %v5323, %v6150
      %v6157 = vadd.f32 %v5328, %v6150
      %v6158 = vadd.f32 %v5331, %v6150
      %v6159 = vadd.f32 %v5336, %v6150
      %v6160 = vadd.f32 %v6110, %v6150
      %v6161 = vadd.f32 %v6113, %v6150
      %v6162 = vadd.f32 %v6118, %v6150
      %v6163 = vadd.f32 %v6121, %v6150
      %v6164 = vadd.f32 %v6126, %v6150
      %v6165 = vadd.f32 %v6129, %v6150
      %v6166 = vadd.f32 %v6134, %v6150
      %v6167 = vadd.f32 %v6137, %v6150
      %v6168 = vadd.f32 %v6142, %v6150
      %v6169 = vld [vmem:[%s3797 + $0x9] sm:$0x1]
      %v6170 = vld [vmem:[%s3797 + $0xa] sm:$0x1]
      %v6171 = vadd.f32 %v3762, %v6151
      %v6172 = vadd.f32 %v3763, %v6152
      %v6173 = vadd.f32 %v3764, %v6153
      %v6174 = vadd.f32 %v3765, %v6154
      %v6175 = vadd.f32 %v3766, %v6155
      %v6176 = vadd.f32 %v3767, %v6156
      %v6177 = vadd.f32 %v3768, %v6157
      %v6178 = vadd.f32 %v3769, %v6158
      %v6179 = vadd.f32 %v3770, %v6159
      %v6180 = vadd.f32 %v3771, %v6160
      %v6181 = vadd.f32 %v3772, %v6161
      %v6182 = vadd.f32 %v3773, %v6162
      %v6183 = vadd.f32 %v3774, %v6163
      %v6184 = vadd.f32 %v3775, %v6164
      %v6185 = vadd.f32 %v3776, %v6165
      %v6186 = vadd.f32 %v3777, %v6166
      %v6187 = vadd.f32 %v3778, %v6167
      %v6188 = vadd.f32 %v3779, %v6168
      %v6189 = vsel %vm274, %v6171, 0.0
      %6190 = vadd.xlane.f32.xlu0 %v6189
      %v6191 = vpop.xlane.xlu0 %6190
      %v6192 = vsel %vm274, %v6172, 0.0
      %6193 = vadd.xlane.f32.xlu0 %v6192
      %v6194 = vpop.xlane.xlu0 %6193
      %v6195 = vsel %vm274, %v6173, 0.0
      %6196 = vadd.xlane.f32.xlu0 %v6195
      %v6197 = vpop.xlane.xlu0 %6196
      %v6198 = vsel %vm274, %v6174, 0.0
      %6199 = vadd.xlane.f32.xlu0 %v6198
      %v6200 = vpop.xlane.xlu0 %6199
      %v6201 = vsel %vm274, %v6175, 0.0
      %6202 = vadd.xlane.f32.xlu0 %v6201
      %v6203 = vpop.xlane.xlu0 %6202
      %v6204 = vsel %vm274, %v6176, 0.0
      %6205 = vadd.xlane.f32.xlu0 %v6204
      %v6206 = vpop.xlane.xlu0 %6205
      %v6207 = vsel %vm274, %v6177, 0.0
      %6208 = vadd.xlane.f32.xlu0 %v6207
      %v6209 = vpop.xlane.xlu0 %6208
      %v6210 = vsel %vm274, %v6178, 0.0
      %6211 = vadd.xlane.f32.xlu0 %v6210
      %v6212 = vpop.xlane.xlu0 %6211
      %v6213 = vsel %vm274, %v6179, 0.0
      %6214 = vadd.xlane.f32.xlu0 %v6213
      %v6215 = vpop.xlane.xlu0 %6214
      %v6216 = vsel %vm274, %v6180, 0.0
      %6217 = vadd.xlane.f32.xlu0 %v6216
      %v6218 = vpop.xlane.xlu0 %6217
      %v6219 = vsel %vm274, %v6181, 0.0
      %6220 = vadd.xlane.f32.xlu0 %v6219
      %v6221 = vpop.xlane.xlu0 %6220
      %v6222 = vsel %vm274, %v6182, 0.0
      %6223 = vadd.xlane.f32.xlu0 %v6222
      %v6224 = vpop.xlane.xlu0 %6223
      %v6225 = vsel %vm274, %v6183, 0.0
      %6226 = vadd.xlane.f32.xlu0 %v6225
      %v6227 = vpop.xlane.xlu0 %6226
      %v6228 = vsel %vm274, %v6184, 0.0
      %6229 = vadd.xlane.f32.xlu0 %v6228
      %v6230 = vpop.xlane.xlu0 %6229
      %v6231 = vsel %vm274, %v6185, 0.0
      %6232 = vadd.xlane.f32.xlu0 %v6231
      %v6233 = vpop.xlane.xlu0 %6232
      %v6234 = vsel %vm274, %v6186, 0.0
      %6235 = vadd.xlane.f32.xlu0 %v6234
      %v6236 = vpop.xlane.xlu0 %6235
      %v6237 = vsel %vm274, %v6187, 0.0
      %6238 = vadd.xlane.f32.xlu0 %v6237
      %v6239 = vpop.xlane.xlu0 %6238
      %v6240 = vsel %vm274, %v6188, 0.0
      %6241 = vadd.xlane.f32.xlu0 %v6240
      %v6242 = vpop.xlane.xlu0 %6241
      %v6243 = vmul.f32 %v6191, %v2922
      %v6244 = vmul.f32 %v6194, %v2922
      %v6245 = vmul.f32 %v6197, %v2922
      %v6246 = vmul.f32 %v6200, %v2922
      %v6247 = vmul.f32 %v6203, %v2922
      %v6248 = vmul.f32 %v6206, %v2922
      %v6249 = vmul.f32 %v6209, %v2922
      %v6250 = vmul.f32 %v6212, %v2922
      %v6251 = vmul.f32 %v6215, %v2922
      %v6252 = vmul.f32 %v6218, %v2922
      %v6253 = vmul.f32 %v6221, %v2922
      %v6254 = vmul.f32 %v6224, %v2922
      %v6255 = vmul.f32 %v6227, %v2922
      %v6256 = vmul.f32 %v6230, %v2922
      %v6257 = vmul.f32 %v6233, %v2922
      %v6258 = vmul.f32 %v6236, %v2922
      %v6259 = vmul.f32 %v6239, %v2922
      %v6260 = vmul.f32 %v6242, %v2922
      %v6261 = vsub.f32 %v6171, %v6243
      %v6262 = vsub.f32 %v6172, %v6244
      %v6263 = vsub.f32 %v6173, %v6245
      %v6264 = vsub.f32 %v6174, %v6246
      %v6265 = vsub.f32 %v6175, %v6247
      %v6266 = vsub.f32 %v6176, %v6248
      %v6267 = vsub.f32 %v6177, %v6249
      %v6268 = vsub.f32 %v6178, %v6250
      %v6269 = vsub.f32 %v6179, %v6251
      %v6270 = vsub.f32 %v6180, %v6252
      %v6271 = vsub.f32 %v6181, %v6253
      %v6272 = vsub.f32 %v6182, %v6254
      %v6273 = vsub.f32 %v6183, %v6255
      %v6274 = vsub.f32 %v6184, %v6256
      %v6275 = vsub.f32 %v6185, %v6257
      %v6276 = vsub.f32 %v6186, %v6258
      %v6277 = vsub.f32 %v6187, %v6259
      %v6278 = vsub.f32 %v6188, %v6260
      %v6279 = vmul.f32 %v6261, %v6261
      %v6280 = vmul.f32 %v6262, %v6262
      %v6281 = vmul.f32 %v6263, %v6263
      %v6282 = vmul.f32 %v6264, %v6264
      %v6283 = vmul.f32 %v6265, %v6265
      %v6284 = vmul.f32 %v6266, %v6266
      %v6285 = vmul.f32 %v6267, %v6267
      %v6286 = vmul.f32 %v6268, %v6268
      %v6287 = vmul.f32 %v6269, %v6269
      %v6288 = vmul.f32 %v6270, %v6270
      %v6289 = vmul.f32 %v6271, %v6271
      %v6290 = vmul.f32 %v6272, %v6272
      %v6291 = vmul.f32 %v6273, %v6273
      %v6292 = vmul.f32 %v6274, %v6274
      %v6293 = vmul.f32 %v6275, %v6275
      %v6294 = vmul.f32 %v6276, %v6276
      %v6295 = vmul.f32 %v6277, %v6277
      %v6296 = vmul.f32 %v6278, %v6278
      %v6297 = vsel %vm274, %v6279, 0.0
      %6298 = vadd.xlane.f32.xlu0 %v6297
      %v6299 = vpop.xlane.xlu0 %6298
      %v6300 = vsel %vm274, %v6280, 0.0
      %6301 = vadd.xlane.f32.xlu0 %v6300
      %v6302 = vpop.xlane.xlu0 %6301
      %v6303 = vsel %vm274, %v6281, 0.0
      %6304 = vadd.xlane.f32.xlu0 %v6303
      %v6305 = vpop.xlane.xlu0 %6304
      %v6306 = vsel %vm274, %v6282, 0.0
      %6307 = vadd.xlane.f32.xlu0 %v6306
      %v6308 = vpop.xlane.xlu0 %6307
      %v6309 = vsel %vm274, %v6283, 0.0
      %6310 = vadd.xlane.f32.xlu0 %v6309
      %v6311 = vpop.xlane.xlu0 %6310
      %v6312 = vsel %vm274, %v6284, 0.0
      %6313 = vadd.xlane.f32.xlu0 %v6312
      %v6314 = vpop.xlane.xlu0 %6313
      %v6315 = vsel %vm274, %v6285, 0.0
      %6316 = vadd.xlane.f32.xlu0 %v6315
      %v6317 = vpop.xlane.xlu0 %6316
      %v6318 = vsel %vm274, %v6286, 0.0
      %6319 = vadd.xlane.f32.xlu0 %v6318
      %v6320 = vpop.xlane.xlu0 %6319
      %v6321 = vsel %vm274, %v6287, 0.0
      %6322 = vadd.xlane.f32.xlu0 %v6321
      %v6323 = vpop.xlane.xlu0 %6322
      %v6324 = vsel %vm274, %v6288, 0.0
      %6325 = vadd.xlane.f32.xlu0 %v6324
      %v6326 = vpop.xlane.xlu0 %6325
      %v6327 = vsel %vm274, %v6289, 0.0
      %6328 = vadd.xlane.f32.xlu0 %v6327
      %v6329 = vpop.xlane.xlu0 %6328
      %v6330 = vsel %vm274, %v6290, 0.0
      %6331 = vadd.xlane.f32.xlu0 %v6330
      %v6332 = vpop.xlane.xlu0 %6331
      %v6333 = vsel %vm274, %v6291, 0.0
      %6334 = vadd.xlane.f32.xlu0 %v6333
      %v6335 = vpop.xlane.xlu0 %6334
      %v6336 = vsel %vm274, %v6292, 0.0
      %6337 = vadd.xlane.f32.xlu0 %v6336
      %v6338 = vpop.xlane.xlu0 %6337
      %v6339 = vsel %vm274, %v6293, 0.0
      %6340 = vadd.xlane.f32.xlu0 %v6339
      %v6341 = vpop.xlane.xlu0 %6340
      %v6342 = vsel %vm274, %v6294, 0.0
      %6343 = vadd.xlane.f32.xlu0 %v6342
      %v6344 = vpop.xlane.xlu0 %6343
      %v6345 = vsel %vm274, %v6295, 0.0
      %6346 = vadd.xlane.f32.xlu0 %v6345
      %v6347 = vpop.xlane.xlu0 %6346
      %v6348 = vsel %vm274, %v6296, 0.0
      %6349 = vadd.xlane.f32.xlu0 %v6348
      %v6350 = vpop.xlane.xlu0 %6349
      %v6351 = vmul.f32 %v6299, %v2922
      %v6352 = vmul.f32 %v6302, %v2922
      %v6353 = vmul.f32 %v6305, %v2922
      %v6354 = vmul.f32 %v6308, %v2922
      %v6355 = vmul.f32 %v6311, %v2922
      %v6356 = vmul.f32 %v6314, %v2922
      %v6357 = vmul.f32 %v6317, %v2922
      %v6358 = vmul.f32 %v6320, %v2922
      %v6359 = vmul.f32 %v6323, %v2922
      %v6360 = vmul.f32 %v6326, %v2922
      %v6361 = vmul.f32 %v6329, %v2922
      %v6362 = vmul.f32 %v6332, %v2922
      %v6363 = vmul.f32 %v6335, %v2922
      %v6364 = vmul.f32 %v6338, %v2922
      %v6365 = vmul.f32 %v6341, %v2922
      %v6366 = vmul.f32 %v6344, %v2922
      %v6367 = vmul.f32 %v6347, %v2922
      %v6368 = vmul.f32 %v6350, %v2922
      %v6369 = vadd.f32 %v6351, 1e-05
      %v6370 = vadd.f32 %v6352, 1e-05
      %v6371 = vadd.f32 %v6353, 1e-05
      %v6372 = vadd.f32 %v6354, 1e-05
      %v6373 = vadd.f32 %v6355, 1e-05
      %v6374 = vadd.f32 %v6356, 1e-05
      %v6375 = vadd.f32 %v6357, 1e-05
      %v6376 = vadd.f32 %v6358, 1e-05
      %v6377 = vadd.f32 %v6359, 1e-05
      %v6378 = vadd.f32 %v6360, 1e-05
      %v6379 = vadd.f32 %v6361, 1e-05
      %v6380 = vadd.f32 %v6362, 1e-05
      %v6381 = vadd.f32 %v6363, 1e-05
      %v6382 = vadd.f32 %v6364, 1e-05
      %v6383 = vadd.f32 %v6365, 1e-05
      %v6384 = vadd.f32 %v6366, 1e-05
      %v6385 = vadd.f32 %v6367, 1e-05
      %v6386 = vadd.f32 %v6368, 1e-05
      %v6387 = vrsqrt.pop %v6369
      %v6388 = vrsqrt.pop %v6370
      %v6389 = vrsqrt.pop %v6371
      %v6390 = vrsqrt.pop %v6372
      %v6391 = vrsqrt.pop %v6373
      %v6392 = vrsqrt.pop %v6374
      %v6393 = vrsqrt.pop %v6375
      %v6394 = vrsqrt.pop %v6376
      %v6395 = vrsqrt.pop %v6377
      %v6396 = vrsqrt.pop %v6378
      %v6397 = vrsqrt.pop %v6379
      %v6398 = vrsqrt.pop %v6380
      %v6399 = vrsqrt.pop %v6381
      %v6400 = vrsqrt.pop %v6382
      %v6401 = vrsqrt.pop %v6383
      %v6402 = vrsqrt.pop %v6384
      %v6403 = vrsqrt.pop %v6385
      %v6404 = vrsqrt.pop %v6386
      %v6405 = vmul.f32 %v6261, %v6387
      %v6406 = vmul.f32 %v6262, %v6388
      %v6407 = vmul.f32 %v6263, %v6389
      %v6408 = vmul.f32 %v6264, %v6390
      %v6409 = vmul.f32 %v6265, %v6391
      %v6410 = vmul.f32 %v6266, %v6392
      %v6411 = vmul.f32 %v6267, %v6393
      %v6412 = vmul.f32 %v6268, %v6394
      %v6413 = vmul.f32 %v6269, %v6395
      %v6414 = vmul.f32 %v6270, %v6396
      %v6415 = vmul.f32 %v6271, %v6397
      %v6416 = vmul.f32 %v6272, %v6398
      %v6417 = vmul.f32 %v6273, %v6399
      %v6418 = vmul.f32 %v6274, %v6400
      %v6419 = vmul.f32 %v6275, %v6401
      %v6420 = vmul.f32 %v6276, %v6402
      %v6421 = vmul.f32 %v6277, %v6403
      %v6422 = vmul.f32 %v6278, %v6404
      %v6423 = vlaneseq
      %v6424 = vshrl.u32 %v6423, 7
      %v6425 = vsub.s32 0, %v6424
      %v6426 = vrot.slane %v6169, %v6425
      %v6427 = vmul.f32 %v6405, %v6426
      %v6428 = vmul.f32 %v6406, %v6426
      %v6429 = vmul.f32 %v6407, %v6426
      %v6430 = vmul.f32 %v6408, %v6426
      %v6431 = vmul.f32 %v6409, %v6426
      %v6432 = vmul.f32 %v6410, %v6426
      %v6433 = vmul.f32 %v6411, %v6426
      %v6434 = vmul.f32 %v6412, %v6426
      %v6435 = vmul.f32 %v6413, %v6426
      %v6436 = vmul.f32 %v6414, %v6426
      %v6437 = vmul.f32 %v6415, %v6426
      %v6438 = vmul.f32 %v6416, %v6426
      %v6439 = vmul.f32 %v6417, %v6426
      %v6440 = vmul.f32 %v6418, %v6426
      %v6441 = vmul.f32 %v6419, %v6426
      %v6442 = vmul.f32 %v6420, %v6426
      %v6443 = vmul.f32 %v6421, %v6426
      %v6444 = vmul.f32 %v6422, %v6426
      %v6445 = vlaneseq
      %v6446 = vshrl.u32 %v6445, 7
      %v6447 = vsub.s32 0, %v6446
      %v6448 = vrot.slane %v6170, %v6447
      %v6449 = vadd.f32 %v6427, %v6448
      %v6450 = vadd.f32 %v6428, %v6448
      %v6451 = vadd.f32 %v6429, %v6448
      %v6452 = vadd.f32 %v6430, %v6448
      %v6453 = vadd.f32 %v6431, %v6448
      %v6454 = vadd.f32 %v6432, %v6448
      %v6455 = vadd.f32 %v6433, %v6448
      %v6456 = vadd.f32 %v6434, %v6448
      %v6457 = vadd.f32 %v6435, %v6448
      %v6458 = vadd.f32 %v6436, %v6448
      %v6459 = vadd.f32 %v6437, %v6448
      %v6460 = vadd.f32 %v6438, %v6448
      %v6461 = vadd.f32 %v6439, %v6448
      %v6462 = vadd.f32 %v6440, %v6448
      %v6463 = vadd.f32 %v6441, %v6448
      %v6464 = vadd.f32 %v6442, %v6448
      %v6465 = vadd.f32 %v6443, %v6448
      %v6466 = vadd.f32 %v6444, %v6448
      %v6467 = vld [vmem:[%s3789 + $0x40] sm:$0xf]
      %v6468 = vld [vmem:[%s3789 + $0x44] sm:$0xf]
      %v6469 = vld [vmem:[%s3789 + $0x48] sm:$0xf]
      %v6470 = vld [vmem:[%s3789 + $0x4c] sm:$0xf]
      %v6471 = vld [vmem:[%s3789 + $0x50] sm:$0xf]
      %v6472 = vld [vmem:[%s3789 + $0x54] sm:$0xf]
      %v6473 = vld [vmem:[%s3797 + $0x7] sm:$0x1]
      %v6474 = vld [vmem:[%s3797 + $0x8] sm:$0x1]
      %v6475 = vpack.c.bf16 %v6450, %v6449
      %v6476 = vpack.c.bf16 %v6452, %v6451
      %v6477 = vpack.c.bf16 %v6454, %v6453
      %v6478 = vpack.c.bf16 %v6456, %v6455
      %v6479 = vpack.c.bf16 %v6458, %v6457
      %v6480 = vpack.c.bf16 %v6460, %v6459
      %v6481 = vpack.c.bf16 %v6462, %v6461
      %v6482 = vpack.c.bf16 %v6464, %v6463
      %v6483 = vpack.c.bf16 %v6466, %v6465
      %v6484 = vlaneseq
      %v6485 = vshrl.u32 %v6484, 7
      %v6486 = vsub.s32 0, %v6485
      %v6487 = vrot.slane %v6473, %v6486
      %v6490 = vunpack.c.l.b16 %v6467
      %v6491 = vunpack.c.l.b16 %v6468
      %v6492 = vpack.c.b16 %v6491, %v6490
      %v6495 = vsel %vm274, %v6475, 0
      %v6498 = vsel %vm274, %v6476, 0
      %v6501 = vsel %vm274, %v6477, 0
      %v6504 = vsel %vm274, %v6478, 0
      %v6507 = vsel %vm274, %v6479, 0
      %v6510 = vsel %vm274, %v6480, 0
      %v6513 = vsel %vm274, %v6481, 0
      %v6516 = vsel %vm274, %v6482, 0
      %v6519 = vsel %vm274, %v6483, 0
      %6521 = vmatprep.subr.bf16.mxu0 0
      %6522 = vmatpush1.bf16.msra.mxu0 %v6492
      %6523 = vmatprep.subr.bf16.mxu0 0
      %6524 = vmatpush1.bf16.msra.mxu0 0
      %6525 = vmatprep.subr.bf16.mxu0 0
      %6526 = vmatpush1.bf16.msra.mxu0 0
      %6527 = vmatprep.subr.bf16.mxu0 0
      %6528 = vmatpush1.bf16.msra.mxu0 0
      %6529 = vmatprep.subr.bf16.mxu0 0
      %6530 = vmatpush1.bf16.msra.mxu0 0
      %6531 = vmatprep.subr.bf16.mxu0 0
      %6532 = vmatpush1.bf16.msra.mxu0 0
      %6533 = vmatprep.subr.bf16.mxu0 0
      %6534 = vmatpush1.bf16.msra.mxu0 0
      %6535 = vmatprep.subr.bf16.mxu0 0
      %6536 = vmatpush1.bf16.msra.mxu0 0
      %6537 = vmatprep.subr.bf16.mxu0 0
      %6538 = vmatpush1.bf16.msra.mxu0 0
      %6539 = vmatprep.subr.bf16.mxu0 0
      %6540 = vmatpush1.bf16.msra.mxu0 0
      %6541 = vmatprep.subr.bf16.mxu0 0
      %6542 = vmatpush1.bf16.msra.mxu0 0
      %6543 = vmatprep.subr.bf16.mxu0 0
      %6544 = vmatpush1.bf16.msra.mxu0 0
      %6545 = vmatprep.subr.bf16.mxu0 0
      %6546 = vmatpush1.bf16.msra.mxu0 0
      %6547 = vmatprep.subr.bf16.mxu0 0
      %6548 = vmatpush1.bf16.msra.mxu0 0
      %6549 = vmatprep.subr.bf16.mxu0 0
      %6550 = vmatpush1.bf16.msra.mxu0 0
      %6551 = vmatprep.subr.bf16.mxu0 0
      %6552 = vmatpush1.bf16.msra.mxu0 0
      %6553 = vmatprep.mubr.bf16.mxu0 0
      %6554 = vmatmul.mubr.bf16.gmra.mrb[0].mxu0 %v6495
      %v6555 = vpop.f32.mrb[0].mxu0
      %v6556 = vadd.f32 %v6487, %v6555
      %v6557 = vpop.f32.mrb[0].mxu0
      %v6558 = vpop.f32.mrb[0].mxu0
      %v6559 = vadd.f32 %v6487, %v6558
      %v6560 = vpop.f32.mrb[0].mxu0
      %6561 = vmatprep.mubr.bf16.mxu0 0
      %6562 = vmatmul.mubr.bf16.gmra.mrb[0].mxu0 %v6498
      %v6563 = vpop.f32.mrb[0].mxu0
      %v6564 = vadd.f32 %v6487, %v6563
      %v6565 = vpop.f32.mrb[0].mxu0
      %v6566 = vpop.f32.mrb[0].mxu0
      %v6567 = vadd.f32 %v6487, %v6566
      %v6568 = vpop.f32.mrb[0].mxu0
      %6569 = vmatprep.mubr.bf16.mxu0 0
      %6570 = vmatmul.mubr.bf16.gmra.mrb[0].mxu0 %v6501
      %v6571 = vpop.f32.mrb[0].mxu0
      %v6572 = vadd.f32 %v6487, %v6571
      %v6573 = vpop.f32.mrb[0].mxu0
      %v6574 = vpop.f32.mrb[0].mxu0
      %v6575 = vadd.f32 %v6487, %v6574
      %v6576 = vpop.f32.mrb[0].mxu0
      %6577 = vmatprep.mubr.bf16.mxu0 0
      %6578 = vmatmul.mubr.bf16.gmra.mrb[0].mxu0 %v6504
      %v6579 = vpop.f32.mrb[0].mxu0
      %v6580 = vadd.f32 %v6487, %v6579
      %v6581 = vpop.f32.mrb[0].mxu0
      %v6582 = vpop.f32.mrb[0].mxu0
      %v6583 = vadd.f32 %v6487, %v6582
      %v6584 = vpop.f32.mrb[0].mxu0
      %6585 = vmatprep.mubr.bf16.mxu0 0
      %6586 = vmatmul.mubr.bf16.gmra.mrb[0].mxu0 %v6507
      %v6587 = vpop.f32.mrb[0].mxu0
      %v6588 = vadd.f32 %v6487, %v6587
      %v6589 = vpop.f32.mrb[0].mxu0
      %v6590 = vpop.f32.mrb[0].mxu0
      %v6591 = vadd.f32 %v6487, %v6590
      %v6592 = vpop.f32.mrb[0].mxu0
      %6593 = vmatprep.mubr.bf16.mxu0 0
      %6594 = vmatmul.mubr.bf16.gmra.mrb[0].mxu0 %v6510
      %v6595 = vpop.f32.mrb[0].mxu0
      %v6596 = vadd.f32 %v6487, %v6595
      %v6597 = vpop.f32.mrb[0].mxu0
      %v6598 = vpop.f32.mrb[0].mxu0
      %v6599 = vadd.f32 %v6487, %v6598
      %v6600 = vpop.f32.mrb[0].mxu0
      %6601 = vmatprep.mubr.bf16.mxu0 0
      %6602 = vmatmul.mubr.bf16.gmra.mrb[0].mxu0 %v6513
      %v6603 = vpop.f32.mrb[0].mxu0
      %v6604 = vadd.f32 %v6487, %v6603
      %v6605 = vpop.f32.mrb[0].mxu0
      %v6606 = vpop.f32.mrb[0].mxu0
      %v6607 = vadd.f32 %v6487, %v6606
      %v6608 = vpop.f32.mrb[0].mxu0
      %6609 = vmatprep.mubr.bf16.mxu0 0
      %6610 = vmatmul.mubr.bf16.gmra.mrb[0].mxu0 %v6516
      %v6611 = vpop.f32.mrb[0].mxu0
      %v6612 = vadd.f32 %v6487, %v6611
      %v6613 = vpop.f32.mrb[0].mxu0
      %v6614 = vpop.f32.mrb[0].mxu0
      %v6615 = vadd.f32 %v6487, %v6614
      %v6616 = vpop.f32.mrb[0].mxu0
      %6617 = vmatprep.mubr.bf16.mxu0 0
      %6618 = vmatmul.mubr.bf16.gmra.mrb[0].mxu0 %v6519
      %v6619 = vpop.f32.mrb[0].mxu0
      %v6620 = vadd.f32 %v6487, %v6619
      %v6621 = vpop.f32.mrb[0].mxu0
      %v6622 = vpop.f32.mrb[0].mxu0
      %v6623 = vadd.f32 %v6487, %v6622
      %v6624 = vpop.f32.mrb[0].mxu0
      %6625 = vdwg.mxu0
      %v6626 = vmax.f32 %v6556, 0.0
      %v6627 = vmax.f32 %v6559, 0.0
      %v6628 = vmax.f32 %v6564, 0.0
      %v6629 = vmax.f32 %v6567, 0.0
      %v6630 = vmax.f32 %v6572, 0.0
      %v6631 = vmax.f32 %v6575, 0.0
      %v6632 = vmax.f32 %v6580, 0.0
      %v6633 = vmax.f32 %v6583, 0.0
      %v6634 = vmax.f32 %v6588, 0.0
      %v6635 = vmax.f32 %v6591, 0.0
      %v6636 = vmax.f32 %v6596, 0.0
      %v6637 = vmax.f32 %v6599, 0.0
      %v6638 = vmax.f32 %v6604, 0.0
      %v6639 = vmax.f32 %v6607, 0.0
      %v6640 = vmax.f32 %v6612, 0.0
      %v6641 = vmax.f32 %v6615, 0.0
      %v6642 = vmax.f32 %v6620, 0.0
      %v6643 = vmax.f32 %v6623, 0.0
      %v6644 = vpack.c.bf16 %v6627, %v6626
      %v6645 = vpack.c.bf16 %v6629, %v6628
      %v6646 = vpack.c.bf16 %v6631, %v6630
      %v6647 = vpack.c.bf16 %v6633, %v6632
      %v6648 = vpack.c.bf16 %v6635, %v6634
      %v6649 = vpack.c.bf16 %v6637, %v6636
      %v6650 = vpack.c.bf16 %v6639, %v6638
      %v6651 = vpack.c.bf16 %v6641, %v6640
      %v6652 = vpack.c.bf16 %v6643, %v6642
      %v6653 = vlaneseq
      %v6654 = vshrl.u32 %v6653, 7
      %v6655 = vsub.s32 0, %v6654
      %v6656 = vrot.slane %v6474, %v6655
      %v6661 = vunpack.c.l.b16 %v6469
      %v6662 = vunpack.c.l.b16 %v6470
      %v6663 = vunpack.c.l.b16 %v6471
      %v6664 = vunpack.c.l.b16 %v6472
      %v6665 = vpack.c.b16 %v6662, %v6661
      %v6666 = vpack.c.b16 %v6664, %v6663
      %v6670 = vsel %vm3349, %v6644, 0
      %v6673 = vsel %vm3349, %v6645, 0
      %v6676 = vsel %vm3349, %v6646, 0
      %v6679 = vsel %vm3349, %v6647, 0
      %v6682 = vsel %vm3349, %v6648, 0
      %v6685 = vsel %vm3349, %v6649, 0
      %v6688 = vsel %vm3349, %v6650, 0
      %v6691 = vsel %vm3349, %v6651, 0
      %v6694 = vsel %vm3349, %v6652, 0
      %6696 = vmatprep.subr.bf16.mxu0 0
      %6697 = vmatpush1.bf16.msra.mxu0 %v6665
      %6698 = vmatprep.subr.bf16.mxu0 0
      %6699 = vmatpush1.bf16.msra.mxu0 %v6666
      %6700 = vmatprep.subr.bf16.mxu0 0
      %6701 = vmatpush1.bf16.msra.mxu0 0
      %6702 = vmatprep.subr.bf16.mxu0 0
      %6703 = vmatpush1.bf16.msra.mxu0 0
      %6704 = vmatprep.subr.bf16.mxu0 0
      %6705 = vmatpush1.bf16.msra.mxu0 0
      %6706 = vmatprep.subr.bf16.mxu0 0
      %6707 = vmatpush1.bf16.msra.mxu0 0
      %6708 = vmatprep.subr.bf16.mxu0 0
      %6709 = vmatpush1.bf16.msra.mxu0 0
      %6710 = vmatprep.subr.bf16.mxu0 0
      %6711 = vmatpush1.bf16.msra.mxu0 0
      %6712 = vmatprep.subr.bf16.mxu0 0
      %6713 = vmatpush1.bf16.msra.mxu0 0
      %6714 = vmatprep.subr.bf16.mxu0 0
      %6715 = vmatpush1.bf16.msra.mxu0 0
      %6716 = vmatprep.subr.bf16.mxu0 0
      %6717 = vmatpush1.bf16.msra.mxu0 0
      %6718 = vmatprep.subr.bf16.mxu0 0
      %6719 = vmatpush1.bf16.msra.mxu0 0
      %6720 = vmatprep.subr.bf16.mxu0 0
      %6721 = vmatpush1.bf16.msra.mxu0 0
      %6722 = vmatprep.subr.bf16.mxu0 0
      %6723 = vmatpush1.bf16.msra.mxu0 0
      %6724 = vmatprep.subr.bf16.mxu0 0
      %6725 = vmatpush1.bf16.msra.mxu0 0
      %6726 = vmatprep.subr.bf16.mxu0 0
      %6727 = vmatpush1.bf16.msra.mxu0 0
      %6728 = vmatprep.mubr.bf16.mxu0 0
      %6729 = vmatmul.mubr.bf16.gmra.mrb[0].mxu0 %v6670
      %v6730 = vpop.f32.mrb[0].mxu0
      %v6731 = vadd.f32 %v6656, %v6730
      %v6732 = vpop.f32.mrb[0].mxu0
      %v6733 = vpop.f32.mrb[0].mxu0
      %v6734 = vadd.f32 %v6656, %v6733
      %v6735 = vpop.f32.mrb[0].mxu0
      %6736 = vmatprep.mubr.bf16.mxu0 0
      %6737 = vmatmul.mubr.bf16.gmra.mrb[0].mxu0 %v6673
      %v6738 = vpop.f32.mrb[0].mxu0
      %v6739 = vadd.f32 %v6656, %v6738
      %v6740 = vpop.f32.mrb[0].mxu0
      %v6741 = vpop.f32.mrb[0].mxu0
      %v6742 = vadd.f32 %v6656, %v6741
      %v6743 = vpop.f32.mrb[0].mxu0
      %6744 = vmatprep.mubr.bf16.mxu0 0
      %6745 = vmatmul.mubr.bf16.gmra.mrb[0].mxu0 %v6676
      %v6746 = vpop.f32.mrb[0].mxu0
      %v6747 = vadd.f32 %v6656, %v6746
      %v6748 = vpop.f32.mrb[0].mxu0
      %v6749 = vpop.f32.mrb[0].mxu0
      %v6750 = vadd.f32 %v6656, %v6749
      %v6751 = vpop.f32.mrb[0].mxu0
      %6752 = vmatprep.mubr.bf16.mxu0 0
      %6753 = vmatmul.mubr.bf16.gmra.mrb[0].mxu0 %v6679
      %v6754 = vpop.f32.mrb[0].mxu0
      %v6755 = vadd.f32 %v6656, %v6754
      %v6756 = vpop.f32.mrb[0].mxu0
      %v6757 = vpop.f32.mrb[0].mxu0
      %v6758 = vadd.f32 %v6656, %v6757
      %v6759 = vpop.f32.mrb[0].mxu0
      %6760 = vmatprep.mubr.bf16.mxu0 0
      %6761 = vmatmul.mubr.bf16.gmra.mrb[0].mxu0 %v6682
      %v6762 = vpop.f32.mrb[0].mxu0
      %v6763 = vadd.f32 %v6656, %v6762
      %v6764 = vpop.f32.mrb[0].mxu0
      %v6765 = vpop.f32.mrb[0].mxu0
      %v6766 = vadd.f32 %v6656, %v6765
      %v6767 = vpop.f32.mrb[0].mxu0
      %6768 = vmatprep.mubr.bf16.mxu0 0
      %6769 = vmatmul.mubr.bf16.gmra.mrb[0].mxu0 %v6685
      %v6770 = vpop.f32.mrb[0].mxu0
      %v6771 = vadd.f32 %v6656, %v6770
      %v6772 = vpop.f32.mrb[0].mxu0
      %v6773 = vpop.f32.mrb[0].mxu0
      %v6774 = vadd.f32 %v6656, %v6773
      %v6775 = vpop.f32.mrb[0].mxu0
      %6776 = vmatprep.mubr.bf16.mxu0 0
      %6777 = vmatmul.mubr.bf16.gmra.mrb[0].mxu0 %v6688
      %v6778 = vpop.f32.mrb[0].mxu0
      %v6779 = vadd.f32 %v6656, %v6778
      %v6780 = vpop.f32.mrb[0].mxu0
      %v6781 = vpop.f32.mrb[0].mxu0
      %v6782 = vadd.f32 %v6656, %v6781
      %v6783 = vpop.f32.mrb[0].mxu0
      %6784 = vmatprep.mubr.bf16.mxu0 0
      %6785 = vmatmul.mubr.bf16.gmra.mrb[0].mxu0 %v6691
      %v6786 = vpop.f32.mrb[0].mxu0
      %v6787 = vadd.f32 %v6656, %v6786
      %v6788 = vpop.f32.mrb[0].mxu0
      %v6789 = vpop.f32.mrb[0].mxu0
      %v6790 = vadd.f32 %v6656, %v6789
      %v6791 = vpop.f32.mrb[0].mxu0
      %6792 = vmatprep.mubr.bf16.mxu0 0
      %6793 = vmatmul.mubr.bf16.gmra.mrb[0].mxu0 %v6694
      %v6794 = vpop.f32.mrb[0].mxu0
      %v6795 = vadd.f32 %v6656, %v6794
      %v6796 = vpop.f32.mrb[0].mxu0
      %v6797 = vpop.f32.mrb[0].mxu0
      %v6798 = vadd.f32 %v6656, %v6797
      %v6799 = vpop.f32.mrb[0].mxu0
      %6800 = vdwg.mxu0
      %v6801 = vld [vmem:[%s3797 + $0xb] sm:$0x1]
      %v6802 = vld [vmem:[%s3797 + $0xc] sm:$0x1]
      %v6803 = vadd.f32 %v6449, %v6731
      %v6804 = vadd.f32 %v6450, %v6734
      %v6805 = vadd.f32 %v6451, %v6739
      %v6806 = vadd.f32 %v6452, %v6742
      %v6807 = vadd.f32 %v6453, %v6747
      %v6808 = vadd.f32 %v6454, %v6750
      %v6809 = vadd.f32 %v6455, %v6755
      %v6810 = vadd.f32 %v6456, %v6758
      %v6811 = vadd.f32 %v6457, %v6763
      %v6812 = vadd.f32 %v6458, %v6766
      %v6813 = vadd.f32 %v6459, %v6771
      %v6814 = vadd.f32 %v6460, %v6774
      %v6815 = vadd.f32 %v6461, %v6779
      %v6816 = vadd.f32 %v6462, %v6782
      %v6817 = vadd.f32 %v6463, %v6787
      %v6818 = vadd.f32 %v6464, %v6790
      %v6819 = vadd.f32 %v6465, %v6795
      %v6820 = vadd.f32 %v6466, %v6798
      %v6821 = vsel %vm274, %v6803, 0.0
      %6822 = vadd.xlane.f32.xlu0 %v6821
      %v6823 = vpop.xlane.xlu0 %6822
      %v6824 = vsel %vm274, %v6804, 0.0
      %6825 = vadd.xlane.f32.xlu0 %v6824
      %v6826 = vpop.xlane.xlu0 %6825
      %v6827 = vsel %vm274, %v6805, 0.0
      %6828 = vadd.xlane.f32.xlu0 %v6827
      %v6829 = vpop.xlane.xlu0 %6828
      %v6830 = vsel %vm274, %v6806, 0.0
      %6831 = vadd.xlane.f32.xlu0 %v6830
      %v6832 = vpop.xlane.xlu0 %6831
      %v6833 = vsel %vm274, %v6807, 0.0
      %6834 = vadd.xlane.f32.xlu0 %v6833
      %v6835 = vpop.xlane.xlu0 %6834
      %v6836 = vsel %vm274, %v6808, 0.0
      %6837 = vadd.xlane.f32.xlu0 %v6836
      %v6838 = vpop.xlane.xlu0 %6837
      %v6839 = vsel %vm274, %v6809, 0.0
      %6840 = vadd.xlane.f32.xlu0 %v6839
      %v6841 = vpop.xlane.xlu0 %6840
      %v6842 = vsel %vm274, %v6810, 0.0
      %6843 = vadd.xlane.f32.xlu0 %v6842
      %v6844 = vpop.xlane.xlu0 %6843
      %v6845 = vsel %vm274, %v6811, 0.0
      %6846 = vadd.xlane.f32.xlu0 %v6845
      %v6847 = vpop.xlane.xlu0 %6846
      %v6848 = vsel %vm274, %v6812, 0.0
      %6849 = vadd.xlane.f32.xlu0 %v6848
      %v6850 = vpop.xlane.xlu0 %6849
      %v6851 = vsel %vm274, %v6813, 0.0
      %6852 = vadd.xlane.f32.xlu0 %v6851
      %v6853 = vpop.xlane.xlu0 %6852
      %v6854 = vsel %vm274, %v6814, 0.0
      %6855 = vadd.xlane.f32.xlu0 %v6854
      %v6856 = vpop.xlane.xlu0 %6855
      %v6857 = vsel %vm274, %v6815, 0.0
      %6858 = vadd.xlane.f32.xlu0 %v6857
      %v6859 = vpop.xlane.xlu0 %6858
      %v6860 = vsel %vm274, %v6816, 0.0
      %6861 = vadd.xlane.f32.xlu0 %v6860
      %v6862 = vpop.xlane.xlu0 %6861
      %v6863 = vsel %vm274, %v6817, 0.0
      %6864 = vadd.xlane.f32.xlu0 %v6863
      %v6865 = vpop.xlane.xlu0 %6864
      %v6866 = vsel %vm274, %v6818, 0.0
      %6867 = vadd.xlane.f32.xlu0 %v6866
      %v6868 = vpop.xlane.xlu0 %6867
      %v6869 = vsel %vm274, %v6819, 0.0
      %6870 = vadd.xlane.f32.xlu0 %v6869
      %v6871 = vpop.xlane.xlu0 %6870
      %v6872 = vsel %vm274, %v6820, 0.0
      %6873 = vadd.xlane.f32.xlu0 %v6872
      %v6874 = vpop.xlane.xlu0 %6873
      %v6875 = vmul.f32 %v6823, %v2922
      %v6876 = vmul.f32 %v6826, %v2922
      %v6877 = vmul.f32 %v6829, %v2922
      %v6878 = vmul.f32 %v6832, %v2922
      %v6879 = vmul.f32 %v6835, %v2922
      %v6880 = vmul.f32 %v6838, %v2922
      %v6881 = vmul.f32 %v6841, %v2922
      %v6882 = vmul.f32 %v6844, %v2922
      %v6883 = vmul.f32 %v6847, %v2922
      %v6884 = vmul.f32 %v6850, %v2922
      %v6885 = vmul.f32 %v6853, %v2922
      %v6886 = vmul.f32 %v6856, %v2922
      %v6887 = vmul.f32 %v6859, %v2922
      %v6888 = vmul.f32 %v6862, %v2922
      %v6889 = vmul.f32 %v6865, %v2922
      %v6890 = vmul.f32 %v6868, %v2922
      %v6891 = vmul.f32 %v6871, %v2922
      %v6892 = vmul.f32 %v6874, %v2922
      %v6893 = vsub.f32 %v6803, %v6875
      %v6894 = vsub.f32 %v6804, %v6876
      %v6895 = vsub.f32 %v6805, %v6877
      %v6896 = vsub.f32 %v6806, %v6878
      %v6897 = vsub.f32 %v6807, %v6879
      %v6898 = vsub.f32 %v6808, %v6880
      %v6899 = vsub.f32 %v6809, %v6881
      %v6900 = vsub.f32 %v6810, %v6882
      %v6901 = vsub.f32 %v6811, %v6883
      %v6902 = vsub.f32 %v6812, %v6884
      %v6903 = vsub.f32 %v6813, %v6885
      %v6904 = vsub.f32 %v6814, %v6886
      %v6905 = vsub.f32 %v6815, %v6887
      %v6906 = vsub.f32 %v6816, %v6888
      %v6907 = vsub.f32 %v6817, %v6889
      %v6908 = vsub.f32 %v6818, %v6890
      %v6909 = vsub.f32 %v6819, %v6891
      %v6910 = vsub.f32 %v6820, %v6892
      %v6911 = vmul.f32 %v6893, %v6893
      %v6912 = vmul.f32 %v6894, %v6894
      %v6913 = vmul.f32 %v6895, %v6895
      %v6914 = vmul.f32 %v6896, %v6896
      %v6915 = vmul.f32 %v6897, %v6897
      %v6916 = vmul.f32 %v6898, %v6898
      %v6917 = vmul.f32 %v6899, %v6899
      %v6918 = vmul.f32 %v6900, %v6900
      %v6919 = vmul.f32 %v6901, %v6901
      %v6920 = vmul.f32 %v6902, %v6902
      %v6921 = vmul.f32 %v6903, %v6903
      %v6922 = vmul.f32 %v6904, %v6904
      %v6923 = vmul.f32 %v6905, %v6905
      %v6924 = vmul.f32 %v6906, %v6906
      %v6925 = vmul.f32 %v6907, %v6907
      %v6926 = vmul.f32 %v6908, %v6908
      %v6927 = vmul.f32 %v6909, %v6909
      %v6928 = vmul.f32 %v6910, %v6910
      %v6929 = vsel %vm274, %v6911, 0.0
      %6930 = vadd.xlane.f32.xlu0 %v6929
      %v6931 = vpop.xlane.xlu0 %6930
      %v6932 = vsel %vm274, %v6912, 0.0
      %6933 = vadd.xlane.f32.xlu0 %v6932
      %v6934 = vpop.xlane.xlu0 %6933
      %v6935 = vsel %vm274, %v6913, 0.0
      %6936 = vadd.xlane.f32.xlu0 %v6935
      %v6937 = vpop.xlane.xlu0 %6936
      %v6938 = vsel %vm274, %v6914, 0.0
      %6939 = vadd.xlane.f32.xlu0 %v6938
      %v6940 = vpop.xlane.xlu0 %6939
      %v6941 = vsel %vm274, %v6915, 0.0
      %6942 = vadd.xlane.f32.xlu0 %v6941
      %v6943 = vpop.xlane.xlu0 %6942
      %v6944 = vsel %vm274, %v6916, 0.0
      %6945 = vadd.xlane.f32.xlu0 %v6944
      %v6946 = vpop.xlane.xlu0 %6945
      %v6947 = vsel %vm274, %v6917, 0.0
      %6948 = vadd.xlane.f32.xlu0 %v6947
      %v6949 = vpop.xlane.xlu0 %6948
      %v6950 = vsel %vm274, %v6918, 0.0
      %6951 = vadd.xlane.f32.xlu0 %v6950
      %v6952 = vpop.xlane.xlu0 %6951
      %v6953 = vsel %vm274, %v6919, 0.0
      %6954 = vadd.xlane.f32.xlu0 %v6953
      %v6955 = vpop.xlane.xlu0 %6954
      %v6956 = vsel %vm274, %v6920, 0.0
      %6957 = vadd.xlane.f32.xlu0 %v6956
      %v6958 = vpop.xlane.xlu0 %6957
      %v6959 = vsel %vm274, %v6921, 0.0
      %6960 = vadd.xlane.f32.xlu0 %v6959
      %v6961 = vpop.xlane.xlu0 %6960
      %v6962 = vsel %vm274, %v6922, 0.0
      %6963 = vadd.xlane.f32.xlu0 %v6962
      %v6964 = vpop.xlane.xlu0 %6963
      %v6965 = vsel %vm274, %v6923, 0.0
      %6966 = vadd.xlane.f32.xlu0 %v6965
      %v6967 = vpop.xlane.xlu0 %6966
      %v6968 = vsel %vm274, %v6924, 0.0
      %6969 = vadd.xlane.f32.xlu0 %v6968
      %v6970 = vpop.xlane.xlu0 %6969
      %v6971 = vsel %vm274, %v6925, 0.0
      %6972 = vadd.xlane.f32.xlu0 %v6971
      %v6973 = vpop.xlane.xlu0 %6972
      %v6974 = vsel %vm274, %v6926, 0.0
      %6975 = vadd.xlane.f32.xlu0 %v6974
      %v6976 = vpop.xlane.xlu0 %6975
      %v6977 = vsel %vm274, %v6927, 0.0
      %6978 = vadd.xlane.f32.xlu0 %v6977
      %v6979 = vpop.xlane.xlu0 %6978
      %v6980 = vsel %vm274, %v6928, 0.0
      %6981 = vadd.xlane.f32.xlu0 %v6980
      %v6982 = vpop.xlane.xlu0 %6981
      %v6983 = vmul.f32 %v6931, %v2922
      %v6984 = vmul.f32 %v6934, %v2922
      %v6985 = vmul.f32 %v6937, %v2922
      %v6986 = vmul.f32 %v6940, %v2922
      %v6987 = vmul.f32 %v6943, %v2922
      %v6988 = vmul.f32 %v6946, %v2922
      %v6989 = vmul.f32 %v6949, %v2922
      %v6990 = vmul.f32 %v6952, %v2922
      %v6991 = vmul.f32 %v6955, %v2922
      %v6992 = vmul.f32 %v6958, %v2922
      %v6993 = vmul.f32 %v6961, %v2922
      %v6994 = vmul.f32 %v6964, %v2922
      %v6995 = vmul.f32 %v6967, %v2922
      %v6996 = vmul.f32 %v6970, %v2922
      %v6997 = vmul.f32 %v6973, %v2922
      %v6998 = vmul.f32 %v6976, %v2922
      %v6999 = vmul.f32 %v6979, %v2922
      %v7000 = vmul.f32 %v6982, %v2922
      %v7001 = vadd.f32 %v6983, 1e-05
      %v7002 = vadd.f32 %v6984, 1e-05
      %v7003 = vadd.f32 %v6985, 1e-05
      %v7004 = vadd.f32 %v6986, 1e-05
      %v7005 = vadd.f32 %v6987, 1e-05
      %v7006 = vadd.f32 %v6988, 1e-05
      %v7007 = vadd.f32 %v6989, 1e-05
      %v7008 = vadd.f32 %v6990, 1e-05
      %v7009 = vadd.f32 %v6991, 1e-05
      %v7010 = vadd.f32 %v6992, 1e-05
      %v7011 = vadd.f32 %v6993, 1e-05
      %v7012 = vadd.f32 %v6994, 1e-05
      %v7013 = vadd.f32 %v6995, 1e-05
      %v7014 = vadd.f32 %v6996, 1e-05
      %v7015 = vadd.f32 %v6997, 1e-05
      %v7016 = vadd.f32 %v6998, 1e-05
      %v7017 = vadd.f32 %v6999, 1e-05
      %v7018 = vadd.f32 %v7000, 1e-05
      %v7019 = vrsqrt.pop %v7001
      %v7020 = vrsqrt.pop %v7002
      %v7021 = vrsqrt.pop %v7003
      %v7022 = vrsqrt.pop %v7004
      %v7023 = vrsqrt.pop %v7005
      %v7024 = vrsqrt.pop %v7006
      %v7025 = vrsqrt.pop %v7007
      %v7026 = vrsqrt.pop %v7008
      %v7027 = vrsqrt.pop %v7009
      %v7028 = vrsqrt.pop %v7010
      %v7029 = vrsqrt.pop %v7011
      %v7030 = vrsqrt.pop %v7012
      %v7031 = vrsqrt.pop %v7013
      %v7032 = vrsqrt.pop %v7014
      %v7033 = vrsqrt.pop %v7015
      %v7034 = vrsqrt.pop %v7016
      %v7035 = vrsqrt.pop %v7017
      %v7036 = vrsqrt.pop %v7018
      %v7037 = vmul.f32 %v6893, %v7019
      %v7038 = vmul.f32 %v6894, %v7020
      %v7039 = vmul.f32 %v6895, %v7021
      %v7040 = vmul.f32 %v6896, %v7022
      %v7041 = vmul.f32 %v6897, %v7023
      %v7042 = vmul.f32 %v6898, %v7024
      %v7043 = vmul.f32 %v6899, %v7025
      %v7044 = vmul.f32 %v6900, %v7026
      %v7045 = vmul.f32 %v6901, %v7027
      %v7046 = vmul.f32 %v6902, %v7028
      %v7047 = vmul.f32 %v6903, %v7029
      %v7048 = vmul.f32 %v6904, %v7030
      %v7049 = vmul.f32 %v6905, %v7031
      %v7050 = vmul.f32 %v6906, %v7032
      %v7051 = vmul.f32 %v6907, %v7033
      %v7052 = vmul.f32 %v6908, %v7034
      %v7053 = vmul.f32 %v6909, %v7035
      %v7054 = vmul.f32 %v6910, %v7036
      %v7055 = vlaneseq
      %v7056 = vshrl.u32 %v7055, 7
      %v7057 = vsub.s32 0, %v7056
      %v7058 = vrot.slane %v6801, %v7057
      %v7059 = vmul.f32 %v7037, %v7058
      %v7060 = vmul.f32 %v7038, %v7058
      %v7061 = vmul.f32 %v7039, %v7058
      %v7062 = vmul.f32 %v7040, %v7058
      %v7063 = vmul.f32 %v7041, %v7058
      %v7064 = vmul.f32 %v7042, %v7058
      %v7065 = vmul.f32 %v7043, %v7058
      %v7066 = vmul.f32 %v7044, %v7058
      %v7067 = vmul.f32 %v7045, %v7058
      %v7068 = vmul.f32 %v7046, %v7058
      %v7069 = vmul.f32 %v7047, %v7058
      %v7070 = vmul.f32 %v7048, %v7058
      %v7071 = vmul.f32 %v7049, %v7058
      %v7072 = vmul.f32 %v7050, %v7058
      %v7073 = vmul.f32 %v7051, %v7058
      %v7074 = vmul.f32 %v7052, %v7058
      %v7075 = vmul.f32 %v7053, %v7058
      %v7076 = vmul.f32 %v7054, %v7058
      %v7077 = vlaneseq
      %v7078 = vshrl.u32 %v7077, 7
      %v7079 = vsub.s32 0, %v7078
      %v7080 = vrot.slane %v6802, %v7079
      %v7081 = vadd.f32 %v7059, %v7080
      %v7082 = vadd.f32 %v7060, %v7080
      %v7083 = vadd.f32 %v7061, %v7080
      %v7084 = vadd.f32 %v7062, %v7080
      %v7085 = vadd.f32 %v7063, %v7080
      %v7086 = vadd.f32 %v7064, %v7080
      %v7087 = vadd.f32 %v7065, %v7080
      %v7088 = vadd.f32 %v7066, %v7080
      %v7089 = vadd.f32 %v7067, %v7080
      %v7090 = vadd.f32 %v7068, %v7080
      %v7091 = vadd.f32 %v7069, %v7080
      %v7092 = vadd.f32 %v7070, %v7080
      %v7093 = vadd.f32 %v7071, %v7080
      %v7094 = vadd.f32 %v7072, %v7080
      %v7095 = vadd.f32 %v7073, %v7080
      %v7096 = vadd.f32 %v7074, %v7080
      %v7097 = vadd.f32 %v7075, %v7080
      %v7098 = vadd.f32 %v7076, %v7080
      %v7099 = vpack.c.bf16 %v7082, %v7081
      %v7100 = vpack.c.bf16 %v7084, %v7083
      %v7101 = vpack.c.bf16 %v7086, %v7085
      %v7102 = vpack.c.bf16 %v7088, %v7087
      %v7103 = vpack.c.bf16 %v7090, %v7089
      %v7104 = vpack.c.bf16 %v7092, %v7091
      %v7105 = vpack.c.bf16 %v7094, %v7093
      %v7106 = vpack.c.bf16 %v7096, %v7095
      %v7107 = vpack.c.bf16 %v7098, %v7097
      %v7108 = vlaneseq
      %v7109 = vshrl.u32 %v7108, 7
      %v7110 = vsub.s32 0, %v7109
      %v7111 = vrot.slane %v243, %v7110
      %v7114 = vunpack.c.l.b16 %v246
      %v7115 = vunpack.c.l.b16 %v247
      %v7116 = vpack.c.b16 %v7115, %v7114
      %v7119 = vsel %vm274, %v7099, 0
      %v7122 = vsel %vm274, %v7100, 0
      %v7125 = vsel %vm274, %v7101, 0
      %v7128 = vsel %vm274, %v7102, 0
      %v7131 = vsel %vm274, %v7103, 0
      %v7134 = vsel %vm274, %v7104, 0
      %v7137 = vsel %vm274, %v7105, 0
      %v7140 = vsel %vm274, %v7106, 0
      %v7143 = vsel %vm274, %v7107, 0
      %7145 = vmatprep.subr.bf16.mxu0 0
      %7146 = vmatpush1.bf16.msra.mxu0 %v7116
      %7147 = vmatprep.subr.bf16.mxu0 0
      %7148 = vmatpush1.bf16.msra.mxu0 0
      %7149 = vmatprep.subr.bf16.mxu0 0
      %7150 = vmatpush1.bf16.msra.mxu0 0
      %7151 = vmatprep.subr.bf16.mxu0 0
      %7152 = vmatpush1.bf16.msra.mxu0 0
      %7153 = vmatprep.subr.bf16.mxu0 0
      %7154 = vmatpush1.bf16.msra.mxu0 0
      %7155 = vmatprep.subr.bf16.mxu0 0
      %7156 = vmatpush1.bf16.msra.mxu0 0
      %7157 = vmatprep.subr.bf16.mxu0 0
      %7158 = vmatpush1.bf16.msra.mxu0 0
      %7159 = vmatprep.subr.bf16.mxu0 0
      %7160 = vmatpush1.bf16.msra.mxu0 0
      %7161 = vmatprep.subr.bf16.mxu0 0
      %7162 = vmatpush1.bf16.msra.mxu0 0
      %7163 = vmatprep.subr.bf16.mxu0 0
      %7164 = vmatpush1.bf16.msra.mxu0 0
      %7165 = vmatprep.subr.bf16.mxu0 0
      %7166 = vmatpush1.bf16.msra.mxu0 0
      %7167 = vmatprep.subr.bf16.mxu0 0
      %7168 = vmatpush1.bf16.msra.mxu0 0
      %7169 = vmatprep.subr.bf16.mxu0 0
      %7170 = vmatpush1.bf16.msra.mxu0 0
      %7171 = vmatprep.subr.bf16.mxu0 0
      %7172 = vmatpush1.bf16.msra.mxu0 0
      %7173 = vmatprep.subr.bf16.mxu0 0
      %7174 = vmatpush1.bf16.msra.mxu0 0
      %7175 = vmatprep.subr.bf16.mxu0 0
      %7176 = vmatpush1.bf16.msra.mxu0 0
      %7177 = vmatprep.mubr.bf16.mxu0 0
      %7178 = vmatmul.mubr.bf16.gmra.mrb[0].mxu0 %v7119
      %v7179 = vpop.f32.mrb[0].mxu0
      %v7180 = vadd.f32 %v7111, %v7179
      %v7181 = vpop.f32.mrb[0].mxu0
      %v7182 = vpop.f32.mrb[0].mxu0
      %v7183 = vadd.f32 %v7111, %v7182
      %v7184 = vpop.f32.mrb[0].mxu0
      %7185 = vmatprep.mubr.bf16.mxu0 0
      %7186 = vmatmul.mubr.bf16.gmra.mrb[0].mxu0 %v7122
      %v7187 = vpop.f32.mrb[0].mxu0
      %v7188 = vadd.f32 %v7111, %v7187
      %v7189 = vpop.f32.mrb[0].mxu0
      %v7190 = vpop.f32.mrb[0].mxu0
      %v7191 = vadd.f32 %v7111, %v7190
      %v7192 = vpop.f32.mrb[0].mxu0
      %7193 = vmatprep.mubr.bf16.mxu0 0
      %7194 = vmatmul.mubr.bf16.gmra.mrb[0].mxu0 %v7125
      %v7195 = vpop.f32.mrb[0].mxu0
      %v7196 = vadd.f32 %v7111, %v7195
      %v7197 = vpop.f32.mrb[0].mxu0
      %v7198 = vpop.f32.mrb[0].mxu0
      %v7199 = vadd.f32 %v7111, %v7198
      %v7200 = vpop.f32.mrb[0].mxu0
      %7201 = vmatprep.mubr.bf16.mxu0 0
      %7202 = vmatmul.mubr.bf16.gmra.mrb[0].mxu0 %v7128
      %v7203 = vpop.f32.mrb[0].mxu0
      %v7204 = vadd.f32 %v7111, %v7203
      %v7205 = vpop.f32.mrb[0].mxu0
      %v7206 = vpop.f32.mrb[0].mxu0
      %v7207 = vadd.f32 %v7111, %v7206
      %v7208 = vpop.f32.mrb[0].mxu0
      %7209 = vmatprep.mubr.bf16.mxu0 0
      %7210 = vmatmul.mubr.bf16.gmra.mrb[0].mxu0 %v7131
      %v7211 = vpop.f32.mrb[0].mxu0
      %v7212 = vadd.f32 %v7111, %v7211
      %v7213 = vpop.f32.mrb[0].mxu0
      %v7214 = vpop.f32.mrb[0].mxu0
      %v7215 = vadd.f32 %v7111, %v7214
      %v7216 = vpop.f32.mrb[0].mxu0
      %7217 = vmatprep.mubr.bf16.mxu0 0
      %7218 = vmatmul.mubr.bf16.gmra.mrb[0].mxu0 %v7134
      %v7219 = vpop.f32.mrb[0].mxu0
      %v7220 = vadd.f32 %v7111, %v7219
      %v7221 = vpop.f32.mrb[0].mxu0
      %v7222 = vpop.f32.mrb[0].mxu0
      %v7223 = vadd.f32 %v7111, %v7222
      %v7224 = vpop.f32.mrb[0].mxu0
      %7225 = vmatprep.mubr.bf16.mxu0 0
      %7226 = vmatmul.mubr.bf16.gmra.mrb[0].mxu0 %v7137
      %v7227 = vpop.f32.mrb[0].mxu0
      %v7228 = vadd.f32 %v7111, %v7227
      %v7229 = vpop.f32.mrb[0].mxu0
      %v7230 = vpop.f32.mrb[0].mxu0
      %v7231 = vadd.f32 %v7111, %v7230
      %v7232 = vpop.f32.mrb[0].mxu0
      %7233 = vmatprep.mubr.bf16.mxu0 0
      %7234 = vmatmul.mubr.bf16.gmra.mrb[0].mxu0 %v7140
      %v7235 = vpop.f32.mrb[0].mxu0
      %v7236 = vadd.f32 %v7111, %v7235
      %v7237 = vpop.f32.mrb[0].mxu0
      %v7238 = vpop.f32.mrb[0].mxu0
      %v7239 = vadd.f32 %v7111, %v7238
      %v7240 = vpop.f32.mrb[0].mxu0
      %7241 = vmatprep.mubr.bf16.mxu0 0
      %7242 = vmatmul.mubr.bf16.gmra.mrb[0].mxu0 %v7143
      %v7243 = vpop.f32.mrb[0].mxu0
      %v7244 = vadd.f32 %v7111, %v7243
      %v7245 = vpop.f32.mrb[0].mxu0
      %v7246 = vpop.f32.mrb[0].mxu0
      %v7247 = vadd.f32 %v7111, %v7246
      %v7248 = vpop.f32.mrb[0].mxu0
      %7249 = vdwg.mxu0
      %v7250 = vsel %vm274, %v7180, -inf
      %v7251 = vsel %vm274, %v7183, -inf
      %v7252 = vsel %vm274, %v7188, -inf
      %v7253 = vsel %vm274, %v7191, -inf
      %v7254 = vsel %vm274, %v7196, -inf
      %v7255 = vmax.f32 %v7250, %v7254
      %v7256 = vsel %vm274, %v7199, -inf
      %v7257 = vmax.f32 %v7251, %v7256
      %v7258 = vsel %vm274, %v7204, -inf
      %v7259 = vmax.f32 %v7252, %v7258
      %v7260 = vsel %vm274, %v7207, -inf
      %v7261 = vmax.f32 %v7253, %v7260
      %v7262 = vmax.f32 %v7255, %v7257
      %v7263 = vmax.f32 %v7259, %v7261
      %v7264 = vmax.f32 %v7262, %v7263
      %v7265 = vrot.slane %v7264, 4
      %v7266 = vmax.f32 %v7264, %v7265
      %v7267 = vrot.slane %v7266, 2
      %v7268 = vmax.f32 %v7266, %v7267
      %v7269 = vrot.slane %v7268, 1
      %v7270 = vmax.f32 %v7268, %v7269
      %v7271 = vsub.f32 %v7180, %v7270
      %v7272 = vsub.f32 %v7183, %v7270
      %v7273 = vsub.f32 %v7188, %v7270
      %v7274 = vsub.f32 %v7191, %v7270
      %v7275 = vsub.f32 %v7196, %v7270
      %v7276 = vsub.f32 %v7199, %v7270
      %v7277 = vsub.f32 %v7204, %v7270
      %v7278 = vsub.f32 %v7207, %v7270
      %v7279 = vmul.f32 %v7271, 1.442695
      %v7280 = vpow.pop %v7279
      %v7281 = vmul.f32 %v7272, 1.442695
      %v7282 = vpow.pop %v7281
      %v7283 = vmul.f32 %v7273, 1.442695
      %v7284 = vpow.pop %v7283
      %v7285 = vmul.f32 %v7274, 1.442695
      %v7286 = vpow.pop %v7285
      %v7287 = vmul.f32 %v7275, 1.442695
      %v7288 = vpow.pop %v7287
      %v7289 = vmul.f32 %v7276, 1.442695
      %v7290 = vpow.pop %v7289
      %v7291 = vmul.f32 %v7277, 1.442695
      %v7292 = vpow.pop %v7291
      %v7293 = vmul.f32 %v7278, 1.442695
      %v7294 = vpow.pop %v7293
      %v7295 = vsel %vm274, %v7280, 0.0
      %v7296 = vsel %vm274, %v7282, 0.0
      %v7297 = vadd.f32 %v7295, %v7296
      %v7298 = vsel %vm274, %v7284, 0.0
      %v7299 = vadd.f32 %v7297, %v7298
      %v7300 = vsel %vm274, %v7286, 0.0
      %v7301 = vadd.f32 %v7299, %v7300
      %v7302 = vsel %vm274, %v7288, 0.0
      %v7303 = vadd.f32 %v7301, %v7302
      %v7304 = vsel %vm274, %v7290, 0.0
      %v7305 = vadd.f32 %v7303, %v7304
      %v7306 = vsel %vm274, %v7292, 0.0
      %v7307 = vadd.f32 %v7305, %v7306
      %v7308 = vsel %vm274, %v7294, 0.0
      %v7309 = vadd.f32 %v7307, %v7308
      %v7310 = vrot.slane %v7309, 4
      %v7311 = vadd.f32 %v7309, %v7310
      %v7312 = vrot.slane %v7311, 2
      %v7313 = vadd.f32 %v7311, %v7312
      %v7314 = vrot.slane %v7313, 1
      %v7315 = vadd.f32 %v7313, %v7314
      %v7316 = vrcp.pop %v7315
      %v7317 = vmul.f32 %v7280, %v7316
      %v7318 = vmul.f32 %v7282, %v7316
      %v7319 = vmul.f32 %v7284, %v7316
      %v7320 = vmul.f32 %v7286, %v7316
      %v7321 = vmul.f32 %v7288, %v7316
      %v7322 = vmul.f32 %v7290, %v7316
      %v7323 = vmul.f32 %v7292, %v7316
      %v7324 = vmul.f32 %v7294, %v7316
      %7325 = vst.msk [vmem:[%s231] sm:$0xff] %vm274, %v7317
      %7326 = vst.msk [vmem:[%s231 + $0x8] sm:$0xff] %vm274, %v7318
      %7327 = vst.msk [vmem:[%s231 + $0x10] sm:$0xff] %vm274, %v7319
      %7328 = vst.msk [vmem:[%s231 + $0x18] sm:$0xff] %vm274, %v7320
      %7329 = vst.msk [vmem:[%s231 + $0x20] sm:$0xff] %vm274, %v7321
      %7330 = vst.msk [vmem:[%s231 + $0x28] sm:$0xff] %vm274, %v7322
      %7331 = vst.msk [vmem:[%s231 + $0x30] sm:$0xff] %vm274, %v7323
      %7332 = vst.msk [vmem:[%s231 + $0x38] sm:$0xff] %vm274, %v7324
      %v7333 = vmul.f32 %v7212, 0.5
      %v7334 = vtanh.pop %v7333
      %v7335 = vadd.f32 %v7334, 1.0
      %v7336 = vmul.f32 %v7335, 0.5
      %vm7337 = vcmask 122880
      %7338 = vst.msk [vmem:[%s231 + $0x40] sm:$0x1] %vm7337, %v7336
      %v7339 = vsel %vm274, %v7215, -inf
      %v7340 = vsel %vm274, %v7220, -inf
      %v7341 = vsel %vm274, %v7223, -inf
      %v7342 = vsel %vm274, %v7228, -inf
      %v7343 = vsel %vm274, %v7231, -inf
      %v7344 = vmax.f32 %v7339, %v7343
      %v7345 = vsel %vm274, %v7236, -inf
      %v7346 = vmax.f32 %v7340, %v7345
      %v7347 = vsel %vm274, %v7239, -inf
      %v7348 = vmax.f32 %v7341, %v7347
      %v7349 = vsel %vm274, %v7244, -inf
      %v7350 = vmax.f32 %v7342, %v7349
      %v7351 = vmax.f32 %v7344, %v7346
      %v7352 = vmax.f32 %v7348, %v7350
      %v7353 = vmax.f32 %v7351, %v7352
      %v7354 = vrot.slane %v7353, 4
      %v7355 = vmax.f32 %v7353, %v7354
      %v7356 = vrot.slane %v7355, 2
      %v7357 = vmax.f32 %v7355, %v7356
      %v7358 = vrot.slane %v7357, 1
      %v7359 = vmax.f32 %v7357, %v7358
      %v7360 = vsub.f32 %v7215, %v7359
      %v7361 = vsub.f32 %v7220, %v7359
      %v7362 = vsub.f32 %v7223, %v7359
      %v7363 = vsub.f32 %v7228, %v7359
      %v7364 = vsub.f32 %v7231, %v7359
      %v7365 = vsub.f32 %v7236, %v7359
      %v7366 = vsub.f32 %v7239, %v7359
      %v7367 = vsub.f32 %v7244, %v7359
      %v7368 = vmul.f32 %v7360, 1.442695
      %v7369 = vpow.pop %v7368
      %v7370 = vmul.f32 %v7361, 1.442695
      %v7371 = vpow.pop %v7370
      %v7372 = vmul.f32 %v7362, 1.442695
      %v7373 = vpow.pop %v7372
      %v7374 = vmul.f32 %v7363, 1.442695
      %v7375 = vpow.pop %v7374
      %v7376 = vmul.f32 %v7364, 1.442695
      %v7377 = vpow.pop %v7376
      %v7378 = vmul.f32 %v7365, 1.442695
      %v7379 = vpow.pop %v7378
      %v7380 = vmul.f32 %v7366, 1.442695
      %v7381 = vpow.pop %v7380
      %v7382 = vmul.f32 %v7367, 1.442695
      %v7383 = vpow.pop %v7382
      %v7384 = vsel %vm274, %v7369, 0.0
      %v7385 = vsel %vm274, %v7371, 0.0
      %v7386 = vadd.f32 %v7384, %v7385
      %v7387 = vsel %vm274, %v7373, 0.0
      %v7388 = vadd.f32 %v7386, %v7387
      %v7389 = vsel %vm274, %v7375, 0.0
      %v7390 = vadd.f32 %v7388, %v7389
      %v7391 = vsel %vm274, %v7377, 0.0
      %v7392 = vadd.f32 %v7390, %v7391
      %v7393 = vsel %vm274, %v7379, 0.0
      %v7394 = vadd.f32 %v7392, %v7393
      %v7395 = vsel %vm274, %v7381, 0.0
      %v7396 = vadd.f32 %v7394, %v7395
      %v7397 = vsel %vm274, %v7383, 0.0
      %v7398 = vadd.f32 %v7396, %v7397
      %v7399 = vrot.slane %v7398, 4
      %v7400 = vadd.f32 %v7398, %v7399
      %v7401 = vrot.slane %v7400, 2
      %v7402 = vadd.f32 %v7400, %v7401
      %v7403 = vrot.slane %v7402, 1
      %v7404 = vadd.f32 %v7402, %v7403
      %v7405 = vrcp.pop %v7404
      %v7406 = vmul.f32 %v7369, %v7405
      %v7407 = vmul.f32 %v7371, %v7405
      %v7408 = vmul.f32 %v7373, %v7405
      %v7409 = vmul.f32 %v7375, %v7405
      %v7410 = vmul.f32 %v7377, %v7405
      %v7411 = vmul.f32 %v7379, %v7405
      %v7412 = vmul.f32 %v7381, %v7405
      %v7413 = vmul.f32 %v7383, %v7405
      %s7414 = scalar_lea.vmem %s231, 72
      %7415 = vst.msk [vmem:[%s7414] sm:$0xff] %vm274, %v7406
      %7416 = vst.msk [vmem:[%s7414 + $0x8] sm:$0xff] %vm274, %v7407
      %7417 = vst.msk [vmem:[%s7414 + $0x10] sm:$0xff] %vm274, %v7408
      %7418 = vst.msk [vmem:[%s7414 + $0x18] sm:$0xff] %vm274, %v7409
      %7419 = vst.msk [vmem:[%s7414 + $0x20] sm:$0xff] %vm274, %v7410
      %7420 = vst.msk [vmem:[%s7414 + $0x28] sm:$0xff] %vm274, %v7411
      %7421 = vst.msk [vmem:[%s7414 + $0x30] sm:$0xff] %vm274, %v7412
      %7422 = vst.msk [vmem:[%s7414 + $0x38] sm:$0xff] %vm274, %v7413
      %v7423 = vmul.f32 %v7247, 0.5
      %v7424 = vtanh.pop %v7423
      %v7425 = vadd.f32 %v7424, 1.0
      %v7426 = vmul.f32 %v7425, 0.5
      %7427 = vst.msk [vmem:[%s7414 + $0x40] sm:$0x1] %vm7337, %v7426
      %s7428 = smul.u32 2, %s16
      %p7429 = scmp.lt.s32.totalorder %s7428, 3
      %s7430 = scalar_select %p7429, %s7428, 3
      %s7431 = smul.addr %s7430, 9
      %s7432 = smul.addr %s7431, 8
      %s7433 = scalar_lea.vmem %s5, %s7432
      // Predicated region
      $region41: #{tf_encoder_forward.1} parent=39 // pred_check
        %p7434 = pneg %p144
      $region42: #{tf_encoder_forward.1} parent=39 // pred_check_branch
        %7436 = sbr.rel (%p7434) target = $region44
      $region43: #{tf_encoder_forward.1} parent=39 // pred_region
        %s7437 = smul.u32 2, %s16
      $region44: #{tf_encoder_forward.1} parent=39 // pred_fallthru
        _
    $region40: #{tf_encoder_forward.1} parent=5 // pred_fallthru
      _
    %p7438 = scmp.le.s32.totalorder 2, %s11
    // Predicated region
    $region45: #{tf_encoder_forward.1} parent=5 // pred_check
      %p7439 = pneg %p7438
    $region46: #{tf_encoder_forward.1} parent=5 // pred_check_branch
      %7441 = sbr.rel (%p7439) target = $region48
    $region47: #{tf_encoder_forward.1} parent=5 // pred_region
      %s7442 = ssub.s32 %s11, 2
      // Predicated region
      $region49: #{tf_encoder_forward.1} parent=47 // pred_check
        %p7443 = pneg %p150
      $region50: #{tf_encoder_forward.1} parent=47 // pred_check_branch
        %7445 = sbr.rel (%p7443) target = $region52
      $region51: #{tf_encoder_forward.1} parent=47 // pred_region
        %s7446 = smul.u32 2, %s17
        %p7447 = scmp.lt.s32.totalorder %s7446, 3
        %s7448 = scalar_select %p7447, %s7446, 3
        %s7449 = smul.addr %s7448, 9
        %s7450 = smul.addr %s7449, 8
        %s7451 = scalar_lea.vmem %s5, %s7450
      $region52: #{tf_encoder_forward.1} parent=47 // pred_fallthru
        _
    $region48: #{tf_encoder_forward.1} parent=5 // pred_fallthru
      _
  $region6: #{tf_encoder_forward.1} parent=0 // loop_footer
    %s15 = sadd.s32 1, %s11
  $region7: #{tf_encoder_forward.1} parent=0 // loop_footer_branch
    %10 = sbr.rel target = $region3
  $region8: #{tf_encoder_forward.1} parent=0 // loop_exit
    _

</llo_original>
